<compile_context>
chip_gen: v7x
topology: tpu7x:2x2x1
jax: 0.10.0
libtpu: 0.0.40
codegen_flags: <defaults>
</compile_context>

<pallas_src>
import jax
import jax.numpy as jnp
from jax import lax
from jax.experimental import pallas as pl
from jax.experimental.pallas import tpu as pltpu


# ----------------------------------------------------------------------------
# One fused kernel: encoder recurrence + full autoregressive decode loop.
# ----------------------------------------------------------------------------
def _seq2seq_kernel(tf_ref, src_emb_ref, trg_emb_ref,
                    enc_w_ref, enc_b_ref,
                    dec_emb_ref, dec_wg_ref, dec_bg_ref,
                    dec_wfc_ref, dec_bfc_ref,
                    out_ref,
                    enc_scr, greedy_scr):
    S, B, E = src_emb_ref.shape
    T = out_ref.shape[0]
    V = out_ref.shape[-1]
    H = enc_scr.shape[-1]
    n_steps = T - 1

    f32 = jnp.float32
    bf16 = jnp.bfloat16

    # ---------------- Encoder: single-layer LSTM over the source ------------
    w_x = enc_w_ref[0:E, :]              # (E, 4H) bf16
    w_h = enc_w_ref[E:E + H, :]          # (H, 4H) bf16
    b_e = enc_b_ref[...]                 # (1, 4H) f32

    h = jnp.zeros((B, H), f32)
    c = jnp.zeros((B, H), f32)
    for t in range(S):
        x = src_emb_ref[t]               # (B, E) f32
        gates = (jnp.dot(x.astype(bf16), w_x, preferred_element_type=f32)
                 + jnp.dot(h.astype(bf16), w_h, preferred_element_type=f32)
                 + b_e)                  # (B, 4H) f32
        i_g = jax.nn.sigmoid(gates[:, 0 * H:1 * H])
        f_g = jax.nn.sigmoid(gates[:, 1 * H:2 * H])
        g_g = jnp.tanh(gates[:, 2 * H:3 * H])
        o_g = jax.nn.sigmoid(gates[:, 3 * H:4 * H])
        c = f_g * c + i_g * g_g
        h = o_g * jnp.tanh(c)
        enc_scr[t] = h                   # time-major encoder outputs (S,B,H)

    enc = enc_scr[...]                   # (S, B, H) f32, no transpose needed

    # ---------------- Decoder weight views (no activation concats) ----------
    wg_e = dec_wg_ref[0:E, :]                    # (E, 4H) bf16
    wg_c = dec_wg_ref[E:E + H, :]                # (H, 4H) bf16
    wg_h = dec_wg_ref[E + H:E + 2 * H, :]        # (H, 4H) bf16
    b_g = dec_bg_ref[...]                        # (1, 4H) f32
    wf_h = dec_wfc_ref[0:H, :]                   # (H, V) bf16
    wf_c = dec_wfc_ref[H:2 * H, :]               # (H, V) bf16
    wf_e = dec_wfc_ref[2 * H:2 * H + E, :]       # (E, V) bf16
    b_f = dec_bfc_ref[...]                       # (1, V) f32
    dec_emb = dec_emb_ref[...]                   # (V, E) bf16

    out_ref[0] = jnp.zeros((B, V), f32)          # outputs[0] stays zero
    greedy_scr[...] = jnp.zeros_like(greedy_scr)

    # ---------------- Autoregressive decode: step j emits outputs[j+1] ------
    for j in range(n_steps):
        # Input embedding: teacher forcing vs previous greedy (argmax) token.
        if j == 0:
            emb = trg_emb_ref[0]                               # always trg[0]
        else:
            tf_f = (tf_ref[j] != 0).astype(f32)                # SMEM scalar
            emb = tf_f * trg_emb_ref[j] + (1.0 - tf_f) * greedy_scr[...]
        emb_bf = emb.astype(bf16)

        # Dot-product attention over encoder outputs — VPU mul + reduces,
        # keepdims shapes throughout (no relayouts, no degenerate matmuls).
        scores = jnp.sum(enc * h[None, :, :], axis=-1, keepdims=True)  # (S,B,1)
        m = jnp.max(scores, axis=0, keepdims=True)                     # (1,B,1)
        e = jnp.exp(scores - m)
        denom = jnp.sum(e, axis=0, keepdims=True)                      # (1,B,1)
        attn = e * pl.reciprocal(denom, approx=True)                   # (S,B,1)
        ctx = jnp.sum(attn * enc, axis=0)                              # (B,H)
        ctx_bf = ctx.astype(bf16)

        # LSTM cell on [emb ; ctx ; h] — three accumulated bf16 MXU pushes.
        gates = (jnp.dot(emb_bf, wg_e, preferred_element_type=f32)
                 + jnp.dot(ctx_bf, wg_c, preferred_element_type=f32)
                 + jnp.dot(h.astype(bf16), wg_h, preferred_element_type=f32)
                 + b_g)                                                # (B,4H)
        i_g = jax.nn.sigmoid(gates[:, 0 * H:1 * H])
        f_g = jax.nn.sigmoid(gates[:, 1 * H:2 * H])
        g_g = jnp.tanh(gates[:, 2 * H:3 * H])
        o_g = jax.nn.sigmoid(gates[:, 3 * H:4 * H])
        c = f_g * c + i_g * g_g
        h = o_g * jnp.tanh(c)

        # Vocab projection on [h_new ; ctx ; emb].
        logits = (jnp.dot(h.astype(bf16), wf_h, preferred_element_type=f32)
                  + jnp.dot(ctx_bf, wf_c, preferred_element_type=f32)
                  + jnp.dot(emb_bf, wf_e, preferred_element_type=f32)
                  + b_f)                                               # (B,V)
        out_ref[j + 1] = logits

        # Greedy re-embedding for step j+1, computed only when it will be
        # consumed (next step exists and is not teacher-forced).
        if j + 1 < n_steps:
            @pl.when(tf_ref[j + 1] == 0)
            def _(logits=logits):
                iota = lax.broadcasted_iota(jnp.int32, logits.shape, 1)
                mx = jnp.max(logits, axis=-1, keepdims=True)
                idx = jnp.min(jnp.where(logits >= mx, iota, V),
                              axis=-1, keepdims=True)
                onehot = (iota == idx).astype(f32)                     # (B,V)
                greedy_scr[...] = jnp.dot(onehot.astype(bf16), dec_emb,
                                          preferred_element_type=f32)


def run_seq2seq(tf_flags, src_emb, trg_emb, p):
    S, B, E = src_emb.shape
    T = trg_emb.shape[0]
    H = p["dec_b_g"].shape[-1] // 4
    V = p["dec_b_fc"].shape[-1]
    vmem = lambda: pl.BlockSpec(memory_space=pltpu.MemorySpace.VMEM)
    return pl.pallas_call(
        _seq2seq_kernel,
        out_shape=jax.ShapeDtypeStruct((T, B, V), jnp.float32),
        in_specs=[pl.BlockSpec(memory_space=pltpu.MemorySpace.SMEM),  # tf flags
                  vmem(), vmem(),                                     # embeddings
                  vmem(), vmem(),                                     # encoder W, b
                  vmem(), vmem(), vmem(), vmem(), vmem()],            # decoder params
        out_specs=pl.BlockSpec(memory_space=pltpu.MemorySpace.VMEM),
        scratch_shapes=[pltpu.VMEM((S, B, H), jnp.float32),   # encoder outputs
                        pltpu.VMEM((B, E), jnp.float32)],     # greedy embedding
    )(tf_flags, src_emb, trg_emb,
      p["enc_w"], p["enc_b"],
      p["dec_emb_bf16"], p["dec_w_g"], p["dec_b_g"],
      p["dec_w_fc"], p["dec_b_fc"])


# ----------------------------------------------------------------------------
# Seq2Seq forward — mirrors the PyTorch module's control flow, fully jittable.
# ----------------------------------------------------------------------------
@jax.jit
def seq2seq_forward(params, src, trg, tf_key, teacher_forcing_ratio):
    max_len, batch = trg.shape
    # Teacher-forcing coin flips, precomputed once (deterministic jax.random
    # stand-in for the reference's per-step random.random()); flag[0] unused.
    tf_flags = (jax.random.uniform(tf_key, (max_len,)) <
                teacher_forcing_ratio).astype(jnp.int32)

    src_emb = jnp.take(params["enc_emb"], src, axis=0)        # (S, B, E) f32
    trg_emb = jnp.take(params["dec_emb"], trg, axis=0)        # (T, B, E) f32
    return run_seq2seq(tf_flags, src_emb, trg_emb, params)    # (T, B, V)


# ----------------------------------------------------------------------------
# Deterministic parameter construction (weights pre-packed for the fused kernel,
# big matrices stored bf16 for the MXU; biases / tables used for gathers in f32).
# ----------------------------------------------------------------------------
def init_params(key, src_vocab, trg_vocab, emb_dim, hid_dim):
    ks = jax.random.split(key, 8)
    s = 0.1
    n = lambda k, shp: jax.random.normal(k, shp, jnp.float32) * s
    dec_emb = n(ks[3], (trg_vocab, emb_dim))
    return {
        # encoder: gates = x @ W[:E] + h @ W[E:] + b
        "enc_emb": n(ks[0], (src_vocab, emb_dim)),
        "enc_w":   n(ks[1], (emb_dim + hid_dim, 4 * hid_dim)).astype(jnp.bfloat16),
        "enc_b":   n(ks[2], (1, 4 * hid_dim)),
        # decoder: gates  = emb @ Wg[:E] + ctx @ Wg[E:E+H] + h @ Wg[E+H:]
        #          logits = h   @ Wf[:H] + ctx @ Wf[H:2H]  + emb @ Wf[2H:]
        "dec_emb":      dec_emb,
        "dec_emb_bf16": dec_emb.astype(jnp.bfloat16),
        "dec_w_g":  n(ks[4], (emb_dim + 2 * hid_dim, 4 * hid_dim)).astype(jnp.bfloat16),
        "dec_b_g":  n(ks[5], (1, 4 * hid_dim)),
        "dec_w_fc": n(ks[6], (2 * hid_dim + emb_dim, trg_vocab)).astype(jnp.bfloat16),
        "dec_b_fc": jnp.zeros((1, trg_vocab), jnp.float32),
    }


if __name__ == "__main__":
    # Hardware-friendly small shapes: B multiple of 8, feature dims multiples of 128.
    SRC_LEN, TRG_LEN, BATCH = 8, 8, 8
    SRC_VOCAB, TRG_VOCAB = 128, 256
    EMB, HID = 128, 128

    root = jax.random.PRNGKey(0)
    k_par, k_src, k_trg, k_tf = jax.random.split(root, 4)

    params = init_params(k_par, SRC_VOCAB, TRG_VOCAB, EMB, HID)
    src = jax.random.randint(k_src, (SRC_LEN, BATCH), 0, SRC_VOCAB, jnp.int32)
    trg = jax.random.randint(k_trg, (TRG_LEN, BATCH), 0, TRG_VOCAB, jnp.int32)

    out = seq2seq_forward(params, src, trg, k_tf, 0.5)
    out = jax.block_until_ready(out)

    assert out.shape == (TRG_LEN, BATCH, TRG_VOCAB)
    assert bool(jnp.all(jnp.isfinite(out)))
    assert bool(jnp.all(out[0] == 0.0))   # outputs[0] is zero, like the reference
    # TODO(synk): encoder/decoder submodules are not defined in the reference
    # file; the canonical LSTM + dot-attention pair is instantiated here, and
    # random.random() teacher forcing is replaced by a precomputed jax.random mask.
    print("KERNEL_OK")
</pallas_src>

<mosaic_0001>
module attributes {stable_mosaic.version = 11 : i64} {
  func.func @_seq2seq_kernel(%arg0: memref<8xi32, #tpu.memory_space<smem>>, %arg1: memref<8x8x128xf32, #tpu.memory_space<vmem>>, %arg2: memref<8x8x128xf32, #tpu.memory_space<vmem>>, %arg3: memref<256x512xbf16, #tpu.memory_space<vmem>>, %arg4: memref<1x512xf32, #tpu.memory_space<vmem>>, %arg5: memref<256x128xbf16, #tpu.memory_space<vmem>>, %arg6: memref<384x512xbf16, #tpu.memory_space<vmem>>, %arg7: memref<1x512xf32, #tpu.memory_space<vmem>>, %arg8: memref<384x256xbf16, #tpu.memory_space<vmem>>, %arg9: memref<1x256xf32, #tpu.memory_space<vmem>>, %arg10: memref<8x8x256xf32, #tpu.memory_space<vmem>>, %arg11: memref<8x8x128xf32, #tpu.memory_space<vmem>>, %arg12: memref<8x128xf32, #tpu.memory_space<vmem>>) attributes {dimension_semantics = [], scalar_prefetch = 0 : i64, scratch_operands = 2 : i64, tpu.core_type = #tpu.core_type<tc>} {
    %c0 = arith.constant 0 : index
    %c0_0 = arith.constant 0 : index
    %0 = vector.load %arg3[%c0, %c0_0] : memref<256x512xbf16, #tpu.memory_space<vmem>>, vector<128x512xbf16>
    %c128 = arith.constant 128 : index
    %c0_1 = arith.constant 0 : index
    %1 = vector.load %arg3[%c128, %c0_1] : memref<256x512xbf16, #tpu.memory_space<vmem>>, vector<128x512xbf16>
    %c0_2 = arith.constant 0 : index
    %c0_3 = arith.constant 0 : index
    %2 = vector.load %arg4[%c0_2, %c0_3] : memref<1x512xf32, #tpu.memory_space<vmem>>, vector<1x512xf32>
    %cst = arith.constant 0.000000e+00 : f32
    %3 = vector.broadcast %cst : f32 to vector<8x128xf32>
    %cst_4 = arith.constant 0.000000e+00 : f32
    %4 = vector.broadcast %cst_4 : f32 to vector<8x128xf32>
    %c0_5 = arith.constant 0 : index
    %c0_6 = arith.constant 0 : index
    %c0_7 = arith.constant 0 : index
    %5 = vector.load %arg1[%c0_5, %c0_6, %c0_7] : memref<8x8x128xf32, #tpu.memory_space<vmem>>, vector<1x8x128xf32>
    %6 = vector.shape_cast %5 : vector<1x8x128xf32> to vector<8x128xf32>
    %7 = arith.truncf %6 : vector<8x128xf32> to vector<8x128xbf16>
    %cst_8 = arith.constant dense<0.000000e+00> : vector<8x512xf32>
    %8 = tpu.matmul %7, %0, %cst_8 {dimension_numbers = #tpu.dot_dimension_numbers<[1], [0], [0], [1], [0, 0, 1, 1], [], []>} : vector<8x128xbf16>, vector<128x512xbf16>, vector<8x512xf32> -> vector<8x512xf32>
    %9 = arith.truncf %3 : vector<8x128xf32> to vector<8x128xbf16>
    %cst_9 = arith.constant dense<0.000000e+00> : vector<8x512xf32>
    %10 = tpu.matmul %9, %1, %cst_9 {dimension_numbers = #tpu.dot_dimension_numbers<[1], [0], [0], [1], [0, 0, 1, 1], [], []>} : vector<8x128xbf16>, vector<128x512xbf16>, vector<8x512xf32> -> vector<8x512xf32>
    %11 = arith.addf %8, %10 : vector<8x512xf32>
    %12 = vector.broadcast %2 : vector<1x512xf32> to vector<8x512xf32>
    %13 = arith.addf %11, %12 : vector<8x512xf32>
    %14 = vector.extract_strided_slice %13 {offsets = [0, 0], sizes = [8, 128], strides = [1, 1]} : vector<8x512xf32> to vector<8x128xf32>
    %15 = arith.negf %14 : vector<8x128xf32>
    %16 = math.exp %15 : vector<8x128xf32>
    %cst_10 = arith.constant 1.000000e+00 : f32
    %17 = vector.broadcast %cst_10 : f32 to vector<8x128xf32>
    %18 = arith.addf %17, %16 : vector<8x128xf32>
    %19 = arith.divf %17, %18 : vector<8x128xf32>
    %20 = vector.extract_strided_slice %13 {offsets = [0, 128], sizes = [8, 128], strides = [1, 1]} : vector<8x512xf32> to vector<8x128xf32>
    %21 = arith.negf %20 : vector<8x128xf32>
    %22 = math.exp %21 : vector<8x128xf32>
    %cst_11 = arith.constant 1.000000e+00 : f32
    %23 = vector.broadcast %cst_11 : f32 to vector<8x128xf32>
    %24 = arith.addf %23, %22 : vector<8x128xf32>
    %25 = arith.divf %23, %24 : vector<8x128xf32>
    %26 = vector.extract_strided_slice %13 {offsets = [0, 256], sizes = [8, 128], strides = [1, 1]} : vector<8x512xf32> to vector<8x128xf32>
    %27 = math.tanh %26 : vector<8x128xf32>
    %28 = vector.extract_strided_slice %13 {offsets = [0, 384], sizes = [8, 128], strides = [1, 1]} : vector<8x512xf32> to vector<8x128xf32>
    %29 = arith.negf %28 : vector<8x128xf32>
    %30 = math.exp %29 : vector<8x128xf32>
    %cst_12 = arith.constant 1.000000e+00 : f32
    %31 = vector.broadcast %cst_12 : f32 to vector<8x128xf32>
    %32 = arith.addf %31, %30 : vector<8x128xf32>
    %33 = arith.divf %31, %32 : vector<8x128xf32>
    %34 = arith.mulf %25, %4 : vector<8x128xf32>
    %35 = arith.mulf %19, %27 : vector<8x128xf32>
    %36 = arith.addf %34, %35 : vector<8x128xf32>
    %37 = math.tanh %36 : vector<8x128xf32>
    %38 = arith.mulf %33, %37 : vector<8x128xf32>
    %c0_13 = arith.constant 0 : index
    %c0_14 = arith.constant 0 : index
    %c0_15 = arith.constant 0 : index
    %39 = vector.load %arg11[%c0_13, %c0_14, %c0_15] : memref<8x8x128xf32, #tpu.memory_space<vmem>>, vector<1x8x128xf32>
    %40 = vector.shape_cast %39 : vector<1x8x128xf32> to vector<8x128xf32>
    %41 = vector.shape_cast %38 : vector<8x128xf32> to vector<1x8x128xf32>
    tpu.vector_store %arg11[%c0_13, %c0_14, %c0_15], %41 {strides = array<i32>} : memref<8x8x128xf32, #tpu.memory_space<vmem>>, vector<1x8x128xf32>,
    %c1 = arith.constant 1 : index
    %c0_16 = arith.constant 0 : index
    %c0_17 = arith.constant 0 : index
    %42 = vector.load %arg1[%c1, %c0_16, %c0_17] : memref<8x8x128xf32, #tpu.memory_space<vmem>>, vector<1x8x128xf32>
    %43 = vector.shape_cast %42 : vector<1x8x128xf32> to vector<8x128xf32>
    %44 = arith.truncf %43 : vector<8x128xf32> to vector<8x128xbf16>
    %cst_18 = arith.constant dense<0.000000e+00> : vector<8x512xf32>
    %45 = tpu.matmul %44, %0, %cst_18 {dimension_numbers = #tpu.dot_dimension_numbers<[1], [0], [0], [1], [0, 0, 1, 1], [], []>} : vector<8x128xbf16>, vector<128x512xbf16>, vector<8x512xf32> -> vector<8x512xf32>
    %46 = arith.truncf %38 : vector<8x128xf32> to vector<8x128xbf16>
    %cst_19 = arith.constant dense<0.000000e+00> : vector<8x512xf32>
    %47 = tpu.matmul %46, %1, %cst_19 {dimension_numbers = #tpu.dot_dimension_numbers<[1], [0], [0], [1], [0, 0, 1, 1], [], []>} : vector<8x128xbf16>, vector<128x512xbf16>, vector<8x512xf32> -> vector<8x512xf32>
    %48 = arith.addf %45, %47 : vector<8x512xf32>
    %49 = vector.broadcast %2 : vector<1x512xf32> to vector<8x512xf32>
    %50 = arith.addf %48, %49 : vector<8x512xf32>
    %51 = vector.extract_strided_slice %50 {offsets = [0, 0], sizes = [8, 128], strides = [1, 1]} : vector<8x512xf32> to vector<8x128xf32>
    %52 = arith.negf %51 : vector<8x128xf32>
    %53 = math.exp %52 : vector<8x128xf32>
    %cst_20 = arith.constant 1.000000e+00 : f32
    %54 = vector.broadcast %cst_20 : f32 to vector<8x128xf32>
    %55 = arith.addf %54, %53 : vector<8x128xf32>
    %56 = arith.divf %54, %55 : vector<8x128xf32>
    %57 = vector.extract_strided_slice %50 {offsets = [0, 128], sizes = [8, 128], strides = [1, 1]} : vector<8x512xf32> to vector<8x128xf32>
    %58 = arith.negf %57 : vector<8x128xf32>
    %59 = math.exp %58 : vector<8x128xf32>
    %cst_21 = arith.constant 1.000000e+00 : f32
    %60 = vector.broadcast %cst_21 : f32 to vector<8x128xf32>
    %61 = arith.addf %60, %59 : vector<8x128xf32>
    %62 = arith.divf %60, %61 : vector<8x128xf32>
    %63 = vector.extract_strided_slice %50 {offsets = [0, 256], sizes = [8, 128], strides = [1, 1]} : vector<8x512xf32> to vector<8x128xf32>
    %64 = math.tanh %63 : vector<8x128xf32>
    %65 = vector.extract_strided_slice %50 {offsets = [0, 384], sizes = [8, 128], strides = [1, 1]} : vector<8x512xf32> to vector<8x128xf32>
    %66 = arith.negf %65 : vector<8x128xf32>
    %67 = math.exp %66 : vector<8x128xf32>
    %cst_22 = arith.constant 1.000000e+00 : f32
    %68 = vector.broadcast %cst_22 : f32 to vector<8x128xf32>
    %69 = arith.addf %68, %67 : vector<8x128xf32>
    %70 = arith.divf %68, %69 : vector<8x128xf32>
    %71 = arith.mulf %62, %36 : vector<8x128xf32>
    %72 = arith.mulf %56, %64 : vector<8x128xf32>
    %73 = arith.addf %71, %72 : vector<8x128xf32>
    %74 = math.tanh %73 : vector<8x128xf32>
    %75 = arith.mulf %70, %74 : vector<8x128xf32>
    %c1_23 = arith.constant 1 : index
    %c0_24 = arith.constant 0 : index
    %c0_25 = arith.constant 0 : index
    %76 = vector.load %arg11[%c1_23, %c0_24, %c0_25] : memref<8x8x128xf32, #tpu.memory_space<vmem>>, vector<1x8x128xf32>
    %77 = vector.shape_cast %76 : vector<1x8x128xf32> to vector<8x128xf32>
    %78 = vector.shape_cast %75 : vector<8x128xf32> to vector<1x8x128xf32>
    tpu.vector_store %arg11[%c1_23, %c0_24, %c0_25], %78 {strides = array<i32>} : memref<8x8x128xf32, #tpu.memory_space<vmem>>, vector<1x8x128xf32>,
    %c2 = arith.constant 2 : index
    %c0_26 = arith.constant 0 : index
    %c0_27 = arith.constant 0 : index
    %79 = vector.load %arg1[%c2, %c0_26, %c0_27] : memref<8x8x128xf32, #tpu.memory_space<vmem>>, vector<1x8x128xf32>
    %80 = vector.shape_cast %79 : vector<1x8x128xf32> to vector<8x128xf32>
    %81 = arith.truncf %80 : vector<8x128xf32> to vector<8x128xbf16>
    %cst_28 = arith.constant dense<0.000000e+00> : vector<8x512xf32>
    %82 = tpu.matmul %81, %0, %cst_28 {dimension_numbers = #tpu.dot_dimension_numbers<[1], [0], [0], [1], [0, 0, 1, 1], [], []>} : vector<8x128xbf16>, vector<128x512xbf16>, vector<8x512xf32> -> vector<8x512xf32>
    %83 = arith.truncf %75 : vector<8x128xf32> to vector<8x128xbf16>
    %cst_29 = arith.constant dense<0.000000e+00> : vector<8x512xf32>
    %84 = tpu.matmul %83, %1, %cst_29 {dimension_numbers = #tpu.dot_dimension_numbers<[1], [0], [0], [1], [0, 0, 1, 1], [], []>} : vector<8x128xbf16>, vector<128x512xbf16>, vector<8x512xf32> -> vector<8x512xf32>
    %85 = arith.addf %82, %84 : vector<8x512xf32>
    %86 = vector.broadcast %2 : vector<1x512xf32> to vector<8x512xf32>
    %87 = arith.addf %85, %86 : vector<8x512xf32>
    %88 = vector.extract_strided_slice %87 {offsets = [0, 0], sizes = [8, 128], strides = [1, 1]} : vector<8x512xf32> to vector<8x128xf32>
    %89 = arith.negf %88 : vector<8x128xf32>
    %90 = math.exp %89 : vector<8x128xf32>
    %cst_30 = arith.constant 1.000000e+00 : f32
    %91 = vector.broadcast %cst_30 : f32 to vector<8x128xf32>
    %92 = arith.addf %91, %90 : vector<8x128xf32>
    %93 = arith.divf %91, %92 : vector<8x128xf32>
    %94 = vector.extract_strided_slice %87 {offsets = [0, 128], sizes = [8, 128], strides = [1, 1]} : vector<8x512xf32> to vector<8x128xf32>
    %95 = arith.negf %94 : vector<8x128xf32>
    %96 = math.exp %95 : vector<8x128xf32>
    %cst_31 = arith.constant 1.000000e+00 : f32
    %97 = vector.broadcast %cst_31 : f32 to vector<8x128xf32>
    %98 = arith.addf %97, %96 : vector<8x128xf32>
    %99 = arith.divf %97, %98 : vector<8x128xf32>
    %100 = vector.extract_strided_slice %87 {offsets = [0, 256], sizes = [8, 128], strides = [1, 1]} : vector<8x512xf32> to vector<8x128xf32>
    %101 = math.tanh %100 : vector<8x128xf32>
    %102 = vector.extract_strided_slice %87 {offsets = [0, 384], sizes = [8, 128], strides = [1, 1]} : vector<8x512xf32> to vector<8x128xf32>
    %103 = arith.negf %102 : vector<8x128xf32>
    %104 = math.exp %103 : vector<8x128xf32>
    %cst_32 = arith.constant 1.000000e+00 : f32
    %105 = vector.broadcast %cst_32 : f32 to vector<8x128xf32>
    %106 = arith.addf %105, %104 : vector<8x128xf32>
    %107 = arith.divf %105, %106 : vector<8x128xf32>
    %108 = arith.mulf %99, %73 : vector<8x128xf32>
    %109 = arith.mulf %93, %101 : vector<8x128xf32>
    %110 = arith.addf %108, %109 : vector<8x128xf32>
    %111 = math.tanh %110 : vector<8x128xf32>
    %112 = arith.mulf %107, %111 : vector<8x128xf32>
    %c2_33 = arith.constant 2 : index
    %c0_34 = arith.constant 0 : index
    %c0_35 = arith.constant 0 : index
    %113 = vector.load %arg11[%c2_33, %c0_34, %c0_35] : memref<8x8x128xf32, #tpu.memory_space<vmem>>, vector<1x8x128xf32>
    %114 = vector.shape_cast %113 : vector<1x8x128xf32> to vector<8x128xf32>
    %115 = vector.shape_cast %112 : vector<8x128xf32> to vector<1x8x128xf32>
    tpu.vector_store %arg11[%c2_33, %c0_34, %c0_35], %115 {strides = array<i32>} : memref<8x8x128xf32, #tpu.memory_space<vmem>>, vector<1x8x128xf32>,
    %c3 = arith.constant 3 : index
    %c0_36 = arith.constant 0 : index
    %c0_37 = arith.constant 0 : index
    %116 = vector.load %arg1[%c3, %c0_36, %c0_37] : memref<8x8x128xf32, #tpu.memory_space<vmem>>, vector<1x8x128xf32>
    %117 = vector.shape_cast %116 : vector<1x8x128xf32> to vector<8x128xf32>
    %118 = arith.truncf %117 : vector<8x128xf32> to vector<8x128xbf16>
    %cst_38 = arith.constant dense<0.000000e+00> : vector<8x512xf32>
    %119 = tpu.matmul %118, %0, %cst_38 {dimension_numbers = #tpu.dot_dimension_numbers<[1], [0], [0], [1], [0, 0, 1, 1], [], []>} : vector<8x128xbf16>, vector<128x512xbf16>, vector<8x512xf32> -> vector<8x512xf32>
    %120 = arith.truncf %112 : vector<8x128xf32> to vector<8x128xbf16>
    %cst_39 = arith.constant dense<0.000000e+00> : vector<8x512xf32>
    %121 = tpu.matmul %120, %1, %cst_39 {dimension_numbers = #tpu.dot_dimension_numbers<[1], [0], [0], [1], [0, 0, 1, 1], [], []>} : vector<8x128xbf16>, vector<128x512xbf16>, vector<8x512xf32> -> vector<8x512xf32>
    %122 = arith.addf %119, %121 : vector<8x512xf32>
    %123 = vector.broadcast %2 : vector<1x512xf32> to vector<8x512xf32>
    %124 = arith.addf %122, %123 : vector<8x512xf32>
    %125 = vector.extract_strided_slice %124 {offsets = [0, 0], sizes = [8, 128], strides = [1, 1]} : vector<8x512xf32> to vector<8x128xf32>
    %126 = arith.negf %125 : vector<8x128xf32>
    %127 = math.exp %126 : vector<8x128xf32>
    %cst_40 = arith.constant 1.000000e+00 : f32
    %128 = vector.broadcast %cst_40 : f32 to vector<8x128xf32>
    %129 = arith.addf %128, %127 : vector<8x128xf32>
    %130 = arith.divf %128, %129 : vector<8x128xf32>
    %131 = vector.extract_strided_slice %124 {offsets = [0, 128], sizes = [8, 128], strides = [1, 1]} : vector<8x512xf32> to vector<8x128xf32>
    %132 = arith.negf %131 : vector<8x128xf32>
    %133 = math.exp %132 : vector<8x128xf32>
    %cst_41 = arith.constant 1.000000e+00 : f32
    %134 = vector.broadcast %cst_41 : f32 to vector<8x128xf32>
    %135 = arith.addf %134, %133 : vector<8x128xf32>
    %136 = arith.divf %134, %135 : vector<8x128xf32>
    %137 = vector.extract_strided_slice %124 {offsets = [0, 256], sizes = [8, 128], strides = [1, 1]} : vector<8x512xf32> to vector<8x128xf32>
    %138 = math.tanh %137 : vector<8x128xf32>
    %139 = vector.extract_strided_slice %124 {offsets = [0, 384], sizes = [8, 128], strides = [1, 1]} : vector<8x512xf32> to vector<8x128xf32>
    %140 = arith.negf %139 : vector<8x128xf32>
    %141 = math.exp %140 : vector<8x128xf32>
    %cst_42 = arith.constant 1.000000e+00 : f32
    %142 = vector.broadcast %cst_42 : f32 to vector<8x128xf32>
    %143 = arith.addf %142, %141 : vector<8x128xf32>
    %144 = arith.divf %142, %143 : vector<8x128xf32>
    %145 = arith.mulf %136, %110 : vector<8x128xf32>
    %146 = arith.mulf %130, %138 : vector<8x128xf32>
    %147 = arith.addf %145, %146 : vector<8x128xf32>
    %148 = math.tanh %147 : vector<8x128xf32>
    %149 = arith.mulf %144, %148 : vector<8x128xf32>
    %c3_43 = arith.constant 3 : index
    %c0_44 = arith.constant 0 : index
    %c0_45 = arith.constant 0 : index
    %150 = vector.load %arg11[%c3_43, %c0_44, %c0_45] : memref<8x8x128xf32, #tpu.memory_space<vmem>>, vector<1x8x128xf32>
    %151 = vector.shape_cast %150 : vector<1x8x128xf32> to vector<8x128xf32>
    %152 = vector.shape_cast %149 : vector<8x128xf32> to vector<1x8x128xf32>
    tpu.vector_store %arg11[%c3_43, %c0_44, %c0_45], %152 {strides = array<i32>} : memref<8x8x128xf32, #tpu.memory_space<vmem>>, vector<1x8x128xf32>,
    %c4 = arith.constant 4 : index
    %c0_46 = arith.constant 0 : index
    %c0_47 = arith.constant 0 : index
    %153 = vector.load %arg1[%c4, %c0_46, %c0_47] : memref<8x8x128xf32, #tpu.memory_space<vmem>>, vector<1x8x128xf32>
    %154 = vector.shape_cast %153 : vector<1x8x128xf32> to vector<8x128xf32>
    %155 = arith.truncf %154 : vector<8x128xf32> to vector<8x128xbf16>
    %cst_48 = arith.constant dense<0.000000e+00> : vector<8x512xf32>
    %156 = tpu.matmul %155, %0, %cst_48 {dimension_numbers = #tpu.dot_dimension_numbers<[1], [0], [0], [1], [0, 0, 1, 1], [], []>} : vector<8x128xbf16>, vector<128x512xbf16>, vector<8x512xf32> -> vector<8x512xf32>
    %157 = arith.truncf %149 : vector<8x128xf32> to vector<8x128xbf16>
    %cst_49 = arith.constant dense<0.000000e+00> : vector<8x512xf32>
    %158 = tpu.matmul %157, %1, %cst_49 {dimension_numbers = #tpu.dot_dimension_numbers<[1], [0], [0], [1], [0, 0, 1, 1], [], []>} : vector<8x128xbf16>, vector<128x512xbf16>, vector<8x512xf32> -> vector<8x512xf32>
    %159 = arith.addf %156, %158 : vector<8x512xf32>
    %160 = vector.broadcast %2 : vector<1x512xf32> to vector<8x512xf32>
    %161 = arith.addf %159, %160 : vector<8x512xf32>
    %162 = vector.extract_strided_slice %161 {offsets = [0, 0], sizes = [8, 128], strides = [1, 1]} : vector<8x512xf32> to vector<8x128xf32>
    %163 = arith.negf %162 : vector<8x128xf32>
    %164 = math.exp %163 : vector<8x128xf32>
    %cst_50 = arith.constant 1.000000e+00 : f32
    %165 = vector.broadcast %cst_50 : f32 to vector<8x128xf32>
    %166 = arith.addf %165, %164 : vector<8x128xf32>
    %167 = arith.divf %165, %166 : vector<8x128xf32>
    %168 = vector.extract_strided_slice %161 {offsets = [0, 128], sizes = [8, 128], strides = [1, 1]} : vector<8x512xf32> to vector<8x128xf32>
    %169 = arith.negf %168 : vector<8x128xf32>
    %170 = math.exp %169 : vector<8x128xf32>
    %cst_51 = arith.constant 1.000000e+00 : f32
    %171 = vector.broadcast %cst_51 : f32 to vector<8x128xf32>
    %172 = arith.addf %171, %170 : vector<8x128xf32>
    %173 = arith.divf %171, %172 : vector<8x128xf32>
    %174 = vector.extract_strided_slice %161 {offsets = [0, 256], sizes = [8, 128], strides = [1, 1]} : vector<8x512xf32> to vector<8x128xf32>
    %175 = math.tanh %174 : vector<8x128xf32>
    %176 = vector.extract_strided_slice %161 {offsets = [0, 384], sizes = [8, 128], strides = [1, 1]} : vector<8x512xf32> to vector<8x128xf32>
    %177 = arith.negf %176 : vector<8x128xf32>
    %178 = math.exp %177 : vector<8x128xf32>
    %cst_52 = arith.constant 1.000000e+00 : f32
    %179 = vector.broadcast %cst_52 : f32 to vector<8x128xf32>
    %180 = arith.addf %179, %178 : vector<8x128xf32>
    %181 = arith.divf %179, %180 : vector<8x128xf32>
    %182 = arith.mulf %173, %147 : vector<8x128xf32>
    %183 = arith.mulf %167, %175 : vector<8x128xf32>
    %184 = arith.addf %182, %183 : vector<8x128xf32>
    %185 = math.tanh %184 : vector<8x128xf32>
    %186 = arith.mulf %181, %185 : vector<8x128xf32>
    %c4_53 = arith.constant 4 : index
    %c0_54 = arith.constant 0 : index
    %c0_55 = arith.constant 0 : index
    %187 = vector.load %arg11[%c4_53, %c0_54, %c0_55] : memref<8x8x128xf32, #tpu.memory_space<vmem>>, vector<1x8x128xf32>
    %188 = vector.shape_cast %187 : vector<1x8x128xf32> to vector<8x128xf32>
    %189 = vector.shape_cast %186 : vector<8x128xf32> to vector<1x8x128xf32>
    tpu.vector_store %arg11[%c4_53, %c0_54, %c0_55], %189 {strides = array<i32>} : memref<8x8x128xf32, #tpu.memory_space<vmem>>, vector<1x8x128xf32>,
    %c5 = arith.constant 5 : index
    %c0_56 = arith.constant 0 : index
    %c0_57 = arith.constant 0 : index
    %190 = vector.load %arg1[%c5, %c0_56, %c0_57] : memref<8x8x128xf32, #tpu.memory_space<vmem>>, vector<1x8x128xf32>
    %191 = vector.shape_cast %190 : vector<1x8x128xf32> to vector<8x128xf32>
    %192 = arith.truncf %191 : vector<8x128xf32> to vector<8x128xbf16>
    %cst_58 = arith.constant dense<0.000000e+00> : vector<8x512xf32>
    %193 = tpu.matmul %192, %0, %cst_58 {dimension_numbers = #tpu.dot_dimension_numbers<[1], [0], [0], [1], [0, 0, 1, 1], [], []>} : vector<8x128xbf16>, vector<128x512xbf16>, vector<8x512xf32> -> vector<8x512xf32>
    %194 = arith.truncf %186 : vector<8x128xf32> to vector<8x128xbf16>
    %cst_59 = arith.constant dense<0.000000e+00> : vector<8x512xf32>
    %195 = tpu.matmul %194, %1, %cst_59 {dimension_numbers = #tpu.dot_dimension_numbers<[1], [0], [0], [1], [0, 0, 1, 1], [], []>} : vector<8x128xbf16>, vector<128x512xbf16>, vector<8x512xf32> -> vector<8x512xf32>
    %196 = arith.addf %193, %195 : vector<8x512xf32>
    %197 = vector.broadcast %2 : vector<1x512xf32> to vector<8x512xf32>
    %198 = arith.addf %196, %197 : vector<8x512xf32>
    %199 = vector.extract_strided_slice %198 {offsets = [0, 0], sizes = [8, 128], strides = [1, 1]} : vector<8x512xf32> to vector<8x128xf32>
    %200 = arith.negf %199 : vector<8x128xf32>
    %201 = math.exp %200 : vector<8x128xf32>
    %cst_60 = arith.constant 1.000000e+00 : f32
    %202 = vector.broadcast %cst_60 : f32 to vector<8x128xf32>
    %203 = arith.addf %202, %201 : vector<8x128xf32>
    %204 = arith.divf %202, %203 : vector<8x128xf32>
    %205 = vector.extract_strided_slice %198 {offsets = [0, 128], sizes = [8, 128], strides = [1, 1]} : vector<8x512xf32> to vector<8x128xf32>
    %206 = arith.negf %205 : vector<8x128xf32>
    %207 = math.exp %206 : vector<8x128xf32>
    %cst_61 = arith.constant 1.000000e+00 : f32
    %208 = vector.broadcast %cst_61 : f32 to vector<8x128xf32>
    %209 = arith.addf %208, %207 : vector<8x128xf32>
    %210 = arith.divf %208, %209 : vector<8x128xf32>
    %211 = vector.extract_strided_slice %198 {offsets = [0, 256], sizes = [8, 128], strides = [1, 1]} : vector<8x512xf32> to vector<8x128xf32>
    %212 = math.tanh %211 : vector<8x128xf32>
    %213 = vector.extract_strided_slice %198 {offsets = [0, 384], sizes = [8, 128], strides = [1, 1]} : vector<8x512xf32> to vector<8x128xf32>
    %214 = arith.negf %213 : vector<8x128xf32>
    %215 = math.exp %214 : vector<8x128xf32>
    %cst_62 = arith.constant 1.000000e+00 : f32
    %216 = vector.broadcast %cst_62 : f32 to vector<8x128xf32>
    %217 = arith.addf %216, %215 : vector<8x128xf32>
    %218 = arith.divf %216, %217 : vector<8x128xf32>
    %219 = arith.mulf %210, %184 : vector<8x128xf32>
    %220 = arith.mulf %204, %212 : vector<8x128xf32>
    %221 = arith.addf %219, %220 : vector<8x128xf32>
    %222 = math.tanh %221 : vector<8x128xf32>
    %223 = arith.mulf %218, %222 : vector<8x128xf32>
    %c5_63 = arith.constant 5 : index
    %c0_64 = arith.constant 0 : index
    %c0_65 = arith.constant 0 : index
    %224 = vector.load %arg11[%c5_63, %c0_64, %c0_65] : memref<8x8x128xf32, #tpu.memory_space<vmem>>, vector<1x8x128xf32>
    %225 = vector.shape_cast %224 : vector<1x8x128xf32> to vector<8x128xf32>
    %226 = vector.shape_cast %223 : vector<8x128xf32> to vector<1x8x128xf32>
    tpu.vector_store %arg11[%c5_63, %c0_64, %c0_65], %226 {strides = array<i32>} : memref<8x8x128xf32, #tpu.memory_space<vmem>>, vector<1x8x128xf32>,
    %c6 = arith.constant 6 : index
    %c0_66 = arith.constant 0 : index
    %c0_67 = arith.constant 0 : index
    %227 = vector.load %arg1[%c6, %c0_66, %c0_67] : memref<8x8x128xf32, #tpu.memory_space<vmem>>, vector<1x8x128xf32>
    %228 = vector.shape_cast %227 : vector<1x8x128xf32> to vector<8x128xf32>
    %229 = arith.truncf %228 : vector<8x128xf32> to vector<8x128xbf16>
    %cst_68 = arith.constant dense<0.000000e+00> : vector<8x512xf32>
    %230 = tpu.matmul %229, %0, %cst_68 {dimension_numbers = #tpu.dot_dimension_numbers<[1], [0], [0], [1], [0, 0, 1, 1], [], []>} : vector<8x128xbf16>, vector<128x512xbf16>, vector<8x512xf32> -> vector<8x512xf32>
    %231 = arith.truncf %223 : vector<8x128xf32> to vector<8x128xbf16>
    %cst_69 = arith.constant dense<0.000000e+00> : vector<8x512xf32>
    %232 = tpu.matmul %231, %1, %cst_69 {dimension_numbers = #tpu.dot_dimension_numbers<[1], [0], [0], [1], [0, 0, 1, 1], [], []>} : vector<8x128xbf16>, vector<128x512xbf16>, vector<8x512xf32> -> vector<8x512xf32>
    %233 = arith.addf %230, %232 : vector<8x512xf32>
    %234 = vector.broadcast %2 : vector<1x512xf32> to vector<8x512xf32>
    %235 = arith.addf %233, %234 : vector<8x512xf32>
    %236 = vector.extract_strided_slice %235 {offsets = [0, 0], sizes = [8, 128], strides = [1, 1]} : vector<8x512xf32> to vector<8x128xf32>
    %237 = arith.negf %236 : vector<8x128xf32>
    %238 = math.exp %237 : vector<8x128xf32>
    %cst_70 = arith.constant 1.000000e+00 : f32
    %239 = vector.broadcast %cst_70 : f32 to vector<8x128xf32>
    %240 = arith.addf %239, %238 : vector<8x128xf32>
    %241 = arith.divf %239, %240 : vector<8x128xf32>
    %242 = vector.extract_strided_slice %235 {offsets = [0, 128], sizes = [8, 128], strides = [1, 1]} : vector<8x512xf32> to vector<8x128xf32>
    %243 = arith.negf %242 : vector<8x128xf32>
    %244 = math.exp %243 : vector<8x128xf32>
    %cst_71 = arith.constant 1.000000e+00 : f32
    %245 = vector.broadcast %cst_71 : f32 to vector<8x128xf32>
    %246 = arith.addf %245, %244 : vector<8x128xf32>
    %247 = arith.divf %245, %246 : vector<8x128xf32>
    %248 = vector.extract_strided_slice %235 {offsets = [0, 256], sizes = [8, 128], strides = [1, 1]} : vector<8x512xf32> to vector<8x128xf32>
    %249 = math.tanh %248 : vector<8x128xf32>
    %250 = vector.extract_strided_slice %235 {offsets = [0, 384], sizes = [8, 128], strides = [1, 1]} : vector<8x512xf32> to vector<8x128xf32>
    %251 = arith.negf %250 : vector<8x128xf32>
    %252 = math.exp %251 : vector<8x128xf32>
    %cst_72 = arith.constant 1.000000e+00 : f32
    %253 = vector.broadcast %cst_72 : f32 to vector<8x128xf32>
    %254 = arith.addf %253, %252 : vector<8x128xf32>
    %255 = arith.divf %253, %254 : vector<8x128xf32>
    %256 = arith.mulf %247, %221 : vector<8x128xf32>
    %257 = arith.mulf %241, %249 : vector<8x128xf32>
    %258 = arith.addf %256, %257 : vector<8x128xf32>
    %259 = math.tanh %258 : vector<8x128xf32>
    %260 = arith.mulf %255, %259 : vector<8x128xf32>
    %c6_73 = arith.constant 6 : index
    %c0_74 = arith.constant 0 : index
    %c0_75 = arith.constant 0 : index
    %261 = vector.load %arg11[%c6_73, %c0_74, %c0_75] : memref<8x8x128xf32, #tpu.memory_space<vmem>>, vector<1x8x128xf32>
    %262 = vector.shape_cast %261 : vector<1x8x128xf32> to vector<8x128xf32>
    %263 = vector.shape_cast %260 : vector<8x128xf32> to vector<1x8x128xf32>
    tpu.vector_store %arg11[%c6_73, %c0_74, %c0_75], %263 {strides = array<i32>} : memref<8x8x128xf32, #tpu.memory_space<vmem>>, vector<1x8x128xf32>,
    %c7 = arith.constant 7 : index
    %c0_76 = arith.constant 0 : index
    %c0_77 = arith.constant 0 : index
    %264 = vector.load %arg1[%c7, %c0_76, %c0_77] : memref<8x8x128xf32, #tpu.memory_space<vmem>>, vector<1x8x128xf32>
    %265 = vector.shape_cast %264 : vector<1x8x128xf32> to vector<8x128xf32>
    %266 = arith.truncf %265 : vector<8x128xf32> to vector<8x128xbf16>
    %cst_78 = arith.constant dense<0.000000e+00> : vector<8x512xf32>
    %267 = tpu.matmul %266, %0, %cst_78 {dimension_numbers = #tpu.dot_dimension_numbers<[1], [0], [0], [1], [0, 0, 1, 1], [], []>} : vector<8x128xbf16>, vector<128x512xbf16>, vector<8x512xf32> -> vector<8x512xf32>
    %268 = arith.truncf %260 : vector<8x128xf32> to vector<8x128xbf16>
    %cst_79 = arith.constant dense<0.000000e+00> : vector<8x512xf32>
    %269 = tpu.matmul %268, %1, %cst_79 {dimension_numbers = #tpu.dot_dimension_numbers<[1], [0], [0], [1], [0, 0, 1, 1], [], []>} : vector<8x128xbf16>, vector<128x512xbf16>, vector<8x512xf32> -> vector<8x512xf32>
    %270 = arith.addf %267, %269 : vector<8x512xf32>
    %271 = vector.broadcast %2 : vector<1x512xf32> to vector<8x512xf32>
    %272 = arith.addf %270, %271 : vector<8x512xf32>
    %273 = vector.extract_strided_slice %272 {offsets = [0, 0], sizes = [8, 128], strides = [1, 1]} : vector<8x512xf32> to vector<8x128xf32>
    %274 = arith.negf %273 : vector<8x128xf32>
    %275 = math.exp %274 : vector<8x128xf32>
    %cst_80 = arith.constant 1.000000e+00 : f32
    %276 = vector.broadcast %cst_80 : f32 to vector<8x128xf32>
    %277 = arith.addf %276, %275 : vector<8x128xf32>
    %278 = arith.divf %276, %277 : vector<8x128xf32>
    %279 = vector.extract_strided_slice %272 {offsets = [0, 128], sizes = [8, 128], strides = [1, 1]} : vector<8x512xf32> to vector<8x128xf32>
    %280 = arith.negf %279 : vector<8x128xf32>
    %281 = math.exp %280 : vector<8x128xf32>
    %cst_81 = arith.constant 1.000000e+00 : f32
    %282 = vector.broadcast %cst_81 : f32 to vector<8x128xf32>
    %283 = arith.addf %282, %281 : vector<8x128xf32>
    %284 = arith.divf %282, %283 : vector<8x128xf32>
    %285 = vector.extract_strided_slice %272 {offsets = [0, 256], sizes = [8, 128], strides = [1, 1]} : vector<8x512xf32> to vector<8x128xf32>
    %286 = math.tanh %285 : vector<8x128xf32>
    %287 = vector.extract_strided_slice %272 {offsets = [0, 384], sizes = [8, 128], strides = [1, 1]} : vector<8x512xf32> to vector<8x128xf32>
    %288 = arith.negf %287 : vector<8x128xf32>
    %289 = math.exp %288 : vector<8x128xf32>
    %cst_82 = arith.constant 1.000000e+00 : f32
    %290 = vector.broadcast %cst_82 : f32 to vector<8x128xf32>
    %291 = arith.addf %290, %289 : vector<8x128xf32>
    %292 = arith.divf %290, %291 : vector<8x128xf32>
    %293 = arith.mulf %284, %258 : vector<8x128xf32>
    %294 = arith.mulf %278, %286 : vector<8x128xf32>
    %295 = arith.addf %293, %294 : vector<8x128xf32>
    %296 = math.tanh %295 : vector<8x128xf32>
    %297 = arith.mulf %292, %296 : vector<8x128xf32>
    %c7_83 = arith.constant 7 : index
    %c0_84 = arith.constant 0 : index
    %c0_85 = arith.constant 0 : index
    %298 = vector.load %arg11[%c7_83, %c0_84, %c0_85] : memref<8x8x128xf32, #tpu.memory_space<vmem>>, vector<1x8x128xf32>
    %299 = vector.shape_cast %298 : vector<1x8x128xf32> to vector<8x128xf32>
    %300 = vector.shape_cast %297 : vector<8x128xf32> to vector<1x8x128xf32>
    tpu.vector_store %arg11[%c7_83, %c0_84, %c0_85], %300 {strides = array<i32>} : memref<8x8x128xf32, #tpu.memory_space<vmem>>, vector<1x8x128xf32>,
    %c0_86 = arith.constant 0 : index
    %c0_87 = arith.constant 0 : index
    %c0_88 = arith.constant 0 : index
    %301 = vector.load %arg11[%c0_86, %c0_87, %c0_88] : memref<8x8x128xf32, #tpu.memory_space<vmem>>, vector<8x8x128xf32>
    %c0_89 = arith.constant 0 : index
    %c0_90 = arith.constant 0 : index
    %302 = vector.load %arg6[%c0_89, %c0_90] : memref<384x512xbf16, #tpu.memory_space<vmem>>, vector<128x512xbf16>
    %c128_91 = arith.constant 128 : index
    %c0_92 = arith.constant 0 : index
    %303 = vector.load %arg6[%c128_91, %c0_92] : memref<384x512xbf16, #tpu.memory_space<vmem>>, vector<128x512xbf16>
    %c256 = arith.constant 256 : index
    %c0_93 = arith.constant 0 : index
    %304 = vector.load %arg6[%c256, %c0_93] : memref<384x512xbf16, #tpu.memory_space<vmem>>, vector<128x512xbf16>
    %c0_94 = arith.constant 0 : index
    %c0_95 = arith.constant 0 : index
    %305 = vector.load %arg7[%c0_94, %c0_95] : memref<1x512xf32, #tpu.memory_space<vmem>>, vector<1x512xf32>
    %c0_96 = arith.constant 0 : index
    %c0_97 = arith.constant 0 : index
    %306 = vector.load %arg8[%c0_96, %c0_97] : memref<384x256xbf16, #tpu.memory_space<vmem>>, vector<128x256xbf16>
    %c128_98 = arith.constant 128 : index
    %c0_99 = arith.constant 0 : index
    %307 = vector.load %arg8[%c128_98, %c0_99] : memref<384x256xbf16, #tpu.memory_space<vmem>>, vector<128x256xbf16>
    %c256_100 = arith.constant 256 : index
    %c0_101 = arith.constant 0 : index
    %308 = vector.load %arg8[%c256_100, %c0_101] : memref<384x256xbf16, #tpu.memory_space<vmem>>, vector<128x256xbf16>
    %c0_102 = arith.constant 0 : index
    %c0_103 = arith.constant 0 : index
    %309 = vector.load %arg9[%c0_102, %c0_103] : memref<1x256xf32, #tpu.memory_space<vmem>>, vector<1x256xf32>
    %c0_104 = arith.constant 0 : index
    %c0_105 = arith.constant 0 : index
    %310 = vector.load %arg5[%c0_104, %c0_105] : memref<256x128xbf16, #tpu.memory_space<vmem>>, vector<256x128xbf16>
    %cst_106 = arith.constant 0.000000e+00 : f32
    %311 = vector.broadcast %cst_106 : f32 to vector<8x256xf32>
    %c0_107 = arith.constant 0 : index
    %c0_108 = arith.constant 0 : index
    %c0_109 = arith.constant 0 : index
    %312 = vector.load %arg10[%c0_107, %c0_108, %c0_109] : memref<8x8x256xf32, #tpu.memory_space<vmem>>, vector<1x8x256xf32>
    %313 = vector.shape_cast %312 : vector<1x8x256xf32> to vector<8x256xf32>
    %314 = vector.shape_cast %311 : vector<8x256xf32> to vector<1x8x256xf32>
    tpu.vector_store %arg10[%c0_107, %c0_108, %c0_109], %314 {strides = array<i32>} : memref<8x8x256xf32, #tpu.memory_space<vmem>>, vector<1x8x256xf32>,
    %cst_110 = arith.constant 0.000000e+00 : f32
    %315 = vector.broadcast %cst_110 : f32 to vector<8x128xf32>
    %c0_111 = arith.constant 0 : index
    %c0_112 = arith.constant 0 : index
    %316 = vector.load %arg12[%c0_111, %c0_112] : memref<8x128xf32, #tpu.memory_space<vmem>>, vector<8x128xf32>
    tpu.vector_store %arg12[%c0_111, %c0_112], %315 {strides = array<i32>} : memref<8x128xf32, #tpu.memory_space<vmem>>, vector<8x128xf32>,
    %c0_113 = arith.constant 0 : index
    %c0_114 = arith.constant 0 : index
    %c0_115 = arith.constant 0 : index
    %317 = vector.load %arg2[%c0_113, %c0_114, %c0_115] : memref<8x8x128xf32, #tpu.memory_space<vmem>>, vector<1x8x128xf32>
    %318 = vector.shape_cast %317 : vector<1x8x128xf32> to vector<8x128xf32>
    %319 = arith.truncf %318 : vector<8x128xf32> to vector<8x128xbf16>
    %320 = vector.shape_cast %297 : vector<8x128xf32> to vector<1x8x128xf32>
    %321 = vector.broadcast %320 : vector<1x8x128xf32> to vector<8x8x128xf32>
    %322 = arith.mulf %301, %321 : vector<8x8x128xf32>
    %cst_116 = arith.constant dense<0.000000e+00> : vector<8x8xf32>
    %323 = vector.multi_reduction <add>, %322, %cst_116 [2] : vector<8x8x128xf32> to vector<8x8xf32>
    %324 = vector.shape_cast %323 : vector<8x8xf32> to vector<8x8x1xf32>
    %cst_117 = arith.constant dense<0xFF800000> : vector<8x1xf32>
    %325 = vector.multi_reduction <maximumf>, %324, %cst_117 [0] : vector<8x8x1xf32> to vector<8x1xf32>
    %326 = vector.shape_cast %325 : vector<8x1xf32> to vector<1x8x1xf32>
    %327 = vector.broadcast %326 : vector<1x8x1xf32> to vector<8x8x1xf32>
    %328 = arith.subf %324, %327 : vector<8x8x1xf32>
    %329 = math.exp %328 : vector<8x8x1xf32>
    %cst_118 = arith.constant dense<0.000000e+00> : vector<8x1xf32>
    %330 = vector.multi_reduction <add>, %329, %cst_118 [0] : vector<8x8x1xf32> to vector<8x1xf32>
    %331 = vector.shape_cast %330 : vector<8x1xf32> to vector<1x8x1xf32>
    %332 = tpu.reciprocal %331 {approx = true} : vector<1x8x1xf32> -> vector<1x8x1xf32>
    %333 = vector.broadcast %332 : vector<1x8x1xf32> to vector<8x8x1xf32>
    %334 = arith.mulf %329, %333 : vector<8x8x1xf32>
    %335 = vector.broadcast %334 : vector<8x8x1xf32> to vector<8x8x128xf32>
    %336 = arith.mulf %335, %301 : vector<8x8x128xf32>
    %cst_119 = arith.constant dense<0.000000e+00> : vector<8x128xf32>
    %337 = vector.multi_reduction <add>, %336, %cst_119 [0] : vector<8x8x128xf32> to vector<8x128xf32>
    %338 = arith.truncf %337 : vector<8x128xf32> to vector<8x128xbf16>
    %cst_120 = arith.constant dense<0.000000e+00> : vector<8x512xf32>
    %339 = tpu.matmul %319, %302, %cst_120 {dimension_numbers = #tpu.dot_dimension_numbers<[1], [0], [0], [1], [0, 0, 1, 1], [], []>} : vector<8x128xbf16>, vector<128x512xbf16>, vector<8x512xf32> -> vector<8x512xf32>
    %cst_121 = arith.constant dense<0.000000e+00> : vector<8x512xf32>
    %340 = tpu.matmul %338, %303, %cst_121 {dimension_numbers = #tpu.dot_dimension_numbers<[1], [0], [0], [1], [0, 0, 1, 1], [], []>} : vector<8x128xbf16>, vector<128x512xbf16>, vector<8x512xf32> -> vector<8x512xf32>
    %341 = arith.addf %339, %340 : vector<8x512xf32>
    %342 = arith.truncf %297 : vector<8x128xf32> to vector<8x128xbf16>
    %cst_122 = arith.constant dense<0.000000e+00> : vector<8x512xf32>
    %343 = tpu.matmul %342, %304, %cst_122 {dimension_numbers = #tpu.dot_dimension_numbers<[1], [0], [0], [1], [0, 0, 1, 1], [], []>} : vector<8x128xbf16>, vector<128x512xbf16>, vector<8x512xf32> -> vector<8x512xf32>
    %344 = arith.addf %341, %343 : vector<8x512xf32>
    %345 = vector.broadcast %305 : vector<1x512xf32> to vector<8x512xf32>
    %346 = arith.addf %344, %345 : vector<8x512xf32>
    %347 = vector.extract_strided_slice %346 {offsets = [0, 0], sizes = [8, 128], strides = [1, 1]} : vector<8x512xf32> to vector<8x128xf32>
    %348 = arith.negf %347 : vector<8x128xf32>
    %349 = math.exp %348 : vector<8x128xf32>
    %cst_123 = arith.constant 1.000000e+00 : f32
    %350 = vector.broadcast %cst_123 : f32 to vector<8x128xf32>
    %351 = arith.addf %350, %349 : vector<8x128xf32>
    %352 = arith.divf %350, %351 : vector<8x128xf32>
    %353 = vector.extract_strided_slice %346 {offsets = [0, 128], sizes = [8, 128], strides = [1, 1]} : vector<8x512xf32> to vector<8x128xf32>
    %354 = arith.negf %353 : vector<8x128xf32>
    %355 = math.exp %354 : vector<8x128xf32>
    %cst_124 = arith.constant 1.000000e+00 : f32
    %356 = vector.broadcast %cst_124 : f32 to vector<8x128xf32>
    %357 = arith.addf %356, %355 : vector<8x128xf32>
    %358 = arith.divf %356, %357 : vector<8x128xf32>
    %359 = vector.extract_strided_slice %346 {offsets = [0, 256], sizes = [8, 128], strides = [1, 1]} : vector<8x512xf32> to vector<8x128xf32>
    %360 = math.tanh %359 : vector<8x128xf32>
    %361 = vector.extract_strided_slice %346 {offsets = [0, 384], sizes = [8, 128], strides = [1, 1]} : vector<8x512xf32> to vector<8x128xf32>
    %362 = arith.negf %361 : vector<8x128xf32>
    %363 = math.exp %362 : vector<8x128xf32>
    %cst_125 = arith.constant 1.000000e+00 : f32
    %364 = vector.broadcast %cst_125 : f32 to vector<8x128xf32>
    %365 = arith.addf %364, %363 : vector<8x128xf32>
    %366 = arith.divf %364, %365 : vector<8x128xf32>
    %367 = arith.mulf %358, %295 : vector<8x128xf32>
    %368 = arith.mulf %352, %360 : vector<8x128xf32>
    %369 = arith.addf %367, %368 : vector<8x128xf32>
    %370 = math.tanh %369 : vector<8x128xf32>
    %371 = arith.mulf %366, %370 : vector<8x128xf32>
    %372 = arith.truncf %371 : vector<8x128xf32> to vector<8x128xbf16>
    %cst_126 = arith.constant dense<0.000000e+00> : vector<8x256xf32>
    %373 = tpu.matmul %372, %306, %cst_126 {dimension_numbers = #tpu.dot_dimension_numbers<[1], [0], [0], [1], [0, 0, 1, 1], [], []>} : vector<8x128xbf16>, vector<128x256xbf16>, vector<8x256xf32> -> vector<8x256xf32>
    %cst_127 = arith.constant dense<0.000000e+00> : vector<8x256xf32>
    %374 = tpu.matmul %338, %307, %cst_127 {dimension_numbers = #tpu.dot_dimension_numbers<[1], [0], [0], [1], [0, 0, 1, 1], [], []>} : vector<8x128xbf16>, vector<128x256xbf16>, vector<8x256xf32> -> vector<8x256xf32>
    %375 = arith.addf %373, %374 : vector<8x256xf32>
    %cst_128 = arith.constant dense<0.000000e+00> : vector<8x256xf32>
    %376 = tpu.matmul %319, %308, %cst_128 {dimension_numbers = #tpu.dot_dimension_numbers<[1], [0], [0], [1], [0, 0, 1, 1], [], []>} : vector<8x128xbf16>, vector<128x256xbf16>, vector<8x256xf32> -> vector<8x256xf32>
    %377 = arith.addf %375, %376 : vector<8x256xf32>
    %378 = vector.broadcast %309 : vector<1x256xf32> to vector<8x256xf32>
    %379 = arith.addf %377, %378 : vector<8x256xf32>
    %c1_129 = arith.constant 1 : index
    %c0_130 = arith.constant 0 : index
    %c0_131 = arith.constant 0 : index
    %380 = vector.load %arg10[%c1_129, %c0_130, %c0_131] : memref<8x8x256xf32, #tpu.memory_space<vmem>>, vector<1x8x256xf32>
    %381 = vector.shape_cast %380 : vector<1x8x256xf32> to vector<8x256xf32>
    %382 = vector.shape_cast %379 : vector<8x256xf32> to vector<1x8x256xf32>
    tpu.vector_store %arg10[%c1_129, %c0_130, %c0_131], %382 {strides = array<i32>} : memref<8x8x256xf32, #tpu.memory_space<vmem>>, vector<1x8x256xf32>,
    %c1_132 = arith.constant 1 : index
    %383 = memref.load %arg0[%c1_132] : memref<8xi32, #tpu.memory_space<smem>>
    %c0_i32 = arith.constant 0 : i32
    %384 = arith.cmpi eq, %383, %c0_i32 : i32
    %385 = arith.extui %384 : i1 to i32
    %c0_i32_133 = arith.constant 0 : i32
    %386 = arith.cmpi ne, %385, %c0_i32_133 : i32
    scf.if %386 {
      %869 = tpu.iota {dimensions = array<i32: 1>} : vector<8x256xi32>
      %cst_293 = arith.constant dense<0xFF800000> : vector<8xf32>
      %870 = vector.multi_reduction <maximumf>, %379, %cst_293 [1] : vector<8x256xf32> to vector<8xf32>
      %871 = vector.shape_cast %870 : vector<8xf32> to vector<8x1xf32>
      %872 = vector.broadcast %871 : vector<8x1xf32> to vector<8x256xf32>
      %873 = arith.cmpf oge, %379, %872 : vector<8x256xf32>
      %c256_i32 = arith.constant 256 : i32
      %874 = vector.broadcast %c256_i32 : i32 to vector<8x256xi32>
      %875 = arith.select %873, %869, %874 : vector<8x256xi1>, vector<8x256xi32>
      %cst_294 = arith.constant dense<2147483647> : vector<8xi32>
      %876 = vector.multi_reduction <minsi>, %875, %cst_294 [1] : vector<8x256xi32> to vector<8xi32>
      %877 = vector.shape_cast %876 : vector<8xi32> to vector<8x1xi32>
      %878 = vector.broadcast %877 : vector<8x1xi32> to vector<8x256xi32>
      %879 = arith.cmpi eq, %869, %878 : vector<8x256xi32>
      %880 = arith.extui %879 : vector<8x256xi1> to vector<8x256xi32>
      %881 = arith.sitofp %880 : vector<8x256xi32> to vector<8x256xf32>
      %882 = arith.truncf %881 : vector<8x256xf32> to vector<8x256xbf16>
      %cst_295 = arith.constant dense<0.000000e+00> : vector<8x128xf32>
      %883 = tpu.matmul %882, %310, %cst_295 {dimension_numbers = #tpu.dot_dimension_numbers<[1], [0], [0], [1], [0, 0, 1, 1], [], []>} : vector<8x256xbf16>, vector<256x128xbf16>, vector<8x128xf32> -> vector<8x128xf32>
      %c0_296 = arith.constant 0 : index
      %c0_297 = arith.constant 0 : index
      %884 = vector.load %arg12[%c0_296, %c0_297] : memref<8x128xf32, #tpu.memory_space<vmem>>, vector<8x128xf32>
      tpu.vector_store %arg12[%c0_296, %c0_297], %883 {strides = array<i32>} : memref<8x128xf32, #tpu.memory_space<vmem>>, vector<8x128xf32>,
    } else {
    }
    %c1_134 = arith.constant 1 : index
    %387 = memref.load %arg0[%c1_134] : memref<8xi32, #tpu.memory_space<smem>>
    %c0_i32_135 = arith.constant 0 : i32
    %388 = arith.cmpi ne, %387, %c0_i32_135 : i32
    %389 = arith.extui %388 : i1 to i32
    %390 = arith.sitofp %389 : i32 to f32
    %c1_136 = arith.constant 1 : index
    %c0_137 = arith.constant 0 : index
    %c0_138 = arith.constant 0 : index
    %391 = vector.load %arg2[%c1_136, %c0_137, %c0_138] : memref<8x8x128xf32, #tpu.memory_space<vmem>>, vector<1x8x128xf32>
    %392 = vector.shape_cast %391 : vector<1x8x128xf32> to vector<8x128xf32>
    %393 = vector.broadcast %390 : f32 to vector<8x128xf32>
    %394 = arith.mulf %393, %392 : vector<8x128xf32>
    %cst_139 = arith.constant 1.000000e+00 : f32
    %395 = arith.subf %cst_139, %390 : f32
    %c0_140 = arith.constant 0 : index
    %c0_141 = arith.constant 0 : index
    %396 = vector.load %arg12[%c0_140, %c0_141] : memref<8x128xf32, #tpu.memory_space<vmem>>, vector<8x128xf32>
    %397 = vector.broadcast %395 : f32 to vector<8x128xf32>
    %398 = arith.mulf %397, %396 : vector<8x128xf32>
    %399 = arith.addf %394, %398 : vector<8x128xf32>
    %400 = arith.truncf %399 : vector<8x128xf32> to vector<8x128xbf16>
    %401 = vector.shape_cast %371 : vector<8x128xf32> to vector<1x8x128xf32>
    %402 = vector.broadcast %401 : vector<1x8x128xf32> to vector<8x8x128xf32>
    %403 = arith.mulf %301, %402 : vector<8x8x128xf32>
    %cst_142 = arith.constant dense<0.000000e+00> : vector<8x8xf32>
    %404 = vector.multi_reduction <add>, %403, %cst_142 [2] : vector<8x8x128xf32> to vector<8x8xf32>
    %405 = vector.shape_cast %404 : vector<8x8xf32> to vector<8x8x1xf32>
    %cst_143 = arith.constant dense<0xFF800000> : vector<8x1xf32>
    %406 = vector.multi_reduction <maximumf>, %405, %cst_143 [0] : vector<8x8x1xf32> to vector<8x1xf32>
    %407 = vector.shape_cast %406 : vector<8x1xf32> to vector<1x8x1xf32>
    %408 = vector.broadcast %407 : vector<1x8x1xf32> to vector<8x8x1xf32>
    %409 = arith.subf %405, %408 : vector<8x8x1xf32>
    %410 = math.exp %409 : vector<8x8x1xf32>
    %cst_144 = arith.constant dense<0.000000e+00> : vector<8x1xf32>
    %411 = vector.multi_reduction <add>, %410, %cst_144 [0] : vector<8x8x1xf32> to vector<8x1xf32>
    %412 = vector.shape_cast %411 : vector<8x1xf32> to vector<1x8x1xf32>
    %413 = tpu.reciprocal %412 {approx = true} : vector<1x8x1xf32> -> vector<1x8x1xf32>
    %414 = vector.broadcast %413 : vector<1x8x1xf32> to vector<8x8x1xf32>
    %415 = arith.mulf %410, %414 : vector<8x8x1xf32>
    %416 = vector.broadcast %415 : vector<8x8x1xf32> to vector<8x8x128xf32>
    %417 = arith.mulf %416, %301 : vector<8x8x128xf32>
    %cst_145 = arith.constant dense<0.000000e+00> : vector<8x128xf32>
    %418 = vector.multi_reduction <add>, %417, %cst_145 [0] : vector<8x8x128xf32> to vector<8x128xf32>
    %419 = arith.truncf %418 : vector<8x128xf32> to vector<8x128xbf16>
    %cst_146 = arith.constant dense<0.000000e+00> : vector<8x512xf32>
    %420 = tpu.matmul %400, %302, %cst_146 {dimension_numbers = #tpu.dot_dimension_numbers<[1], [0], [0], [1], [0, 0, 1, 1], [], []>} : vector<8x128xbf16>, vector<128x512xbf16>, vector<8x512xf32> -> vector<8x512xf32>
    %cst_147 = arith.constant dense<0.000000e+00> : vector<8x512xf32>
    %421 = tpu.matmul %419, %303, %cst_147 {dimension_numbers = #tpu.dot_dimension_numbers<[1], [0], [0], [1], [0, 0, 1, 1], [], []>} : vector<8x128xbf16>, vector<128x512xbf16>, vector<8x512xf32> -> vector<8x512xf32>
    %422 = arith.addf %420, %421 : vector<8x512xf32>
    %423 = arith.truncf %371 : vector<8x128xf32> to vector<8x128xbf16>
    %cst_148 = arith.constant dense<0.000000e+00> : vector<8x512xf32>
    %424 = tpu.matmul %423, %304, %cst_148 {dimension_numbers = #tpu.dot_dimension_numbers<[1], [0], [0], [1], [0, 0, 1, 1], [], []>} : vector<8x128xbf16>, vector<128x512xbf16>, vector<8x512xf32> -> vector<8x512xf32>
    %425 = arith.addf %422, %424 : vector<8x512xf32>
    %426 = vector.broadcast %305 : vector<1x512xf32> to vector<8x512xf32>
    %427 = arith.addf %425, %426 : vector<8x512xf32>
    %428 = vector.extract_strided_slice %427 {offsets = [0, 0], sizes = [8, 128], strides = [1, 1]} : vector<8x512xf32> to vector<8x128xf32>
    %429 = arith.negf %428 : vector<8x128xf32>
    %430 = math.exp %429 : vector<8x128xf32>
    %cst_149 = arith.constant 1.000000e+00 : f32
    %431 = vector.broadcast %cst_149 : f32 to vector<8x128xf32>
    %432 = arith.addf %431, %430 : vector<8x128xf32>
    %433 = arith.divf %431, %432 : vector<8x128xf32>
    %434 = vector.extract_strided_slice %427 {offsets = [0, 128], sizes = [8, 128], strides = [1, 1]} : vector<8x512xf32> to vector<8x128xf32>
    %435 = arith.negf %434 : vector<8x128xf32>
    %436 = math.exp %435 : vector<8x128xf32>
    %cst_150 = arith.constant 1.000000e+00 : f32
    %437 = vector.broadcast %cst_150 : f32 to vector<8x128xf32>
    %438 = arith.addf %437, %436 : vector<8x128xf32>
    %439 = arith.divf %437, %438 : vector<8x128xf32>
    %440 = vector.extract_strided_slice %427 {offsets = [0, 256], sizes = [8, 128], strides = [1, 1]} : vector<8x512xf32> to vector<8x128xf32>
    %441 = math.tanh %440 : vector<8x128xf32>
    %442 = vector.extract_strided_slice %427 {offsets = [0, 384], sizes = [8, 128], strides = [1, 1]} : vector<8x512xf32> to vector<8x128xf32>
    %443 = arith.negf %442 : vector<8x128xf32>
    %444 = math.exp %443 : vector<8x128xf32>
    %cst_151 = arith.constant 1.000000e+00 : f32
    %445 = vector.broadcast %cst_151 : f32 to vector<8x128xf32>
    %446 = arith.addf %445, %444 : vector<8x128xf32>
    %447 = arith.divf %445, %446 : vector<8x128xf32>
    %448 = arith.mulf %439, %369 : vector<8x128xf32>
    %449 = arith.mulf %433, %441 : vector<8x128xf32>
    %450 = arith.addf %448, %449 : vector<8x128xf32>
    %451 = math.tanh %450 : vector<8x128xf32>
    %452 = arith.mulf %447, %451 : vector<8x128xf32>
    %453 = arith.truncf %452 : vector<8x128xf32> to vector<8x128xbf16>
    %cst_152 = arith.constant dense<0.000000e+00> : vector<8x256xf32>
    %454 = tpu.matmul %453, %306, %cst_152 {dimension_numbers = #tpu.dot_dimension_numbers<[1], [0], [0], [1], [0, 0, 1, 1], [], []>} : vector<8x128xbf16>, vector<128x256xbf16>, vector<8x256xf32> -> vector<8x256xf32>
    %cst_153 = arith.constant dense<0.000000e+00> : vector<8x256xf32>
    %455 = tpu.matmul %419, %307, %cst_153 {dimension_numbers = #tpu.dot_dimension_numbers<[1], [0], [0], [1], [0, 0, 1, 1], [], []>} : vector<8x128xbf16>, vector<128x256xbf16>, vector<8x256xf32> -> vector<8x256xf32>
    %456 = arith.addf %454, %455 : vector<8x256xf32>
    %cst_154 = arith.constant dense<0.000000e+00> : vector<8x256xf32>
    %457 = tpu.matmul %400, %308, %cst_154 {dimension_numbers = #tpu.dot_dimension_numbers<[1], [0], [0], [1], [0, 0, 1, 1], [], []>} : vector<8x128xbf16>, vector<128x256xbf16>, vector<8x256xf32> -> vector<8x256xf32>
    %458 = arith.addf %456, %457 : vector<8x256xf32>
    %459 = vector.broadcast %309 : vector<1x256xf32> to vector<8x256xf32>
    %460 = arith.addf %458, %459 : vector<8x256xf32>
    %c2_155 = arith.constant 2 : index
    %c0_156 = arith.constant 0 : index
    %c0_157 = arith.constant 0 : index
    %461 = vector.load %arg10[%c2_155, %c0_156, %c0_157] : memref<8x8x256xf32, #tpu.memory_space<vmem>>, vector<1x8x256xf32>
    %462 = vector.shape_cast %461 : vector<1x8x256xf32> to vector<8x256xf32>
    %463 = vector.shape_cast %460 : vector<8x256xf32> to vector<1x8x256xf32>
    tpu.vector_store %arg10[%c2_155, %c0_156, %c0_157], %463 {strides = array<i32>} : memref<8x8x256xf32, #tpu.memory_space<vmem>>, vector<1x8x256xf32>,
    %c2_158 = arith.constant 2 : index
    %464 = memref.load %arg0[%c2_158] : memref<8xi32, #tpu.memory_space<smem>>
    %c0_i32_159 = arith.constant 0 : i32
    %465 = arith.cmpi eq, %464, %c0_i32_159 : i32
    %466 = arith.extui %465 : i1 to i32
    %c0_i32_160 = arith.constant 0 : i32
    %467 = arith.cmpi ne, %466, %c0_i32_160 : i32
    scf.if %467 {
      %869 = tpu.iota {dimensions = array<i32: 1>} : vector<8x256xi32>
      %cst_293 = arith.constant dense<0xFF800000> : vector<8xf32>
      %870 = vector.multi_reduction <maximumf>, %460, %cst_293 [1] : vector<8x256xf32> to vector<8xf32>
      %871 = vector.shape_cast %870 : vector<8xf32> to vector<8x1xf32>
      %872 = vector.broadcast %871 : vector<8x1xf32> to vector<8x256xf32>
      %873 = arith.cmpf oge, %460, %872 : vector<8x256xf32>
      %c256_i32 = arith.constant 256 : i32
      %874 = vector.broadcast %c256_i32 : i32 to vector<8x256xi32>
      %875 = arith.select %873, %869, %874 : vector<8x256xi1>, vector<8x256xi32>
      %cst_294 = arith.constant dense<2147483647> : vector<8xi32>
      %876 = vector.multi_reduction <minsi>, %875, %cst_294 [1] : vector<8x256xi32> to vector<8xi32>
      %877 = vector.shape_cast %876 : vector<8xi32> to vector<8x1xi32>
      %878 = vector.broadcast %877 : vector<8x1xi32> to vector<8x256xi32>
      %879 = arith.cmpi eq, %869, %878 : vector<8x256xi32>
      %880 = arith.extui %879 : vector<8x256xi1> to vector<8x256xi32>
      %881 = arith.sitofp %880 : vector<8x256xi32> to vector<8x256xf32>
      %882 = arith.truncf %881 : vector<8x256xf32> to vector<8x256xbf16>
      %cst_295 = arith.constant dense<0.000000e+00> : vector<8x128xf32>
      %883 = tpu.matmul %882, %310, %cst_295 {dimension_numbers = #tpu.dot_dimension_numbers<[1], [0], [0], [1], [0, 0, 1, 1], [], []>} : vector<8x256xbf16>, vector<256x128xbf16>, vector<8x128xf32> -> vector<8x128xf32>
      %c0_296 = arith.constant 0 : index
      %c0_297 = arith.constant 0 : index
      %884 = vector.load %arg12[%c0_296, %c0_297] : memref<8x128xf32, #tpu.memory_space<vmem>>, vector<8x128xf32>
      tpu.vector_store %arg12[%c0_296, %c0_297], %883 {strides = array<i32>} : memref<8x128xf32, #tpu.memory_space<vmem>>, vector<8x128xf32>,
    } else {
    }
    %c2_161 = arith.constant 2 : index
    %468 = memref.load %arg0[%c2_161] : memref<8xi32, #tpu.memory_space<smem>>
    %c0_i32_162 = arith.constant 0 : i32
    %469 = arith.cmpi ne, %468, %c0_i32_162 : i32
    %470 = arith.extui %469 : i1 to i32
    %471 = arith.sitofp %470 : i32 to f32
    %c2_163 = arith.constant 2 : index
    %c0_164 = arith.constant 0 : index
    %c0_165 = arith.constant 0 : index
    %472 = vector.load %arg2[%c2_163, %c0_164, %c0_165] : memref<8x8x128xf32, #tpu.memory_space<vmem>>, vector<1x8x128xf32>
    %473 = vector.shape_cast %472 : vector<1x8x128xf32> to vector<8x128xf32>
    %474 = vector.broadcast %471 : f32 to vector<8x128xf32>
    %475 = arith.mulf %474, %473 : vector<8x128xf32>
    %cst_166 = arith.constant 1.000000e+00 : f32
    %476 = arith.subf %cst_166, %471 : f32
    %c0_167 = arith.constant 0 : index
    %c0_168 = arith.constant 0 : index
    %477 = vector.load %arg12[%c0_167, %c0_168] : memref<8x128xf32, #tpu.memory_space<vmem>>, vector<8x128xf32>
    %478 = vector.broadcast %476 : f32 to vector<8x128xf32>
    %479 = arith.mulf %478, %477 : vector<8x128xf32>
    %480 = arith.addf %475, %479 : vector<8x128xf32>
    %481 = arith.truncf %480 : vector<8x128xf32> to vector<8x128xbf16>
    %482 = vector.shape_cast %452 : vector<8x128xf32> to vector<1x8x128xf32>
    %483 = vector.broadcast %482 : vector<1x8x128xf32> to vector<8x8x128xf32>
    %484 = arith.mulf %301, %483 : vector<8x8x128xf32>
    %cst_169 = arith.constant dense<0.000000e+00> : vector<8x8xf32>
    %485 = vector.multi_reduction <add>, %484, %cst_169 [2] : vector<8x8x128xf32> to vector<8x8xf32>
    %486 = vector.shape_cast %485 : vector<8x8xf32> to vector<8x8x1xf32>
    %cst_170 = arith.constant dense<0xFF800000> : vector<8x1xf32>
    %487 = vector.multi_reduction <maximumf>, %486, %cst_170 [0] : vector<8x8x1xf32> to vector<8x1xf32>
    %488 = vector.shape_cast %487 : vector<8x1xf32> to vector<1x8x1xf32>
    %489 = vector.broadcast %488 : vector<1x8x1xf32> to vector<8x8x1xf32>
    %490 = arith.subf %486, %489 : vector<8x8x1xf32>
    %491 = math.exp %490 : vector<8x8x1xf32>
    %cst_171 = arith.constant dense<0.000000e+00> : vector<8x1xf32>
    %492 = vector.multi_reduction <add>, %491, %cst_171 [0] : vector<8x8x1xf32> to vector<8x1xf32>
    %493 = vector.shape_cast %492 : vector<8x1xf32> to vector<1x8x1xf32>
    %494 = tpu.reciprocal %493 {approx = true} : vector<1x8x1xf32> -> vector<1x8x1xf32>
    %495 = vector.broadcast %494 : vector<1x8x1xf32> to vector<8x8x1xf32>
    %496 = arith.mulf %491, %495 : vector<8x8x1xf32>
    %497 = vector.broadcast %496 : vector<8x8x1xf32> to vector<8x8x128xf32>
    %498 = arith.mulf %497, %301 : vector<8x8x128xf32>
    %cst_172 = arith.constant dense<0.000000e+00> : vector<8x128xf32>
    %499 = vector.multi_reduction <add>, %498, %cst_172 [0] : vector<8x8x128xf32> to vector<8x128xf32>
    %500 = arith.truncf %499 : vector<8x128xf32> to vector<8x128xbf16>
    %cst_173 = arith.constant dense<0.000000e+00> : vector<8x512xf32>
    %501 = tpu.matmul %481, %302, %cst_173 {dimension_numbers = #tpu.dot_dimension_numbers<[1], [0], [0], [1], [0, 0, 1, 1], [], []>} : vector<8x128xbf16>, vector<128x512xbf16>, vector<8x512xf32> -> vector<8x512xf32>
    %cst_174 = arith.constant dense<0.000000e+00> : vector<8x512xf32>
    %502 = tpu.matmul %500, %303, %cst_174 {dimension_numbers = #tpu.dot_dimension_numbers<[1], [0], [0], [1], [0, 0, 1, 1], [], []>} : vector<8x128xbf16>, vector<128x512xbf16>, vector<8x512xf32> -> vector<8x512xf32>
    %503 = arith.addf %501, %502 : vector<8x512xf32>
    %504 = arith.truncf %452 : vector<8x128xf32> to vector<8x128xbf16>
    %cst_175 = arith.constant dense<0.000000e+00> : vector<8x512xf32>
    %505 = tpu.matmul %504, %304, %cst_175 {dimension_numbers = #tpu.dot_dimension_numbers<[1], [0], [0], [1], [0, 0, 1, 1], [], []>} : vector<8x128xbf16>, vector<128x512xbf16>, vector<8x512xf32> -> vector<8x512xf32>
    %506 = arith.addf %503, %505 : vector<8x512xf32>
    %507 = vector.broadcast %305 : vector<1x512xf32> to vector<8x512xf32>
    %508 = arith.addf %506, %507 : vector<8x512xf32>
    %509 = vector.extract_strided_slice %508 {offsets = [0, 0], sizes = [8, 128], strides = [1, 1]} : vector<8x512xf32> to vector<8x128xf32>
    %510 = arith.negf %509 : vector<8x128xf32>
    %511 = math.exp %510 : vector<8x128xf32>
    %cst_176 = arith.constant 1.000000e+00 : f32
    %512 = vector.broadcast %cst_176 : f32 to vector<8x128xf32>
    %513 = arith.addf %512, %511 : vector<8x128xf32>
    %514 = arith.divf %512, %513 : vector<8x128xf32>
    %515 = vector.extract_strided_slice %508 {offsets = [0, 128], sizes = [8, 128], strides = [1, 1]} : vector<8x512xf32> to vector<8x128xf32>
    %516 = arith.negf %515 : vector<8x128xf32>
    %517 = math.exp %516 : vector<8x128xf32>
    %cst_177 = arith.constant 1.000000e+00 : f32
    %518 = vector.broadcast %cst_177 : f32 to vector<8x128xf32>
    %519 = arith.addf %518, %517 : vector<8x128xf32>
    %520 = arith.divf %518, %519 : vector<8x128xf32>
    %521 = vector.extract_strided_slice %508 {offsets = [0, 256], sizes = [8, 128], strides = [1, 1]} : vector<8x512xf32> to vector<8x128xf32>
    %522 = math.tanh %521 : vector<8x128xf32>
    %523 = vector.extract_strided_slice %508 {offsets = [0, 384], sizes = [8, 128], strides = [1, 1]} : vector<8x512xf32> to vector<8x128xf32>
    %524 = arith.negf %523 : vector<8x128xf32>
    %525 = math.exp %524 : vector<8x128xf32>
    %cst_178 = arith.constant 1.000000e+00 : f32
    %526 = vector.broadcast %cst_178 : f32 to vector<8x128xf32>
    %527 = arith.addf %526, %525 : vector<8x128xf32>
    %528 = arith.divf %526, %527 : vector<8x128xf32>
    %529 = arith.mulf %520, %450 : vector<8x128xf32>
    %530 = arith.mulf %514, %522 : vector<8x128xf32>
    %531 = arith.addf %529, %530 : vector<8x128xf32>
    %532 = math.tanh %531 : vector<8x128xf32>
    %533 = arith.mulf %528, %532 : vector<8x128xf32>
    %534 = arith.truncf %533 : vector<8x128xf32> to vector<8x128xbf16>
    %cst_179 = arith.constant dense<0.000000e+00> : vector<8x256xf32>
    %535 = tpu.matmul %534, %306, %cst_179 {dimension_numbers = #tpu.dot_dimension_numbers<[1], [0], [0], [1], [0, 0, 1, 1], [], []>} : vector<8x128xbf16>, vector<128x256xbf16>, vector<8x256xf32> -> vector<8x256xf32>
    %cst_180 = arith.constant dense<0.000000e+00> : vector<8x256xf32>
    %536 = tpu.matmul %500, %307, %cst_180 {dimension_numbers = #tpu.dot_dimension_numbers<[1], [0], [0], [1], [0, 0, 1, 1], [], []>} : vector<8x128xbf16>, vector<128x256xbf16>, vector<8x256xf32> -> vector<8x256xf32>
    %537 = arith.addf %535, %536 : vector<8x256xf32>
    %cst_181 = arith.constant dense<0.000000e+00> : vector<8x256xf32>
    %538 = tpu.matmul %481, %308, %cst_181 {dimension_numbers = #tpu.dot_dimension_numbers<[1], [0], [0], [1], [0, 0, 1, 1], [], []>} : vector<8x128xbf16>, vector<128x256xbf16>, vector<8x256xf32> -> vector<8x256xf32>
    %539 = arith.addf %537, %538 : vector<8x256xf32>
    %540 = vector.broadcast %309 : vector<1x256xf32> to vector<8x256xf32>
    %541 = arith.addf %539, %540 : vector<8x256xf32>
    %c3_182 = arith.constant 3 : index
    %c0_183 = arith.constant 0 : index
    %c0_184 = arith.constant 0 : index
    %542 = vector.load %arg10[%c3_182, %c0_183, %c0_184] : memref<8x8x256xf32, #tpu.memory_space<vmem>>, vector<1x8x256xf32>
    %543 = vector.shape_cast %542 : vector<1x8x256xf32> to vector<8x256xf32>
    %544 = vector.shape_cast %541 : vector<8x256xf32> to vector<1x8x256xf32>
    tpu.vector_store %arg10[%c3_182, %c0_183, %c0_184], %544 {strides = array<i32>} : memref<8x8x256xf32, #tpu.memory_space<vmem>>, vector<1x8x256xf32>,
    %c3_185 = arith.constant 3 : index
    %545 = memref.load %arg0[%c3_185] : memref<8xi32, #tpu.memory_space<smem>>
    %c0_i32_186 = arith.constant 0 : i32
    %546 = arith.cmpi eq, %545, %c0_i32_186 : i32
    %547 = arith.extui %546 : i1 to i32
    %c0_i32_187 = arith.constant 0 : i32
    %548 = arith.cmpi ne, %547, %c0_i32_187 : i32
    scf.if %548 {
      %869 = tpu.iota {dimensions = array<i32: 1>} : vector<8x256xi32>
      %cst_293 = arith.constant dense<0xFF800000> : vector<8xf32>
      %870 = vector.multi_reduction <maximumf>, %541, %cst_293 [1] : vector<8x256xf32> to vector<8xf32>
      %871 = vector.shape_cast %870 : vector<8xf32> to vector<8x1xf32>
      %872 = vector.broadcast %871 : vector<8x1xf32> to vector<8x256xf32>
      %873 = arith.cmpf oge, %541, %872 : vector<8x256xf32>
      %c256_i32 = arith.constant 256 : i32
      %874 = vector.broadcast %c256_i32 : i32 to vector<8x256xi32>
      %875 = arith.select %873, %869, %874 : vector<8x256xi1>, vector<8x256xi32>
      %cst_294 = arith.constant dense<2147483647> : vector<8xi32>
      %876 = vector.multi_reduction <minsi>, %875, %cst_294 [1] : vector<8x256xi32> to vector<8xi32>
      %877 = vector.shape_cast %876 : vector<8xi32> to vector<8x1xi32>
      %878 = vector.broadcast %877 : vector<8x1xi32> to vector<8x256xi32>
      %879 = arith.cmpi eq, %869, %878 : vector<8x256xi32>
      %880 = arith.extui %879 : vector<8x256xi1> to vector<8x256xi32>
      %881 = arith.sitofp %880 : vector<8x256xi32> to vector<8x256xf32>
      %882 = arith.truncf %881 : vector<8x256xf32> to vector<8x256xbf16>
      %cst_295 = arith.constant dense<0.000000e+00> : vector<8x128xf32>
      %883 = tpu.matmul %882, %310, %cst_295 {dimension_numbers = #tpu.dot_dimension_numbers<[1], [0], [0], [1], [0, 0, 1, 1], [], []>} : vector<8x256xbf16>, vector<256x128xbf16>, vector<8x128xf32> -> vector<8x128xf32>
      %c0_296 = arith.constant 0 : index
      %c0_297 = arith.constant 0 : index
      %884 = vector.load %arg12[%c0_296, %c0_297] : memref<8x128xf32, #tpu.memory_space<vmem>>, vector<8x128xf32>
      tpu.vector_store %arg12[%c0_296, %c0_297], %883 {strides = array<i32>} : memref<8x128xf32, #tpu.memory_space<vmem>>, vector<8x128xf32>,
    } else {
    }
    %c3_188 = arith.constant 3 : index
    %549 = memref.load %arg0[%c3_188] : memref<8xi32, #tpu.memory_space<smem>>
    %c0_i32_189 = arith.constant 0 : i32
    %550 = arith.cmpi ne, %549, %c0_i32_189 : i32
    %551 = arith.extui %550 : i1 to i32
    %552 = arith.sitofp %551 : i32 to f32
    %c3_190 = arith.constant 3 : index
    %c0_191 = arith.constant 0 : index
    %c0_192 = arith.constant 0 : index
    %553 = vector.load %arg2[%c3_190, %c0_191, %c0_192] : memref<8x8x128xf32, #tpu.memory_space<vmem>>, vector<1x8x128xf32>
    %554 = vector.shape_cast %553 : vector<1x8x128xf32> to vector<8x128xf32>
    %555 = vector.broadcast %552 : f32 to vector<8x128xf32>
    %556 = arith.mulf %555, %554 : vector<8x128xf32>
    %cst_193 = arith.constant 1.000000e+00 : f32
    %557 = arith.subf %cst_193, %552 : f32
    %c0_194 = arith.constant 0 : index
    %c0_195 = arith.constant 0 : index
    %558 = vector.load %arg12[%c0_194, %c0_195] : memref<8x128xf32, #tpu.memory_space<vmem>>, vector<8x128xf32>
    %559 = vector.broadcast %557 : f32 to vector<8x128xf32>
    %560 = arith.mulf %559, %558 : vector<8x128xf32>
    %561 = arith.addf %556, %560 : vector<8x128xf32>
    %562 = arith.truncf %561 : vector<8x128xf32> to vector<8x128xbf16>
    %563 = vector.shape_cast %533 : vector<8x128xf32> to vector<1x8x128xf32>
    %564 = vector.broadcast %563 : vector<1x8x128xf32> to vector<8x8x128xf32>
    %565 = arith.mulf %301, %564 : vector<8x8x128xf32>
    %cst_196 = arith.constant dense<0.000000e+00> : vector<8x8xf32>
    %566 = vector.multi_reduction <add>, %565, %cst_196 [2] : vector<8x8x128xf32> to vector<8x8xf32>
    %567 = vector.shape_cast %566 : vector<8x8xf32> to vector<8x8x1xf32>
    %cst_197 = arith.constant dense<0xFF800000> : vector<8x1xf32>
    %568 = vector.multi_reduction <maximumf>, %567, %cst_197 [0] : vector<8x8x1xf32> to vector<8x1xf32>
    %569 = vector.shape_cast %568 : vector<8x1xf32> to vector<1x8x1xf32>
    %570 = vector.broadcast %569 : vector<1x8x1xf32> to vector<8x8x1xf32>
    %571 = arith.subf %567, %570 : vector<8x8x1xf32>
    %572 = math.exp %571 : vector<8x8x1xf32>
    %cst_198 = arith.constant dense<0.000000e+00> : vector<8x1xf32>
    %573 = vector.multi_reduction <add>, %572, %cst_198 [0] : vector<8x8x1xf32> to vector<8x1xf32>
    %574 = vector.shape_cast %573 : vector<8x1xf32> to vector<1x8x1xf32>
    %575 = tpu.reciprocal %574 {approx = true} : vector<1x8x1xf32> -> vector<1x8x1xf32>
    %576 = vector.broadcast %575 : vector<1x8x1xf32> to vector<8x8x1xf32>
    %577 = arith.mulf %572, %576 : vector<8x8x1xf32>
    %578 = vector.broadcast %577 : vector<8x8x1xf32> to vector<8x8x128xf32>
    %579 = arith.mulf %578, %301 : vector<8x8x128xf32>
    %cst_199 = arith.constant dense<0.000000e+00> : vector<8x128xf32>
    %580 = vector.multi_reduction <add>, %579, %cst_199 [0] : vector<8x8x128xf32> to vector<8x128xf32>
    %581 = arith.truncf %580 : vector<8x128xf32> to vector<8x128xbf16>
    %cst_200 = arith.constant dense<0.000000e+00> : vector<8x512xf32>
    %582 = tpu.matmul %562, %302, %cst_200 {dimension_numbers = #tpu.dot_dimension_numbers<[1], [0], [0], [1], [0, 0, 1, 1], [], []>} : vector<8x128xbf16>, vector<128x512xbf16>, vector<8x512xf32> -> vector<8x512xf32>
    %cst_201 = arith.constant dense<0.000000e+00> : vector<8x512xf32>
    %583 = tpu.matmul %581, %303, %cst_201 {dimension_numbers = #tpu.dot_dimension_numbers<[1], [0], [0], [1], [0, 0, 1, 1], [], []>} : vector<8x128xbf16>, vector<128x512xbf16>, vector<8x512xf32> -> vector<8x512xf32>
    %584 = arith.addf %582, %583 : vector<8x512xf32>
    %585 = arith.truncf %533 : vector<8x128xf32> to vector<8x128xbf16>
    %cst_202 = arith.constant dense<0.000000e+00> : vector<8x512xf32>
    %586 = tpu.matmul %585, %304, %cst_202 {dimension_numbers = #tpu.dot_dimension_numbers<[1], [0], [0], [1], [0, 0, 1, 1], [], []>} : vector<8x128xbf16>, vector<128x512xbf16>, vector<8x512xf32> -> vector<8x512xf32>
    %587 = arith.addf %584, %586 : vector<8x512xf32>
    %588 = vector.broadcast %305 : vector<1x512xf32> to vector<8x512xf32>
    %589 = arith.addf %587, %588 : vector<8x512xf32>
    %590 = vector.extract_strided_slice %589 {offsets = [0, 0], sizes = [8, 128], strides = [1, 1]} : vector<8x512xf32> to vector<8x128xf32>
    %591 = arith.negf %590 : vector<8x128xf32>
    %592 = math.exp %591 : vector<8x128xf32>
    %cst_203 = arith.constant 1.000000e+00 : f32
    %593 = vector.broadcast %cst_203 : f32 to vector<8x128xf32>
    %594 = arith.addf %593, %592 : vector<8x128xf32>
    %595 = arith.divf %593, %594 : vector<8x128xf32>
    %596 = vector.extract_strided_slice %589 {offsets = [0, 128], sizes = [8, 128], strides = [1, 1]} : vector<8x512xf32> to vector<8x128xf32>
    %597 = arith.negf %596 : vector<8x128xf32>
    %598 = math.exp %597 : vector<8x128xf32>
    %cst_204 = arith.constant 1.000000e+00 : f32
    %599 = vector.broadcast %cst_204 : f32 to vector<8x128xf32>
    %600 = arith.addf %599, %598 : vector<8x128xf32>
    %601 = arith.divf %599, %600 : vector<8x128xf32>
    %602 = vector.extract_strided_slice %589 {offsets = [0, 256], sizes = [8, 128], strides = [1, 1]} : vector<8x512xf32> to vector<8x128xf32>
    %603 = math.tanh %602 : vector<8x128xf32>
    %604 = vector.extract_strided_slice %589 {offsets = [0, 384], sizes = [8, 128], strides = [1, 1]} : vector<8x512xf32> to vector<8x128xf32>
    %605 = arith.negf %604 : vector<8x128xf32>
    %606 = math.exp %605 : vector<8x128xf32>
    %cst_205 = arith.constant 1.000000e+00 : f32
    %607 = vector.broadcast %cst_205 : f32 to vector<8x128xf32>
    %608 = arith.addf %607, %606 : vector<8x128xf32>
    %609 = arith.divf %607, %608 : vector<8x128xf32>
    %610 = arith.mulf %601, %531 : vector<8x128xf32>
    %611 = arith.mulf %595, %603 : vector<8x128xf32>
    %612 = arith.addf %610, %611 : vector<8x128xf32>
    %613 = math.tanh %612 : vector<8x128xf32>
    %614 = arith.mulf %609, %613 : vector<8x128xf32>
    %615 = arith.truncf %614 : vector<8x128xf32> to vector<8x128xbf16>
    %cst_206 = arith.constant dense<0.000000e+00> : vector<8x256xf32>
    %616 = tpu.matmul %615, %306, %cst_206 {dimension_numbers = #tpu.dot_dimension_numbers<[1], [0], [0], [1], [0, 0, 1, 1], [], []>} : vector<8x128xbf16>, vector<128x256xbf16>, vector<8x256xf32> -> vector<8x256xf32>
    %cst_207 = arith.constant dense<0.000000e+00> : vector<8x256xf32>
    %617 = tpu.matmul %581, %307, %cst_207 {dimension_numbers = #tpu.dot_dimension_numbers<[1], [0], [0], [1], [0, 0, 1, 1], [], []>} : vector<8x128xbf16>, vector<128x256xbf16>, vector<8x256xf32> -> vector<8x256xf32>
    %618 = arith.addf %616, %617 : vector<8x256xf32>
    %cst_208 = arith.constant dense<0.000000e+00> : vector<8x256xf32>
    %619 = tpu.matmul %562, %308, %cst_208 {dimension_numbers = #tpu.dot_dimension_numbers<[1], [0], [0], [1], [0, 0, 1, 1], [], []>} : vector<8x128xbf16>, vector<128x256xbf16>, vector<8x256xf32> -> vector<8x256xf32>
    %620 = arith.addf %618, %619 : vector<8x256xf32>
    %621 = vector.broadcast %309 : vector<1x256xf32> to vector<8x256xf32>
    %622 = arith.addf %620, %621 : vector<8x256xf32>
    %c4_209 = arith.constant 4 : index
    %c0_210 = arith.constant 0 : index
    %c0_211 = arith.constant 0 : index
    %623 = vector.load %arg10[%c4_209, %c0_210, %c0_211] : memref<8x8x256xf32, #tpu.memory_space<vmem>>, vector<1x8x256xf32>
    %624 = vector.shape_cast %623 : vector<1x8x256xf32> to vector<8x256xf32>
    %625 = vector.shape_cast %622 : vector<8x256xf32> to vector<1x8x256xf32>
    tpu.vector_store %arg10[%c4_209, %c0_210, %c0_211], %625 {strides = array<i32>} : memref<8x8x256xf32, #tpu.memory_space<vmem>>, vector<1x8x256xf32>,
    %c4_212 = arith.constant 4 : index
    %626 = memref.load %arg0[%c4_212] : memref<8xi32, #tpu.memory_space<smem>>
    %c0_i32_213 = arith.constant 0 : i32
    %627 = arith.cmpi eq, %626, %c0_i32_213 : i32
    %628 = arith.extui %627 : i1 to i32
    %c0_i32_214 = arith.constant 0 : i32
    %629 = arith.cmpi ne, %628, %c0_i32_214 : i32
    scf.if %629 {
      %869 = tpu.iota {dimensions = array<i32: 1>} : vector<8x256xi32>
      %cst_293 = arith.constant dense<0xFF800000> : vector<8xf32>
      %870 = vector.multi_reduction <maximumf>, %622, %cst_293 [1] : vector<8x256xf32> to vector<8xf32>
      %871 = vector.shape_cast %870 : vector<8xf32> to vector<8x1xf32>
      %872 = vector.broadcast %871 : vector<8x1xf32> to vector<8x256xf32>
      %873 = arith.cmpf oge, %622, %872 : vector<8x256xf32>
      %c256_i32 = arith.constant 256 : i32
      %874 = vector.broadcast %c256_i32 : i32 to vector<8x256xi32>
      %875 = arith.select %873, %869, %874 : vector<8x256xi1>, vector<8x256xi32>
      %cst_294 = arith.constant dense<2147483647> : vector<8xi32>
      %876 = vector.multi_reduction <minsi>, %875, %cst_294 [1] : vector<8x256xi32> to vector<8xi32>
      %877 = vector.shape_cast %876 : vector<8xi32> to vector<8x1xi32>
      %878 = vector.broadcast %877 : vector<8x1xi32> to vector<8x256xi32>
      %879 = arith.cmpi eq, %869, %878 : vector<8x256xi32>
      %880 = arith.extui %879 : vector<8x256xi1> to vector<8x256xi32>
      %881 = arith.sitofp %880 : vector<8x256xi32> to vector<8x256xf32>
      %882 = arith.truncf %881 : vector<8x256xf32> to vector<8x256xbf16>
      %cst_295 = arith.constant dense<0.000000e+00> : vector<8x128xf32>
      %883 = tpu.matmul %882, %310, %cst_295 {dimension_numbers = #tpu.dot_dimension_numbers<[1], [0], [0], [1], [0, 0, 1, 1], [], []>} : vector<8x256xbf16>, vector<256x128xbf16>, vector<8x128xf32> -> vector<8x128xf32>
      %c0_296 = arith.constant 0 : index
      %c0_297 = arith.constant 0 : index
      %884 = vector.load %arg12[%c0_296, %c0_297] : memref<8x128xf32, #tpu.memory_space<vmem>>, vector<8x128xf32>
      tpu.vector_store %arg12[%c0_296, %c0_297], %883 {strides = array<i32>} : memref<8x128xf32, #tpu.memory_space<vmem>>, vector<8x128xf32>,
    } else {
    }
    %c4_215 = arith.constant 4 : index
    %630 = memref.load %arg0[%c4_215] : memref<8xi32, #tpu.memory_space<smem>>
    %c0_i32_216 = arith.constant 0 : i32
    %631 = arith.cmpi ne, %630, %c0_i32_216 : i32
    %632 = arith.extui %631 : i1 to i32
    %633 = arith.sitofp %632 : i32 to f32
    %c4_217 = arith.constant 4 : index
    %c0_218 = arith.constant 0 : index
    %c0_219 = arith.constant 0 : index
    %634 = vector.load %arg2[%c4_217, %c0_218, %c0_219] : memref<8x8x128xf32, #tpu.memory_space<vmem>>, vector<1x8x128xf32>
    %635 = vector.shape_cast %634 : vector<1x8x128xf32> to vector<8x128xf32>
    %636 = vector.broadcast %633 : f32 to vector<8x128xf32>
    %637 = arith.mulf %636, %635 : vector<8x128xf32>
    %cst_220 = arith.constant 1.000000e+00 : f32
    %638 = arith.subf %cst_220, %633 : f32
    %c0_221 = arith.constant 0 : index
    %c0_222 = arith.constant 0 : index
    %639 = vector.load %arg12[%c0_221, %c0_222] : memref<8x128xf32, #tpu.memory_space<vmem>>, vector<8x128xf32>
    %640 = vector.broadcast %638 : f32 to vector<8x128xf32>
    %641 = arith.mulf %640, %639 : vector<8x128xf32>
    %642 = arith.addf %637, %641 : vector<8x128xf32>
    %643 = arith.truncf %642 : vector<8x128xf32> to vector<8x128xbf16>
    %644 = vector.shape_cast %614 : vector<8x128xf32> to vector<1x8x128xf32>
    %645 = vector.broadcast %644 : vector<1x8x128xf32> to vector<8x8x128xf32>
    %646 = arith.mulf %301, %645 : vector<8x8x128xf32>
    %cst_223 = arith.constant dense<0.000000e+00> : vector<8x8xf32>
    %647 = vector.multi_reduction <add>, %646, %cst_223 [2] : vector<8x8x128xf32> to vector<8x8xf32>
    %648 = vector.shape_cast %647 : vector<8x8xf32> to vector<8x8x1xf32>
    %cst_224 = arith.constant dense<0xFF800000> : vector<8x1xf32>
    %649 = vector.multi_reduction <maximumf>, %648, %cst_224 [0] : vector<8x8x1xf32> to vector<8x1xf32>
    %650 = vector.shape_cast %649 : vector<8x1xf32> to vector<1x8x1xf32>
    %651 = vector.broadcast %650 : vector<1x8x1xf32> to vector<8x8x1xf32>
    %652 = arith.subf %648, %651 : vector<8x8x1xf32>
    %653 = math.exp %652 : vector<8x8x1xf32>
    %cst_225 = arith.constant dense<0.000000e+00> : vector<8x1xf32>
    %654 = vector.multi_reduction <add>, %653, %cst_225 [0] : vector<8x8x1xf32> to vector<8x1xf32>
    %655 = vector.shape_cast %654 : vector<8x1xf32> to vector<1x8x1xf32>
    %656 = tpu.reciprocal %655 {approx = true} : vector<1x8x1xf32> -> vector<1x8x1xf32>
    %657 = vector.broadcast %656 : vector<1x8x1xf32> to vector<8x8x1xf32>
    %658 = arith.mulf %653, %657 : vector<8x8x1xf32>
    %659 = vector.broadcast %658 : vector<8x8x1xf32> to vector<8x8x128xf32>
    %660 = arith.mulf %659, %301 : vector<8x8x128xf32>
    %cst_226 = arith.constant dense<0.000000e+00> : vector<8x128xf32>
    %661 = vector.multi_reduction <add>, %660, %cst_226 [0] : vector<8x8x128xf32> to vector<8x128xf32>
    %662 = arith.truncf %661 : vector<8x128xf32> to vector<8x128xbf16>
    %cst_227 = arith.constant dense<0.000000e+00> : vector<8x512xf32>
    %663 = tpu.matmul %643, %302, %cst_227 {dimension_numbers = #tpu.dot_dimension_numbers<[1], [0], [0], [1], [0, 0, 1, 1], [], []>} : vector<8x128xbf16>, vector<128x512xbf16>, vector<8x512xf32> -> vector<8x512xf32>
    %cst_228 = arith.constant dense<0.000000e+00> : vector<8x512xf32>
    %664 = tpu.matmul %662, %303, %cst_228 {dimension_numbers = #tpu.dot_dimension_numbers<[1], [0], [0], [1], [0, 0, 1, 1], [], []>} : vector<8x128xbf16>, vector<128x512xbf16>, vector<8x512xf32> -> vector<8x512xf32>
    %665 = arith.addf %663, %664 : vector<8x512xf32>
    %666 = arith.truncf %614 : vector<8x128xf32> to vector<8x128xbf16>
    %cst_229 = arith.constant dense<0.000000e+00> : vector<8x512xf32>
    %667 = tpu.matmul %666, %304, %cst_229 {dimension_numbers = #tpu.dot_dimension_numbers<[1], [0], [0], [1], [0, 0, 1, 1], [], []>} : vector<8x128xbf16>, vector<128x512xbf16>, vector<8x512xf32> -> vector<8x512xf32>
    %668 = arith.addf %665, %667 : vector<8x512xf32>
    %669 = vector.broadcast %305 : vector<1x512xf32> to vector<8x512xf32>
    %670 = arith.addf %668, %669 : vector<8x512xf32>
    %671 = vector.extract_strided_slice %670 {offsets = [0, 0], sizes = [8, 128], strides = [1, 1]} : vector<8x512xf32> to vector<8x128xf32>
    %672 = arith.negf %671 : vector<8x128xf32>
    %673 = math.exp %672 : vector<8x128xf32>
    %cst_230 = arith.constant 1.000000e+00 : f32
    %674 = vector.broadcast %cst_230 : f32 to vector<8x128xf32>
    %675 = arith.addf %674, %673 : vector<8x128xf32>
    %676 = arith.divf %674, %675 : vector<8x128xf32>
    %677 = vector.extract_strided_slice %670 {offsets = [0, 128], sizes = [8, 128], strides = [1, 1]} : vector<8x512xf32> to vector<8x128xf32>
    %678 = arith.negf %677 : vector<8x128xf32>
    %679 = math.exp %678 : vector<8x128xf32>
    %cst_231 = arith.constant 1.000000e+00 : f32
    %680 = vector.broadcast %cst_231 : f32 to vector<8x128xf32>
    %681 = arith.addf %680, %679 : vector<8x128xf32>
    %682 = arith.divf %680, %681 : vector<8x128xf32>
    %683 = vector.extract_strided_slice %670 {offsets = [0, 256], sizes = [8, 128], strides = [1, 1]} : vector<8x512xf32> to vector<8x128xf32>
    %684 = math.tanh %683 : vector<8x128xf32>
    %685 = vector.extract_strided_slice %670 {offsets = [0, 384], sizes = [8, 128], strides = [1, 1]} : vector<8x512xf32> to vector<8x128xf32>
    %686 = arith.negf %685 : vector<8x128xf32>
    %687 = math.exp %686 : vector<8x128xf32>
    %cst_232 = arith.constant 1.000000e+00 : f32
    %688 = vector.broadcast %cst_232 : f32 to vector<8x128xf32>
    %689 = arith.addf %688, %687 : vector<8x128xf32>
    %690 = arith.divf %688, %689 : vector<8x128xf32>
    %691 = arith.mulf %682, %612 : vector<8x128xf32>
    %692 = arith.mulf %676, %684 : vector<8x128xf32>
    %693 = arith.addf %691, %692 : vector<8x128xf32>
    %694 = math.tanh %693 : vector<8x128xf32>
    %695 = arith.mulf %690, %694 : vector<8x128xf32>
    %696 = arith.truncf %695 : vector<8x128xf32> to vector<8x128xbf16>
    %cst_233 = arith.constant dense<0.000000e+00> : vector<8x256xf32>
    %697 = tpu.matmul %696, %306, %cst_233 {dimension_numbers = #tpu.dot_dimension_numbers<[1], [0], [0], [1], [0, 0, 1, 1], [], []>} : vector<8x128xbf16>, vector<128x256xbf16>, vector<8x256xf32> -> vector<8x256xf32>
    %cst_234 = arith.constant dense<0.000000e+00> : vector<8x256xf32>
    %698 = tpu.matmul %662, %307, %cst_234 {dimension_numbers = #tpu.dot_dimension_numbers<[1], [0], [0], [1], [0, 0, 1, 1], [], []>} : vector<8x128xbf16>, vector<128x256xbf16>, vector<8x256xf32> -> vector<8x256xf32>
    %699 = arith.addf %697, %698 : vector<8x256xf32>
    %cst_235 = arith.constant dense<0.000000e+00> : vector<8x256xf32>
    %700 = tpu.matmul %643, %308, %cst_235 {dimension_numbers = #tpu.dot_dimension_numbers<[1], [0], [0], [1], [0, 0, 1, 1], [], []>} : vector<8x128xbf16>, vector<128x256xbf16>, vector<8x256xf32> -> vector<8x256xf32>
    %701 = arith.addf %699, %700 : vector<8x256xf32>
    %702 = vector.broadcast %309 : vector<1x256xf32> to vector<8x256xf32>
    %703 = arith.addf %701, %702 : vector<8x256xf32>
    %c5_236 = arith.constant 5 : index
    %c0_237 = arith.constant 0 : index
    %c0_238 = arith.constant 0 : index
    %704 = vector.load %arg10[%c5_236, %c0_237, %c0_238] : memref<8x8x256xf32, #tpu.memory_space<vmem>>, vector<1x8x256xf32>
    %705 = vector.shape_cast %704 : vector<1x8x256xf32> to vector<8x256xf32>
    %706 = vector.shape_cast %703 : vector<8x256xf32> to vector<1x8x256xf32>
    tpu.vector_store %arg10[%c5_236, %c0_237, %c0_238], %706 {strides = array<i32>} : memref<8x8x256xf32, #tpu.memory_space<vmem>>, vector<1x8x256xf32>,
    %c5_239 = arith.constant 5 : index
    %707 = memref.load %arg0[%c5_239] : memref<8xi32, #tpu.memory_space<smem>>
    %c0_i32_240 = arith.constant 0 : i32
    %708 = arith.cmpi eq, %707, %c0_i32_240 : i32
    %709 = arith.extui %708 : i1 to i32
    %c0_i32_241 = arith.constant 0 : i32
    %710 = arith.cmpi ne, %709, %c0_i32_241 : i32
    scf.if %710 {
      %869 = tpu.iota {dimensions = array<i32: 1>} : vector<8x256xi32>
      %cst_293 = arith.constant dense<0xFF800000> : vector<8xf32>
      %870 = vector.multi_reduction <maximumf>, %703, %cst_293 [1] : vector<8x256xf32> to vector<8xf32>
      %871 = vector.shape_cast %870 : vector<8xf32> to vector<8x1xf32>
      %872 = vector.broadcast %871 : vector<8x1xf32> to vector<8x256xf32>
      %873 = arith.cmpf oge, %703, %872 : vector<8x256xf32>
      %c256_i32 = arith.constant 256 : i32
      %874 = vector.broadcast %c256_i32 : i32 to vector<8x256xi32>
      %875 = arith.select %873, %869, %874 : vector<8x256xi1>, vector<8x256xi32>
      %cst_294 = arith.constant dense<2147483647> : vector<8xi32>
      %876 = vector.multi_reduction <minsi>, %875, %cst_294 [1] : vector<8x256xi32> to vector<8xi32>
      %877 = vector.shape_cast %876 : vector<8xi32> to vector<8x1xi32>
      %878 = vector.broadcast %877 : vector<8x1xi32> to vector<8x256xi32>
      %879 = arith.cmpi eq, %869, %878 : vector<8x256xi32>
      %880 = arith.extui %879 : vector<8x256xi1> to vector<8x256xi32>
      %881 = arith.sitofp %880 : vector<8x256xi32> to vector<8x256xf32>
      %882 = arith.truncf %881 : vector<8x256xf32> to vector<8x256xbf16>
      %cst_295 = arith.constant dense<0.000000e+00> : vector<8x128xf32>
      %883 = tpu.matmul %882, %310, %cst_295 {dimension_numbers = #tpu.dot_dimension_numbers<[1], [0], [0], [1], [0, 0, 1, 1], [], []>} : vector<8x256xbf16>, vector<256x128xbf16>, vector<8x128xf32> -> vector<8x128xf32>
      %c0_296 = arith.constant 0 : index
      %c0_297 = arith.constant 0 : index
      %884 = vector.load %arg12[%c0_296, %c0_297] : memref<8x128xf32, #tpu.memory_space<vmem>>, vector<8x128xf32>
      tpu.vector_store %arg12[%c0_296, %c0_297], %883 {strides = array<i32>} : memref<8x128xf32, #tpu.memory_space<vmem>>, vector<8x128xf32>,
    } else {
    }
    %c5_242 = arith.constant 5 : index
    %711 = memref.load %arg0[%c5_242] : memref<8xi32, #tpu.memory_space<smem>>
    %c0_i32_243 = arith.constant 0 : i32
    %712 = arith.cmpi ne, %711, %c0_i32_243 : i32
    %713 = arith.extui %712 : i1 to i32
    %714 = arith.sitofp %713 : i32 to f32
    %c5_244 = arith.constant 5 : index
    %c0_245 = arith.constant 0 : index
    %c0_246 = arith.constant 0 : index
    %715 = vector.load %arg2[%c5_244, %c0_245, %c0_246] : memref<8x8x128xf32, #tpu.memory_space<vmem>>, vector<1x8x128xf32>
    %716 = vector.shape_cast %715 : vector<1x8x128xf32> to vector<8x128xf32>
    %717 = vector.broadcast %714 : f32 to vector<8x128xf32>
    %718 = arith.mulf %717, %716 : vector<8x128xf32>
    %cst_247 = arith.constant 1.000000e+00 : f32
    %719 = arith.subf %cst_247, %714 : f32
    %c0_248 = arith.constant 0 : index
    %c0_249 = arith.constant 0 : index
    %720 = vector.load %arg12[%c0_248, %c0_249] : memref<8x128xf32, #tpu.memory_space<vmem>>, vector<8x128xf32>
    %721 = vector.broadcast %719 : f32 to vector<8x128xf32>
    %722 = arith.mulf %721, %720 : vector<8x128xf32>
    %723 = arith.addf %718, %722 : vector<8x128xf32>
    %724 = arith.truncf %723 : vector<8x128xf32> to vector<8x128xbf16>
    %725 = vector.shape_cast %695 : vector<8x128xf32> to vector<1x8x128xf32>
    %726 = vector.broadcast %725 : vector<1x8x128xf32> to vector<8x8x128xf32>
    %727 = arith.mulf %301, %726 : vector<8x8x128xf32>
    %cst_250 = arith.constant dense<0.000000e+00> : vector<8x8xf32>
    %728 = vector.multi_reduction <add>, %727, %cst_250 [2] : vector<8x8x128xf32> to vector<8x8xf32>
    %729 = vector.shape_cast %728 : vector<8x8xf32> to vector<8x8x1xf32>
    %cst_251 = arith.constant dense<0xFF800000> : vector<8x1xf32>
    %730 = vector.multi_reduction <maximumf>, %729, %cst_251 [0] : vector<8x8x1xf32> to vector<8x1xf32>
    %731 = vector.shape_cast %730 : vector<8x1xf32> to vector<1x8x1xf32>
    %732 = vector.broadcast %731 : vector<1x8x1xf32> to vector<8x8x1xf32>
    %733 = arith.subf %729, %732 : vector<8x8x1xf32>
    %734 = math.exp %733 : vector<8x8x1xf32>
    %cst_252 = arith.constant dense<0.000000e+00> : vector<8x1xf32>
    %735 = vector.multi_reduction <add>, %734, %cst_252 [0] : vector<8x8x1xf32> to vector<8x1xf32>
    %736 = vector.shape_cast %735 : vector<8x1xf32> to vector<1x8x1xf32>
    %737 = tpu.reciprocal %736 {approx = true} : vector<1x8x1xf32> -> vector<1x8x1xf32>
    %738 = vector.broadcast %737 : vector<1x8x1xf32> to vector<8x8x1xf32>
    %739 = arith.mulf %734, %738 : vector<8x8x1xf32>
    %740 = vector.broadcast %739 : vector<8x8x1xf32> to vector<8x8x128xf32>
    %741 = arith.mulf %740, %301 : vector<8x8x128xf32>
    %cst_253 = arith.constant dense<0.000000e+00> : vector<8x128xf32>
    %742 = vector.multi_reduction <add>, %741, %cst_253 [0] : vector<8x8x128xf32> to vector<8x128xf32>
    %743 = arith.truncf %742 : vector<8x128xf32> to vector<8x128xbf16>
    %cst_254 = arith.constant dense<0.000000e+00> : vector<8x512xf32>
    %744 = tpu.matmul %724, %302, %cst_254 {dimension_numbers = #tpu.dot_dimension_numbers<[1], [0], [0], [1], [0, 0, 1, 1], [], []>} : vector<8x128xbf16>, vector<128x512xbf16>, vector<8x512xf32> -> vector<8x512xf32>
    %cst_255 = arith.constant dense<0.000000e+00> : vector<8x512xf32>
    %745 = tpu.matmul %743, %303, %cst_255 {dimension_numbers = #tpu.dot_dimension_numbers<[1], [0], [0], [1], [0, 0, 1, 1], [], []>} : vector<8x128xbf16>, vector<128x512xbf16>, vector<8x512xf32> -> vector<8x512xf32>
    %746 = arith.addf %744, %745 : vector<8x512xf32>
    %747 = arith.truncf %695 : vector<8x128xf32> to vector<8x128xbf16>
    %cst_256 = arith.constant dense<0.000000e+00> : vector<8x512xf32>
    %748 = tpu.matmul %747, %304, %cst_256 {dimension_numbers = #tpu.dot_dimension_numbers<[1], [0], [0], [1], [0, 0, 1, 1], [], []>} : vector<8x128xbf16>, vector<128x512xbf16>, vector<8x512xf32> -> vector<8x512xf32>
    %749 = arith.addf %746, %748 : vector<8x512xf32>
    %750 = vector.broadcast %305 : vector<1x512xf32> to vector<8x512xf32>
    %751 = arith.addf %749, %750 : vector<8x512xf32>
    %752 = vector.extract_strided_slice %751 {offsets = [0, 0], sizes = [8, 128], strides = [1, 1]} : vector<8x512xf32> to vector<8x128xf32>
    %753 = arith.negf %752 : vector<8x128xf32>
    %754 = math.exp %753 : vector<8x128xf32>
    %cst_257 = arith.constant 1.000000e+00 : f32
    %755 = vector.broadcast %cst_257 : f32 to vector<8x128xf32>
    %756 = arith.addf %755, %754 : vector<8x128xf32>
    %757 = arith.divf %755, %756 : vector<8x128xf32>
    %758 = vector.extract_strided_slice %751 {offsets = [0, 128], sizes = [8, 128], strides = [1, 1]} : vector<8x512xf32> to vector<8x128xf32>
    %759 = arith.negf %758 : vector<8x128xf32>
    %760 = math.exp %759 : vector<8x128xf32>
    %cst_258 = arith.constant 1.000000e+00 : f32
    %761 = vector.broadcast %cst_258 : f32 to vector<8x128xf32>
    %762 = arith.addf %761, %760 : vector<8x128xf32>
    %763 = arith.divf %761, %762 : vector<8x128xf32>
    %764 = vector.extract_strided_slice %751 {offsets = [0, 256], sizes = [8, 128], strides = [1, 1]} : vector<8x512xf32> to vector<8x128xf32>
    %765 = math.tanh %764 : vector<8x128xf32>
    %766 = vector.extract_strided_slice %751 {offsets = [0, 384], sizes = [8, 128], strides = [1, 1]} : vector<8x512xf32> to vector<8x128xf32>
    %767 = arith.negf %766 : vector<8x128xf32>
    %768 = math.exp %767 : vector<8x128xf32>
    %cst_259 = arith.constant 1.000000e+00 : f32
    %769 = vector.broadcast %cst_259 : f32 to vector<8x128xf32>
    %770 = arith.addf %769, %768 : vector<8x128xf32>
    %771 = arith.divf %769, %770 : vector<8x128xf32>
    %772 = arith.mulf %763, %693 : vector<8x128xf32>
    %773 = arith.mulf %757, %765 : vector<8x128xf32>
    %774 = arith.addf %772, %773 : vector<8x128xf32>
    %775 = math.tanh %774 : vector<8x128xf32>
    %776 = arith.mulf %771, %775 : vector<8x128xf32>
    %777 = arith.truncf %776 : vector<8x128xf32> to vector<8x128xbf16>
    %cst_260 = arith.constant dense<0.000000e+00> : vector<8x256xf32>
    %778 = tpu.matmul %777, %306, %cst_260 {dimension_numbers = #tpu.dot_dimension_numbers<[1], [0], [0], [1], [0, 0, 1, 1], [], []>} : vector<8x128xbf16>, vector<128x256xbf16>, vector<8x256xf32> -> vector<8x256xf32>
    %cst_261 = arith.constant dense<0.000000e+00> : vector<8x256xf32>
    %779 = tpu.matmul %743, %307, %cst_261 {dimension_numbers = #tpu.dot_dimension_numbers<[1], [0], [0], [1], [0, 0, 1, 1], [], []>} : vector<8x128xbf16>, vector<128x256xbf16>, vector<8x256xf32> -> vector<8x256xf32>
    %780 = arith.addf %778, %779 : vector<8x256xf32>
    %cst_262 = arith.constant dense<0.000000e+00> : vector<8x256xf32>
    %781 = tpu.matmul %724, %308, %cst_262 {dimension_numbers = #tpu.dot_dimension_numbers<[1], [0], [0], [1], [0, 0, 1, 1], [], []>} : vector<8x128xbf16>, vector<128x256xbf16>, vector<8x256xf32> -> vector<8x256xf32>
    %782 = arith.addf %780, %781 : vector<8x256xf32>
    %783 = vector.broadcast %309 : vector<1x256xf32> to vector<8x256xf32>
    %784 = arith.addf %782, %783 : vector<8x256xf32>
    %c6_263 = arith.constant 6 : index
    %c0_264 = arith.constant 0 : index
    %c0_265 = arith.constant 0 : index
    %785 = vector.load %arg10[%c6_263, %c0_264, %c0_265] : memref<8x8x256xf32, #tpu.memory_space<vmem>>, vector<1x8x256xf32>
    %786 = vector.shape_cast %785 : vector<1x8x256xf32> to vector<8x256xf32>
    %787 = vector.shape_cast %784 : vector<8x256xf32> to vector<1x8x256xf32>
    tpu.vector_store %arg10[%c6_263, %c0_264, %c0_265], %787 {strides = array<i32>} : memref<8x8x256xf32, #tpu.memory_space<vmem>>, vector<1x8x256xf32>,
    %c6_266 = arith.constant 6 : index
    %788 = memref.load %arg0[%c6_266] : memref<8xi32, #tpu.memory_space<smem>>
    %c0_i32_267 = arith.constant 0 : i32
    %789 = arith.cmpi eq, %788, %c0_i32_267 : i32
    %790 = arith.extui %789 : i1 to i32
    %c0_i32_268 = arith.constant 0 : i32
    %791 = arith.cmpi ne, %790, %c0_i32_268 : i32
    scf.if %791 {
      %869 = tpu.iota {dimensions = array<i32: 1>} : vector<8x256xi32>
      %cst_293 = arith.constant dense<0xFF800000> : vector<8xf32>
      %870 = vector.multi_reduction <maximumf>, %784, %cst_293 [1] : vector<8x256xf32> to vector<8xf32>
      %871 = vector.shape_cast %870 : vector<8xf32> to vector<8x1xf32>
      %872 = vector.broadcast %871 : vector<8x1xf32> to vector<8x256xf32>
      %873 = arith.cmpf oge, %784, %872 : vector<8x256xf32>
      %c256_i32 = arith.constant 256 : i32
      %874 = vector.broadcast %c256_i32 : i32 to vector<8x256xi32>
      %875 = arith.select %873, %869, %874 : vector<8x256xi1>, vector<8x256xi32>
      %cst_294 = arith.constant dense<2147483647> : vector<8xi32>
      %876 = vector.multi_reduction <minsi>, %875, %cst_294 [1] : vector<8x256xi32> to vector<8xi32>
      %877 = vector.shape_cast %876 : vector<8xi32> to vector<8x1xi32>
      %878 = vector.broadcast %877 : vector<8x1xi32> to vector<8x256xi32>
      %879 = arith.cmpi eq, %869, %878 : vector<8x256xi32>
      %880 = arith.extui %879 : vector<8x256xi1> to vector<8x256xi32>
      %881 = arith.sitofp %880 : vector<8x256xi32> to vector<8x256xf32>
      %882 = arith.truncf %881 : vector<8x256xf32> to vector<8x256xbf16>
      %cst_295 = arith.constant dense<0.000000e+00> : vector<8x128xf32>
      %883 = tpu.matmul %882, %310, %cst_295 {dimension_numbers = #tpu.dot_dimension_numbers<[1], [0], [0], [1], [0, 0, 1, 1], [], []>} : vector<8x256xbf16>, vector<256x128xbf16>, vector<8x128xf32> -> vector<8x128xf32>
      %c0_296 = arith.constant 0 : index
      %c0_297 = arith.constant 0 : index
      %884 = vector.load %arg12[%c0_296, %c0_297] : memref<8x128xf32, #tpu.memory_space<vmem>>, vector<8x128xf32>
      tpu.vector_store %arg12[%c0_296, %c0_297], %883 {strides = array<i32>} : memref<8x128xf32, #tpu.memory_space<vmem>>, vector<8x128xf32>,
    } else {
    }
    %c6_269 = arith.constant 6 : index
    %792 = memref.load %arg0[%c6_269] : memref<8xi32, #tpu.memory_space<smem>>
    %c0_i32_270 = arith.constant 0 : i32
    %793 = arith.cmpi ne, %792, %c0_i32_270 : i32
    %794 = arith.extui %793 : i1 to i32
    %795 = arith.sitofp %794 : i32 to f32
    %c6_271 = arith.constant 6 : index
    %c0_272 = arith.constant 0 : index
    %c0_273 = arith.constant 0 : index
    %796 = vector.load %arg2[%c6_271, %c0_272, %c0_273] : memref<8x8x128xf32, #tpu.memory_space<vmem>>, vector<1x8x128xf32>
    %797 = vector.shape_cast %796 : vector<1x8x128xf32> to vector<8x128xf32>
    %798 = vector.broadcast %795 : f32 to vector<8x128xf32>
    %799 = arith.mulf %798, %797 : vector<8x128xf32>
    %cst_274 = arith.constant 1.000000e+00 : f32
    %800 = arith.subf %cst_274, %795 : f32
    %c0_275 = arith.constant 0 : index
    %c0_276 = arith.constant 0 : index
    %801 = vector.load %arg12[%c0_275, %c0_276] : memref<8x128xf32, #tpu.memory_space<vmem>>, vector<8x128xf32>
    %802 = vector.broadcast %800 : f32 to vector<8x128xf32>
    %803 = arith.mulf %802, %801 : vector<8x128xf32>
    %804 = arith.addf %799, %803 : vector<8x128xf32>
    %805 = arith.truncf %804 : vector<8x128xf32> to vector<8x128xbf16>
    %806 = vector.shape_cast %776 : vector<8x128xf32> to vector<1x8x128xf32>
    %807 = vector.broadcast %806 : vector<1x8x128xf32> to vector<8x8x128xf32>
    %808 = arith.mulf %301, %807 : vector<8x8x128xf32>
    %cst_277 = arith.constant dense<0.000000e+00> : vector<8x8xf32>
    %809 = vector.multi_reduction <add>, %808, %cst_277 [2] : vector<8x8x128xf32> to vector<8x8xf32>
    %810 = vector.shape_cast %809 : vector<8x8xf32> to vector<8x8x1xf32>
    %cst_278 = arith.constant dense<0xFF800000> : vector<8x1xf32>
    %811 = vector.multi_reduction <maximumf>, %810, %cst_278 [0] : vector<8x8x1xf32> to vector<8x1xf32>
    %812 = vector.shape_cast %811 : vector<8x1xf32> to vector<1x8x1xf32>
    %813 = vector.broadcast %812 : vector<1x8x1xf32> to vector<8x8x1xf32>
    %814 = arith.subf %810, %813 : vector<8x8x1xf32>
    %815 = math.exp %814 : vector<8x8x1xf32>
    %cst_279 = arith.constant dense<0.000000e+00> : vector<8x1xf32>
    %816 = vector.multi_reduction <add>, %815, %cst_279 [0] : vector<8x8x1xf32> to vector<8x1xf32>
    %817 = vector.shape_cast %816 : vector<8x1xf32> to vector<1x8x1xf32>
    %818 = tpu.reciprocal %817 {approx = true} : vector<1x8x1xf32> -> vector<1x8x1xf32>
    %819 = vector.broadcast %818 : vector<1x8x1xf32> to vector<8x8x1xf32>
    %820 = arith.mulf %815, %819 : vector<8x8x1xf32>
    %821 = vector.broadcast %820 : vector<8x8x1xf32> to vector<8x8x128xf32>
    %822 = arith.mulf %821, %301 : vector<8x8x128xf32>
    %cst_280 = arith.constant dense<0.000000e+00> : vector<8x128xf32>
    %823 = vector.multi_reduction <add>, %822, %cst_280 [0] : vector<8x8x128xf32> to vector<8x128xf32>
    %824 = arith.truncf %823 : vector<8x128xf32> to vector<8x128xbf16>
    %cst_281 = arith.constant dense<0.000000e+00> : vector<8x512xf32>
    %825 = tpu.matmul %805, %302, %cst_281 {dimension_numbers = #tpu.dot_dimension_numbers<[1], [0], [0], [1], [0, 0, 1, 1], [], []>} : vector<8x128xbf16>, vector<128x512xbf16>, vector<8x512xf32> -> vector<8x512xf32>
    %cst_282 = arith.constant dense<0.000000e+00> : vector<8x512xf32>
    %826 = tpu.matmul %824, %303, %cst_282 {dimension_numbers = #tpu.dot_dimension_numbers<[1], [0], [0], [1], [0, 0, 1, 1], [], []>} : vector<8x128xbf16>, vector<128x512xbf16>, vector<8x512xf32> -> vector<8x512xf32>
    %827 = arith.addf %825, %826 : vector<8x512xf32>
    %828 = arith.truncf %776 : vector<8x128xf32> to vector<8x128xbf16>
    %cst_283 = arith.constant dense<0.000000e+00> : vector<8x512xf32>
    %829 = tpu.matmul %828, %304, %cst_283 {dimension_numbers = #tpu.dot_dimension_numbers<[1], [0], [0], [1], [0, 0, 1, 1], [], []>} : vector<8x128xbf16>, vector<128x512xbf16>, vector<8x512xf32> -> vector<8x512xf32>
    %830 = arith.addf %827, %829 : vector<8x512xf32>
    %831 = vector.broadcast %305 : vector<1x512xf32> to vector<8x512xf32>
    %832 = arith.addf %830, %831 : vector<8x512xf32>
    %833 = vector.extract_strided_slice %832 {offsets = [0, 0], sizes = [8, 128], strides = [1, 1]} : vector<8x512xf32> to vector<8x128xf32>
    %834 = arith.negf %833 : vector<8x128xf32>
    %835 = math.exp %834 : vector<8x128xf32>
    %cst_284 = arith.constant 1.000000e+00 : f32
    %836 = vector.broadcast %cst_284 : f32 to vector<8x128xf32>
    %837 = arith.addf %836, %835 : vector<8x128xf32>
    %838 = arith.divf %836, %837 : vector<8x128xf32>
    %839 = vector.extract_strided_slice %832 {offsets = [0, 128], sizes = [8, 128], strides = [1, 1]} : vector<8x512xf32> to vector<8x128xf32>
    %840 = arith.negf %839 : vector<8x128xf32>
    %841 = math.exp %840 : vector<8x128xf32>
    %cst_285 = arith.constant 1.000000e+00 : f32
    %842 = vector.broadcast %cst_285 : f32 to vector<8x128xf32>
    %843 = arith.addf %842, %841 : vector<8x128xf32>
    %844 = arith.divf %842, %843 : vector<8x128xf32>
    %845 = vector.extract_strided_slice %832 {offsets = [0, 256], sizes = [8, 128], strides = [1, 1]} : vector<8x512xf32> to vector<8x128xf32>
    %846 = math.tanh %845 : vector<8x128xf32>
    %847 = vector.extract_strided_slice %832 {offsets = [0, 384], sizes = [8, 128], strides = [1, 1]} : vector<8x512xf32> to vector<8x128xf32>
    %848 = arith.negf %847 : vector<8x128xf32>
    %849 = math.exp %848 : vector<8x128xf32>
    %cst_286 = arith.constant 1.000000e+00 : f32
    %850 = vector.broadcast %cst_286 : f32 to vector<8x128xf32>
    %851 = arith.addf %850, %849 : vector<8x128xf32>
    %852 = arith.divf %850, %851 : vector<8x128xf32>
    %853 = arith.mulf %844, %774 : vector<8x128xf32>
    %854 = arith.mulf %838, %846 : vector<8x128xf32>
    %855 = arith.addf %853, %854 : vector<8x128xf32>
    %856 = math.tanh %855 : vector<8x128xf32>
    %857 = arith.mulf %852, %856 : vector<8x128xf32>
    %858 = arith.truncf %857 : vector<8x128xf32> to vector<8x128xbf16>
    %cst_287 = arith.constant dense<0.000000e+00> : vector<8x256xf32>
    %859 = tpu.matmul %858, %306, %cst_287 {dimension_numbers = #tpu.dot_dimension_numbers<[1], [0], [0], [1], [0, 0, 1, 1], [], []>} : vector<8x128xbf16>, vector<128x256xbf16>, vector<8x256xf32> -> vector<8x256xf32>
    %cst_288 = arith.constant dense<0.000000e+00> : vector<8x256xf32>
    %860 = tpu.matmul %824, %307, %cst_288 {dimension_numbers = #tpu.dot_dimension_numbers<[1], [0], [0], [1], [0, 0, 1, 1], [], []>} : vector<8x128xbf16>, vector<128x256xbf16>, vector<8x256xf32> -> vector<8x256xf32>
    %861 = arith.addf %859, %860 : vector<8x256xf32>
    %cst_289 = arith.constant dense<0.000000e+00> : vector<8x256xf32>
    %862 = tpu.matmul %805, %308, %cst_289 {dimension_numbers = #tpu.dot_dimension_numbers<[1], [0], [0], [1], [0, 0, 1, 1], [], []>} : vector<8x128xbf16>, vector<128x256xbf16>, vector<8x256xf32> -> vector<8x256xf32>
    %863 = arith.addf %861, %862 : vector<8x256xf32>
    %864 = vector.broadcast %309 : vector<1x256xf32> to vector<8x256xf32>
    %865 = arith.addf %863, %864 : vector<8x256xf32>
    %c7_290 = arith.constant 7 : index
    %c0_291 = arith.constant 0 : index
    %c0_292 = arith.constant 0 : index
    %866 = vector.load %arg10[%c7_290, %c0_291, %c0_292] : memref<8x8x256xf32, #tpu.memory_space<vmem>>, vector<1x8x256xf32>
    %867 = vector.shape_cast %866 : vector<1x8x256xf32> to vector<8x256xf32>
    %868 = vector.shape_cast %865 : vector<8x256xf32> to vector<1x8x256xf32>
    tpu.vector_store %arg10[%c7_290, %c0_291, %c0_292], %868 {strides = array<i32>} : memref<8x8x256xf32, #tpu.memory_space<vmem>>, vector<1x8x256xf32>,
    return
  }
}

</mosaic_0001>

<llo_original>
// kernel: seq2seq_forward.1
$region0: #{seq2seq_forward.1}
  #allocation0 [shape = 'u32[]', space=smem, size = 0x4, offset = 0x4, fixed_abs, tag = 'smem constant byte address 0x4 - core index']
  #allocation1 [shape = 'u32[144,128]{1,0:T(1,128)}', space=vmem, size = 0x12000, scoped, tag = 'internal scratch']
  #allocation2 [shape = 'f32[8,8,128]{2,1,0:T(8,128)}', space=vmem, size = 0x8000, scoped, tag = 'scratch operand']
  #allocation3 [shape = 'f32[8,128]{1,0:T(8,128)}', space=vmem, size = 0x1000, scoped, tag = 'scratch operand']
  %s0 = inlined_call_operand.vmem [shape: s32[8], index: 0, kind: input, shape index: {}]
  %s1 = inlined_call_operand.vmem [shape: f32[8,8,128], index: 1, kind: input, shape index: {}]
  %s2 = inlined_call_operand.vmem [shape: f32[8,8,128], index: 2, kind: input, shape index: {}]
  %s3 = inlined_call_operand.vmem [shape: bf16[256,512], index: 3, kind: input, shape index: {}]
  %s4 = inlined_call_operand.vmem [shape: f32[1,512], index: 4, kind: input, shape index: {}]
  %s5 = inlined_call_operand.vmem [shape: bf16[256,128], index: 5, kind: input, shape index: {}]
  %s6 = inlined_call_operand.vmem [shape: bf16[384,512], index: 6, kind: input, shape index: {}]
  %s7 = inlined_call_operand.vmem [shape: f32[1,512], index: 7, kind: input, shape index: {}]
  %s8 = inlined_call_operand.hbm [shape: bf16[384,256], index: 8, kind: input, shape index: {}]
  %s9 = inlined_call_operand.vmem [shape: f32[1,256], index: 9, kind: input, shape index: {}]
  %s10 = inlined_call_operand.hbm [shape: f32[8,8,256], index: 10, kind: output, shape index: {}]
  %s11 = sld [smem:[#allocation0]]
  $region82: #{seq2seq_forward.1} parent=0
    _
  %s13 = ssub.s32 1, %s11
  %s14 = scalar_select 0, %s13, %s11
  $region1: #{seq2seq_forward.1} parent=0
    #allocation4 [shape = 'u8[512]{0}', space=smem, size = 0x200, scoped, tag = 'input window, operand 0, single buffered']
    #allocation5 [shape = 's32[1]{0}', space=sflag, size = 0x4, scoped, tag = 'scoped memory for seq2seq_forward.1']
    #allocation6 [shape = 's32[1]{0}', space=sflag, size = 0x4, scoped, tag = 'scoped memory for seq2seq_forward.1']
    #allocation7 [shape = 's32[1]{0}', space=sflag, size = 0x4, scoped, tag = 'scoped memory for seq2seq_forward.1']
    #allocation8 [shape = 'u8[196608]{0}', space=vmem, size = 0x30000, scoped, tag = 'input window, operand 8, single buffered']
    #allocation9 [shape = 'u8[65536]{0}', space=vmem, size = 0x10000, scoped, tag = 'output window, operand 0, single buffered']
    %15 = vsyncpa [#allocation7], 0
    %16 = vsyncpa [#allocation5], 0
    %17 = vsyncpa [#allocation6], 0
    // Predicated region
    $region2: #{seq2seq_forward.1} parent=1 // pred_check
      _
    $region3: #{seq2seq_forward.1} parent=1 // pred_check_branch
      %19 = sbr.rel (0) target = $region5
    $region4: #{seq2seq_forward.1} parent=1 // pred_region
      %s21 = ssub.s32 16, 16
      %22 = vsyncadd [#allocation7], %s21
      %s24 = sshll.u32 %s0, 4
      %s25 = int_to_ptr.vmem [resolvable:$true] %s24
      %27 = dma.vmem_to_smem %s25, 16, [#allocation4], [#allocation7]
    $region5: #{seq2seq_forward.1} parent=1 // pred_fallthru
      _
    // Predicated region
    $region6: #{seq2seq_forward.1} parent=1 // pred_check
      _
    $region7: #{seq2seq_forward.1} parent=1 // pred_check_branch
      %29 = sbr.rel (0) target = $region9
    $region8: #{seq2seq_forward.1} parent=1 // pred_region
      _
    $region9: #{seq2seq_forward.1} parent=1 // pred_fallthru
      _
    // Predicated region
    $region10: #{seq2seq_forward.1} parent=1 // pred_check
      _
    $region11: #{seq2seq_forward.1} parent=1 // pred_check_branch
      %31 = sbr.rel (0) target = $region13
    $region12: #{seq2seq_forward.1} parent=1 // pred_region
      _
    $region13: #{seq2seq_forward.1} parent=1 // pred_fallthru
      _
    // Predicated region
    $region14: #{seq2seq_forward.1} parent=1 // pred_check
      _
    $region15: #{seq2seq_forward.1} parent=1 // pred_check_branch
      %33 = sbr.rel (0) target = $region17
    $region16: #{seq2seq_forward.1} parent=1 // pred_region
      _
    $region17: #{seq2seq_forward.1} parent=1 // pred_fallthru
      _
    // Predicated region
    $region18: #{seq2seq_forward.1} parent=1 // pred_check
      _
    $region19: #{seq2seq_forward.1} parent=1 // pred_check_branch
      %35 = sbr.rel (0) target = $region21
    $region20: #{seq2seq_forward.1} parent=1 // pred_region
      _
    $region21: #{seq2seq_forward.1} parent=1 // pred_fallthru
      _
    // Predicated region
    $region22: #{seq2seq_forward.1} parent=1 // pred_check
      _
    $region23: #{seq2seq_forward.1} parent=1 // pred_check_branch
      %37 = sbr.rel (0) target = $region25
    $region24: #{seq2seq_forward.1} parent=1 // pred_region
      _
    $region25: #{seq2seq_forward.1} parent=1 // pred_fallthru
      _
    // Predicated region
    $region26: #{seq2seq_forward.1} parent=1 // pred_check
      _
    $region27: #{seq2seq_forward.1} parent=1 // pred_check_branch
      %39 = sbr.rel (0) target = $region29
    $region28: #{seq2seq_forward.1} parent=1 // pred_region
      _
    $region29: #{seq2seq_forward.1} parent=1 // pred_fallthru
      _
    // Predicated region
    $region30: #{seq2seq_forward.1} parent=1 // pred_check
      _
    $region31: #{seq2seq_forward.1} parent=1 // pred_check_branch
      %41 = sbr.rel (0) target = $region33
    $region32: #{seq2seq_forward.1} parent=1 // pred_region
      _
    $region33: #{seq2seq_forward.1} parent=1 // pred_fallthru
      _
    // Predicated region
    $region34: #{seq2seq_forward.1} parent=1 // pred_check
      _
    $region35: #{seq2seq_forward.1} parent=1 // pred_check_branch
      %43 = sbr.rel (0) target = $region37
    $region36: #{seq2seq_forward.1} parent=1 // pred_region
      %s45 = ssub.s32 6144, 6144
      %46 = vsyncadd [#allocation5], %s45
      %s47 = sshll.u32 [#allocation8], 4
      %s48 = int_to_ptr.vmem [resolvable:$true] %s47
      %53 = dma.hbm_to_vmem [thread:$0]  %s8, 6144, %s48, [#allocation5], 128, 128, 8
    $region37: #{seq2seq_forward.1} parent=1 // pred_fallthru
      _
    // Predicated region
    $region38: #{seq2seq_forward.1} parent=1 // pred_check
      _
    $region39: #{seq2seq_forward.1} parent=1 // pred_check_branch
      %55 = sbr.rel (0) target = $region41
    $region40: #{seq2seq_forward.1} parent=1 // pred_region
      _
    $region41: #{seq2seq_forward.1} parent=1 // pred_fallthru
      _
    // Predicated region
    $region42: #{seq2seq_forward.1} parent=1 // pred_check
      _
    $region43: #{seq2seq_forward.1} parent=1 // pred_check_branch
      %57 = sbr.rel (0) target = $region45
    $region44: #{seq2seq_forward.1} parent=1 // pred_region
      %58 = dma.done [#allocation7], 16
    $region45: #{seq2seq_forward.1} parent=1 // pred_fallthru
      _
    // Predicated region
    $region46: #{seq2seq_forward.1} parent=1 // pred_check
      _
    $region47: #{seq2seq_forward.1} parent=1 // pred_check_branch
      %60 = sbr.rel (0) target = $region49
    $region48: #{seq2seq_forward.1} parent=1 // pred_region
      %61 = dma.done [#allocation5], 6144
    $region49: #{seq2seq_forward.1} parent=1 // pred_fallthru
      _
    %62 = sfence
    %v64 = vld [vmem:[%s3] sm:$0xff]
    %v65 = vld [vmem:[%s3 + $0x8] sm:$0xff]
    %v66 = vld [vmem:[%s3 + $0x10] sm:$0xff]
    %v67 = vld [vmem:[%s3 + $0x18] sm:$0xff]
    %v68 = vld [vmem:[%s3 + $0x20] sm:$0xff]
    %v69 = vld [vmem:[%s3 + $0x28] sm:$0xff]
    %v70 = vld [vmem:[%s3 + $0x30] sm:$0xff]
    %v71 = vld [vmem:[%s3 + $0x38] sm:$0xff]
    %v72 = vld [vmem:[%s3 + $0x40] sm:$0xff]
    %v73 = vld [vmem:[%s3 + $0x48] sm:$0xff]
    %v74 = vld [vmem:[%s3 + $0x50] sm:$0xff]
    %v75 = vld [vmem:[%s3 + $0x58] sm:$0xff]
    %v76 = vld [vmem:[%s3 + $0x60] sm:$0xff]
    %v77 = vld [vmem:[%s3 + $0x68] sm:$0xff]
    %v78 = vld [vmem:[%s3 + $0x70] sm:$0xff]
    %v79 = vld [vmem:[%s3 + $0x78] sm:$0xff]
    %v80 = vld [vmem:[%s3 + $0x80] sm:$0xff]
    %v81 = vld [vmem:[%s3 + $0x88] sm:$0xff]
    %v82 = vld [vmem:[%s3 + $0x90] sm:$0xff]
    %v83 = vld [vmem:[%s3 + $0x98] sm:$0xff]
    %v84 = vld [vmem:[%s3 + $0xa0] sm:$0xff]
    %v85 = vld [vmem:[%s3 + $0xa8] sm:$0xff]
    %v86 = vld [vmem:[%s3 + $0xb0] sm:$0xff]
    %v87 = vld [vmem:[%s3 + $0xb8] sm:$0xff]
    %v88 = vld [vmem:[%s3 + $0xc0] sm:$0xff]
    %v89 = vld [vmem:[%s3 + $0xc8] sm:$0xff]
    %v90 = vld [vmem:[%s3 + $0xd0] sm:$0xff]
    %v91 = vld [vmem:[%s3 + $0xd8] sm:$0xff]
    %v92 = vld [vmem:[%s3 + $0xe0] sm:$0xff]
    %v93 = vld [vmem:[%s3 + $0xe8] sm:$0xff]
    %v94 = vld [vmem:[%s3 + $0xf0] sm:$0xff]
    %v95 = vld [vmem:[%s3 + $0xf8] sm:$0xff]
    %v96 = vld [vmem:[%s3 + $0x100] sm:$0xff]
    %v97 = vld [vmem:[%s3 + $0x108] sm:$0xff]
    %v98 = vld [vmem:[%s3 + $0x110] sm:$0xff]
    %v99 = vld [vmem:[%s3 + $0x118] sm:$0xff]
    %v100 = vld [vmem:[%s3 + $0x120] sm:$0xff]
    %v101 = vld [vmem:[%s3 + $0x128] sm:$0xff]
    %v102 = vld [vmem:[%s3 + $0x130] sm:$0xff]
    %v103 = vld [vmem:[%s3 + $0x138] sm:$0xff]
    %v104 = vld [vmem:[%s3 + $0x140] sm:$0xff]
    %v105 = vld [vmem:[%s3 + $0x148] sm:$0xff]
    %v106 = vld [vmem:[%s3 + $0x150] sm:$0xff]
    %v107 = vld [vmem:[%s3 + $0x158] sm:$0xff]
    %v108 = vld [vmem:[%s3 + $0x160] sm:$0xff]
    %v109 = vld [vmem:[%s3 + $0x168] sm:$0xff]
    %v110 = vld [vmem:[%s3 + $0x170] sm:$0xff]
    %v111 = vld [vmem:[%s3 + $0x178] sm:$0xff]
    %v112 = vld [vmem:[%s3 + $0x180] sm:$0xff]
    %v113 = vld [vmem:[%s3 + $0x188] sm:$0xff]
    %v114 = vld [vmem:[%s3 + $0x190] sm:$0xff]
    %v115 = vld [vmem:[%s3 + $0x198] sm:$0xff]
    %v116 = vld [vmem:[%s3 + $0x1a0] sm:$0xff]
    %v117 = vld [vmem:[%s3 + $0x1a8] sm:$0xff]
    %v118 = vld [vmem:[%s3 + $0x1b0] sm:$0xff]
    %v119 = vld [vmem:[%s3 + $0x1b8] sm:$0xff]
    %v120 = vld [vmem:[%s3 + $0x1c0] sm:$0xff]
    %v121 = vld [vmem:[%s3 + $0x1c8] sm:$0xff]
    %v122 = vld [vmem:[%s3 + $0x1d0] sm:$0xff]
    %v123 = vld [vmem:[%s3 + $0x1d8] sm:$0xff]
    %v124 = vld [vmem:[%s3 + $0x1e0] sm:$0xff]
    %v125 = vld [vmem:[%s3 + $0x1e8] sm:$0xff]
    %v126 = vld [vmem:[%s3 + $0x1f0] sm:$0xff]
    %v127 = vld [vmem:[%s3 + $0x1f8] sm:$0xff]
    %v128 = vld [vmem:[%s4] sm:$0xf]
    %v129 = vld [vmem:[%s1] sm:$0xff]
    %v130 = vpack.c.bf16 %v129, %v129
    %v163 = vunpack.c.l.b16 %v96
    %v164 = vunpack.c.h.b16 %v96
    %v165 = vunpack.c.l.b16 %v97
    %v166 = vunpack.c.h.b16 %v97
    %v167 = vunpack.c.l.b16 %v98
    %v168 = vunpack.c.h.b16 %v98
    %v169 = vunpack.c.l.b16 %v99
    %v170 = vunpack.c.h.b16 %v99
    %v171 = vunpack.c.l.b16 %v100
    %v172 = vunpack.c.h.b16 %v100
    %v173 = vunpack.c.l.b16 %v101
    %v174 = vunpack.c.h.b16 %v101
    %v175 = vunpack.c.l.b16 %v102
    %v176 = vunpack.c.h.b16 %v102
    %v177 = vunpack.c.l.b16 %v103
    %v178 = vunpack.c.h.b16 %v103
    %v179 = vunpack.c.l.b16 %v104
    %v180 = vunpack.c.h.b16 %v104
    %v181 = vunpack.c.l.b16 %v105
    %v182 = vunpack.c.h.b16 %v105
    %v183 = vunpack.c.l.b16 %v106
    %v184 = vunpack.c.h.b16 %v106
    %v185 = vunpack.c.l.b16 %v107
    %v186 = vunpack.c.h.b16 %v107
    %v187 = vunpack.c.l.b16 %v108
    %v188 = vunpack.c.h.b16 %v108
    %v189 = vunpack.c.l.b16 %v109
    %v190 = vunpack.c.h.b16 %v109
    %v191 = vunpack.c.l.b16 %v110
    %v192 = vunpack.c.h.b16 %v110
    %v193 = vunpack.c.l.b16 %v111
    %v194 = vunpack.c.h.b16 %v111
    %v195 = vunpack.c.l.b16 %v112
    %v196 = vunpack.c.h.b16 %v112
    %v197 = vunpack.c.l.b16 %v113
    %v198 = vunpack.c.h.b16 %v113
    %v199 = vunpack.c.l.b16 %v114
    %v200 = vunpack.c.h.b16 %v114
    %v201 = vunpack.c.l.b16 %v115
    %v202 = vunpack.c.h.b16 %v115
    %v203 = vunpack.c.l.b16 %v116
    %v204 = vunpack.c.h.b16 %v116
    %v205 = vunpack.c.l.b16 %v117
    %v206 = vunpack.c.h.b16 %v117
    %v207 = vunpack.c.l.b16 %v118
    %v208 = vunpack.c.h.b16 %v118
    %v209 = vunpack.c.l.b16 %v119
    %v210 = vunpack.c.h.b16 %v119
    %v211 = vunpack.c.l.b16 %v120
    %v212 = vunpack.c.h.b16 %v120
    %v213 = vunpack.c.l.b16 %v121
    %v214 = vunpack.c.h.b16 %v121
    %v215 = vunpack.c.l.b16 %v122
    %v216 = vunpack.c.h.b16 %v122
    %v217 = vunpack.c.l.b16 %v123
    %v218 = vunpack.c.h.b16 %v123
    %v219 = vunpack.c.l.b16 %v124
    %v220 = vunpack.c.h.b16 %v124
    %v221 = vunpack.c.l.b16 %v125
    %v222 = vunpack.c.h.b16 %v125
    %v223 = vunpack.c.l.b16 %v126
    %v224 = vunpack.c.h.b16 %v126
    %v225 = vunpack.c.l.b16 %v127
    %v226 = vunpack.c.h.b16 %v127
    %v227 = vpack.c.b16 %v167, %v163
    %v228 = vpack.c.b16 %v168, %v164
    %v229 = vpack.c.b16 %v169, %v165
    %v230 = vpack.c.b16 %v170, %v166
    %v231 = vpack.c.b16 %v175, %v171
    %v232 = vpack.c.b16 %v176, %v172
    %v233 = vpack.c.b16 %v177, %v173
    %v234 = vpack.c.b16 %v178, %v174
    %v235 = vpack.c.b16 %v183, %v179
    %v236 = vpack.c.b16 %v184, %v180
    %v237 = vpack.c.b16 %v185, %v181
    %v238 = vpack.c.b16 %v186, %v182
    %v239 = vpack.c.b16 %v191, %v187
    %v240 = vpack.c.b16 %v192, %v188
    %v241 = vpack.c.b16 %v193, %v189
    %v242 = vpack.c.b16 %v194, %v190
    %v243 = vpack.c.b16 %v199, %v195
    %v244 = vpack.c.b16 %v200, %v196
    %v245 = vpack.c.b16 %v201, %v197
    %v246 = vpack.c.b16 %v202, %v198
    %v247 = vpack.c.b16 %v207, %v203
    %v248 = vpack.c.b16 %v208, %v204
    %v249 = vpack.c.b16 %v209, %v205
    %v250 = vpack.c.b16 %v210, %v206
    %v251 = vpack.c.b16 %v215, %v211
    %v252 = vpack.c.b16 %v216, %v212
    %v253 = vpack.c.b16 %v217, %v213
    %v254 = vpack.c.b16 %v218, %v214
    %v255 = vpack.c.b16 %v223, %v219
    %v256 = vpack.c.b16 %v224, %v220
    %v257 = vpack.c.b16 %v225, %v221
    %v258 = vpack.c.b16 %v226, %v222
    %291 = vmatprep.subr.bf16.mxu0 %v228
    %292 = vmatpush1.bf16.msra.mxu0 %v227
    %293 = vmatprep.subr.bf16.mxu0 %v232
    %294 = vmatpush1.bf16.msra.mxu0 %v231
    %295 = vmatprep.subr.bf16.mxu0 %v236
    %296 = vmatpush1.bf16.msra.mxu0 %v235
    %297 = vmatprep.subr.bf16.mxu0 %v240
    %298 = vmatpush1.bf16.msra.mxu0 %v239
    %299 = vmatprep.subr.bf16.mxu0 %v244
    %300 = vmatpush1.bf16.msra.mxu0 %v243
    %301 = vmatprep.subr.bf16.mxu0 %v248
    %302 = vmatpush1.bf16.msra.mxu0 %v247
    %303 = vmatprep.subr.bf16.mxu0 %v252
    %304 = vmatpush1.bf16.msra.mxu0 %v251
    %305 = vmatprep.subr.bf16.mxu0 %v256
    %306 = vmatpush1.bf16.msra.mxu0 %v255
    %307 = vmatprep.subr.bf16.mxu0 0
    %308 = vmatpush1.bf16.msra.mxu0 0
    %309 = vmatprep.subr.bf16.mxu0 0
    %310 = vmatpush1.bf16.msra.mxu0 0
    %311 = vmatprep.subr.bf16.mxu0 0
    %312 = vmatpush1.bf16.msra.mxu0 0
    %313 = vmatprep.subr.bf16.mxu0 0
    %314 = vmatpush1.bf16.msra.mxu0 0
    %315 = vmatprep.subr.bf16.mxu0 0
    %316 = vmatpush1.bf16.msra.mxu0 0
    %317 = vmatprep.subr.bf16.mxu0 0
    %318 = vmatpush1.bf16.msra.mxu0 0
    %319 = vmatprep.subr.bf16.mxu0 0
    %320 = vmatpush1.bf16.msra.mxu0 0
    %321 = vmatprep.subr.bf16.mxu0 0
    %322 = vmatpush1.bf16.msra.mxu0 0
    %323 = vmatprep.mubr.bf16.mxu0 0
    %324 = vmatmul.mubr.bf16.gmra.mrb[0].mxu0 0
    %v325 = vpop.f32.mrb[0].mxu0
    %v326 = vadd.f32 0.0, %v325
    %v327 = vpop.f32.mrb[0].mxu0
    %v328 = vadd.f32 0.0, %v327
    %v329 = vpop.f32.mrb[0].mxu0
    %v330 = vpop.f32.mrb[0].mxu0
    %331 = vdwg.mxu0
    %332 = vmatprep.subr.bf16.mxu0 %v230
    %333 = vmatpush1.bf16.msra.mxu0 %v229
    %334 = vmatprep.subr.bf16.mxu0 %v234
    %335 = vmatpush1.bf16.msra.mxu0 %v233
    %336 = vmatprep.subr.bf16.mxu0 %v238
    %337 = vmatpush1.bf16.msra.mxu0 %v237
    %338 = vmatprep.subr.bf16.mxu0 %v242
    %339 = vmatpush1.bf16.msra.mxu0 %v241
    %340 = vmatprep.subr.bf16.mxu0 %v246
    %341 = vmatpush1.bf16.msra.mxu0 %v245
    %342 = vmatprep.subr.bf16.mxu0 %v250
    %343 = vmatpush1.bf16.msra.mxu0 %v249
    %344 = vmatprep.subr.bf16.mxu0 %v254
    %345 = vmatpush1.bf16.msra.mxu0 %v253
    %346 = vmatprep.subr.bf16.mxu0 %v258
    %347 = vmatpush1.bf16.msra.mxu0 %v257
    %348 = vmatprep.subr.bf16.mxu0 0
    %349 = vmatpush1.bf16.msra.mxu0 0
    %350 = vmatprep.subr.bf16.mxu0 0
    %351 = vmatpush1.bf16.msra.mxu0 0
    %352 = vmatprep.subr.bf16.mxu0 0
    %353 = vmatpush1.bf16.msra.mxu0 0
    %354 = vmatprep.subr.bf16.mxu0 0
    %355 = vmatpush1.bf16.msra.mxu0 0
    %356 = vmatprep.subr.bf16.mxu0 0
    %357 = vmatpush1.bf16.msra.mxu0 0
    %358 = vmatprep.subr.bf16.mxu0 0
    %359 = vmatpush1.bf16.msra.mxu0 0
    %360 = vmatprep.subr.bf16.mxu0 0
    %361 = vmatpush1.bf16.msra.mxu0 0
    %362 = vmatprep.subr.bf16.mxu0 0
    %363 = vmatpush1.bf16.msra.mxu0 0
    %364 = vmatprep.mubr.bf16.mxu0 0
    %365 = vmatmul.mubr.bf16.gmra.mrb[0].mxu0 0
    %v366 = vpop.f32.mrb[0].mxu0
    %v367 = vadd.f32 0.0, %v366
    %v368 = vpop.f32.mrb[0].mxu0
    %v369 = vadd.f32 0.0, %v368
    %v370 = vpop.f32.mrb[0].mxu0
    %v371 = vpop.f32.mrb[0].mxu0
    %372 = vdwg.mxu0
    %v405 = vunpack.c.l.b16 %v64
    %v406 = vunpack.c.h.b16 %v64
    %v407 = vunpack.c.l.b16 %v65
    %v408 = vunpack.c.h.b16 %v65
    %v409 = vunpack.c.l.b16 %v66
    %v410 = vunpack.c.h.b16 %v66
    %v411 = vunpack.c.l.b16 %v67
    %v412 = vunpack.c.h.b16 %v67
    %v413 = vunpack.c.l.b16 %v68
    %v414 = vunpack.c.h.b16 %v68
    %v415 = vunpack.c.l.b16 %v69
    %v416 = vunpack.c.h.b16 %v69
    %v417 = vunpack.c.l.b16 %v70
    %v418 = vunpack.c.h.b16 %v70
    %v419 = vunpack.c.l.b16 %v71
    %v420 = vunpack.c.h.b16 %v71
    %v421 = vunpack.c.l.b16 %v72
    %v422 = vunpack.c.h.b16 %v72
    %v423 = vunpack.c.l.b16 %v73
    %v424 = vunpack.c.h.b16 %v73
    %v425 = vunpack.c.l.b16 %v74
    %v426 = vunpack.c.h.b16 %v74
    %v427 = vunpack.c.l.b16 %v75
    %v428 = vunpack.c.h.b16 %v75
    %v429 = vunpack.c.l.b16 %v76
    %v430 = vunpack.c.h.b16 %v76
    %v431 = vunpack.c.l.b16 %v77
    %v432 = vunpack.c.h.b16 %v77
    %v433 = vunpack.c.l.b16 %v78
    %v434 = vunpack.c.h.b16 %v78
    %v435 = vunpack.c.l.b16 %v79
    %v436 = vunpack.c.h.b16 %v79
    %v437 = vunpack.c.l.b16 %v80
    %v438 = vunpack.c.h.b16 %v80
    %v439 = vunpack.c.l.b16 %v81
    %v440 = vunpack.c.h.b16 %v81
    %v441 = vunpack.c.l.b16 %v82
    %v442 = vunpack.c.h.b16 %v82
    %v443 = vunpack.c.l.b16 %v83
    %v444 = vunpack.c.h.b16 %v83
    %v445 = vunpack.c.l.b16 %v84
    %v446 = vunpack.c.h.b16 %v84
    %v447 = vunpack.c.l.b16 %v85
    %v448 = vunpack.c.h.b16 %v85
    %v449 = vunpack.c.l.b16 %v86
    %v450 = vunpack.c.h.b16 %v86
    %v451 = vunpack.c.l.b16 %v87
    %v452 = vunpack.c.h.b16 %v87
    %v453 = vunpack.c.l.b16 %v88
    %v454 = vunpack.c.h.b16 %v88
    %v455 = vunpack.c.l.b16 %v89
    %v456 = vunpack.c.h.b16 %v89
    %v457 = vunpack.c.l.b16 %v90
    %v458 = vunpack.c.h.b16 %v90
    %v459 = vunpack.c.l.b16 %v91
    %v460 = vunpack.c.h.b16 %v91
    %v461 = vunpack.c.l.b16 %v92
    %v462 = vunpack.c.h.b16 %v92
    %v463 = vunpack.c.l.b16 %v93
    %v464 = vunpack.c.h.b16 %v93
    %v465 = vunpack.c.l.b16 %v94
    %v466 = vunpack.c.h.b16 %v94
    %v467 = vunpack.c.l.b16 %v95
    %v468 = vunpack.c.h.b16 %v95
    %v469 = vpack.c.b16 %v409, %v405
    %v470 = vpack.c.b16 %v410, %v406
    %v471 = vpack.c.b16 %v411, %v407
    %v472 = vpack.c.b16 %v412, %v408
    %v473 = vpack.c.b16 %v417, %v413
    %v474 = vpack.c.b16 %v418, %v414
    %v475 = vpack.c.b16 %v419, %v415
    %v476 = vpack.c.b16 %v420, %v416
    %v477 = vpack.c.b16 %v425, %v421
    %v478 = vpack.c.b16 %v426, %v422
    %v479 = vpack.c.b16 %v427, %v423
    %v480 = vpack.c.b16 %v428, %v424
    %v481 = vpack.c.b16 %v433, %v429
    %v482 = vpack.c.b16 %v434, %v430
    %v483 = vpack.c.b16 %v435, %v431
    %v484 = vpack.c.b16 %v436, %v432
    %v485 = vpack.c.b16 %v441, %v437
    %v486 = vpack.c.b16 %v442, %v438
    %v487 = vpack.c.b16 %v443, %v439
    %v488 = vpack.c.b16 %v444, %v440
    %v489 = vpack.c.b16 %v449, %v445
    %v490 = vpack.c.b16 %v450, %v446
    %v491 = vpack.c.b16 %v451, %v447
    %v492 = vpack.c.b16 %v452, %v448
    %v493 = vpack.c.b16 %v457, %v453
    %v494 = vpack.c.b16 %v458, %v454
    %v495 = vpack.c.b16 %v459, %v455
    %v496 = vpack.c.b16 %v460, %v456
    %v497 = vpack.c.b16 %v465, %v461
    %v498 = vpack.c.b16 %v466, %v462
    %v499 = vpack.c.b16 %v467, %v463
    %v500 = vpack.c.b16 %v468, %v464
    %533 = vmatprep.subr.bf16.mxu0 %v470
    %534 = vmatpush1.bf16.msra.mxu0 %v469
    %535 = vmatprep.subr.bf16.mxu0 %v474
    %536 = vmatpush1.bf16.msra.mxu0 %v473
    %537 = vmatprep.subr.bf16.mxu0 %v478
    %538 = vmatpush1.bf16.msra.mxu0 %v477
    %539 = vmatprep.subr.bf16.mxu0 %v482
    %540 = vmatpush1.bf16.msra.mxu0 %v481
    %541 = vmatprep.subr.bf16.mxu0 %v486
    %542 = vmatpush1.bf16.msra.mxu0 %v485
    %543 = vmatprep.subr.bf16.mxu0 %v490
    %544 = vmatpush1.bf16.msra.mxu0 %v489
    %545 = vmatprep.subr.bf16.mxu0 %v494
    %546 = vmatpush1.bf16.msra.mxu0 %v493
    %547 = vmatprep.subr.bf16.mxu0 %v498
    %548 = vmatpush1.bf16.msra.mxu0 %v497
    %549 = vmatprep.subr.bf16.mxu0 0
    %550 = vmatpush1.bf16.msra.mxu0 0
    %551 = vmatprep.subr.bf16.mxu0 0
    %552 = vmatpush1.bf16.msra.mxu0 0
    %553 = vmatprep.subr.bf16.mxu0 0
    %554 = vmatpush1.bf16.msra.mxu0 0
    %555 = vmatprep.subr.bf16.mxu0 0
    %556 = vmatpush1.bf16.msra.mxu0 0
    %557 = vmatprep.subr.bf16.mxu0 0
    %558 = vmatpush1.bf16.msra.mxu0 0
    %559 = vmatprep.subr.bf16.mxu0 0
    %560 = vmatpush1.bf16.msra.mxu0 0
    %561 = vmatprep.subr.bf16.mxu0 0
    %562 = vmatpush1.bf16.msra.mxu0 0
    %563 = vmatprep.subr.bf16.mxu0 0
    %564 = vmatpush1.bf16.msra.mxu0 0
    %565 = vmatprep.mubr.bf16.mxu0 0
    %566 = vmatmul.mubr.bf16.gmra.mrb[0].mxu0 %v130
    %v567 = vpop.f32.mrb[0].mxu0
    %v568 = vadd.f32 %v326, %v567
    %v569 = vpop.f32.mrb[0].mxu0
    %v570 = vadd.f32 %v328, %v569
    %v571 = vpop.f32.mrb[0].mxu0
    %v572 = vpop.f32.mrb[0].mxu0
    %573 = vdwg.mxu0
    %574 = vmatprep.subr.bf16.mxu0 %v472
    %575 = vmatpush1.bf16.msra.mxu0 %v471
    %576 = vmatprep.subr.bf16.mxu0 %v476
    %577 = vmatpush1.bf16.msra.mxu0 %v475
    %578 = vmatprep.subr.bf16.mxu0 %v480
    %579 = vmatpush1.bf16.msra.mxu0 %v479
    %580 = vmatprep.subr.bf16.mxu0 %v484
    %581 = vmatpush1.bf16.msra.mxu0 %v483
    %582 = vmatprep.subr.bf16.mxu0 %v488
    %583 = vmatpush1.bf16.msra.mxu0 %v487
    %584 = vmatprep.subr.bf16.mxu0 %v492
    %585 = vmatpush1.bf16.msra.mxu0 %v491
    %586 = vmatprep.subr.bf16.mxu0 %v496
    %587 = vmatpush1.bf16.msra.mxu0 %v495
    %588 = vmatprep.subr.bf16.mxu0 %v500
    %589 = vmatpush1.bf16.msra.mxu0 %v499
    %590 = vmatprep.subr.bf16.mxu0 0
    %591 = vmatpush1.bf16.msra.mxu0 0
    %592 = vmatprep.subr.bf16.mxu0 0
    %593 = vmatpush1.bf16.msra.mxu0 0
    %594 = vmatprep.subr.bf16.mxu0 0
    %595 = vmatpush1.bf16.msra.mxu0 0
    %596 = vmatprep.subr.bf16.mxu0 0
    %597 = vmatpush1.bf16.msra.mxu0 0
    %598 = vmatprep.subr.bf16.mxu0 0
    %599 = vmatpush1.bf16.msra.mxu0 0
    %600 = vmatprep.subr.bf16.mxu0 0
    %601 = vmatpush1.bf16.msra.mxu0 0
    %602 = vmatprep.subr.bf16.mxu0 0
    %603 = vmatpush1.bf16.msra.mxu0 0
    %604 = vmatprep.subr.bf16.mxu0 0
    %605 = vmatpush1.bf16.msra.mxu0 0
    %606 = vmatprep.mubr.bf16.mxu0 0
    %607 = vmatmul.mubr.bf16.gmra.mrb[0].mxu0 %v130
    %v608 = vpop.f32.mrb[0].mxu0
    %v609 = vadd.f32 %v367, %v608
    %v610 = vpop.f32.mrb[0].mxu0
    %v611 = vadd.f32 %v369, %v610
    %v612 = vpop.f32.mrb[0].mxu0
    %v613 = vpop.f32.mrb[0].mxu0
    %614 = vdwg.mxu0
    %v616 = vlaneseq
    %v617 = vshrl.u32 %v616, 7
    %v618 = vsub.s32 0, %v617
    %v619 = vrot.slane %v128, %v618
    %v620 = vlaneseq
    %v621 = vshrl.u32 %v620, 7
    %v622 = vsub.s32 1, %v621
    %v623 = vrot.slane %v128, %v622
    %v624 = vlaneseq
    %v625 = vshrl.u32 %v624, 7
    %v626 = vsub.s32 2, %v625
    %v627 = vrot.slane %v128, %v626
    %v628 = vlaneseq
    %v629 = vshrl.u32 %v628, 7
    %v630 = vsub.s32 3, %v629
    %v631 = vrot.slane %v128, %v630
    %v636 = vadd.f32 %v568, %v619
    %v637 = vadd.f32 %v570, %v623
    %v638 = vadd.f32 %v609, %v627
    %v639 = vadd.f32 %v611, %v631
    %v640 = vxor.u32 %v636, 2147483648
    %v641 = vmul.f32 %v640, 1.442695
    %v642 = vpow.pop %v641
    %v643 = vadd.f32 %v642, 1.0
    %v644 = vrcp.pop %v643
    %v645 = vmul.f32 1.0, %v644
    %v646 = vxor.u32 %v637, 2147483648
    %v647 = vmul.f32 %v646, 1.442695
    %v648 = vpow.pop %v647
    %v649 = vadd.f32 %v648, 1.0
    %v650 = vrcp.pop %v649
    %v651 = vmul.f32 1.0, %v650
    %v652 = vtanh.pop %v638
    %v653 = vxor.u32 %v639, 2147483648
    %v654 = vmul.f32 %v653, 1.442695
    %v655 = vpow.pop %v654
    %v656 = vadd.f32 %v655, 1.0
    %v657 = vrcp.pop %v656
    %v658 = vmul.f32 1.0, %v657
    %v659 = vmul.f32 %v651, 0.0
    %v660 = vmul.f32 %v645, %v652
    %v661 = vadd.f32 %v659, %v660
    %v662 = vtanh.pop %v661
    %v663 = vmul.f32 %v658, %v662
    %664 = vst [vmem:[#allocation2] sm:$0xff] %v663
    %s665 = scalar_lea.vmem %s1, 8
    %v666 = vld [vmem:[%s665] sm:$0xff]
    %v667 = vpack.c.bf16 %v666, %v666
    %v668 = vpack.c.bf16 %v663, %v663
    %669 = vmatprep.subr.bf16.mxu0 %v228
    %670 = vmatpush1.bf16.msra.mxu0 %v227
    %671 = vmatprep.subr.bf16.mxu0 %v232
    %672 = vmatpush1.bf16.msra.mxu0 %v231
    %673 = vmatprep.subr.bf16.mxu0 %v236
    %674 = vmatpush1.bf16.msra.mxu0 %v235
    %675 = vmatprep.subr.bf16.mxu0 %v240
    %676 = vmatpush1.bf16.msra.mxu0 %v239
    %677 = vmatprep.subr.bf16.mxu0 %v244
    %678 = vmatpush1.bf16.msra.mxu0 %v243
    %679 = vmatprep.subr.bf16.mxu0 %v248
    %680 = vmatpush1.bf16.msra.mxu0 %v247
    %681 = vmatprep.subr.bf16.mxu0 %v252
    %682 = vmatpush1.bf16.msra.mxu0 %v251
    %683 = vmatprep.subr.bf16.mxu0 %v256
    %684 = vmatpush1.bf16.msra.mxu0 %v255
    %685 = vmatprep.subr.bf16.mxu0 0
    %686 = vmatpush1.bf16.msra.mxu0 0
    %687 = vmatprep.subr.bf16.mxu0 0
    %688 = vmatpush1.bf16.msra.mxu0 0
    %689 = vmatprep.subr.bf16.mxu0 0
    %690 = vmatpush1.bf16.msra.mxu0 0
    %691 = vmatprep.subr.bf16.mxu0 0
    %692 = vmatpush1.bf16.msra.mxu0 0
    %693 = vmatprep.subr.bf16.mxu0 0
    %694 = vmatpush1.bf16.msra.mxu0 0
    %695 = vmatprep.subr.bf16.mxu0 0
    %696 = vmatpush1.bf16.msra.mxu0 0
    %697 = vmatprep.subr.bf16.mxu0 0
    %698 = vmatpush1.bf16.msra.mxu0 0
    %699 = vmatprep.subr.bf16.mxu0 0
    %700 = vmatpush1.bf16.msra.mxu0 0
    %701 = vmatprep.mubr.bf16.mxu0 0
    %702 = vmatmul.mubr.bf16.gmra.mrb[0].mxu0 %v668
    %v703 = vpop.f32.mrb[0].mxu0
    %v704 = vadd.f32 0.0, %v703
    %v705 = vpop.f32.mrb[0].mxu0
    %v706 = vadd.f32 0.0, %v705
    %v707 = vpop.f32.mrb[0].mxu0
    %v708 = vpop.f32.mrb[0].mxu0
    %709 = vdwg.mxu0
    %710 = vmatprep.subr.bf16.mxu0 %v230
    %711 = vmatpush1.bf16.msra.mxu0 %v229
    %712 = vmatprep.subr.bf16.mxu0 %v234
    %713 = vmatpush1.bf16.msra.mxu0 %v233
    %714 = vmatprep.subr.bf16.mxu0 %v238
    %715 = vmatpush1.bf16.msra.mxu0 %v237
    %716 = vmatprep.subr.bf16.mxu0 %v242
    %717 = vmatpush1.bf16.msra.mxu0 %v241
    %718 = vmatprep.subr.bf16.mxu0 %v246
    %719 = vmatpush1.bf16.msra.mxu0 %v245
    %720 = vmatprep.subr.bf16.mxu0 %v250
    %721 = vmatpush1.bf16.msra.mxu0 %v249
    %722 = vmatprep.subr.bf16.mxu0 %v254
    %723 = vmatpush1.bf16.msra.mxu0 %v253
    %724 = vmatprep.subr.bf16.mxu0 %v258
    %725 = vmatpush1.bf16.msra.mxu0 %v257
    %726 = vmatprep.subr.bf16.mxu0 0
    %727 = vmatpush1.bf16.msra.mxu0 0
    %728 = vmatprep.subr.bf16.mxu0 0
    %729 = vmatpush1.bf16.msra.mxu0 0
    %730 = vmatprep.subr.bf16.mxu0 0
    %731 = vmatpush1.bf16.msra.mxu0 0
    %732 = vmatprep.subr.bf16.mxu0 0
    %733 = vmatpush1.bf16.msra.mxu0 0
    %734 = vmatprep.subr.bf16.mxu0 0
    %735 = vmatpush1.bf16.msra.mxu0 0
    %736 = vmatprep.subr.bf16.mxu0 0
    %737 = vmatpush1.bf16.msra.mxu0 0
    %738 = vmatprep.subr.bf16.mxu0 0
    %739 = vmatpush1.bf16.msra.mxu0 0
    %740 = vmatprep.subr.bf16.mxu0 0
    %741 = vmatpush1.bf16.msra.mxu0 0
    %742 = vmatprep.mubr.bf16.mxu0 0
    %743 = vmatmul.mubr.bf16.gmra.mrb[0].mxu0 %v668
    %v744 = vpop.f32.mrb[0].mxu0
    %v745 = vadd.f32 0.0, %v744
    %v746 = vpop.f32.mrb[0].mxu0
    %v747 = vadd.f32 0.0, %v746
    %v748 = vpop.f32.mrb[0].mxu0
    %v749 = vpop.f32.mrb[0].mxu0
    %750 = vdwg.mxu0
    %751 = vmatprep.subr.bf16.mxu0 %v470
    %752 = vmatpush1.bf16.msra.mxu0 %v469
    %753 = vmatprep.subr.bf16.mxu0 %v474
    %754 = vmatpush1.bf16.msra.mxu0 %v473
    %755 = vmatprep.subr.bf16.mxu0 %v478
    %756 = vmatpush1.bf16.msra.mxu0 %v477
    %757 = vmatprep.subr.bf16.mxu0 %v482
    %758 = vmatpush1.bf16.msra.mxu0 %v481
    %759 = vmatprep.subr.bf16.mxu0 %v486
    %760 = vmatpush1.bf16.msra.mxu0 %v485
    %761 = vmatprep.subr.bf16.mxu0 %v490
    %762 = vmatpush1.bf16.msra.mxu0 %v489
    %763 = vmatprep.subr.bf16.mxu0 %v494
    %764 = vmatpush1.bf16.msra.mxu0 %v493
    %765 = vmatprep.subr.bf16.mxu0 %v498
    %766 = vmatpush1.bf16.msra.mxu0 %v497
    %767 = vmatprep.subr.bf16.mxu0 0
    %768 = vmatpush1.bf16.msra.mxu0 0
    %769 = vmatprep.subr.bf16.mxu0 0
    %770 = vmatpush1.bf16.msra.mxu0 0
    %771 = vmatprep.subr.bf16.mxu0 0
    %772 = vmatpush1.bf16.msra.mxu0 0
    %773 = vmatprep.subr.bf16.mxu0 0
    %774 = vmatpush1.bf16.msra.mxu0 0
    %775 = vmatprep.subr.bf16.mxu0 0
    %776 = vmatpush1.bf16.msra.mxu0 0
    %777 = vmatprep.subr.bf16.mxu0 0
    %778 = vmatpush1.bf16.msra.mxu0 0
    %779 = vmatprep.subr.bf16.mxu0 0
    %780 = vmatpush1.bf16.msra.mxu0 0
    %781 = vmatprep.subr.bf16.mxu0 0
    %782 = vmatpush1.bf16.msra.mxu0 0
    %783 = vmatprep.mubr.bf16.mxu0 0
    %784 = vmatmul.mubr.bf16.gmra.mrb[0].mxu0 %v667
    %v785 = vpop.f32.mrb[0].mxu0
    %v786 = vadd.f32 %v704, %v785
    %v787 = vpop.f32.mrb[0].mxu0
    %v788 = vadd.f32 %v706, %v787
    %v789 = vpop.f32.mrb[0].mxu0
    %v790 = vpop.f32.mrb[0].mxu0
    %791 = vdwg.mxu0
    %792 = vmatprep.subr.bf16.mxu0 %v472
    %793 = vmatpush1.bf16.msra.mxu0 %v471
    %794 = vmatprep.subr.bf16.mxu0 %v476
    %795 = vmatpush1.bf16.msra.mxu0 %v475
    %796 = vmatprep.subr.bf16.mxu0 %v480
    %797 = vmatpush1.bf16.msra.mxu0 %v479
    %798 = vmatprep.subr.bf16.mxu0 %v484
    %799 = vmatpush1.bf16.msra.mxu0 %v483
    %800 = vmatprep.subr.bf16.mxu0 %v488
    %801 = vmatpush1.bf16.msra.mxu0 %v487
    %802 = vmatprep.subr.bf16.mxu0 %v492
    %803 = vmatpush1.bf16.msra.mxu0 %v491
    %804 = vmatprep.subr.bf16.mxu0 %v496
    %805 = vmatpush1.bf16.msra.mxu0 %v495
    %806 = vmatprep.subr.bf16.mxu0 %v500
    %807 = vmatpush1.bf16.msra.mxu0 %v499
    %808 = vmatprep.subr.bf16.mxu0 0
    %809 = vmatpush1.bf16.msra.mxu0 0
    %810 = vmatprep.subr.bf16.mxu0 0
    %811 = vmatpush1.bf16.msra.mxu0 0
    %812 = vmatprep.subr.bf16.mxu0 0
    %813 = vmatpush1.bf16.msra.mxu0 0
    %814 = vmatprep.subr.bf16.mxu0 0
    %815 = vmatpush1.bf16.msra.mxu0 0
    %816 = vmatprep.subr.bf16.mxu0 0
    %817 = vmatpush1.bf16.msra.mxu0 0
    %818 = vmatprep.subr.bf16.mxu0 0
    %819 = vmatpush1.bf16.msra.mxu0 0
    %820 = vmatprep.subr.bf16.mxu0 0
    %821 = vmatpush1.bf16.msra.mxu0 0
    %822 = vmatprep.subr.bf16.mxu0 0
    %823 = vmatpush1.bf16.msra.mxu0 0
    %824 = vmatprep.mubr.bf16.mxu0 0
    %825 = vmatmul.mubr.bf16.gmra.mrb[0].mxu0 %v667
    %v826 = vpop.f32.mrb[0].mxu0
    %v827 = vadd.f32 %v745, %v826
    %v828 = vpop.f32.mrb[0].mxu0
    %v829 = vadd.f32 %v747, %v828
    %v830 = vpop.f32.mrb[0].mxu0
    %v831 = vpop.f32.mrb[0].mxu0
    %832 = vdwg.mxu0
    %v833 = vadd.f32 %v786, %v619
    %v834 = vadd.f32 %v788, %v623
    %v835 = vadd.f32 %v827, %v627
    %v836 = vadd.f32 %v829, %v631
    %v837 = vxor.u32 %v833, 2147483648
    %v838 = vmul.f32 %v837, 1.442695
    %v839 = vpow.pop %v838
    %v840 = vadd.f32 %v839, 1.0
    %v841 = vrcp.pop %v840
    %v842 = vmul.f32 1.0, %v841
    %v843 = vxor.u32 %v834, 2147483648
    %v844 = vmul.f32 %v843, 1.442695
    %v845 = vpow.pop %v844
    %v846 = vadd.f32 %v845, 1.0
    %v847 = vrcp.pop %v846
    %v848 = vmul.f32 1.0, %v847
    %v849 = vtanh.pop %v835
    %v850 = vxor.u32 %v836, 2147483648
    %v851 = vmul.f32 %v850, 1.442695
    %v852 = vpow.pop %v851
    %v853 = vadd.f32 %v852, 1.0
    %v854 = vrcp.pop %v853
    %v855 = vmul.f32 1.0, %v854
    %v856 = vmul.f32 %v848, %v661
    %v857 = vmul.f32 %v842, %v849
    %v858 = vadd.f32 %v856, %v857
    %v859 = vtanh.pop %v858
    %v860 = vmul.f32 %v855, %v859
    %s861 = scalar_lea.vmem [#allocation2], 8
    %862 = vst [vmem:[%s861] sm:$0xff] %v860
    %s863 = scalar_lea.vmem %s1, 16
    %v864 = vld [vmem:[%s863] sm:$0xff]
    %v865 = vpack.c.bf16 %v864, %v864
    %v866 = vpack.c.bf16 %v860, %v860
    %867 = vmatprep.subr.bf16.mxu0 %v228
    %868 = vmatpush1.bf16.msra.mxu0 %v227
    %869 = vmatprep.subr.bf16.mxu0 %v232
    %870 = vmatpush1.bf16.msra.mxu0 %v231
    %871 = vmatprep.subr.bf16.mxu0 %v236
    %872 = vmatpush1.bf16.msra.mxu0 %v235
    %873 = vmatprep.subr.bf16.mxu0 %v240
    %874 = vmatpush1.bf16.msra.mxu0 %v239
    %875 = vmatprep.subr.bf16.mxu0 %v244
    %876 = vmatpush1.bf16.msra.mxu0 %v243
    %877 = vmatprep.subr.bf16.mxu0 %v248
    %878 = vmatpush1.bf16.msra.mxu0 %v247
    %879 = vmatprep.subr.bf16.mxu0 %v252
    %880 = vmatpush1.bf16.msra.mxu0 %v251
    %881 = vmatprep.subr.bf16.mxu0 %v256
    %882 = vmatpush1.bf16.msra.mxu0 %v255
    %883 = vmatprep.subr.bf16.mxu0 0
    %884 = vmatpush1.bf16.msra.mxu0 0
    %885 = vmatprep.subr.bf16.mxu0 0
    %886 = vmatpush1.bf16.msra.mxu0 0
    %887 = vmatprep.subr.bf16.mxu0 0
    %888 = vmatpush1.bf16.msra.mxu0 0
    %889 = vmatprep.subr.bf16.mxu0 0
    %890 = vmatpush1.bf16.msra.mxu0 0
    %891 = vmatprep.subr.bf16.mxu0 0
    %892 = vmatpush1.bf16.msra.mxu0 0
    %893 = vmatprep.subr.bf16.mxu0 0
    %894 = vmatpush1.bf16.msra.mxu0 0
    %895 = vmatprep.subr.bf16.mxu0 0
    %896 = vmatpush1.bf16.msra.mxu0 0
    %897 = vmatprep.subr.bf16.mxu0 0
    %898 = vmatpush1.bf16.msra.mxu0 0
    %899 = vmatprep.mubr.bf16.mxu0 0
    %900 = vmatmul.mubr.bf16.gmra.mrb[0].mxu0 %v866
    %v901 = vpop.f32.mrb[0].mxu0
    %v902 = vadd.f32 0.0, %v901
    %v903 = vpop.f32.mrb[0].mxu0
    %v904 = vadd.f32 0.0, %v903
    %v905 = vpop.f32.mrb[0].mxu0
    %v906 = vpop.f32.mrb[0].mxu0
    %907 = vdwg.mxu0
    %908 = vmatprep.subr.bf16.mxu0 %v230
    %909 = vmatpush1.bf16.msra.mxu0 %v229
    %910 = vmatprep.subr.bf16.mxu0 %v234
    %911 = vmatpush1.bf16.msra.mxu0 %v233
    %912 = vmatprep.subr.bf16.mxu0 %v238
    %913 = vmatpush1.bf16.msra.mxu0 %v237
    %914 = vmatprep.subr.bf16.mxu0 %v242
    %915 = vmatpush1.bf16.msra.mxu0 %v241
    %916 = vmatprep.subr.bf16.mxu0 %v246
    %917 = vmatpush1.bf16.msra.mxu0 %v245
    %918 = vmatprep.subr.bf16.mxu0 %v250
    %919 = vmatpush1.bf16.msra.mxu0 %v249
    %920 = vmatprep.subr.bf16.mxu0 %v254
    %921 = vmatpush1.bf16.msra.mxu0 %v253
    %922 = vmatprep.subr.bf16.mxu0 %v258
    %923 = vmatpush1.bf16.msra.mxu0 %v257
    %924 = vmatprep.subr.bf16.mxu0 0
    %925 = vmatpush1.bf16.msra.mxu0 0
    %926 = vmatprep.subr.bf16.mxu0 0
    %927 = vmatpush1.bf16.msra.mxu0 0
    %928 = vmatprep.subr.bf16.mxu0 0
    %929 = vmatpush1.bf16.msra.mxu0 0
    %930 = vmatprep.subr.bf16.mxu0 0
    %931 = vmatpush1.bf16.msra.mxu0 0
    %932 = vmatprep.subr.bf16.mxu0 0
    %933 = vmatpush1.bf16.msra.mxu0 0
    %934 = vmatprep.subr.bf16.mxu0 0
    %935 = vmatpush1.bf16.msra.mxu0 0
    %936 = vmatprep.subr.bf16.mxu0 0
    %937 = vmatpush1.bf16.msra.mxu0 0
    %938 = vmatprep.subr.bf16.mxu0 0
    %939 = vmatpush1.bf16.msra.mxu0 0
    %940 = vmatprep.mubr.bf16.mxu0 0
    %941 = vmatmul.mubr.bf16.gmra.mrb[0].mxu0 %v866
    %v942 = vpop.f32.mrb[0].mxu0
    %v943 = vadd.f32 0.0, %v942
    %v944 = vpop.f32.mrb[0].mxu0
    %v945 = vadd.f32 0.0, %v944
    %v946 = vpop.f32.mrb[0].mxu0
    %v947 = vpop.f32.mrb[0].mxu0
    %948 = vdwg.mxu0
    %949 = vmatprep.subr.bf16.mxu0 %v470
    %950 = vmatpush1.bf16.msra.mxu0 %v469
    %951 = vmatprep.subr.bf16.mxu0 %v474
    %952 = vmatpush1.bf16.msra.mxu0 %v473
    %953 = vmatprep.subr.bf16.mxu0 %v478
    %954 = vmatpush1.bf16.msra.mxu0 %v477
    %955 = vmatprep.subr.bf16.mxu0 %v482
    %956 = vmatpush1.bf16.msra.mxu0 %v481
    %957 = vmatprep.subr.bf16.mxu0 %v486
    %958 = vmatpush1.bf16.msra.mxu0 %v485
    %959 = vmatprep.subr.bf16.mxu0 %v490
    %960 = vmatpush1.bf16.msra.mxu0 %v489
    %961 = vmatprep.subr.bf16.mxu0 %v494
    %962 = vmatpush1.bf16.msra.mxu0 %v493
    %963 = vmatprep.subr.bf16.mxu0 %v498
    %964 = vmatpush1.bf16.msra.mxu0 %v497
    %965 = vmatprep.subr.bf16.mxu0 0
    %966 = vmatpush1.bf16.msra.mxu0 0
    %967 = vmatprep.subr.bf16.mxu0 0
    %968 = vmatpush1.bf16.msra.mxu0 0
    %969 = vmatprep.subr.bf16.mxu0 0
    %970 = vmatpush1.bf16.msra.mxu0 0
    %971 = vmatprep.subr.bf16.mxu0 0
    %972 = vmatpush1.bf16.msra.mxu0 0
    %973 = vmatprep.subr.bf16.mxu0 0
    %974 = vmatpush1.bf16.msra.mxu0 0
    %975 = vmatprep.subr.bf16.mxu0 0
    %976 = vmatpush1.bf16.msra.mxu0 0
    %977 = vmatprep.subr.bf16.mxu0 0
    %978 = vmatpush1.bf16.msra.mxu0 0
    %979 = vmatprep.subr.bf16.mxu0 0
    %980 = vmatpush1.bf16.msra.mxu0 0
    %981 = vmatprep.mubr.bf16.mxu0 0
    %982 = vmatmul.mubr.bf16.gmra.mrb[0].mxu0 %v865
    %v983 = vpop.f32.mrb[0].mxu0
    %v984 = vadd.f32 %v902, %v983
    %v985 = vpop.f32.mrb[0].mxu0
    %v986 = vadd.f32 %v904, %v985
    %v987 = vpop.f32.mrb[0].mxu0
    %v988 = vpop.f32.mrb[0].mxu0
    %989 = vdwg.mxu0
    %990 = vmatprep.subr.bf16.mxu0 %v472
    %991 = vmatpush1.bf16.msra.mxu0 %v471
    %992 = vmatprep.subr.bf16.mxu0 %v476
    %993 = vmatpush1.bf16.msra.mxu0 %v475
    %994 = vmatprep.subr.bf16.mxu0 %v480
    %995 = vmatpush1.bf16.msra.mxu0 %v479
    %996 = vmatprep.subr.bf16.mxu0 %v484
    %997 = vmatpush1.bf16.msra.mxu0 %v483
    %998 = vmatprep.subr.bf16.mxu0 %v488
    %999 = vmatpush1.bf16.msra.mxu0 %v487
    %1000 = vmatprep.subr.bf16.mxu0 %v492
    %1001 = vmatpush1.bf16.msra.mxu0 %v491
    %1002 = vmatprep.subr.bf16.mxu0 %v496
    %1003 = vmatpush1.bf16.msra.mxu0 %v495
    %1004 = vmatprep.subr.bf16.mxu0 %v500
    %1005 = vmatpush1.bf16.msra.mxu0 %v499
    %1006 = vmatprep.subr.bf16.mxu0 0
    %1007 = vmatpush1.bf16.msra.mxu0 0
    %1008 = vmatprep.subr.bf16.mxu0 0
    %1009 = vmatpush1.bf16.msra.mxu0 0
    %1010 = vmatprep.subr.bf16.mxu0 0
    %1011 = vmatpush1.bf16.msra.mxu0 0
    %1012 = vmatprep.subr.bf16.mxu0 0
    %1013 = vmatpush1.bf16.msra.mxu0 0
    %1014 = vmatprep.subr.bf16.mxu0 0
    %1015 = vmatpush1.bf16.msra.mxu0 0
    %1016 = vmatprep.subr.bf16.mxu0 0
    %1017 = vmatpush1.bf16.msra.mxu0 0
    %1018 = vmatprep.subr.bf16.mxu0 0
    %1019 = vmatpush1.bf16.msra.mxu0 0
    %1020 = vmatprep.subr.bf16.mxu0 0
    %1021 = vmatpush1.bf16.msra.mxu0 0
    %1022 = vmatprep.mubr.bf16.mxu0 0
    %1023 = vmatmul.mubr.bf16.gmra.mrb[0].mxu0 %v865
    %v1024 = vpop.f32.mrb[0].mxu0
    %v1025 = vadd.f32 %v943, %v1024
    %v1026 = vpop.f32.mrb[0].mxu0
    %v1027 = vadd.f32 %v945, %v1026
    %v1028 = vpop.f32.mrb[0].mxu0
    %v1029 = vpop.f32.mrb[0].mxu0
    %1030 = vdwg.mxu0
    %v1031 = vadd.f32 %v984, %v619
    %v1032 = vadd.f32 %v986, %v623
    %v1033 = vadd.f32 %v1025, %v627
    %v1034 = vadd.f32 %v1027, %v631
    %v1035 = vxor.u32 %v1031, 2147483648
    %v1036 = vmul.f32 %v1035, 1.442695
    %v1037 = vpow.pop %v1036
    %v1038 = vadd.f32 %v1037, 1.0
    %v1039 = vrcp.pop %v1038
    %v1040 = vmul.f32 1.0, %v1039
    %v1041 = vxor.u32 %v1032, 2147483648
    %v1042 = vmul.f32 %v1041, 1.442695
    %v1043 = vpow.pop %v1042
    %v1044 = vadd.f32 %v1043, 1.0
    %v1045 = vrcp.pop %v1044
    %v1046 = vmul.f32 1.0, %v1045
    %v1047 = vtanh.pop %v1033
    %v1048 = vxor.u32 %v1034, 2147483648
    %v1049 = vmul.f32 %v1048, 1.442695
    %v1050 = vpow.pop %v1049
    %v1051 = vadd.f32 %v1050, 1.0
    %v1052 = vrcp.pop %v1051
    %v1053 = vmul.f32 1.0, %v1052
    %v1054 = vmul.f32 %v1046, %v858
    %v1055 = vmul.f32 %v1040, %v1047
    %v1056 = vadd.f32 %v1054, %v1055
    %v1057 = vtanh.pop %v1056
    %v1058 = vmul.f32 %v1053, %v1057
    %s1059 = scalar_lea.vmem [#allocation2], 16
    %1060 = vst [vmem:[%s1059] sm:$0xff] %v1058
    %s1061 = scalar_lea.vmem %s1, 24
    %v1062 = vld [vmem:[%s1061] sm:$0xff]
    %v1063 = vpack.c.bf16 %v1062, %v1062
    %v1064 = vpack.c.bf16 %v1058, %v1058
    %1065 = vmatprep.subr.bf16.mxu0 %v228
    %1066 = vmatpush1.bf16.msra.mxu0 %v227
    %1067 = vmatprep.subr.bf16.mxu0 %v232
    %1068 = vmatpush1.bf16.msra.mxu0 %v231
    %1069 = vmatprep.subr.bf16.mxu0 %v236
    %1070 = vmatpush1.bf16.msra.mxu0 %v235
    %1071 = vmatprep.subr.bf16.mxu0 %v240
    %1072 = vmatpush1.bf16.msra.mxu0 %v239
    %1073 = vmatprep.subr.bf16.mxu0 %v244
    %1074 = vmatpush1.bf16.msra.mxu0 %v243
    %1075 = vmatprep.subr.bf16.mxu0 %v248
    %1076 = vmatpush1.bf16.msra.mxu0 %v247
    %1077 = vmatprep.subr.bf16.mxu0 %v252
    %1078 = vmatpush1.bf16.msra.mxu0 %v251
    %1079 = vmatprep.subr.bf16.mxu0 %v256
    %1080 = vmatpush1.bf16.msra.mxu0 %v255
    %1081 = vmatprep.subr.bf16.mxu0 0
    %1082 = vmatpush1.bf16.msra.mxu0 0
    %1083 = vmatprep.subr.bf16.mxu0 0
    %1084 = vmatpush1.bf16.msra.mxu0 0
    %1085 = vmatprep.subr.bf16.mxu0 0
    %1086 = vmatpush1.bf16.msra.mxu0 0
    %1087 = vmatprep.subr.bf16.mxu0 0
    %1088 = vmatpush1.bf16.msra.mxu0 0
    %1089 = vmatprep.subr.bf16.mxu0 0
    %1090 = vmatpush1.bf16.msra.mxu0 0
    %1091 = vmatprep.subr.bf16.mxu0 0
    %1092 = vmatpush1.bf16.msra.mxu0 0
    %1093 = vmatprep.subr.bf16.mxu0 0
    %1094 = vmatpush1.bf16.msra.mxu0 0
    %1095 = vmatprep.subr.bf16.mxu0 0
    %1096 = vmatpush1.bf16.msra.mxu0 0
    %1097 = vmatprep.mubr.bf16.mxu0 0
    %1098 = vmatmul.mubr.bf16.gmra.mrb[0].mxu0 %v1064
    %v1099 = vpop.f32.mrb[0].mxu0
    %v1100 = vadd.f32 0.0, %v1099
    %v1101 = vpop.f32.mrb[0].mxu0
    %v1102 = vadd.f32 0.0, %v1101
    %v1103 = vpop.f32.mrb[0].mxu0
    %v1104 = vpop.f32.mrb[0].mxu0
    %1105 = vdwg.mxu0
    %1106 = vmatprep.subr.bf16.mxu0 %v230
    %1107 = vmatpush1.bf16.msra.mxu0 %v229
    %1108 = vmatprep.subr.bf16.mxu0 %v234
    %1109 = vmatpush1.bf16.msra.mxu0 %v233
    %1110 = vmatprep.subr.bf16.mxu0 %v238
    %1111 = vmatpush1.bf16.msra.mxu0 %v237
    %1112 = vmatprep.subr.bf16.mxu0 %v242
    %1113 = vmatpush1.bf16.msra.mxu0 %v241
    %1114 = vmatprep.subr.bf16.mxu0 %v246
    %1115 = vmatpush1.bf16.msra.mxu0 %v245
    %1116 = vmatprep.subr.bf16.mxu0 %v250
    %1117 = vmatpush1.bf16.msra.mxu0 %v249
    %1118 = vmatprep.subr.bf16.mxu0 %v254
    %1119 = vmatpush1.bf16.msra.mxu0 %v253
    %1120 = vmatprep.subr.bf16.mxu0 %v258
    %1121 = vmatpush1.bf16.msra.mxu0 %v257
    %1122 = vmatprep.subr.bf16.mxu0 0
    %1123 = vmatpush1.bf16.msra.mxu0 0
    %1124 = vmatprep.subr.bf16.mxu0 0
    %1125 = vmatpush1.bf16.msra.mxu0 0
    %1126 = vmatprep.subr.bf16.mxu0 0
    %1127 = vmatpush1.bf16.msra.mxu0 0
    %1128 = vmatprep.subr.bf16.mxu0 0
    %1129 = vmatpush1.bf16.msra.mxu0 0
    %1130 = vmatprep.subr.bf16.mxu0 0
    %1131 = vmatpush1.bf16.msra.mxu0 0
    %1132 = vmatprep.subr.bf16.mxu0 0
    %1133 = vmatpush1.bf16.msra.mxu0 0
    %1134 = vmatprep.subr.bf16.mxu0 0
    %1135 = vmatpush1.bf16.msra.mxu0 0
    %1136 = vmatprep.subr.bf16.mxu0 0
    %1137 = vmatpush1.bf16.msra.mxu0 0
    %1138 = vmatprep.mubr.bf16.mxu0 0
    %1139 = vmatmul.mubr.bf16.gmra.mrb[0].mxu0 %v1064
    %v1140 = vpop.f32.mrb[0].mxu0
    %v1141 = vadd.f32 0.0, %v1140
    %v1142 = vpop.f32.mrb[0].mxu0
    %v1143 = vadd.f32 0.0, %v1142
    %v1144 = vpop.f32.mrb[0].mxu0
    %v1145 = vpop.f32.mrb[0].mxu0
    %1146 = vdwg.mxu0
    %1147 = vmatprep.subr.bf16.mxu0 %v470
    %1148 = vmatpush1.bf16.msra.mxu0 %v469
    %1149 = vmatprep.subr.bf16.mxu0 %v474
    %1150 = vmatpush1.bf16.msra.mxu0 %v473
    %1151 = vmatprep.subr.bf16.mxu0 %v478
    %1152 = vmatpush1.bf16.msra.mxu0 %v477
    %1153 = vmatprep.subr.bf16.mxu0 %v482
    %1154 = vmatpush1.bf16.msra.mxu0 %v481
    %1155 = vmatprep.subr.bf16.mxu0 %v486
    %1156 = vmatpush1.bf16.msra.mxu0 %v485
    %1157 = vmatprep.subr.bf16.mxu0 %v490
    %1158 = vmatpush1.bf16.msra.mxu0 %v489
    %1159 = vmatprep.subr.bf16.mxu0 %v494
    %1160 = vmatpush1.bf16.msra.mxu0 %v493
    %1161 = vmatprep.subr.bf16.mxu0 %v498
    %1162 = vmatpush1.bf16.msra.mxu0 %v497
    %1163 = vmatprep.subr.bf16.mxu0 0
    %1164 = vmatpush1.bf16.msra.mxu0 0
    %1165 = vmatprep.subr.bf16.mxu0 0
    %1166 = vmatpush1.bf16.msra.mxu0 0
    %1167 = vmatprep.subr.bf16.mxu0 0
    %1168 = vmatpush1.bf16.msra.mxu0 0
    %1169 = vmatprep.subr.bf16.mxu0 0
    %1170 = vmatpush1.bf16.msra.mxu0 0
    %1171 = vmatprep.subr.bf16.mxu0 0
    %1172 = vmatpush1.bf16.msra.mxu0 0
    %1173 = vmatprep.subr.bf16.mxu0 0
    %1174 = vmatpush1.bf16.msra.mxu0 0
    %1175 = vmatprep.subr.bf16.mxu0 0
    %1176 = vmatpush1.bf16.msra.mxu0 0
    %1177 = vmatprep.subr.bf16.mxu0 0
    %1178 = vmatpush1.bf16.msra.mxu0 0
    %1179 = vmatprep.mubr.bf16.mxu0 0
    %1180 = vmatmul.mubr.bf16.gmra.mrb[0].mxu0 %v1063
    %v1181 = vpop.f32.mrb[0].mxu0
    %v1182 = vadd.f32 %v1100, %v1181
    %v1183 = vpop.f32.mrb[0].mxu0
    %v1184 = vadd.f32 %v1102, %v1183
    %v1185 = vpop.f32.mrb[0].mxu0
    %v1186 = vpop.f32.mrb[0].mxu0
    %1187 = vdwg.mxu0
    %1188 = vmatprep.subr.bf16.mxu0 %v472
    %1189 = vmatpush1.bf16.msra.mxu0 %v471
    %1190 = vmatprep.subr.bf16.mxu0 %v476
    %1191 = vmatpush1.bf16.msra.mxu0 %v475
    %1192 = vmatprep.subr.bf16.mxu0 %v480
    %1193 = vmatpush1.bf16.msra.mxu0 %v479
    %1194 = vmatprep.subr.bf16.mxu0 %v484
    %1195 = vmatpush1.bf16.msra.mxu0 %v483
    %1196 = vmatprep.subr.bf16.mxu0 %v488
    %1197 = vmatpush1.bf16.msra.mxu0 %v487
    %1198 = vmatprep.subr.bf16.mxu0 %v492
    %1199 = vmatpush1.bf16.msra.mxu0 %v491
    %1200 = vmatprep.subr.bf16.mxu0 %v496
    %1201 = vmatpush1.bf16.msra.mxu0 %v495
    %1202 = vmatprep.subr.bf16.mxu0 %v500
    %1203 = vmatpush1.bf16.msra.mxu0 %v499
    %1204 = vmatprep.subr.bf16.mxu0 0
    %1205 = vmatpush1.bf16.msra.mxu0 0
    %1206 = vmatprep.subr.bf16.mxu0 0
    %1207 = vmatpush1.bf16.msra.mxu0 0
    %1208 = vmatprep.subr.bf16.mxu0 0
    %1209 = vmatpush1.bf16.msra.mxu0 0
    %1210 = vmatprep.subr.bf16.mxu0 0
    %1211 = vmatpush1.bf16.msra.mxu0 0
    %1212 = vmatprep.subr.bf16.mxu0 0
    %1213 = vmatpush1.bf16.msra.mxu0 0
    %1214 = vmatprep.subr.bf16.mxu0 0
    %1215 = vmatpush1.bf16.msra.mxu0 0
    %1216 = vmatprep.subr.bf16.mxu0 0
    %1217 = vmatpush1.bf16.msra.mxu0 0
    %1218 = vmatprep.subr.bf16.mxu0 0
    %1219 = vmatpush1.bf16.msra.mxu0 0
    %1220 = vmatprep.mubr.bf16.mxu0 0
    %1221 = vmatmul.mubr.bf16.gmra.mrb[0].mxu0 %v1063
    %v1222 = vpop.f32.mrb[0].mxu0
    %v1223 = vadd.f32 %v1141, %v1222
    %v1224 = vpop.f32.mrb[0].mxu0
    %v1225 = vadd.f32 %v1143, %v1224
    %v1226 = vpop.f32.mrb[0].mxu0
    %v1227 = vpop.f32.mrb[0].mxu0
    %1228 = vdwg.mxu0
    %v1229 = vadd.f32 %v1182, %v619
    %v1230 = vadd.f32 %v1184, %v623
    %v1231 = vadd.f32 %v1223, %v627
    %v1232 = vadd.f32 %v1225, %v631
    %v1233 = vxor.u32 %v1229, 2147483648
    %v1234 = vmul.f32 %v1233, 1.442695
    %v1235 = vpow.pop %v1234
    %v1236 = vadd.f32 %v1235, 1.0
    %v1237 = vrcp.pop %v1236
    %v1238 = vmul.f32 1.0, %v1237
    %v1239 = vxor.u32 %v1230, 2147483648
    %v1240 = vmul.f32 %v1239, 1.442695
    %v1241 = vpow.pop %v1240
    %v1242 = vadd.f32 %v1241, 1.0
    %v1243 = vrcp.pop %v1242
    %v1244 = vmul.f32 1.0, %v1243
    %v1245 = vtanh.pop %v1231
    %v1246 = vxor.u32 %v1232, 2147483648
    %v1247 = vmul.f32 %v1246, 1.442695
    %v1248 = vpow.pop %v1247
    %v1249 = vadd.f32 %v1248, 1.0
    %v1250 = vrcp.pop %v1249
    %v1251 = vmul.f32 1.0, %v1250
    %v1252 = vmul.f32 %v1244, %v1056
    %v1253 = vmul.f32 %v1238, %v1245
    %v1254 = vadd.f32 %v1252, %v1253
    %v1255 = vtanh.pop %v1254
    %v1256 = vmul.f32 %v1251, %v1255
    %s1257 = scalar_lea.vmem [#allocation2], 24
    %1258 = vst [vmem:[%s1257] sm:$0xff] %v1256
    %s1259 = scalar_lea.vmem %s1, 32
    %v1260 = vld [vmem:[%s1259] sm:$0xff]
    %v1261 = vpack.c.bf16 %v1260, %v1260
    %v1262 = vpack.c.bf16 %v1256, %v1256
    %1263 = vmatprep.subr.bf16.mxu0 %v228
    %1264 = vmatpush1.bf16.msra.mxu0 %v227
    %1265 = vmatprep.subr.bf16.mxu0 %v232
    %1266 = vmatpush1.bf16.msra.mxu0 %v231
    %1267 = vmatprep.subr.bf16.mxu0 %v236
    %1268 = vmatpush1.bf16.msra.mxu0 %v235
    %1269 = vmatprep.subr.bf16.mxu0 %v240
    %1270 = vmatpush1.bf16.msra.mxu0 %v239
    %1271 = vmatprep.subr.bf16.mxu0 %v244
    %1272 = vmatpush1.bf16.msra.mxu0 %v243
    %1273 = vmatprep.subr.bf16.mxu0 %v248
    %1274 = vmatpush1.bf16.msra.mxu0 %v247
    %1275 = vmatprep.subr.bf16.mxu0 %v252
    %1276 = vmatpush1.bf16.msra.mxu0 %v251
    %1277 = vmatprep.subr.bf16.mxu0 %v256
    %1278 = vmatpush1.bf16.msra.mxu0 %v255
    %1279 = vmatprep.subr.bf16.mxu0 0
    %1280 = vmatpush1.bf16.msra.mxu0 0
    %1281 = vmatprep.subr.bf16.mxu0 0
    %1282 = vmatpush1.bf16.msra.mxu0 0
    %1283 = vmatprep.subr.bf16.mxu0 0
    %1284 = vmatpush1.bf16.msra.mxu0 0
    %1285 = vmatprep.subr.bf16.mxu0 0
    %1286 = vmatpush1.bf16.msra.mxu0 0
    %1287 = vmatprep.subr.bf16.mxu0 0
    %1288 = vmatpush1.bf16.msra.mxu0 0
    %1289 = vmatprep.subr.bf16.mxu0 0
    %1290 = vmatpush1.bf16.msra.mxu0 0
    %1291 = vmatprep.subr.bf16.mxu0 0
    %1292 = vmatpush1.bf16.msra.mxu0 0
    %1293 = vmatprep.subr.bf16.mxu0 0
    %1294 = vmatpush1.bf16.msra.mxu0 0
    %1295 = vmatprep.mubr.bf16.mxu0 0
    %1296 = vmatmul.mubr.bf16.gmra.mrb[0].mxu0 %v1262
    %v1297 = vpop.f32.mrb[0].mxu0
    %v1298 = vadd.f32 0.0, %v1297
    %v1299 = vpop.f32.mrb[0].mxu0
    %v1300 = vadd.f32 0.0, %v1299
    %v1301 = vpop.f32.mrb[0].mxu0
    %v1302 = vpop.f32.mrb[0].mxu0
    %1303 = vdwg.mxu0
    %1304 = vmatprep.subr.bf16.mxu0 %v230
    %1305 = vmatpush1.bf16.msra.mxu0 %v229
    %1306 = vmatprep.subr.bf16.mxu0 %v234
    %1307 = vmatpush1.bf16.msra.mxu0 %v233
    %1308 = vmatprep.subr.bf16.mxu0 %v238
    %1309 = vmatpush1.bf16.msra.mxu0 %v237
    %1310 = vmatprep.subr.bf16.mxu0 %v242
    %1311 = vmatpush1.bf16.msra.mxu0 %v241
    %1312 = vmatprep.subr.bf16.mxu0 %v246
    %1313 = vmatpush1.bf16.msra.mxu0 %v245
    %1314 = vmatprep.subr.bf16.mxu0 %v250
    %1315 = vmatpush1.bf16.msra.mxu0 %v249
    %1316 = vmatprep.subr.bf16.mxu0 %v254
    %1317 = vmatpush1.bf16.msra.mxu0 %v253
    %1318 = vmatprep.subr.bf16.mxu0 %v258
    %1319 = vmatpush1.bf16.msra.mxu0 %v257
    %1320 = vmatprep.subr.bf16.mxu0 0
    %1321 = vmatpush1.bf16.msra.mxu0 0
    %1322 = vmatprep.subr.bf16.mxu0 0
    %1323 = vmatpush1.bf16.msra.mxu0 0
    %1324 = vmatprep.subr.bf16.mxu0 0
    %1325 = vmatpush1.bf16.msra.mxu0 0
    %1326 = vmatprep.subr.bf16.mxu0 0
    %1327 = vmatpush1.bf16.msra.mxu0 0
    %1328 = vmatprep.subr.bf16.mxu0 0
    %1329 = vmatpush1.bf16.msra.mxu0 0
    %1330 = vmatprep.subr.bf16.mxu0 0
    %1331 = vmatpush1.bf16.msra.mxu0 0
    %1332 = vmatprep.subr.bf16.mxu0 0
    %1333 = vmatpush1.bf16.msra.mxu0 0
    %1334 = vmatprep.subr.bf16.mxu0 0
    %1335 = vmatpush1.bf16.msra.mxu0 0
    %1336 = vmatprep.mubr.bf16.mxu0 0
    %1337 = vmatmul.mubr.bf16.gmra.mrb[0].mxu0 %v1262
    %v1338 = vpop.f32.mrb[0].mxu0
    %v1339 = vadd.f32 0.0, %v1338
    %v1340 = vpop.f32.mrb[0].mxu0
    %v1341 = vadd.f32 0.0, %v1340
    %v1342 = vpop.f32.mrb[0].mxu0
    %v1343 = vpop.f32.mrb[0].mxu0
    %1344 = vdwg.mxu0
    %1345 = vmatprep.subr.bf16.mxu0 %v470
    %1346 = vmatpush1.bf16.msra.mxu0 %v469
    %1347 = vmatprep.subr.bf16.mxu0 %v474
    %1348 = vmatpush1.bf16.msra.mxu0 %v473
    %1349 = vmatprep.subr.bf16.mxu0 %v478
    %1350 = vmatpush1.bf16.msra.mxu0 %v477
    %1351 = vmatprep.subr.bf16.mxu0 %v482
    %1352 = vmatpush1.bf16.msra.mxu0 %v481
    %1353 = vmatprep.subr.bf16.mxu0 %v486
    %1354 = vmatpush1.bf16.msra.mxu0 %v485
    %1355 = vmatprep.subr.bf16.mxu0 %v490
    %1356 = vmatpush1.bf16.msra.mxu0 %v489
    %1357 = vmatprep.subr.bf16.mxu0 %v494
    %1358 = vmatpush1.bf16.msra.mxu0 %v493
    %1359 = vmatprep.subr.bf16.mxu0 %v498
    %1360 = vmatpush1.bf16.msra.mxu0 %v497
    %1361 = vmatprep.subr.bf16.mxu0 0
    %1362 = vmatpush1.bf16.msra.mxu0 0
    %1363 = vmatprep.subr.bf16.mxu0 0
    %1364 = vmatpush1.bf16.msra.mxu0 0
    %1365 = vmatprep.subr.bf16.mxu0 0
    %1366 = vmatpush1.bf16.msra.mxu0 0
    %1367 = vmatprep.subr.bf16.mxu0 0
    %1368 = vmatpush1.bf16.msra.mxu0 0
    %1369 = vmatprep.subr.bf16.mxu0 0
    %1370 = vmatpush1.bf16.msra.mxu0 0
    %1371 = vmatprep.subr.bf16.mxu0 0
    %1372 = vmatpush1.bf16.msra.mxu0 0
    %1373 = vmatprep.subr.bf16.mxu0 0
    %1374 = vmatpush1.bf16.msra.mxu0 0
    %1375 = vmatprep.subr.bf16.mxu0 0
    %1376 = vmatpush1.bf16.msra.mxu0 0
    %1377 = vmatprep.mubr.bf16.mxu0 0
    %1378 = vmatmul.mubr.bf16.gmra.mrb[0].mxu0 %v1261
    %v1379 = vpop.f32.mrb[0].mxu0
    %v1380 = vadd.f32 %v1298, %v1379
    %v1381 = vpop.f32.mrb[0].mxu0
    %v1382 = vadd.f32 %v1300, %v1381
    %v1383 = vpop.f32.mrb[0].mxu0
    %v1384 = vpop.f32.mrb[0].mxu0
    %1385 = vdwg.mxu0
    %1386 = vmatprep.subr.bf16.mxu0 %v472
    %1387 = vmatpush1.bf16.msra.mxu0 %v471
    %1388 = vmatprep.subr.bf16.mxu0 %v476
    %1389 = vmatpush1.bf16.msra.mxu0 %v475
    %1390 = vmatprep.subr.bf16.mxu0 %v480
    %1391 = vmatpush1.bf16.msra.mxu0 %v479
    %1392 = vmatprep.subr.bf16.mxu0 %v484
    %1393 = vmatpush1.bf16.msra.mxu0 %v483
    %1394 = vmatprep.subr.bf16.mxu0 %v488
    %1395 = vmatpush1.bf16.msra.mxu0 %v487
    %1396 = vmatprep.subr.bf16.mxu0 %v492
    %1397 = vmatpush1.bf16.msra.mxu0 %v491
    %1398 = vmatprep.subr.bf16.mxu0 %v496
    %1399 = vmatpush1.bf16.msra.mxu0 %v495
    %1400 = vmatprep.subr.bf16.mxu0 %v500
    %1401 = vmatpush1.bf16.msra.mxu0 %v499
    %1402 = vmatprep.subr.bf16.mxu0 0
    %1403 = vmatpush1.bf16.msra.mxu0 0
    %1404 = vmatprep.subr.bf16.mxu0 0
    %1405 = vmatpush1.bf16.msra.mxu0 0
    %1406 = vmatprep.subr.bf16.mxu0 0
    %1407 = vmatpush1.bf16.msra.mxu0 0
    %1408 = vmatprep.subr.bf16.mxu0 0
    %1409 = vmatpush1.bf16.msra.mxu0 0
    %1410 = vmatprep.subr.bf16.mxu0 0
    %1411 = vmatpush1.bf16.msra.mxu0 0
    %1412 = vmatprep.subr.bf16.mxu0 0
    %1413 = vmatpush1.bf16.msra.mxu0 0
    %1414 = vmatprep.subr.bf16.mxu0 0
    %1415 = vmatpush1.bf16.msra.mxu0 0
    %1416 = vmatprep.subr.bf16.mxu0 0
    %1417 = vmatpush1.bf16.msra.mxu0 0
    %1418 = vmatprep.mubr.bf16.mxu0 0
    %1419 = vmatmul.mubr.bf16.gmra.mrb[0].mxu0 %v1261
    %v1420 = vpop.f32.mrb[0].mxu0
    %v1421 = vadd.f32 %v1339, %v1420
    %v1422 = vpop.f32.mrb[0].mxu0
    %v1423 = vadd.f32 %v1341, %v1422
    %v1424 = vpop.f32.mrb[0].mxu0
    %v1425 = vpop.f32.mrb[0].mxu0
    %1426 = vdwg.mxu0
    %v1427 = vadd.f32 %v1380, %v619
    %v1428 = vadd.f32 %v1382, %v623
    %v1429 = vadd.f32 %v1421, %v627
    %v1430 = vadd.f32 %v1423, %v631
    %v1431 = vxor.u32 %v1427, 2147483648
    %v1432 = vmul.f32 %v1431, 1.442695
    %v1433 = vpow.pop %v1432
    %v1434 = vadd.f32 %v1433, 1.0
    %v1435 = vrcp.pop %v1434
    %v1436 = vmul.f32 1.0, %v1435
    %v1437 = vxor.u32 %v1428, 2147483648
    %v1438 = vmul.f32 %v1437, 1.442695
    %v1439 = vpow.pop %v1438
    %v1440 = vadd.f32 %v1439, 1.0
    %v1441 = vrcp.pop %v1440
    %v1442 = vmul.f32 1.0, %v1441
    %v1443 = vtanh.pop %v1429
    %v1444 = vxor.u32 %v1430, 2147483648
    %v1445 = vmul.f32 %v1444, 1.442695
    %v1446 = vpow.pop %v1445
    %v1447 = vadd.f32 %v1446, 1.0
    %v1448 = vrcp.pop %v1447
    %v1449 = vmul.f32 1.0, %v1448
    %v1450 = vmul.f32 %v1442, %v1254
    %v1451 = vmul.f32 %v1436, %v1443
    %v1452 = vadd.f32 %v1450, %v1451
    %v1453 = vtanh.pop %v1452
    %v1454 = vmul.f32 %v1449, %v1453
    %s1455 = scalar_lea.vmem [#allocation2], 32
    %1456 = vst [vmem:[%s1455] sm:$0xff] %v1454
    %s1457 = scalar_lea.vmem %s1, 40
    %v1458 = vld [vmem:[%s1457] sm:$0xff]
    %v1459 = vpack.c.bf16 %v1458, %v1458
    %v1460 = vpack.c.bf16 %v1454, %v1454
    %1461 = vmatprep.subr.bf16.mxu0 %v228
    %1462 = vmatpush1.bf16.msra.mxu0 %v227
    %1463 = vmatprep.subr.bf16.mxu0 %v232
    %1464 = vmatpush1.bf16.msra.mxu0 %v231
    %1465 = vmatprep.subr.bf16.mxu0 %v236
    %1466 = vmatpush1.bf16.msra.mxu0 %v235
    %1467 = vmatprep.subr.bf16.mxu0 %v240
    %1468 = vmatpush1.bf16.msra.mxu0 %v239
    %1469 = vmatprep.subr.bf16.mxu0 %v244
    %1470 = vmatpush1.bf16.msra.mxu0 %v243
    %1471 = vmatprep.subr.bf16.mxu0 %v248
    %1472 = vmatpush1.bf16.msra.mxu0 %v247
    %1473 = vmatprep.subr.bf16.mxu0 %v252
    %1474 = vmatpush1.bf16.msra.mxu0 %v251
    %1475 = vmatprep.subr.bf16.mxu0 %v256
    %1476 = vmatpush1.bf16.msra.mxu0 %v255
    %1477 = vmatprep.subr.bf16.mxu0 0
    %1478 = vmatpush1.bf16.msra.mxu0 0
    %1479 = vmatprep.subr.bf16.mxu0 0
    %1480 = vmatpush1.bf16.msra.mxu0 0
    %1481 = vmatprep.subr.bf16.mxu0 0
    %1482 = vmatpush1.bf16.msra.mxu0 0
    %1483 = vmatprep.subr.bf16.mxu0 0
    %1484 = vmatpush1.bf16.msra.mxu0 0
    %1485 = vmatprep.subr.bf16.mxu0 0
    %1486 = vmatpush1.bf16.msra.mxu0 0
    %1487 = vmatprep.subr.bf16.mxu0 0
    %1488 = vmatpush1.bf16.msra.mxu0 0
    %1489 = vmatprep.subr.bf16.mxu0 0
    %1490 = vmatpush1.bf16.msra.mxu0 0
    %1491 = vmatprep.subr.bf16.mxu0 0
    %1492 = vmatpush1.bf16.msra.mxu0 0
    %1493 = vmatprep.mubr.bf16.mxu0 0
    %1494 = vmatmul.mubr.bf16.gmra.mrb[0].mxu0 %v1460
    %v1495 = vpop.f32.mrb[0].mxu0
    %v1496 = vadd.f32 0.0, %v1495
    %v1497 = vpop.f32.mrb[0].mxu0
    %v1498 = vadd.f32 0.0, %v1497
    %v1499 = vpop.f32.mrb[0].mxu0
    %v1500 = vpop.f32.mrb[0].mxu0
    %1501 = vdwg.mxu0
    %1502 = vmatprep.subr.bf16.mxu0 %v230
    %1503 = vmatpush1.bf16.msra.mxu0 %v229
    %1504 = vmatprep.subr.bf16.mxu0 %v234
    %1505 = vmatpush1.bf16.msra.mxu0 %v233
    %1506 = vmatprep.subr.bf16.mxu0 %v238
    %1507 = vmatpush1.bf16.msra.mxu0 %v237
    %1508 = vmatprep.subr.bf16.mxu0 %v242
    %1509 = vmatpush1.bf16.msra.mxu0 %v241
    %1510 = vmatprep.subr.bf16.mxu0 %v246
    %1511 = vmatpush1.bf16.msra.mxu0 %v245
    %1512 = vmatprep.subr.bf16.mxu0 %v250
    %1513 = vmatpush1.bf16.msra.mxu0 %v249
    %1514 = vmatprep.subr.bf16.mxu0 %v254
    %1515 = vmatpush1.bf16.msra.mxu0 %v253
    %1516 = vmatprep.subr.bf16.mxu0 %v258
    %1517 = vmatpush1.bf16.msra.mxu0 %v257
    %1518 = vmatprep.subr.bf16.mxu0 0
    %1519 = vmatpush1.bf16.msra.mxu0 0
    %1520 = vmatprep.subr.bf16.mxu0 0
    %1521 = vmatpush1.bf16.msra.mxu0 0
    %1522 = vmatprep.subr.bf16.mxu0 0
    %1523 = vmatpush1.bf16.msra.mxu0 0
    %1524 = vmatprep.subr.bf16.mxu0 0
    %1525 = vmatpush1.bf16.msra.mxu0 0
    %1526 = vmatprep.subr.bf16.mxu0 0
    %1527 = vmatpush1.bf16.msra.mxu0 0
    %1528 = vmatprep.subr.bf16.mxu0 0
    %1529 = vmatpush1.bf16.msra.mxu0 0
    %1530 = vmatprep.subr.bf16.mxu0 0
    %1531 = vmatpush1.bf16.msra.mxu0 0
    %1532 = vmatprep.subr.bf16.mxu0 0
    %1533 = vmatpush1.bf16.msra.mxu0 0
    %1534 = vmatprep.mubr.bf16.mxu0 0
    %1535 = vmatmul.mubr.bf16.gmra.mrb[0].mxu0 %v1460
    %v1536 = vpop.f32.mrb[0].mxu0
    %v1537 = vadd.f32 0.0, %v1536
    %v1538 = vpop.f32.mrb[0].mxu0
    %v1539 = vadd.f32 0.0, %v1538
    %v1540 = vpop.f32.mrb[0].mxu0
    %v1541 = vpop.f32.mrb[0].mxu0
    %1542 = vdwg.mxu0
    %1543 = vmatprep.subr.bf16.mxu0 %v470
    %1544 = vmatpush1.bf16.msra.mxu0 %v469
    %1545 = vmatprep.subr.bf16.mxu0 %v474
    %1546 = vmatpush1.bf16.msra.mxu0 %v473
    %1547 = vmatprep.subr.bf16.mxu0 %v478
    %1548 = vmatpush1.bf16.msra.mxu0 %v477
    %1549 = vmatprep.subr.bf16.mxu0 %v482
    %1550 = vmatpush1.bf16.msra.mxu0 %v481
    %1551 = vmatprep.subr.bf16.mxu0 %v486
    %1552 = vmatpush1.bf16.msra.mxu0 %v485
    %1553 = vmatprep.subr.bf16.mxu0 %v490
    %1554 = vmatpush1.bf16.msra.mxu0 %v489
    %1555 = vmatprep.subr.bf16.mxu0 %v494
    %1556 = vmatpush1.bf16.msra.mxu0 %v493
    %1557 = vmatprep.subr.bf16.mxu0 %v498
    %1558 = vmatpush1.bf16.msra.mxu0 %v497
    %1559 = vmatprep.subr.bf16.mxu0 0
    %1560 = vmatpush1.bf16.msra.mxu0 0
    %1561 = vmatprep.subr.bf16.mxu0 0
    %1562 = vmatpush1.bf16.msra.mxu0 0
    %1563 = vmatprep.subr.bf16.mxu0 0
    %1564 = vmatpush1.bf16.msra.mxu0 0
    %1565 = vmatprep.subr.bf16.mxu0 0
    %1566 = vmatpush1.bf16.msra.mxu0 0
    %1567 = vmatprep.subr.bf16.mxu0 0
    %1568 = vmatpush1.bf16.msra.mxu0 0
    %1569 = vmatprep.subr.bf16.mxu0 0
    %1570 = vmatpush1.bf16.msra.mxu0 0
    %1571 = vmatprep.subr.bf16.mxu0 0
    %1572 = vmatpush1.bf16.msra.mxu0 0
    %1573 = vmatprep.subr.bf16.mxu0 0
    %1574 = vmatpush1.bf16.msra.mxu0 0
    %1575 = vmatprep.mubr.bf16.mxu0 0
    %1576 = vmatmul.mubr.bf16.gmra.mrb[0].mxu0 %v1459
    %v1577 = vpop.f32.mrb[0].mxu0
    %v1578 = vadd.f32 %v1496, %v1577
    %v1579 = vpop.f32.mrb[0].mxu0
    %v1580 = vadd.f32 %v1498, %v1579
    %v1581 = vpop.f32.mrb[0].mxu0
    %v1582 = vpop.f32.mrb[0].mxu0
    %1583 = vdwg.mxu0
    %1584 = vmatprep.subr.bf16.mxu0 %v472
    %1585 = vmatpush1.bf16.msra.mxu0 %v471
    %1586 = vmatprep.subr.bf16.mxu0 %v476
    %1587 = vmatpush1.bf16.msra.mxu0 %v475
    %1588 = vmatprep.subr.bf16.mxu0 %v480
    %1589 = vmatpush1.bf16.msra.mxu0 %v479
    %1590 = vmatprep.subr.bf16.mxu0 %v484
    %1591 = vmatpush1.bf16.msra.mxu0 %v483
    %1592 = vmatprep.subr.bf16.mxu0 %v488
    %1593 = vmatpush1.bf16.msra.mxu0 %v487
    %1594 = vmatprep.subr.bf16.mxu0 %v492
    %1595 = vmatpush1.bf16.msra.mxu0 %v491
    %1596 = vmatprep.subr.bf16.mxu0 %v496
    %1597 = vmatpush1.bf16.msra.mxu0 %v495
    %1598 = vmatprep.subr.bf16.mxu0 %v500
    %1599 = vmatpush1.bf16.msra.mxu0 %v499
    %1600 = vmatprep.subr.bf16.mxu0 0
    %1601 = vmatpush1.bf16.msra.mxu0 0
    %1602 = vmatprep.subr.bf16.mxu0 0
    %1603 = vmatpush1.bf16.msra.mxu0 0
    %1604 = vmatprep.subr.bf16.mxu0 0
    %1605 = vmatpush1.bf16.msra.mxu0 0
    %1606 = vmatprep.subr.bf16.mxu0 0
    %1607 = vmatpush1.bf16.msra.mxu0 0
    %1608 = vmatprep.subr.bf16.mxu0 0
    %1609 = vmatpush1.bf16.msra.mxu0 0
    %1610 = vmatprep.subr.bf16.mxu0 0
    %1611 = vmatpush1.bf16.msra.mxu0 0
    %1612 = vmatprep.subr.bf16.mxu0 0
    %1613 = vmatpush1.bf16.msra.mxu0 0
    %1614 = vmatprep.subr.bf16.mxu0 0
    %1615 = vmatpush1.bf16.msra.mxu0 0
    %1616 = vmatprep.mubr.bf16.mxu0 0
    %1617 = vmatmul.mubr.bf16.gmra.mrb[0].mxu0 %v1459
    %v1618 = vpop.f32.mrb[0].mxu0
    %v1619 = vadd.f32 %v1537, %v1618
    %v1620 = vpop.f32.mrb[0].mxu0
    %v1621 = vadd.f32 %v1539, %v1620
    %v1622 = vpop.f32.mrb[0].mxu0
    %v1623 = vpop.f32.mrb[0].mxu0
    %1624 = vdwg.mxu0
    %v1625 = vadd.f32 %v1578, %v619
    %v1626 = vadd.f32 %v1580, %v623
    %v1627 = vadd.f32 %v1619, %v627
    %v1628 = vadd.f32 %v1621, %v631
    %v1629 = vxor.u32 %v1625, 2147483648
    %v1630 = vmul.f32 %v1629, 1.442695
    %v1631 = vpow.pop %v1630
    %v1632 = vadd.f32 %v1631, 1.0
    %v1633 = vrcp.pop %v1632
    %v1634 = vmul.f32 1.0, %v1633
    %v1635 = vxor.u32 %v1626, 2147483648
    %v1636 = vmul.f32 %v1635, 1.442695
    %v1637 = vpow.pop %v1636
    %v1638 = vadd.f32 %v1637, 1.0
    %v1639 = vrcp.pop %v1638
    %v1640 = vmul.f32 1.0, %v1639
    %v1641 = vtanh.pop %v1627
    %v1642 = vxor.u32 %v1628, 2147483648
    %v1643 = vmul.f32 %v1642, 1.442695
    %v1644 = vpow.pop %v1643
    %v1645 = vadd.f32 %v1644, 1.0
    %v1646 = vrcp.pop %v1645
    %v1647 = vmul.f32 1.0, %v1646
    %v1648 = vmul.f32 %v1640, %v1452
    %v1649 = vmul.f32 %v1634, %v1641
    %v1650 = vadd.f32 %v1648, %v1649
    %v1651 = vtanh.pop %v1650
    %v1652 = vmul.f32 %v1647, %v1651
    %s1653 = scalar_lea.vmem [#allocation2], 40
    %1654 = vst [vmem:[%s1653] sm:$0xff] %v1652
    %s1655 = scalar_lea.vmem %s1, 48
    %v1656 = vld [vmem:[%s1655] sm:$0xff]
    %v1657 = vpack.c.bf16 %v1656, %v1656
    %v1658 = vpack.c.bf16 %v1652, %v1652
    %1659 = vmatprep.subr.bf16.mxu0 %v228
    %1660 = vmatpush1.bf16.msra.mxu0 %v227
    %1661 = vmatprep.subr.bf16.mxu0 %v232
    %1662 = vmatpush1.bf16.msra.mxu0 %v231
    %1663 = vmatprep.subr.bf16.mxu0 %v236
    %1664 = vmatpush1.bf16.msra.mxu0 %v235
    %1665 = vmatprep.subr.bf16.mxu0 %v240
    %1666 = vmatpush1.bf16.msra.mxu0 %v239
    %1667 = vmatprep.subr.bf16.mxu0 %v244
    %1668 = vmatpush1.bf16.msra.mxu0 %v243
    %1669 = vmatprep.subr.bf16.mxu0 %v248
    %1670 = vmatpush1.bf16.msra.mxu0 %v247
    %1671 = vmatprep.subr.bf16.mxu0 %v252
    %1672 = vmatpush1.bf16.msra.mxu0 %v251
    %1673 = vmatprep.subr.bf16.mxu0 %v256
    %1674 = vmatpush1.bf16.msra.mxu0 %v255
    %1675 = vmatprep.subr.bf16.mxu0 0
    %1676 = vmatpush1.bf16.msra.mxu0 0
    %1677 = vmatprep.subr.bf16.mxu0 0
    %1678 = vmatpush1.bf16.msra.mxu0 0
    %1679 = vmatprep.subr.bf16.mxu0 0
    %1680 = vmatpush1.bf16.msra.mxu0 0
    %1681 = vmatprep.subr.bf16.mxu0 0
    %1682 = vmatpush1.bf16.msra.mxu0 0
    %1683 = vmatprep.subr.bf16.mxu0 0
    %1684 = vmatpush1.bf16.msra.mxu0 0
    %1685 = vmatprep.subr.bf16.mxu0 0
    %1686 = vmatpush1.bf16.msra.mxu0 0
    %1687 = vmatprep.subr.bf16.mxu0 0
    %1688 = vmatpush1.bf16.msra.mxu0 0
    %1689 = vmatprep.subr.bf16.mxu0 0
    %1690 = vmatpush1.bf16.msra.mxu0 0
    %1691 = vmatprep.mubr.bf16.mxu0 0
    %1692 = vmatmul.mubr.bf16.gmra.mrb[0].mxu0 %v1658
    %v1693 = vpop.f32.mrb[0].mxu0
    %v1694 = vadd.f32 0.0, %v1693
    %v1695 = vpop.f32.mrb[0].mxu0
    %v1696 = vadd.f32 0.0, %v1695
    %v1697 = vpop.f32.mrb[0].mxu0
    %v1698 = vpop.f32.mrb[0].mxu0
    %1699 = vdwg.mxu0
    %1700 = vmatprep.subr.bf16.mxu0 %v230
    %1701 = vmatpush1.bf16.msra.mxu0 %v229
    %1702 = vmatprep.subr.bf16.mxu0 %v234
    %1703 = vmatpush1.bf16.msra.mxu0 %v233
    %1704 = vmatprep.subr.bf16.mxu0 %v238
    %1705 = vmatpush1.bf16.msra.mxu0 %v237
    %1706 = vmatprep.subr.bf16.mxu0 %v242
    %1707 = vmatpush1.bf16.msra.mxu0 %v241
    %1708 = vmatprep.subr.bf16.mxu0 %v246
    %1709 = vmatpush1.bf16.msra.mxu0 %v245
    %1710 = vmatprep.subr.bf16.mxu0 %v250
    %1711 = vmatpush1.bf16.msra.mxu0 %v249
    %1712 = vmatprep.subr.bf16.mxu0 %v254
    %1713 = vmatpush1.bf16.msra.mxu0 %v253
    %1714 = vmatprep.subr.bf16.mxu0 %v258
    %1715 = vmatpush1.bf16.msra.mxu0 %v257
    %1716 = vmatprep.subr.bf16.mxu0 0
    %1717 = vmatpush1.bf16.msra.mxu0 0
    %1718 = vmatprep.subr.bf16.mxu0 0
    %1719 = vmatpush1.bf16.msra.mxu0 0
    %1720 = vmatprep.subr.bf16.mxu0 0
    %1721 = vmatpush1.bf16.msra.mxu0 0
    %1722 = vmatprep.subr.bf16.mxu0 0
    %1723 = vmatpush1.bf16.msra.mxu0 0
    %1724 = vmatprep.subr.bf16.mxu0 0
    %1725 = vmatpush1.bf16.msra.mxu0 0
    %1726 = vmatprep.subr.bf16.mxu0 0
    %1727 = vmatpush1.bf16.msra.mxu0 0
    %1728 = vmatprep.subr.bf16.mxu0 0
    %1729 = vmatpush1.bf16.msra.mxu0 0
    %1730 = vmatprep.subr.bf16.mxu0 0
    %1731 = vmatpush1.bf16.msra.mxu0 0
    %1732 = vmatprep.mubr.bf16.mxu0 0
    %1733 = vmatmul.mubr.bf16.gmra.mrb[0].mxu0 %v1658
    %v1734 = vpop.f32.mrb[0].mxu0
    %v1735 = vadd.f32 0.0, %v1734
    %v1736 = vpop.f32.mrb[0].mxu0
    %v1737 = vadd.f32 0.0, %v1736
    %v1738 = vpop.f32.mrb[0].mxu0
    %v1739 = vpop.f32.mrb[0].mxu0
    %1740 = vdwg.mxu0
    %1741 = vmatprep.subr.bf16.mxu0 %v470
    %1742 = vmatpush1.bf16.msra.mxu0 %v469
    %1743 = vmatprep.subr.bf16.mxu0 %v474
    %1744 = vmatpush1.bf16.msra.mxu0 %v473
    %1745 = vmatprep.subr.bf16.mxu0 %v478
    %1746 = vmatpush1.bf16.msra.mxu0 %v477
    %1747 = vmatprep.subr.bf16.mxu0 %v482
    %1748 = vmatpush1.bf16.msra.mxu0 %v481
    %1749 = vmatprep.subr.bf16.mxu0 %v486
    %1750 = vmatpush1.bf16.msra.mxu0 %v485
    %1751 = vmatprep.subr.bf16.mxu0 %v490
    %1752 = vmatpush1.bf16.msra.mxu0 %v489
    %1753 = vmatprep.subr.bf16.mxu0 %v494
    %1754 = vmatpush1.bf16.msra.mxu0 %v493
    %1755 = vmatprep.subr.bf16.mxu0 %v498
    %1756 = vmatpush1.bf16.msra.mxu0 %v497
    %1757 = vmatprep.subr.bf16.mxu0 0
    %1758 = vmatpush1.bf16.msra.mxu0 0
    %1759 = vmatprep.subr.bf16.mxu0 0
    %1760 = vmatpush1.bf16.msra.mxu0 0
    %1761 = vmatprep.subr.bf16.mxu0 0
    %1762 = vmatpush1.bf16.msra.mxu0 0
    %1763 = vmatprep.subr.bf16.mxu0 0
    %1764 = vmatpush1.bf16.msra.mxu0 0
    %1765 = vmatprep.subr.bf16.mxu0 0
    %1766 = vmatpush1.bf16.msra.mxu0 0
    %1767 = vmatprep.subr.bf16.mxu0 0
    %1768 = vmatpush1.bf16.msra.mxu0 0
    %1769 = vmatprep.subr.bf16.mxu0 0
    %1770 = vmatpush1.bf16.msra.mxu0 0
    %1771 = vmatprep.subr.bf16.mxu0 0
    %1772 = vmatpush1.bf16.msra.mxu0 0
    %1773 = vmatprep.mubr.bf16.mxu0 0
    %1774 = vmatmul.mubr.bf16.gmra.mrb[0].mxu0 %v1657
    %v1775 = vpop.f32.mrb[0].mxu0
    %v1776 = vadd.f32 %v1694, %v1775
    %v1777 = vpop.f32.mrb[0].mxu0
    %v1778 = vadd.f32 %v1696, %v1777
    %v1779 = vpop.f32.mrb[0].mxu0
    %v1780 = vpop.f32.mrb[0].mxu0
    %1781 = vdwg.mxu0
    %1782 = vmatprep.subr.bf16.mxu0 %v472
    %1783 = vmatpush1.bf16.msra.mxu0 %v471
    %1784 = vmatprep.subr.bf16.mxu0 %v476
    %1785 = vmatpush1.bf16.msra.mxu0 %v475
    %1786 = vmatprep.subr.bf16.mxu0 %v480
    %1787 = vmatpush1.bf16.msra.mxu0 %v479
    %1788 = vmatprep.subr.bf16.mxu0 %v484
    %1789 = vmatpush1.bf16.msra.mxu0 %v483
    %1790 = vmatprep.subr.bf16.mxu0 %v488
    %1791 = vmatpush1.bf16.msra.mxu0 %v487
    %1792 = vmatprep.subr.bf16.mxu0 %v492
    %1793 = vmatpush1.bf16.msra.mxu0 %v491
    %1794 = vmatprep.subr.bf16.mxu0 %v496
    %1795 = vmatpush1.bf16.msra.mxu0 %v495
    %1796 = vmatprep.subr.bf16.mxu0 %v500
    %1797 = vmatpush1.bf16.msra.mxu0 %v499
    %1798 = vmatprep.subr.bf16.mxu0 0
    %1799 = vmatpush1.bf16.msra.mxu0 0
    %1800 = vmatprep.subr.bf16.mxu0 0
    %1801 = vmatpush1.bf16.msra.mxu0 0
    %1802 = vmatprep.subr.bf16.mxu0 0
    %1803 = vmatpush1.bf16.msra.mxu0 0
    %1804 = vmatprep.subr.bf16.mxu0 0
    %1805 = vmatpush1.bf16.msra.mxu0 0
    %1806 = vmatprep.subr.bf16.mxu0 0
    %1807 = vmatpush1.bf16.msra.mxu0 0
    %1808 = vmatprep.subr.bf16.mxu0 0
    %1809 = vmatpush1.bf16.msra.mxu0 0
    %1810 = vmatprep.subr.bf16.mxu0 0
    %1811 = vmatpush1.bf16.msra.mxu0 0
    %1812 = vmatprep.subr.bf16.mxu0 0
    %1813 = vmatpush1.bf16.msra.mxu0 0
    %1814 = vmatprep.mubr.bf16.mxu0 0
    %1815 = vmatmul.mubr.bf16.gmra.mrb[0].mxu0 %v1657
    %v1816 = vpop.f32.mrb[0].mxu0
    %v1817 = vadd.f32 %v1735, %v1816
    %v1818 = vpop.f32.mrb[0].mxu0
    %v1819 = vadd.f32 %v1737, %v1818
    %v1820 = vpop.f32.mrb[0].mxu0
    %v1821 = vpop.f32.mrb[0].mxu0
    %1822 = vdwg.mxu0
    %v1823 = vadd.f32 %v1776, %v619
    %v1824 = vadd.f32 %v1778, %v623
    %v1825 = vadd.f32 %v1817, %v627
    %v1826 = vadd.f32 %v1819, %v631
    %v1827 = vxor.u32 %v1823, 2147483648
    %v1828 = vmul.f32 %v1827, 1.442695
    %v1829 = vpow.pop %v1828
    %v1830 = vadd.f32 %v1829, 1.0
    %v1831 = vrcp.pop %v1830
    %v1832 = vmul.f32 1.0, %v1831
    %v1833 = vxor.u32 %v1824, 2147483648
    %v1834 = vmul.f32 %v1833, 1.442695
    %v1835 = vpow.pop %v1834
    %v1836 = vadd.f32 %v1835, 1.0
    %v1837 = vrcp.pop %v1836
    %v1838 = vmul.f32 1.0, %v1837
    %v1839 = vtanh.pop %v1825
    %v1840 = vxor.u32 %v1826, 2147483648
    %v1841 = vmul.f32 %v1840, 1.442695
    %v1842 = vpow.pop %v1841
    %v1843 = vadd.f32 %v1842, 1.0
    %v1844 = vrcp.pop %v1843
    %v1845 = vmul.f32 1.0, %v1844
    %v1846 = vmul.f32 %v1838, %v1650
    %v1847 = vmul.f32 %v1832, %v1839
    %v1848 = vadd.f32 %v1846, %v1847
    %v1849 = vtanh.pop %v1848
    %v1850 = vmul.f32 %v1845, %v1849
    %s1851 = scalar_lea.vmem [#allocation2], 48
    %1852 = vst [vmem:[%s1851] sm:$0xff] %v1850
    %s1853 = scalar_lea.vmem %s1, 56
    %v1854 = vld [vmem:[%s1853] sm:$0xff]
    %v1855 = vpack.c.bf16 %v1854, %v1854
    %v1856 = vpack.c.bf16 %v1850, %v1850
    %1857 = vmatprep.subr.bf16.mxu0 %v228
    %1858 = vmatpush1.bf16.msra.mxu0 %v227
    %1859 = vmatprep.subr.bf16.mxu0 %v232
    %1860 = vmatpush1.bf16.msra.mxu0 %v231
    %1861 = vmatprep.subr.bf16.mxu0 %v236
    %1862 = vmatpush1.bf16.msra.mxu0 %v235
    %1863 = vmatprep.subr.bf16.mxu0 %v240
    %1864 = vmatpush1.bf16.msra.mxu0 %v239
    %1865 = vmatprep.subr.bf16.mxu0 %v244
    %1866 = vmatpush1.bf16.msra.mxu0 %v243
    %1867 = vmatprep.subr.bf16.mxu0 %v248
    %1868 = vmatpush1.bf16.msra.mxu0 %v247
    %1869 = vmatprep.subr.bf16.mxu0 %v252
    %1870 = vmatpush1.bf16.msra.mxu0 %v251
    %1871 = vmatprep.subr.bf16.mxu0 %v256
    %1872 = vmatpush1.bf16.msra.mxu0 %v255
    %1873 = vmatprep.subr.bf16.mxu0 0
    %1874 = vmatpush1.bf16.msra.mxu0 0
    %1875 = vmatprep.subr.bf16.mxu0 0
    %1876 = vmatpush1.bf16.msra.mxu0 0
    %1877 = vmatprep.subr.bf16.mxu0 0
    %1878 = vmatpush1.bf16.msra.mxu0 0
    %1879 = vmatprep.subr.bf16.mxu0 0
    %1880 = vmatpush1.bf16.msra.mxu0 0
    %1881 = vmatprep.subr.bf16.mxu0 0
    %1882 = vmatpush1.bf16.msra.mxu0 0
    %1883 = vmatprep.subr.bf16.mxu0 0
    %1884 = vmatpush1.bf16.msra.mxu0 0
    %1885 = vmatprep.subr.bf16.mxu0 0
    %1886 = vmatpush1.bf16.msra.mxu0 0
    %1887 = vmatprep.subr.bf16.mxu0 0
    %1888 = vmatpush1.bf16.msra.mxu0 0
    %1889 = vmatprep.mubr.bf16.mxu0 0
    %1890 = vmatmul.mubr.bf16.gmra.mrb[0].mxu0 %v1856
    %v1891 = vpop.f32.mrb[0].mxu0
    %v1892 = vadd.f32 0.0, %v1891
    %v1893 = vpop.f32.mrb[0].mxu0
    %v1894 = vadd.f32 0.0, %v1893
    %v1895 = vpop.f32.mrb[0].mxu0
    %v1896 = vpop.f32.mrb[0].mxu0
    %1897 = vdwg.mxu0
    %1898 = vmatprep.subr.bf16.mxu0 %v230
    %1899 = vmatpush1.bf16.msra.mxu0 %v229
    %1900 = vmatprep.subr.bf16.mxu0 %v234
    %1901 = vmatpush1.bf16.msra.mxu0 %v233
    %1902 = vmatprep.subr.bf16.mxu0 %v238
    %1903 = vmatpush1.bf16.msra.mxu0 %v237
    %1904 = vmatprep.subr.bf16.mxu0 %v242
    %1905 = vmatpush1.bf16.msra.mxu0 %v241
    %1906 = vmatprep.subr.bf16.mxu0 %v246
    %1907 = vmatpush1.bf16.msra.mxu0 %v245
    %1908 = vmatprep.subr.bf16.mxu0 %v250
    %1909 = vmatpush1.bf16.msra.mxu0 %v249
    %1910 = vmatprep.subr.bf16.mxu0 %v254
    %1911 = vmatpush1.bf16.msra.mxu0 %v253
    %1912 = vmatprep.subr.bf16.mxu0 %v258
    %1913 = vmatpush1.bf16.msra.mxu0 %v257
    %1914 = vmatprep.subr.bf16.mxu0 0
    %1915 = vmatpush1.bf16.msra.mxu0 0
    %1916 = vmatprep.subr.bf16.mxu0 0
    %1917 = vmatpush1.bf16.msra.mxu0 0
    %1918 = vmatprep.subr.bf16.mxu0 0
    %1919 = vmatpush1.bf16.msra.mxu0 0
    %1920 = vmatprep.subr.bf16.mxu0 0
    %1921 = vmatpush1.bf16.msra.mxu0 0
    %1922 = vmatprep.subr.bf16.mxu0 0
    %1923 = vmatpush1.bf16.msra.mxu0 0
    %1924 = vmatprep.subr.bf16.mxu0 0
    %1925 = vmatpush1.bf16.msra.mxu0 0
    %1926 = vmatprep.subr.bf16.mxu0 0
    %1927 = vmatpush1.bf16.msra.mxu0 0
    %1928 = vmatprep.subr.bf16.mxu0 0
    %1929 = vmatpush1.bf16.msra.mxu0 0
    %1930 = vmatprep.mubr.bf16.mxu0 0
    %1931 = vmatmul.mubr.bf16.gmra.mrb[0].mxu0 %v1856
    %v1932 = vpop.f32.mrb[0].mxu0
    %v1933 = vadd.f32 0.0, %v1932
    %v1934 = vpop.f32.mrb[0].mxu0
    %v1935 = vadd.f32 0.0, %v1934
    %v1936 = vpop.f32.mrb[0].mxu0
    %v1937 = vpop.f32.mrb[0].mxu0
    %1938 = vdwg.mxu0
    %1939 = vmatprep.subr.bf16.mxu0 %v470
    %1940 = vmatpush1.bf16.msra.mxu0 %v469
    %1941 = vmatprep.subr.bf16.mxu0 %v474
    %1942 = vmatpush1.bf16.msra.mxu0 %v473
    %1943 = vmatprep.subr.bf16.mxu0 %v478
    %1944 = vmatpush1.bf16.msra.mxu0 %v477
    %1945 = vmatprep.subr.bf16.mxu0 %v482
    %1946 = vmatpush1.bf16.msra.mxu0 %v481
    %1947 = vmatprep.subr.bf16.mxu0 %v486
    %1948 = vmatpush1.bf16.msra.mxu0 %v485
    %1949 = vmatprep.subr.bf16.mxu0 %v490
    %1950 = vmatpush1.bf16.msra.mxu0 %v489
    %1951 = vmatprep.subr.bf16.mxu0 %v494
    %1952 = vmatpush1.bf16.msra.mxu0 %v493
    %1953 = vmatprep.subr.bf16.mxu0 %v498
    %1954 = vmatpush1.bf16.msra.mxu0 %v497
    %1955 = vmatprep.subr.bf16.mxu0 0
    %1956 = vmatpush1.bf16.msra.mxu0 0
    %1957 = vmatprep.subr.bf16.mxu0 0
    %1958 = vmatpush1.bf16.msra.mxu0 0
    %1959 = vmatprep.subr.bf16.mxu0 0
    %1960 = vmatpush1.bf16.msra.mxu0 0
    %1961 = vmatprep.subr.bf16.mxu0 0
    %1962 = vmatpush1.bf16.msra.mxu0 0
    %1963 = vmatprep.subr.bf16.mxu0 0
    %1964 = vmatpush1.bf16.msra.mxu0 0
    %1965 = vmatprep.subr.bf16.mxu0 0
    %1966 = vmatpush1.bf16.msra.mxu0 0
    %1967 = vmatprep.subr.bf16.mxu0 0
    %1968 = vmatpush1.bf16.msra.mxu0 0
    %1969 = vmatprep.subr.bf16.mxu0 0
    %1970 = vmatpush1.bf16.msra.mxu0 0
    %1971 = vmatprep.mubr.bf16.mxu0 0
    %1972 = vmatmul.mubr.bf16.gmra.mrb[0].mxu0 %v1855
    %v1973 = vpop.f32.mrb[0].mxu0
    %v1974 = vadd.f32 %v1892, %v1973
    %v1975 = vpop.f32.mrb[0].mxu0
    %v1976 = vadd.f32 %v1894, %v1975
    %v1977 = vpop.f32.mrb[0].mxu0
    %v1978 = vpop.f32.mrb[0].mxu0
    %1979 = vdwg.mxu0
    %1980 = vmatprep.subr.bf16.mxu0 %v472
    %1981 = vmatpush1.bf16.msra.mxu0 %v471
    %1982 = vmatprep.subr.bf16.mxu0 %v476
    %1983 = vmatpush1.bf16.msra.mxu0 %v475
    %1984 = vmatprep.subr.bf16.mxu0 %v480
    %1985 = vmatpush1.bf16.msra.mxu0 %v479
    %1986 = vmatprep.subr.bf16.mxu0 %v484
    %1987 = vmatpush1.bf16.msra.mxu0 %v483
    %1988 = vmatprep.subr.bf16.mxu0 %v488
    %1989 = vmatpush1.bf16.msra.mxu0 %v487
    %1990 = vmatprep.subr.bf16.mxu0 %v492
    %1991 = vmatpush1.bf16.msra.mxu0 %v491
    %1992 = vmatprep.subr.bf16.mxu0 %v496
    %1993 = vmatpush1.bf16.msra.mxu0 %v495
    %1994 = vmatprep.subr.bf16.mxu0 %v500
    %1995 = vmatpush1.bf16.msra.mxu0 %v499
    %1996 = vmatprep.subr.bf16.mxu0 0
    %1997 = vmatpush1.bf16.msra.mxu0 0
    %1998 = vmatprep.subr.bf16.mxu0 0
    %1999 = vmatpush1.bf16.msra.mxu0 0
    %2000 = vmatprep.subr.bf16.mxu0 0
    %2001 = vmatpush1.bf16.msra.mxu0 0
    %2002 = vmatprep.subr.bf16.mxu0 0
    %2003 = vmatpush1.bf16.msra.mxu0 0
    %2004 = vmatprep.subr.bf16.mxu0 0
    %2005 = vmatpush1.bf16.msra.mxu0 0
    %2006 = vmatprep.subr.bf16.mxu0 0
    %2007 = vmatpush1.bf16.msra.mxu0 0
    %2008 = vmatprep.subr.bf16.mxu0 0
    %2009 = vmatpush1.bf16.msra.mxu0 0
    %2010 = vmatprep.subr.bf16.mxu0 0
    %2011 = vmatpush1.bf16.msra.mxu0 0
    %2012 = vmatprep.mubr.bf16.mxu0 0
    %2013 = vmatmul.mubr.bf16.gmra.mrb[0].mxu0 %v1855
    %v2014 = vpop.f32.mrb[0].mxu0
    %v2015 = vadd.f32 %v1933, %v2014
    %v2016 = vpop.f32.mrb[0].mxu0
    %v2017 = vadd.f32 %v1935, %v2016
    %v2018 = vpop.f32.mrb[0].mxu0
    %v2019 = vpop.f32.mrb[0].mxu0
    %2020 = vdwg.mxu0
    %v2021 = vadd.f32 %v1974, %v619
    %v2022 = vadd.f32 %v1976, %v623
    %v2023 = vadd.f32 %v2015, %v627
    %v2024 = vadd.f32 %v2017, %v631
    %v2025 = vxor.u32 %v2021, 2147483648
    %v2026 = vmul.f32 %v2025, 1.442695
    %v2027 = vpow.pop %v2026
    %v2028 = vadd.f32 %v2027, 1.0
    %v2029 = vrcp.pop %v2028
    %v2030 = vmul.f32 1.0, %v2029
    %v2031 = vxor.u32 %v2022, 2147483648
    %v2032 = vmul.f32 %v2031, 1.442695
    %v2033 = vpow.pop %v2032
    %v2034 = vadd.f32 %v2033, 1.0
    %v2035 = vrcp.pop %v2034
    %v2036 = vmul.f32 1.0, %v2035
    %v2037 = vtanh.pop %v2023
    %v2038 = vxor.u32 %v2024, 2147483648
    %v2039 = vmul.f32 %v2038, 1.442695
    %v2040 = vpow.pop %v2039
    %v2041 = vadd.f32 %v2040, 1.0
    %v2042 = vrcp.pop %v2041
    %v2043 = vmul.f32 1.0, %v2042
    %v2044 = vmul.f32 %v2036, %v1848
    %v2045 = vmul.f32 %v2030, %v2037
    %v2046 = vadd.f32 %v2044, %v2045
    %v2047 = vtanh.pop %v2046
    %v2048 = vmul.f32 %v2043, %v2047
    %s2049 = scalar_lea.vmem [#allocation2], 56
    %2050 = vst [vmem:[%s2049] sm:$0xff] %v2048
    %v2051 = vld [vmem:[#allocation2] sm:$0xff]
    %v2052 = vld [vmem:[#allocation2 + $0x8] sm:$0xff]
    %v2053 = vld [vmem:[#allocation2 + $0x10] sm:$0xff]
    %v2054 = vld [vmem:[#allocation2 + $0x18] sm:$0xff]
    %v2055 = vld [vmem:[#allocation2 + $0x20] sm:$0xff]
    %v2056 = vld [vmem:[#allocation2 + $0x28] sm:$0xff]
    %v2057 = vld [vmem:[#allocation2 + $0x30] sm:$0xff]
    %v2058 = vld [vmem:[#allocation2 + $0x38] sm:$0xff]
    %v2059 = vld [vmem:[%s6] sm:$0xff]
    %v2060 = vld [vmem:[%s6 + $0x8] sm:$0xff]
    %v2061 = vld [vmem:[%s6 + $0x10] sm:$0xff]
    %v2062 = vld [vmem:[%s6 + $0x18] sm:$0xff]
    %v2063 = vld [vmem:[%s6 + $0x20] sm:$0xff]
    %v2064 = vld [vmem:[%s6 + $0x28] sm:$0xff]
    %v2065 = vld [vmem:[%s6 + $0x30] sm:$0xff]
    %v2066 = vld [vmem:[%s6 + $0x38] sm:$0xff]
    %v2067 = vld [vmem:[%s6 + $0x40] sm:$0xff]
    %v2068 = vld [vmem:[%s6 + $0x48] sm:$0xff]
    %v2069 = vld [vmem:[%s6 + $0x50] sm:$0xff]
    %v2070 = vld [vmem:[%s6 + $0x58] sm:$0xff]
    %v2071 = vld [vmem:[%s6 + $0x60] sm:$0xff]
    %v2072 = vld [vmem:[%s6 + $0x68] sm:$0xff]
    %v2073 = vld [vmem:[%s6 + $0x70] sm:$0xff]
    %v2074 = vld [vmem:[%s6 + $0x78] sm:$0xff]
    %v2075 = vld [vmem:[%s6 + $0x80] sm:$0xff]
    %v2076 = vld [vmem:[%s6 + $0x88] sm:$0xff]
    %v2077 = vld [vmem:[%s6 + $0x90] sm:$0xff]
    %v2078 = vld [vmem:[%s6 + $0x98] sm:$0xff]
    %v2079 = vld [vmem:[%s6 + $0xa0] sm:$0xff]
    %v2080 = vld [vmem:[%s6 + $0xa8] sm:$0xff]
    %v2081 = vld [vmem:[%s6 + $0xb0] sm:$0xff]
    %v2082 = vld [vmem:[%s6 + $0xb8] sm:$0xff]
    %v2083 = vld [vmem:[%s6 + $0xc0] sm:$0xff]
    %v2084 = vld [vmem:[%s6 + $0xc8] sm:$0xff]
    %v2085 = vld [vmem:[%s6 + $0xd0] sm:$0xff]
    %v2086 = vld [vmem:[%s6 + $0xd8] sm:$0xff]
    %v2087 = vld [vmem:[%s6 + $0xe0] sm:$0xff]
    %v2088 = vld [vmem:[%s6 + $0xe8] sm:$0xff]
    %v2089 = vld [vmem:[%s6 + $0xf0] sm:$0xff]
    %v2090 = vld [vmem:[%s6 + $0xf8] sm:$0xff]
    %v2091 = vld [vmem:[%s6 + $0x100] sm:$0xff]
    %v2092 = vld [vmem:[%s6 + $0x108] sm:$0xff]
    %v2093 = vld [vmem:[%s6 + $0x110] sm:$0xff]
    %v2094 = vld [vmem:[%s6 + $0x118] sm:$0xff]
    %v2095 = vld [vmem:[%s6 + $0x120] sm:$0xff]
    %v2096 = vld [vmem:[%s6 + $0x128] sm:$0xff]
    %v2097 = vld [vmem:[%s6 + $0x130] sm:$0xff]
    %v2098 = vld [vmem:[%s6 + $0x138] sm:$0xff]
    %v2099 = vld [vmem:[%s6 + $0x140] sm:$0xff]
    %v2100 = vld [vmem:[%s6 + $0x148] sm:$0xff]
    %v2101 = vld [vmem:[%s6 + $0x150] sm:$0xff]
    %v2102 = vld [vmem:[%s6 + $0x158] sm:$0xff]
    %v2103 = vld [vmem:[%s6 + $0x160] sm:$0xff]
    %v2104 = vld [vmem:[%s6 + $0x168] sm:$0xff]
    %v2105 = vld [vmem:[%s6 + $0x170] sm:$0xff]
    %v2106 = vld [vmem:[%s6 + $0x178] sm:$0xff]
    %v2107 = vld [vmem:[%s6 + $0x180] sm:$0xff]
    %v2108 = vld [vmem:[%s6 + $0x188] sm:$0xff]
    %v2109 = vld [vmem:[%s6 + $0x190] sm:$0xff]
    %v2110 = vld [vmem:[%s6 + $0x198] sm:$0xff]
    %v2111 = vld [vmem:[%s6 + $0x1a0] sm:$0xff]
    %v2112 = vld [vmem:[%s6 + $0x1a8] sm:$0xff]
    %v2113 = vld [vmem:[%s6 + $0x1b0] sm:$0xff]
    %v2114 = vld [vmem:[%s6 + $0x1b8] sm:$0xff]
    %v2115 = vld [vmem:[%s6 + $0x1c0] sm:$0xff]
    %v2116 = vld [vmem:[%s6 + $0x1c8] sm:$0xff]
    %v2117 = vld [vmem:[%s6 + $0x1d0] sm:$0xff]
    %v2118 = vld [vmem:[%s6 + $0x1d8] sm:$0xff]
    %v2119 = vld [vmem:[%s6 + $0x1e0] sm:$0xff]
    %v2120 = vld [vmem:[%s6 + $0x1e8] sm:$0xff]
    %v2121 = vld [vmem:[%s6 + $0x1f0] sm:$0xff]
    %v2122 = vld [vmem:[%s6 + $0x1f8] sm:$0xff]
    %v2123 = vld [vmem:[%s6 + $0x200] sm:$0xff]
    %v2124 = vld [vmem:[%s6 + $0x208] sm:$0xff]
    %v2125 = vld [vmem:[%s6 + $0x210] sm:$0xff]
    %v2126 = vld [vmem:[%s6 + $0x218] sm:$0xff]
    %v2127 = vld [vmem:[%s6 + $0x220] sm:$0xff]
    %v2128 = vld [vmem:[%s6 + $0x228] sm:$0xff]
    %v2129 = vld [vmem:[%s6 + $0x230] sm:$0xff]
    %v2130 = vld [vmem:[%s6 + $0x238] sm:$0xff]
    %v2131 = vld [vmem:[%s6 + $0x240] sm:$0xff]
    %v2132 = vld [vmem:[%s6 + $0x248] sm:$0xff]
    %v2133 = vld [vmem:[%s6 + $0x250] sm:$0xff]
    %v2134 = vld [vmem:[%s6 + $0x258] sm:$0xff]
    %v2135 = vld [vmem:[%s6 + $0x260] sm:$0xff]
    %v2136 = vld [vmem:[%s6 + $0x268] sm:$0xff]
    %v2137 = vld [vmem:[%s6 + $0x270] sm:$0xff]
    %v2138 = vld [vmem:[%s6 + $0x278] sm:$0xff]
    %v2139 = vld [vmem:[%s6 + $0x280] sm:$0xff]
    %v2140 = vld [vmem:[%s6 + $0x288] sm:$0xff]
    %v2141 = vld [vmem:[%s6 + $0x290] sm:$0xff]
    %v2142 = vld [vmem:[%s6 + $0x298] sm:$0xff]
    %v2143 = vld [vmem:[%s6 + $0x2a0] sm:$0xff]
    %v2144 = vld [vmem:[%s6 + $0x2a8] sm:$0xff]
    %v2145 = vld [vmem:[%s6 + $0x2b0] sm:$0xff]
    %v2146 = vld [vmem:[%s6 + $0x2b8] sm:$0xff]
    %v2147 = vld [vmem:[%s6 + $0x2c0] sm:$0xff]
    %v2148 = vld [vmem:[%s6 + $0x2c8] sm:$0xff]
    %v2149 = vld [vmem:[%s6 + $0x2d0] sm:$0xff]
    %v2150 = vld [vmem:[%s6 + $0x2d8] sm:$0xff]
    %v2151 = vld [vmem:[%s6 + $0x2e0] sm:$0xff]
    %v2152 = vld [vmem:[%s6 + $0x2e8] sm:$0xff]
    %v2153 = vld [vmem:[%s6 + $0x2f0] sm:$0xff]
    %v2154 = vld [vmem:[%s6 + $0x2f8] sm:$0xff]
    %v2155 = vld [vmem:[%s7] sm:$0xf]
    %v2156 = vld [vmem:[#allocation8] sm:$0xff]
    %v2157 = vld [vmem:[#allocation8 + $0x8] sm:$0xff]
    %v2158 = vld [vmem:[#allocation8 + $0x10] sm:$0xff]
    %v2159 = vld [vmem:[#allocation8 + $0x18] sm:$0xff]
    %v2160 = vld [vmem:[#allocation8 + $0x20] sm:$0xff]
    %v2161 = vld [vmem:[#allocation8 + $0x28] sm:$0xff]
    %v2162 = vld [vmem:[#allocation8 + $0x30] sm:$0xff]
    %v2163 = vld [vmem:[#allocation8 + $0x38] sm:$0xff]
    %v2164 = vld [vmem:[#allocation8 + $0x40] sm:$0xff]
    %v2165 = vld [vmem:[#allocation8 + $0x48] sm:$0xff]
    %v2166 = vld [vmem:[#allocation8 + $0x50] sm:$0xff]
    %v2167 = vld [vmem:[#allocation8 + $0x58] sm:$0xff]
    %v2168 = vld [vmem:[#allocation8 + $0x60] sm:$0xff]
    %v2169 = vld [vmem:[#allocation8 + $0x68] sm:$0xff]
    %v2170 = vld [vmem:[#allocation8 + $0x70] sm:$0xff]
    %v2171 = vld [vmem:[#allocation8 + $0x78] sm:$0xff]
    %v2172 = vld [vmem:[#allocation8 + $0x80] sm:$0xff]
    %v2173 = vld [vmem:[#allocation8 + $0x88] sm:$0xff]
    %v2174 = vld [vmem:[#allocation8 + $0x90] sm:$0xff]
    %v2175 = vld [vmem:[#allocation8 + $0x98] sm:$0xff]
    %v2176 = vld [vmem:[#allocation8 + $0xa0] sm:$0xff]
    %v2177 = vld [vmem:[#allocation8 + $0xa8] sm:$0xff]
    %v2178 = vld [vmem:[#allocation8 + $0xb0] sm:$0xff]
    %v2179 = vld [vmem:[#allocation8 + $0xb8] sm:$0xff]
    %v2180 = vld [vmem:[#allocation8 + $0xc0] sm:$0xff]
    %v2181 = vld [vmem:[#allocation8 + $0xc8] sm:$0xff]
    %v2182 = vld [vmem:[#allocation8 + $0xd0] sm:$0xff]
    %v2183 = vld [vmem:[#allocation8 + $0xd8] sm:$0xff]
    %v2184 = vld [vmem:[#allocation8 + $0xe0] sm:$0xff]
    %v2185 = vld [vmem:[#allocation8 + $0xe8] sm:$0xff]
    %v2186 = vld [vmem:[#allocation8 + $0xf0] sm:$0xff]
    %v2187 = vld [vmem:[#allocation8 + $0xf8] sm:$0xff]
    %v2188 = vld [vmem:[#allocation8 + $0x100] sm:$0xff]
    %v2189 = vld [vmem:[#allocation8 + $0x108] sm:$0xff]
    %v2190 = vld [vmem:[#allocation8 + $0x110] sm:$0xff]
    %v2191 = vld [vmem:[#allocation8 + $0x118] sm:$0xff]
    %v2192 = vld [vmem:[#allocation8 + $0x120] sm:$0xff]
    %v2193 = vld [vmem:[#allocation8 + $0x128] sm:$0xff]
    %v2194 = vld [vmem:[#allocation8 + $0x130] sm:$0xff]
    %v2195 = vld [vmem:[#allocation8 + $0x138] sm:$0xff]
    %v2196 = vld [vmem:[#allocation8 + $0x140] sm:$0xff]
    %v2197 = vld [vmem:[#allocation8 + $0x148] sm:$0xff]
    %v2198 = vld [vmem:[#allocation8 + $0x150] sm:$0xff]
    %v2199 = vld [vmem:[#allocation8 + $0x158] sm:$0xff]
    %v2200 = vld [vmem:[#allocation8 + $0x160] sm:$0xff]
    %v2201 = vld [vmem:[#allocation8 + $0x168] sm:$0xff]
    %v2202 = vld [vmem:[#allocation8 + $0x170] sm:$0xff]
    %v2203 = vld [vmem:[#allocation8 + $0x178] sm:$0xff]
    %v2204 = vld [vmem:[%s9] sm:$0x3]
    %v2205 = vld [vmem:[%s5] sm:$0xf]
    %v2206 = vld [vmem:[%s5 + $0x4] sm:$0xf]
    %v2207 = vld [vmem:[%s5 + $0x8] sm:$0xf]
    %v2208 = vld [vmem:[%s5 + $0xc] sm:$0xf]
    %v2209 = vld [vmem:[%s5 + $0x10] sm:$0xf]
    %v2210 = vld [vmem:[%s5 + $0x14] sm:$0xf]
    %v2211 = vld [vmem:[%s5 + $0x18] sm:$0xf]
    %v2212 = vld [vmem:[%s5 + $0x1c] sm:$0xf]
    %v2213 = vld [vmem:[%s5 + $0x20] sm:$0xf]
    %v2214 = vld [vmem:[%s5 + $0x24] sm:$0xf]
    %v2215 = vld [vmem:[%s5 + $0x28] sm:$0xf]
    %v2216 = vld [vmem:[%s5 + $0x2c] sm:$0xf]
    %v2217 = vld [vmem:[%s5 + $0x30] sm:$0xf]
    %v2218 = vld [vmem:[%s5 + $0x34] sm:$0xf]
    %v2219 = vld [vmem:[%s5 + $0x38] sm:$0xf]
    %v2220 = vld [vmem:[%s5 + $0x3c] sm:$0xf]
    %v2221 = vld [vmem:[%s5 + $0x40] sm:$0xf]
    %v2222 = vld [vmem:[%s5 + $0x44] sm:$0xf]
    %v2223 = vld [vmem:[%s5 + $0x48] sm:$0xf]
    %v2224 = vld [vmem:[%s5 + $0x4c] sm:$0xf]
    %v2225 = vld [vmem:[%s5 + $0x50] sm:$0xf]
    %v2226 = vld [vmem:[%s5 + $0x54] sm:$0xf]
    %v2227 = vld [vmem:[%s5 + $0x58] sm:$0xf]
    %v2228 = vld [vmem:[%s5 + $0x5c] sm:$0xf]
    %v2229 = vld [vmem:[%s5 + $0x60] sm:$0xf]
    %v2230 = vld [vmem:[%s5 + $0x64] sm:$0xf]
    %v2231 = vld [vmem:[%s5 + $0x68] sm:$0xf]
    %v2232 = vld [vmem:[%s5 + $0x6c] sm:$0xf]
    %v2233 = vld [vmem:[%s5 + $0x70] sm:$0xf]
    %v2234 = vld [vmem:[%s5 + $0x74] sm:$0xf]
    %v2235 = vld [vmem:[%s5 + $0x78] sm:$0xf]
    %v2236 = vld [vmem:[%s5 + $0x7c] sm:$0xf]
    %2237 = vst [vmem:[#allocation9] sm:$0xff] 0.0
    %2238 = vst [vmem:[#allocation9 + $0x8] sm:$0xff] 0.0
    %2239 = vst [vmem:[#allocation3] sm:$0xff] 0.0
    %v2240 = vld [vmem:[%s2] sm:$0xff]
    %v2241 = vpack.c.bf16 %v2240, %v2240
    %v2242 = vmul.f32 %v2051, %v2048
    %v2243 = vmul.f32 %v2052, %v2048
    %v2244 = vmul.f32 %v2053, %v2048
    %v2245 = vmul.f32 %v2054, %v2048
    %v2246 = vmul.f32 %v2055, %v2048
    %v2247 = vmul.f32 %v2056, %v2048
    %v2248 = vmul.f32 %v2057, %v2048
    %v2249 = vmul.f32 %v2058, %v2048
    %2250 = vadd.xlane.f32.xlu0 %v2242
    %v2251 = vpop.xlane.xlu0 %2250
    %2252 = vadd.xlane.f32.xlu0 %v2243
    %v2253 = vpop.xlane.xlu0 %2252
    %2254 = vadd.xlane.f32.xlu0 %v2244
    %v2255 = vpop.xlane.xlu0 %2254
    %2256 = vadd.xlane.f32.xlu0 %v2245
    %v2257 = vpop.xlane.xlu0 %2256
    %2258 = vadd.xlane.f32.xlu0 %v2246
    %v2259 = vpop.xlane.xlu0 %2258
    %2260 = vadd.xlane.f32.xlu0 %v2247
    %v2261 = vpop.xlane.xlu0 %2260
    %2262 = vadd.xlane.f32.xlu0 %v2248
    %v2263 = vpop.xlane.xlu0 %2262
    %2264 = vadd.xlane.f32.xlu0 %v2249
    %v2265 = vpop.xlane.xlu0 %2264
    %v2266 = vmax.f32 %v2251, %v2259
    %v2267 = vmax.f32 %v2253, %v2261
    %v2268 = vmax.f32 %v2255, %v2263
    %v2269 = vmax.f32 %v2257, %v2265
    %v2270 = vmax.f32 %v2266, %v2267
    %v2271 = vmax.f32 %v2268, %v2269
    %v2272 = vmax.f32 %v2270, %v2271
    %v2273 = vsub.f32 %v2251, %v2272
    %v2274 = vsub.f32 %v2253, %v2272
    %v2275 = vsub.f32 %v2255, %v2272
    %v2276 = vsub.f32 %v2257, %v2272
    %v2277 = vsub.f32 %v2259, %v2272
    %v2278 = vsub.f32 %v2261, %v2272
    %v2279 = vsub.f32 %v2263, %v2272
    %v2280 = vsub.f32 %v2265, %v2272
    %v2281 = vmul.f32 %v2273, 1.442695
    %v2282 = vpow.pop %v2281
    %v2283 = vmul.f32 %v2274, 1.442695
    %v2284 = vpow.pop %v2283
    %v2285 = vmul.f32 %v2275, 1.442695
    %v2286 = vpow.pop %v2285
    %v2287 = vmul.f32 %v2276, 1.442695
    %v2288 = vpow.pop %v2287
    %v2289 = vmul.f32 %v2277, 1.442695
    %v2290 = vpow.pop %v2289
    %v2291 = vmul.f32 %v2278, 1.442695
    %v2292 = vpow.pop %v2291
    %v2293 = vmul.f32 %v2279, 1.442695
    %v2294 = vpow.pop %v2293
    %v2295 = vmul.f32 %v2280, 1.442695
    %v2296 = vpow.pop %v2295
    %v2297 = vadd.f32 %v2282, %v2284
    %v2298 = vadd.f32 %v2297, %v2286
    %v2299 = vadd.f32 %v2298, %v2288
    %v2300 = vadd.f32 %v2299, %v2290
    %v2301 = vadd.f32 %v2300, %v2292
    %v2302 = vadd.f32 %v2301, %v2294
    %v2303 = vadd.f32 %v2302, %v2296
    %v2304 = vrcp.pop %v2303
    %v2305 = vmul.f32 %v2282, %v2304
    %v2306 = vmul.f32 %v2284, %v2304
    %v2307 = vmul.f32 %v2286, %v2304
    %v2308 = vmul.f32 %v2288, %v2304
    %v2309 = vmul.f32 %v2290, %v2304
    %v2310 = vmul.f32 %v2292, %v2304
    %v2311 = vmul.f32 %v2294, %v2304
    %v2312 = vmul.f32 %v2296, %v2304
    %v2313 = vmul.f32 %v2305, %v2051
    %v2314 = vmul.f32 %v2306, %v2052
    %v2315 = vmul.f32 %v2307, %v2053
    %v2316 = vmul.f32 %v2308, %v2054
    %v2317 = vmul.f32 %v2309, %v2055
    %v2318 = vmul.f32 %v2310, %v2056
    %v2319 = vmul.f32 %v2311, %v2057
    %v2320 = vmul.f32 %v2312, %v2058
    %v2321 = vadd.f32 %v2313, %v2314
    %v2322 = vadd.f32 %v2321, %v2315
    %v2323 = vadd.f32 %v2322, %v2316
    %v2324 = vadd.f32 %v2323, %v2317
    %v2325 = vadd.f32 %v2324, %v2318
    %v2326 = vadd.f32 %v2325, %v2319
    %v2327 = vadd.f32 %v2326, %v2320
    %v2328 = vpack.c.bf16 %v2327, %v2327
    %v2361 = vunpack.c.l.b16 %v2091
    %v2362 = vunpack.c.h.b16 %v2091
    %v2363 = vunpack.c.l.b16 %v2092
    %v2364 = vunpack.c.h.b16 %v2092
    %v2365 = vunpack.c.l.b16 %v2093
    %v2366 = vunpack.c.h.b16 %v2093
    %v2367 = vunpack.c.l.b16 %v2094
    %v2368 = vunpack.c.h.b16 %v2094
    %v2369 = vunpack.c.l.b16 %v2095
    %v2370 = vunpack.c.h.b16 %v2095
    %v2371 = vunpack.c.l.b16 %v2096
    %v2372 = vunpack.c.h.b16 %v2096
    %v2373 = vunpack.c.l.b16 %v2097
    %v2374 = vunpack.c.h.b16 %v2097
    %v2375 = vunpack.c.l.b16 %v2098
    %v2376 = vunpack.c.h.b16 %v2098
    %v2377 = vunpack.c.l.b16 %v2099
    %v2378 = vunpack.c.h.b16 %v2099
    %v2379 = vunpack.c.l.b16 %v2100
    %v2380 = vunpack.c.h.b16 %v2100
    %v2381 = vunpack.c.l.b16 %v2101
    %v2382 = vunpack.c.h.b16 %v2101
    %v2383 = vunpack.c.l.b16 %v2102
    %v2384 = vunpack.c.h.b16 %v2102
    %v2385 = vunpack.c.l.b16 %v2103
    %v2386 = vunpack.c.h.b16 %v2103
    %v2387 = vunpack.c.l.b16 %v2104
    %v2388 = vunpack.c.h.b16 %v2104
    %v2389 = vunpack.c.l.b16 %v2105
    %v2390 = vunpack.c.h.b16 %v2105
    %v2391 = vunpack.c.l.b16 %v2106
    %v2392 = vunpack.c.h.b16 %v2106
    %v2393 = vunpack.c.l.b16 %v2107
    %v2394 = vunpack.c.h.b16 %v2107
    %v2395 = vunpack.c.l.b16 %v2108
    %v2396 = vunpack.c.h.b16 %v2108
    %v2397 = vunpack.c.l.b16 %v2109
    %v2398 = vunpack.c.h.b16 %v2109
    %v2399 = vunpack.c.l.b16 %v2110
    %v2400 = vunpack.c.h.b16 %v2110
    %v2401 = vunpack.c.l.b16 %v2111
    %v2402 = vunpack.c.h.b16 %v2111
    %v2403 = vunpack.c.l.b16 %v2112
    %v2404 = vunpack.c.h.b16 %v2112
    %v2405 = vunpack.c.l.b16 %v2113
    %v2406 = vunpack.c.h.b16 %v2113
    %v2407 = vunpack.c.l.b16 %v2114
    %v2408 = vunpack.c.h.b16 %v2114
    %v2409 = vunpack.c.l.b16 %v2115
    %v2410 = vunpack.c.h.b16 %v2115
    %v2411 = vunpack.c.l.b16 %v2116
    %v2412 = vunpack.c.h.b16 %v2116
    %v2413 = vunpack.c.l.b16 %v2117
    %v2414 = vunpack.c.h.b16 %v2117
    %v2415 = vunpack.c.l.b16 %v2118
    %v2416 = vunpack.c.h.b16 %v2118
    %v2417 = vunpack.c.l.b16 %v2119
    %v2418 = vunpack.c.h.b16 %v2119
    %v2419 = vunpack.c.l.b16 %v2120
    %v2420 = vunpack.c.h.b16 %v2120
    %v2421 = vunpack.c.l.b16 %v2121
    %v2422 = vunpack.c.h.b16 %v2121
    %v2423 = vunpack.c.l.b16 %v2122
    %v2424 = vunpack.c.h.b16 %v2122
    %v2425 = vpack.c.b16 %v2365, %v2361
    %v2426 = vpack.c.b16 %v2366, %v2362
    %v2427 = vpack.c.b16 %v2367, %v2363
    %v2428 = vpack.c.b16 %v2368, %v2364
    %v2429 = vpack.c.b16 %v2373, %v2369
    %v2430 = vpack.c.b16 %v2374, %v2370
    %v2431 = vpack.c.b16 %v2375, %v2371
    %v2432 = vpack.c.b16 %v2376, %v2372
    %v2433 = vpack.c.b16 %v2381, %v2377
    %v2434 = vpack.c.b16 %v2382, %v2378
    %v2435 = vpack.c.b16 %v2383, %v2379
    %v2436 = vpack.c.b16 %v2384, %v2380
    %v2437 = vpack.c.b16 %v2389, %v2385
    %v2438 = vpack.c.b16 %v2390, %v2386
    %v2439 = vpack.c.b16 %v2391, %v2387
    %v2440 = vpack.c.b16 %v2392, %v2388
    %v2441 = vpack.c.b16 %v2397, %v2393
    %v2442 = vpack.c.b16 %v2398, %v2394
    %v2443 = vpack.c.b16 %v2399, %v2395
    %v2444 = vpack.c.b16 %v2400, %v2396
    %v2445 = vpack.c.b16 %v2405, %v2401
    %v2446 = vpack.c.b16 %v2406, %v2402
    %v2447 = vpack.c.b16 %v2407, %v2403
    %v2448 = vpack.c.b16 %v2408, %v2404
    %v2449 = vpack.c.b16 %v2413, %v2409
    %v2450 = vpack.c.b16 %v2414, %v2410
    %v2451 = vpack.c.b16 %v2415, %v2411
    %v2452 = vpack.c.b16 %v2416, %v2412
    %v2453 = vpack.c.b16 %v2421, %v2417
    %v2454 = vpack.c.b16 %v2422, %v2418
    %v2455 = vpack.c.b16 %v2423, %v2419
    %v2456 = vpack.c.b16 %v2424, %v2420
    %2489 = vmatprep.subr.bf16.mxu0 %v2426
    %2490 = vmatpush1.bf16.msra.mxu0 %v2425
    %2491 = vmatprep.subr.bf16.mxu0 %v2430
    %2492 = vmatpush1.bf16.msra.mxu0 %v2429
    %2493 = vmatprep.subr.bf16.mxu0 %v2434
    %2494 = vmatpush1.bf16.msra.mxu0 %v2433
    %2495 = vmatprep.subr.bf16.mxu0 %v2438
    %2496 = vmatpush1.bf16.msra.mxu0 %v2437
    %2497 = vmatprep.subr.bf16.mxu0 %v2442
    %2498 = vmatpush1.bf16.msra.mxu0 %v2441
    %2499 = vmatprep.subr.bf16.mxu0 %v2446
    %2500 = vmatpush1.bf16.msra.mxu0 %v2445
    %2501 = vmatprep.subr.bf16.mxu0 %v2450
    %2502 = vmatpush1.bf16.msra.mxu0 %v2449
    %2503 = vmatprep.subr.bf16.mxu0 %v2454
    %2504 = vmatpush1.bf16.msra.mxu0 %v2453
    %2505 = vmatprep.subr.bf16.mxu0 0
    %2506 = vmatpush1.bf16.msra.mxu0 0
    %2507 = vmatprep.subr.bf16.mxu0 0
    %2508 = vmatpush1.bf16.msra.mxu0 0
    %2509 = vmatprep.subr.bf16.mxu0 0
    %2510 = vmatpush1.bf16.msra.mxu0 0
    %2511 = vmatprep.subr.bf16.mxu0 0
    %2512 = vmatpush1.bf16.msra.mxu0 0
    %2513 = vmatprep.subr.bf16.mxu0 0
    %2514 = vmatpush1.bf16.msra.mxu0 0
    %2515 = vmatprep.subr.bf16.mxu0 0
    %2516 = vmatpush1.bf16.msra.mxu0 0
    %2517 = vmatprep.subr.bf16.mxu0 0
    %2518 = vmatpush1.bf16.msra.mxu0 0
    %2519 = vmatprep.subr.bf16.mxu0 0
    %2520 = vmatpush1.bf16.msra.mxu0 0
    %2521 = vmatprep.mubr.bf16.mxu0 0
    %2522 = vmatmul.mubr.bf16.gmra.mrb[0].mxu0 %v2328
    %v2523 = vpop.f32.mrb[0].mxu0
    %v2524 = vadd.f32 0.0, %v2523
    %v2525 = vpop.f32.mrb[0].mxu0
    %v2526 = vadd.f32 0.0, %v2525
    %v2527 = vpop.f32.mrb[0].mxu0
    %v2528 = vpop.f32.mrb[0].mxu0
    %2529 = vdwg.mxu0
    %2530 = vmatprep.subr.bf16.mxu0 %v2428
    %2531 = vmatpush1.bf16.msra.mxu0 %v2427
    %2532 = vmatprep.subr.bf16.mxu0 %v2432
    %2533 = vmatpush1.bf16.msra.mxu0 %v2431
    %2534 = vmatprep.subr.bf16.mxu0 %v2436
    %2535 = vmatpush1.bf16.msra.mxu0 %v2435
    %2536 = vmatprep.subr.bf16.mxu0 %v2440
    %2537 = vmatpush1.bf16.msra.mxu0 %v2439
    %2538 = vmatprep.subr.bf16.mxu0 %v2444
    %2539 = vmatpush1.bf16.msra.mxu0 %v2443
    %2540 = vmatprep.subr.bf16.mxu0 %v2448
    %2541 = vmatpush1.bf16.msra.mxu0 %v2447
    %2542 = vmatprep.subr.bf16.mxu0 %v2452
    %2543 = vmatpush1.bf16.msra.mxu0 %v2451
    %2544 = vmatprep.subr.bf16.mxu0 %v2456
    %2545 = vmatpush1.bf16.msra.mxu0 %v2455
    %2546 = vmatprep.subr.bf16.mxu0 0
    %2547 = vmatpush1.bf16.msra.mxu0 0
    %2548 = vmatprep.subr.bf16.mxu0 0
    %2549 = vmatpush1.bf16.msra.mxu0 0
    %2550 = vmatprep.subr.bf16.mxu0 0
    %2551 = vmatpush1.bf16.msra.mxu0 0
    %2552 = vmatprep.subr.bf16.mxu0 0
    %2553 = vmatpush1.bf16.msra.mxu0 0
    %2554 = vmatprep.subr.bf16.mxu0 0
    %2555 = vmatpush1.bf16.msra.mxu0 0
    %2556 = vmatprep.subr.bf16.mxu0 0
    %2557 = vmatpush1.bf16.msra.mxu0 0
    %2558 = vmatprep.subr.bf16.mxu0 0
    %2559 = vmatpush1.bf16.msra.mxu0 0
    %2560 = vmatprep.subr.bf16.mxu0 0
    %2561 = vmatpush1.bf16.msra.mxu0 0
    %2562 = vmatprep.mubr.bf16.mxu0 0
    %2563 = vmatmul.mubr.bf16.gmra.mrb[0].mxu0 %v2328
    %v2564 = vpop.f32.mrb[0].mxu0
    %v2565 = vadd.f32 0.0, %v2564
    %v2566 = vpop.f32.mrb[0].mxu0
    %v2567 = vadd.f32 0.0, %v2566
    %v2568 = vpop.f32.mrb[0].mxu0
    %v2569 = vpop.f32.mrb[0].mxu0
    %2570 = vdwg.mxu0
    %v2603 = vunpack.c.l.b16 %v2059
    %v2604 = vunpack.c.h.b16 %v2059
    %v2605 = vunpack.c.l.b16 %v2060
    %v2606 = vunpack.c.h.b16 %v2060
    %v2607 = vunpack.c.l.b16 %v2061
    %v2608 = vunpack.c.h.b16 %v2061
    %v2609 = vunpack.c.l.b16 %v2062
    %v2610 = vunpack.c.h.b16 %v2062
    %v2611 = vunpack.c.l.b16 %v2063
    %v2612 = vunpack.c.h.b16 %v2063
    %v2613 = vunpack.c.l.b16 %v2064
    %v2614 = vunpack.c.h.b16 %v2064
    %v2615 = vunpack.c.l.b16 %v2065
    %v2616 = vunpack.c.h.b16 %v2065
    %v2617 = vunpack.c.l.b16 %v2066
    %v2618 = vunpack.c.h.b16 %v2066
    %v2619 = vunpack.c.l.b16 %v2067
    %v2620 = vunpack.c.h.b16 %v2067
    %v2621 = vunpack.c.l.b16 %v2068
    %v2622 = vunpack.c.h.b16 %v2068
    %v2623 = vunpack.c.l.b16 %v2069
    %v2624 = vunpack.c.h.b16 %v2069
    %v2625 = vunpack.c.l.b16 %v2070
    %v2626 = vunpack.c.h.b16 %v2070
    %v2627 = vunpack.c.l.b16 %v2071
    %v2628 = vunpack.c.h.b16 %v2071
    %v2629 = vunpack.c.l.b16 %v2072
    %v2630 = vunpack.c.h.b16 %v2072
    %v2631 = vunpack.c.l.b16 %v2073
    %v2632 = vunpack.c.h.b16 %v2073
    %v2633 = vunpack.c.l.b16 %v2074
    %v2634 = vunpack.c.h.b16 %v2074
    %v2635 = vunpack.c.l.b16 %v2075
    %v2636 = vunpack.c.h.b16 %v2075
    %v2637 = vunpack.c.l.b16 %v2076
    %v2638 = vunpack.c.h.b16 %v2076
    %v2639 = vunpack.c.l.b16 %v2077
    %v2640 = vunpack.c.h.b16 %v2077
    %v2641 = vunpack.c.l.b16 %v2078
    %v2642 = vunpack.c.h.b16 %v2078
    %v2643 = vunpack.c.l.b16 %v2079
    %v2644 = vunpack.c.h.b16 %v2079
    %v2645 = vunpack.c.l.b16 %v2080
    %v2646 = vunpack.c.h.b16 %v2080
    %v2647 = vunpack.c.l.b16 %v2081
    %v2648 = vunpack.c.h.b16 %v2081
    %v2649 = vunpack.c.l.b16 %v2082
    %v2650 = vunpack.c.h.b16 %v2082
    %v2651 = vunpack.c.l.b16 %v2083
    %v2652 = vunpack.c.h.b16 %v2083
    %v2653 = vunpack.c.l.b16 %v2084
    %v2654 = vunpack.c.h.b16 %v2084
    %v2655 = vunpack.c.l.b16 %v2085
    %v2656 = vunpack.c.h.b16 %v2085
    %v2657 = vunpack.c.l.b16 %v2086
    %v2658 = vunpack.c.h.b16 %v2086
    %v2659 = vunpack.c.l.b16 %v2087
    %v2660 = vunpack.c.h.b16 %v2087
    %v2661 = vunpack.c.l.b16 %v2088
    %v2662 = vunpack.c.h.b16 %v2088
    %v2663 = vunpack.c.l.b16 %v2089
    %v2664 = vunpack.c.h.b16 %v2089
    %v2665 = vunpack.c.l.b16 %v2090
    %v2666 = vunpack.c.h.b16 %v2090
    %v2667 = vpack.c.b16 %v2607, %v2603
    %v2668 = vpack.c.b16 %v2608, %v2604
    %v2669 = vpack.c.b16 %v2609, %v2605
    %v2670 = vpack.c.b16 %v2610, %v2606
    %v2671 = vpack.c.b16 %v2615, %v2611
    %v2672 = vpack.c.b16 %v2616, %v2612
    %v2673 = vpack.c.b16 %v2617, %v2613
    %v2674 = vpack.c.b16 %v2618, %v2614
    %v2675 = vpack.c.b16 %v2623, %v2619
    %v2676 = vpack.c.b16 %v2624, %v2620
    %v2677 = vpack.c.b16 %v2625, %v2621
    %v2678 = vpack.c.b16 %v2626, %v2622
    %v2679 = vpack.c.b16 %v2631, %v2627
    %v2680 = vpack.c.b16 %v2632, %v2628
    %v2681 = vpack.c.b16 %v2633, %v2629
    %v2682 = vpack.c.b16 %v2634, %v2630
    %v2683 = vpack.c.b16 %v2639, %v2635
    %v2684 = vpack.c.b16 %v2640, %v2636
    %v2685 = vpack.c.b16 %v2641, %v2637
    %v2686 = vpack.c.b16 %v2642, %v2638
    %v2687 = vpack.c.b16 %v2647, %v2643
    %v2688 = vpack.c.b16 %v2648, %v2644
    %v2689 = vpack.c.b16 %v2649, %v2645
    %v2690 = vpack.c.b16 %v2650, %v2646
    %v2691 = vpack.c.b16 %v2655, %v2651
    %v2692 = vpack.c.b16 %v2656, %v2652
    %v2693 = vpack.c.b16 %v2657, %v2653
    %v2694 = vpack.c.b16 %v2658, %v2654
    %v2695 = vpack.c.b16 %v2663, %v2659
    %v2696 = vpack.c.b16 %v2664, %v2660
    %v2697 = vpack.c.b16 %v2665, %v2661
    %v2698 = vpack.c.b16 %v2666, %v2662
    %2731 = vmatprep.subr.bf16.mxu0 %v2668
    %2732 = vmatpush1.bf16.msra.mxu0 %v2667
    %2733 = vmatprep.subr.bf16.mxu0 %v2672
    %2734 = vmatpush1.bf16.msra.mxu0 %v2671
    %2735 = vmatprep.subr.bf16.mxu0 %v2676
    %2736 = vmatpush1.bf16.msra.mxu0 %v2675
    %2737 = vmatprep.subr.bf16.mxu0 %v2680
    %2738 = vmatpush1.bf16.msra.mxu0 %v2679
    %2739 = vmatprep.subr.bf16.mxu0 %v2684
    %2740 = vmatpush1.bf16.msra.mxu0 %v2683
    %2741 = vmatprep.subr.bf16.mxu0 %v2688
    %2742 = vmatpush1.bf16.msra.mxu0 %v2687
    %2743 = vmatprep.subr.bf16.mxu0 %v2692
    %2744 = vmatpush1.bf16.msra.mxu0 %v2691
    %2745 = vmatprep.subr.bf16.mxu0 %v2696
    %2746 = vmatpush1.bf16.msra.mxu0 %v2695
    %2747 = vmatprep.subr.bf16.mxu0 0
    %2748 = vmatpush1.bf16.msra.mxu0 0
    %2749 = vmatprep.subr.bf16.mxu0 0
    %2750 = vmatpush1.bf16.msra.mxu0 0
    %2751 = vmatprep.subr.bf16.mxu0 0
    %2752 = vmatpush1.bf16.msra.mxu0 0
    %2753 = vmatprep.subr.bf16.mxu0 0
    %2754 = vmatpush1.bf16.msra.mxu0 0
    %2755 = vmatprep.subr.bf16.mxu0 0
    %2756 = vmatpush1.bf16.msra.mxu0 0
    %2757 = vmatprep.subr.bf16.mxu0 0
    %2758 = vmatpush1.bf16.msra.mxu0 0
    %2759 = vmatprep.subr.bf16.mxu0 0
    %2760 = vmatpush1.bf16.msra.mxu0 0
    %2761 = vmatprep.subr.bf16.mxu0 0
    %2762 = vmatpush1.bf16.msra.mxu0 0
    %2763 = vmatprep.mubr.bf16.mxu0 0
    %2764 = vmatmul.mubr.bf16.gmra.mrb[0].mxu0 %v2241
    %v2765 = vpop.f32.mrb[0].mxu0
    %v2766 = vadd.f32 %v2524, %v2765
    %v2767 = vpop.f32.mrb[0].mxu0
    %v2768 = vadd.f32 %v2526, %v2767
    %v2769 = vpop.f32.mrb[0].mxu0
    %v2770 = vpop.f32.mrb[0].mxu0
    %2771 = vdwg.mxu0
    %2772 = vmatprep.subr.bf16.mxu0 %v2670
    %2773 = vmatpush1.bf16.msra.mxu0 %v2669
    %2774 = vmatprep.subr.bf16.mxu0 %v2674
    %2775 = vmatpush1.bf16.msra.mxu0 %v2673
    %2776 = vmatprep.subr.bf16.mxu0 %v2678
    %2777 = vmatpush1.bf16.msra.mxu0 %v2677
    %2778 = vmatprep.subr.bf16.mxu0 %v2682
    %2779 = vmatpush1.bf16.msra.mxu0 %v2681
    %2780 = vmatprep.subr.bf16.mxu0 %v2686
    %2781 = vmatpush1.bf16.msra.mxu0 %v2685
    %2782 = vmatprep.subr.bf16.mxu0 %v2690
    %2783 = vmatpush1.bf16.msra.mxu0 %v2689
    %2784 = vmatprep.subr.bf16.mxu0 %v2694
    %2785 = vmatpush1.bf16.msra.mxu0 %v2693
    %2786 = vmatprep.subr.bf16.mxu0 %v2698
    %2787 = vmatpush1.bf16.msra.mxu0 %v2697
    %2788 = vmatprep.subr.bf16.mxu0 0
    %2789 = vmatpush1.bf16.msra.mxu0 0
    %2790 = vmatprep.subr.bf16.mxu0 0
    %2791 = vmatpush1.bf16.msra.mxu0 0
    %2792 = vmatprep.subr.bf16.mxu0 0
    %2793 = vmatpush1.bf16.msra.mxu0 0
    %2794 = vmatprep.subr.bf16.mxu0 0
    %2795 = vmatpush1.bf16.msra.mxu0 0
    %2796 = vmatprep.subr.bf16.mxu0 0
    %2797 = vmatpush1.bf16.msra.mxu0 0
    %2798 = vmatprep.subr.bf16.mxu0 0
    %2799 = vmatpush1.bf16.msra.mxu0 0
    %2800 = vmatprep.subr.bf16.mxu0 0
    %2801 = vmatpush1.bf16.msra.mxu0 0
    %2802 = vmatprep.subr.bf16.mxu0 0
    %2803 = vmatpush1.bf16.msra.mxu0 0
    %2804 = vmatprep.mubr.bf16.mxu0 0
    %2805 = vmatmul.mubr.bf16.gmra.mrb[0].mxu0 %v2241
    %v2806 = vpop.f32.mrb[0].mxu0
    %v2807 = vadd.f32 %v2565, %v2806
    %v2808 = vpop.f32.mrb[0].mxu0
    %v2809 = vadd.f32 %v2567, %v2808
    %v2810 = vpop.f32.mrb[0].mxu0
    %v2811 = vpop.f32.mrb[0].mxu0
    %2812 = vdwg.mxu0
    %v2813 = vpack.c.bf16 %v2048, %v2048
    %v2846 = vunpack.c.l.b16 %v2123
    %v2847 = vunpack.c.h.b16 %v2123
    %v2848 = vunpack.c.l.b16 %v2124
    %v2849 = vunpack.c.h.b16 %v2124
    %v2850 = vunpack.c.l.b16 %v2125
    %v2851 = vunpack.c.h.b16 %v2125
    %v2852 = vunpack.c.l.b16 %v2126
    %v2853 = vunpack.c.h.b16 %v2126
    %v2854 = vunpack.c.l.b16 %v2127
    %v2855 = vunpack.c.h.b16 %v2127
    %v2856 = vunpack.c.l.b16 %v2128
    %v2857 = vunpack.c.h.b16 %v2128
    %v2858 = vunpack.c.l.b16 %v2129
    %v2859 = vunpack.c.h.b16 %v2129
    %v2860 = vunpack.c.l.b16 %v2130
    %v2861 = vunpack.c.h.b16 %v2130
    %v2862 = vunpack.c.l.b16 %v2131
    %v2863 = vunpack.c.h.b16 %v2131
    %v2864 = vunpack.c.l.b16 %v2132
    %v2865 = vunpack.c.h.b16 %v2132
    %v2866 = vunpack.c.l.b16 %v2133
    %v2867 = vunpack.c.h.b16 %v2133
    %v2868 = vunpack.c.l.b16 %v2134
    %v2869 = vunpack.c.h.b16 %v2134
    %v2870 = vunpack.c.l.b16 %v2135
    %v2871 = vunpack.c.h.b16 %v2135
    %v2872 = vunpack.c.l.b16 %v2136
    %v2873 = vunpack.c.h.b16 %v2136
    %v2874 = vunpack.c.l.b16 %v2137
    %v2875 = vunpack.c.h.b16 %v2137
    %v2876 = vunpack.c.l.b16 %v2138
    %v2877 = vunpack.c.h.b16 %v2138
    %v2878 = vunpack.c.l.b16 %v2139
    %v2879 = vunpack.c.h.b16 %v2139
    %v2880 = vunpack.c.l.b16 %v2140
    %v2881 = vunpack.c.h.b16 %v2140
    %v2882 = vunpack.c.l.b16 %v2141
    %v2883 = vunpack.c.h.b16 %v2141
    %v2884 = vunpack.c.l.b16 %v2142
    %v2885 = vunpack.c.h.b16 %v2142
    %v2886 = vunpack.c.l.b16 %v2143
    %v2887 = vunpack.c.h.b16 %v2143
    %v2888 = vunpack.c.l.b16 %v2144
    %v2889 = vunpack.c.h.b16 %v2144
    %v2890 = vunpack.c.l.b16 %v2145
    %v2891 = vunpack.c.h.b16 %v2145
    %v2892 = vunpack.c.l.b16 %v2146
    %v2893 = vunpack.c.h.b16 %v2146
    %v2894 = vunpack.c.l.b16 %v2147
    %v2895 = vunpack.c.h.b16 %v2147
    %v2896 = vunpack.c.l.b16 %v2148
    %v2897 = vunpack.c.h.b16 %v2148
    %v2898 = vunpack.c.l.b16 %v2149
    %v2899 = vunpack.c.h.b16 %v2149
    %v2900 = vunpack.c.l.b16 %v2150
    %v2901 = vunpack.c.h.b16 %v2150
    %v2902 = vunpack.c.l.b16 %v2151
    %v2903 = vunpack.c.h.b16 %v2151
    %v2904 = vunpack.c.l.b16 %v2152
    %v2905 = vunpack.c.h.b16 %v2152
    %v2906 = vunpack.c.l.b16 %v2153
    %v2907 = vunpack.c.h.b16 %v2153
    %v2908 = vunpack.c.l.b16 %v2154
    %v2909 = vunpack.c.h.b16 %v2154
    %v2910 = vpack.c.b16 %v2850, %v2846
    %v2911 = vpack.c.b16 %v2851, %v2847
    %v2912 = vpack.c.b16 %v2852, %v2848
    %v2913 = vpack.c.b16 %v2853, %v2849
    %v2914 = vpack.c.b16 %v2858, %v2854
    %v2915 = vpack.c.b16 %v2859, %v2855
    %v2916 = vpack.c.b16 %v2860, %v2856
    %v2917 = vpack.c.b16 %v2861, %v2857
    %v2918 = vpack.c.b16 %v2866, %v2862
    %v2919 = vpack.c.b16 %v2867, %v2863
    %v2920 = vpack.c.b16 %v2868, %v2864
    %v2921 = vpack.c.b16 %v2869, %v2865
    %v2922 = vpack.c.b16 %v2874, %v2870
    %v2923 = vpack.c.b16 %v2875, %v2871
    %v2924 = vpack.c.b16 %v2876, %v2872
    %v2925 = vpack.c.b16 %v2877, %v2873
    %v2926 = vpack.c.b16 %v2882, %v2878
    %v2927 = vpack.c.b16 %v2883, %v2879
    %v2928 = vpack.c.b16 %v2884, %v2880
    %v2929 = vpack.c.b16 %v2885, %v2881
    %v2930 = vpack.c.b16 %v2890, %v2886
    %v2931 = vpack.c.b16 %v2891, %v2887
    %v2932 = vpack.c.b16 %v2892, %v2888
    %v2933 = vpack.c.b16 %v2893, %v2889
    %v2934 = vpack.c.b16 %v2898, %v2894
    %v2935 = vpack.c.b16 %v2899, %v2895
    %v2936 = vpack.c.b16 %v2900, %v2896
    %v2937 = vpack.c.b16 %v2901, %v2897
    %v2938 = vpack.c.b16 %v2906, %v2902
    %v2939 = vpack.c.b16 %v2907, %v2903
    %v2940 = vpack.c.b16 %v2908, %v2904
    %v2941 = vpack.c.b16 %v2909, %v2905
    %2974 = vmatprep.subr.bf16.mxu0 %v2911
    %2975 = vmatpush1.bf16.msra.mxu0 %v2910
    %2976 = vmatprep.subr.bf16.mxu0 %v2915
    %2977 = vmatpush1.bf16.msra.mxu0 %v2914
    %2978 = vmatprep.subr.bf16.mxu0 %v2919
    %2979 = vmatpush1.bf16.msra.mxu0 %v2918
    %2980 = vmatprep.subr.bf16.mxu0 %v2923
    %2981 = vmatpush1.bf16.msra.mxu0 %v2922
    %2982 = vmatprep.subr.bf16.mxu0 %v2927
    %2983 = vmatpush1.bf16.msra.mxu0 %v2926
    %2984 = vmatprep.subr.bf16.mxu0 %v2931
    %2985 = vmatpush1.bf16.msra.mxu0 %v2930
    %2986 = vmatprep.subr.bf16.mxu0 %v2935
    %2987 = vmatpush1.bf16.msra.mxu0 %v2934
    %2988 = vmatprep.subr.bf16.mxu0 %v2939
    %2989 = vmatpush1.bf16.msra.mxu0 %v2938
    %2990 = vmatprep.subr.bf16.mxu0 0
    %2991 = vmatpush1.bf16.msra.mxu0 0
    %2992 = vmatprep.subr.bf16.mxu0 0
    %2993 = vmatpush1.bf16.msra.mxu0 0
    %2994 = vmatprep.subr.bf16.mxu0 0
    %2995 = vmatpush1.bf16.msra.mxu0 0
    %2996 = vmatprep.subr.bf16.mxu0 0
    %2997 = vmatpush1.bf16.msra.mxu0 0
    %2998 = vmatprep.subr.bf16.mxu0 0
    %2999 = vmatpush1.bf16.msra.mxu0 0
    %3000 = vmatprep.subr.bf16.mxu0 0
    %3001 = vmatpush1.bf16.msra.mxu0 0
    %3002 = vmatprep.subr.bf16.mxu0 0
    %3003 = vmatpush1.bf16.msra.mxu0 0
    %3004 = vmatprep.subr.bf16.mxu0 0
    %3005 = vmatpush1.bf16.msra.mxu0 0
    %3006 = vmatprep.mubr.bf16.mxu0 0
    %3007 = vmatmul.mubr.bf16.gmra.mrb[0].mxu0 %v2813
    %v3008 = vpop.f32.mrb[0].mxu0
    %v3009 = vadd.f32 0.0, %v3008
    %v3010 = vpop.f32.mrb[0].mxu0
    %v3011 = vadd.f32 0.0, %v3010
    %v3012 = vpop.f32.mrb[0].mxu0
    %v3013 = vpop.f32.mrb[0].mxu0
    %3014 = vdwg.mxu0
    %3015 = vmatprep.subr.bf16.mxu0 %v2913
    %3016 = vmatpush1.bf16.msra.mxu0 %v2912
    %3017 = vmatprep.subr.bf16.mxu0 %v2917
    %3018 = vmatpush1.bf16.msra.mxu0 %v2916
    %3019 = vmatprep.subr.bf16.mxu0 %v2921
    %3020 = vmatpush1.bf16.msra.mxu0 %v2920
    %3021 = vmatprep.subr.bf16.mxu0 %v2925
    %3022 = vmatpush1.bf16.msra.mxu0 %v2924
    %3023 = vmatprep.subr.bf16.mxu0 %v2929
    %3024 = vmatpush1.bf16.msra.mxu0 %v2928
    %3025 = vmatprep.subr.bf16.mxu0 %v2933
    %3026 = vmatpush1.bf16.msra.mxu0 %v2932
    %3027 = vmatprep.subr.bf16.mxu0 %v2937
    %3028 = vmatpush1.bf16.msra.mxu0 %v2936
    %3029 = vmatprep.subr.bf16.mxu0 %v2941
    %3030 = vmatpush1.bf16.msra.mxu0 %v2940
    %3031 = vmatprep.subr.bf16.mxu0 0
    %3032 = vmatpush1.bf16.msra.mxu0 0
    %3033 = vmatprep.subr.bf16.mxu0 0
    %3034 = vmatpush1.bf16.msra.mxu0 0
    %3035 = vmatprep.subr.bf16.mxu0 0
    %3036 = vmatpush1.bf16.msra.mxu0 0
    %3037 = vmatprep.subr.bf16.mxu0 0
    %3038 = vmatpush1.bf16.msra.mxu0 0
    %3039 = vmatprep.subr.bf16.mxu0 0
    %3040 = vmatpush1.bf16.msra.mxu0 0
    %3041 = vmatprep.subr.bf16.mxu0 0
    %3042 = vmatpush1.bf16.msra.mxu0 0
    %3043 = vmatprep.subr.bf16.mxu0 0
    %3044 = vmatpush1.bf16.msra.mxu0 0
    %3045 = vmatprep.subr.bf16.mxu0 0
    %3046 = vmatpush1.bf16.msra.mxu0 0
    %3047 = vmatprep.mubr.bf16.mxu0 0
    %3048 = vmatmul.mubr.bf16.gmra.mrb[0].mxu0 %v2813
    %v3049 = vpop.f32.mrb[0].mxu0
    %v3050 = vadd.f32 0.0, %v3049
    %v3051 = vpop.f32.mrb[0].mxu0
    %v3052 = vadd.f32 0.0, %v3051
    %v3053 = vpop.f32.mrb[0].mxu0
    %v3054 = vpop.f32.mrb[0].mxu0
    %3055 = vdwg.mxu0
    %v3056 = vadd.f32 %v2766, %v3009
    %v3057 = vadd.f32 %v2768, %v3011
    %v3058 = vadd.f32 %v2807, %v3050
    %v3059 = vadd.f32 %v2809, %v3052
    %v3061 = vlaneseq
    %v3062 = vshrl.u32 %v3061, 7
    %v3063 = vsub.s32 0, %v3062
    %v3064 = vrot.slane %v2155, %v3063
    %v3065 = vlaneseq
    %v3066 = vshrl.u32 %v3065, 7
    %v3067 = vsub.s32 1, %v3066
    %v3068 = vrot.slane %v2155, %v3067
    %v3069 = vlaneseq
    %v3070 = vshrl.u32 %v3069, 7
    %v3071 = vsub.s32 2, %v3070
    %v3072 = vrot.slane %v2155, %v3071
    %v3073 = vlaneseq
    %v3074 = vshrl.u32 %v3073, 7
    %v3075 = vsub.s32 3, %v3074
    %v3076 = vrot.slane %v2155, %v3075
    %v3081 = vadd.f32 %v3056, %v3064
    %v3082 = vadd.f32 %v3057, %v3068
    %v3083 = vadd.f32 %v3058, %v3072
    %v3084 = vadd.f32 %v3059, %v3076
    %v3085 = vxor.u32 %v3081, 2147483648
    %v3086 = vmul.f32 %v3085, 1.442695
    %v3087 = vpow.pop %v3086
    %v3088 = vadd.f32 %v3087, 1.0
    %v3089 = vrcp.pop %v3088
    %v3090 = vmul.f32 1.0, %v3089
    %v3091 = vxor.u32 %v3082, 2147483648
    %v3092 = vmul.f32 %v3091, 1.442695
    %v3093 = vpow.pop %v3092
    %v3094 = vadd.f32 %v3093, 1.0
    %v3095 = vrcp.pop %v3094
    %v3096 = vmul.f32 1.0, %v3095
    %v3097 = vtanh.pop %v3083
    %v3098 = vxor.u32 %v3084, 2147483648
    %v3099 = vmul.f32 %v3098, 1.442695
    %v3100 = vpow.pop %v3099
    %v3101 = vadd.f32 %v3100, 1.0
    %v3102 = vrcp.pop %v3101
    %v3103 = vmul.f32 1.0, %v3102
    %v3104 = vmul.f32 %v3096, %v2046
    %v3105 = vmul.f32 %v3090, %v3097
    %v3106 = vadd.f32 %v3104, %v3105
    %v3107 = vtanh.pop %v3106
    %v3108 = vmul.f32 %v3103, %v3107
    %v3109 = vpack.c.bf16 %v3108, %v3108
    %v3126 = vunpack.c.l.b16 %v2172
    %v3127 = vunpack.c.h.b16 %v2172
    %v3128 = vunpack.c.l.b16 %v2173
    %v3129 = vunpack.c.h.b16 %v2173
    %v3130 = vunpack.c.l.b16 %v2174
    %v3131 = vunpack.c.h.b16 %v2174
    %v3132 = vunpack.c.l.b16 %v2175
    %v3133 = vunpack.c.h.b16 %v2175
    %v3134 = vunpack.c.l.b16 %v2176
    %v3135 = vunpack.c.h.b16 %v2176
    %v3136 = vunpack.c.l.b16 %v2177
    %v3137 = vunpack.c.h.b16 %v2177
    %v3138 = vunpack.c.l.b16 %v2178
    %v3139 = vunpack.c.h.b16 %v2178
    %v3140 = vunpack.c.l.b16 %v2179
    %v3141 = vunpack.c.h.b16 %v2179
    %v3142 = vunpack.c.l.b16 %v2180
    %v3143 = vunpack.c.h.b16 %v2180
    %v3144 = vunpack.c.l.b16 %v2181
    %v3145 = vunpack.c.h.b16 %v2181
    %v3146 = vunpack.c.l.b16 %v2182
    %v3147 = vunpack.c.h.b16 %v2182
    %v3148 = vunpack.c.l.b16 %v2183
    %v3149 = vunpack.c.h.b16 %v2183
    %v3150 = vunpack.c.l.b16 %v2184
    %v3151 = vunpack.c.h.b16 %v2184
    %v3152 = vunpack.c.l.b16 %v2185
    %v3153 = vunpack.c.h.b16 %v2185
    %v3154 = vunpack.c.l.b16 %v2186
    %v3155 = vunpack.c.h.b16 %v2186
    %v3156 = vunpack.c.l.b16 %v2187
    %v3157 = vunpack.c.h.b16 %v2187
    %v3158 = vpack.c.b16 %v3128, %v3126
    %v3159 = vpack.c.b16 %v3129, %v3127
    %v3160 = vpack.c.b16 %v3132, %v3130
    %v3161 = vpack.c.b16 %v3133, %v3131
    %v3162 = vpack.c.b16 %v3136, %v3134
    %v3163 = vpack.c.b16 %v3137, %v3135
    %v3164 = vpack.c.b16 %v3140, %v3138
    %v3165 = vpack.c.b16 %v3141, %v3139
    %v3166 = vpack.c.b16 %v3144, %v3142
    %v3167 = vpack.c.b16 %v3145, %v3143
    %v3168 = vpack.c.b16 %v3148, %v3146
    %v3169 = vpack.c.b16 %v3149, %v3147
    %v3170 = vpack.c.b16 %v3152, %v3150
    %v3171 = vpack.c.b16 %v3153, %v3151
    %v3172 = vpack.c.b16 %v3156, %v3154
    %v3173 = vpack.c.b16 %v3157, %v3155
    %3190 = vmatprep.subr.bf16.mxu0 %v3159
    %3191 = vmatpush1.bf16.msra.mxu0 %v3158
    %3192 = vmatprep.subr.bf16.mxu0 %v3161
    %3193 = vmatpush1.bf16.msra.mxu0 %v3160
    %3194 = vmatprep.subr.bf16.mxu0 %v3163
    %3195 = vmatpush1.bf16.msra.mxu0 %v3162
    %3196 = vmatprep.subr.bf16.mxu0 %v3165
    %3197 = vmatpush1.bf16.msra.mxu0 %v3164
    %3198 = vmatprep.subr.bf16.mxu0 %v3167
    %3199 = vmatpush1.bf16.msra.mxu0 %v3166
    %3200 = vmatprep.subr.bf16.mxu0 %v3169
    %3201 = vmatpush1.bf16.msra.mxu0 %v3168
    %3202 = vmatprep.subr.bf16.mxu0 %v3171
    %3203 = vmatpush1.bf16.msra.mxu0 %v3170
    %3204 = vmatprep.subr.bf16.mxu0 %v3173
    %3205 = vmatpush1.bf16.msra.mxu0 %v3172
    %3206 = vmatprep.subr.bf16.mxu0 0
    %3207 = vmatpush1.bf16.msra.mxu0 0
    %3208 = vmatprep.subr.bf16.mxu0 0
    %3209 = vmatpush1.bf16.msra.mxu0 0
    %3210 = vmatprep.subr.bf16.mxu0 0
    %3211 = vmatpush1.bf16.msra.mxu0 0
    %3212 = vmatprep.subr.bf16.mxu0 0
    %3213 = vmatpush1.bf16.msra.mxu0 0
    %3214 = vmatprep.subr.bf16.mxu0 0
    %3215 = vmatpush1.bf16.msra.mxu0 0
    %3216 = vmatprep.subr.bf16.mxu0 0
    %3217 = vmatpush1.bf16.msra.mxu0 0
    %3218 = vmatprep.subr.bf16.mxu0 0
    %3219 = vmatpush1.bf16.msra.mxu0 0
    %3220 = vmatprep.subr.bf16.mxu0 0
    %3221 = vmatpush1.bf16.msra.mxu0 0
    %3222 = vmatprep.mubr.bf16.mxu0 0
    %3223 = vmatmul.mubr.bf16.gmra.mrb[0].mxu0 %v2328
    %v3224 = vpop.f32.mrb[0].mxu0
    %v3225 = vadd.f32 0.0, %v3224
    %v3226 = vpop.f32.mrb[0].mxu0
    %v3227 = vadd.f32 0.0, %v3226
    %v3228 = vpop.f32.mrb[0].mxu0
    %v3229 = vpop.f32.mrb[0].mxu0
    %3230 = vdwg.mxu0
    %v3247 = vunpack.c.l.b16 %v2156
    %v3248 = vunpack.c.h.b16 %v2156
    %v3249 = vunpack.c.l.b16 %v2157
    %v3250 = vunpack.c.h.b16 %v2157
    %v3251 = vunpack.c.l.b16 %v2158
    %v3252 = vunpack.c.h.b16 %v2158
    %v3253 = vunpack.c.l.b16 %v2159
    %v3254 = vunpack.c.h.b16 %v2159
    %v3255 = vunpack.c.l.b16 %v2160
    %v3256 = vunpack.c.h.b16 %v2160
    %v3257 = vunpack.c.l.b16 %v2161
    %v3258 = vunpack.c.h.b16 %v2161
    %v3259 = vunpack.c.l.b16 %v2162
    %v3260 = vunpack.c.h.b16 %v2162
    %v3261 = vunpack.c.l.b16 %v2163
    %v3262 = vunpack.c.h.b16 %v2163
    %v3263 = vunpack.c.l.b16 %v2164
    %v3264 = vunpack.c.h.b16 %v2164
    %v3265 = vunpack.c.l.b16 %v2165
    %v3266 = vunpack.c.h.b16 %v2165
    %v3267 = vunpack.c.l.b16 %v2166
    %v3268 = vunpack.c.h.b16 %v2166
    %v3269 = vunpack.c.l.b16 %v2167
    %v3270 = vunpack.c.h.b16 %v2167
    %v3271 = vunpack.c.l.b16 %v2168
    %v3272 = vunpack.c.h.b16 %v2168
    %v3273 = vunpack.c.l.b16 %v2169
    %v3274 = vunpack.c.h.b16 %v2169
    %v3275 = vunpack.c.l.b16 %v2170
    %v3276 = vunpack.c.h.b16 %v2170
    %v3277 = vunpack.c.l.b16 %v2171
    %v3278 = vunpack.c.h.b16 %v2171
    %v3279 = vpack.c.b16 %v3249, %v3247
    %v3280 = vpack.c.b16 %v3250, %v3248
    %v3281 = vpack.c.b16 %v3253, %v3251
    %v3282 = vpack.c.b16 %v3254, %v3252
    %v3283 = vpack.c.b16 %v3257, %v3255
    %v3284 = vpack.c.b16 %v3258, %v3256
    %v3285 = vpack.c.b16 %v3261, %v3259
    %v3286 = vpack.c.b16 %v3262, %v3260
    %v3287 = vpack.c.b16 %v3265, %v3263
    %v3288 = vpack.c.b16 %v3266, %v3264
    %v3289 = vpack.c.b16 %v3269, %v3267
    %v3290 = vpack.c.b16 %v3270, %v3268
    %v3291 = vpack.c.b16 %v3273, %v3271
    %v3292 = vpack.c.b16 %v3274, %v3272
    %v3293 = vpack.c.b16 %v3277, %v3275
    %v3294 = vpack.c.b16 %v3278, %v3276
    %3311 = vmatprep.subr.bf16.mxu0 %v3280
    %3312 = vmatpush1.bf16.msra.mxu0 %v3279
    %3313 = vmatprep.subr.bf16.mxu0 %v3282
    %3314 = vmatpush1.bf16.msra.mxu0 %v3281
    %3315 = vmatprep.subr.bf16.mxu0 %v3284
    %3316 = vmatpush1.bf16.msra.mxu0 %v3283
    %3317 = vmatprep.subr.bf16.mxu0 %v3286
    %3318 = vmatpush1.bf16.msra.mxu0 %v3285
    %3319 = vmatprep.subr.bf16.mxu0 %v3288
    %3320 = vmatpush1.bf16.msra.mxu0 %v3287
    %3321 = vmatprep.subr.bf16.mxu0 %v3290
    %3322 = vmatpush1.bf16.msra.mxu0 %v3289
    %3323 = vmatprep.subr.bf16.mxu0 %v3292
    %3324 = vmatpush1.bf16.msra.mxu0 %v3291
    %3325 = vmatprep.subr.bf16.mxu0 %v3294
    %3326 = vmatpush1.bf16.msra.mxu0 %v3293
    %3327 = vmatprep.subr.bf16.mxu0 0
    %3328 = vmatpush1.bf16.msra.mxu0 0
    %3329 = vmatprep.subr.bf16.mxu0 0
    %3330 = vmatpush1.bf16.msra.mxu0 0
    %3331 = vmatprep.subr.bf16.mxu0 0
    %3332 = vmatpush1.bf16.msra.mxu0 0
    %3333 = vmatprep.subr.bf16.mxu0 0
    %3334 = vmatpush1.bf16.msra.mxu0 0
    %3335 = vmatprep.subr.bf16.mxu0 0
    %3336 = vmatpush1.bf16.msra.mxu0 0
    %3337 = vmatprep.subr.bf16.mxu0 0
    %3338 = vmatpush1.bf16.msra.mxu0 0
    %3339 = vmatprep.subr.bf16.mxu0 0
    %3340 = vmatpush1.bf16.msra.mxu0 0
    %3341 = vmatprep.subr.bf16.mxu0 0
    %3342 = vmatpush1.bf16.msra.mxu0 0
    %3343 = vmatprep.mubr.bf16.mxu0 0
    %3344 = vmatmul.mubr.bf16.gmra.mrb[0].mxu0 %v3109
    %v3345 = vpop.f32.mrb[0].mxu0
    %v3346 = vadd.f32 %v3225, %v3345
    %v3347 = vpop.f32.mrb[0].mxu0
    %v3348 = vadd.f32 %v3227, %v3347
    %v3349 = vpop.f32.mrb[0].mxu0
    %v3350 = vpop.f32.mrb[0].mxu0
    %3351 = vdwg.mxu0
    %v3368 = vunpack.c.l.b16 %v2188
    %v3369 = vunpack.c.h.b16 %v2188
    %v3370 = vunpack.c.l.b16 %v2189
    %v3371 = vunpack.c.h.b16 %v2189
    %v3372 = vunpack.c.l.b16 %v2190
    %v3373 = vunpack.c.h.b16 %v2190
    %v3374 = vunpack.c.l.b16 %v2191
    %v3375 = vunpack.c.h.b16 %v2191
    %v3376 = vunpack.c.l.b16 %v2192
    %v3377 = vunpack.c.h.b16 %v2192
    %v3378 = vunpack.c.l.b16 %v2193
    %v3379 = vunpack.c.h.b16 %v2193
    %v3380 = vunpack.c.l.b16 %v2194
    %v3381 = vunpack.c.h.b16 %v2194
    %v3382 = vunpack.c.l.b16 %v2195
    %v3383 = vunpack.c.h.b16 %v2195
    %v3384 = vunpack.c.l.b16 %v2196
    %v3385 = vunpack.c.h.b16 %v2196
    %v3386 = vunpack.c.l.b16 %v2197
    %v3387 = vunpack.c.h.b16 %v2197
    %v3388 = vunpack.c.l.b16 %v2198
    %v3389 = vunpack.c.h.b16 %v2198
    %v3390 = vunpack.c.l.b16 %v2199
    %v3391 = vunpack.c.h.b16 %v2199
    %v3392 = vunpack.c.l.b16 %v2200
    %v3393 = vunpack.c.h.b16 %v2200
    %v3394 = vunpack.c.l.b16 %v2201
    %v3395 = vunpack.c.h.b16 %v2201
    %v3396 = vunpack.c.l.b16 %v2202
    %v3397 = vunpack.c.h.b16 %v2202
    %v3398 = vunpack.c.l.b16 %v2203
    %v3399 = vunpack.c.h.b16 %v2203
    %v3400 = vpack.c.b16 %v3370, %v3368
    %v3401 = vpack.c.b16 %v3371, %v3369
    %v3402 = vpack.c.b16 %v3374, %v3372
    %v3403 = vpack.c.b16 %v3375, %v3373
    %v3404 = vpack.c.b16 %v3378, %v3376
    %v3405 = vpack.c.b16 %v3379, %v3377
    %v3406 = vpack.c.b16 %v3382, %v3380
    %v3407 = vpack.c.b16 %v3383, %v3381
    %v3408 = vpack.c.b16 %v3386, %v3384
    %v3409 = vpack.c.b16 %v3387, %v3385
    %v3410 = vpack.c.b16 %v3390, %v3388
    %v3411 = vpack.c.b16 %v3391, %v3389
    %v3412 = vpack.c.b16 %v3394, %v3392
    %v3413 = vpack.c.b16 %v3395, %v3393
    %v3414 = vpack.c.b16 %v3398, %v3396
    %v3415 = vpack.c.b16 %v3399, %v3397
    %3432 = vmatprep.subr.bf16.mxu0 %v3401
    %3433 = vmatpush1.bf16.msra.mxu0 %v3400
    %3434 = vmatprep.subr.bf16.mxu0 %v3403
    %3435 = vmatpush1.bf16.msra.mxu0 %v3402
    %3436 = vmatprep.subr.bf16.mxu0 %v3405
    %3437 = vmatpush1.bf16.msra.mxu0 %v3404
    %3438 = vmatprep.subr.bf16.mxu0 %v3407
    %3439 = vmatpush1.bf16.msra.mxu0 %v3406
    %3440 = vmatprep.subr.bf16.mxu0 %v3409
    %3441 = vmatpush1.bf16.msra.mxu0 %v3408
    %3442 = vmatprep.subr.bf16.mxu0 %v3411
    %3443 = vmatpush1.bf16.msra.mxu0 %v3410
    %3444 = vmatprep.subr.bf16.mxu0 %v3413
    %3445 = vmatpush1.bf16.msra.mxu0 %v3412
    %3446 = vmatprep.subr.bf16.mxu0 %v3415
    %3447 = vmatpush1.bf16.msra.mxu0 %v3414
    %3448 = vmatprep.subr.bf16.mxu0 0
    %3449 = vmatpush1.bf16.msra.mxu0 0
    %3450 = vmatprep.subr.bf16.mxu0 0
    %3451 = vmatpush1.bf16.msra.mxu0 0
    %3452 = vmatprep.subr.bf16.mxu0 0
    %3453 = vmatpush1.bf16.msra.mxu0 0
    %3454 = vmatprep.subr.bf16.mxu0 0
    %3455 = vmatpush1.bf16.msra.mxu0 0
    %3456 = vmatprep.subr.bf16.mxu0 0
    %3457 = vmatpush1.bf16.msra.mxu0 0
    %3458 = vmatprep.subr.bf16.mxu0 0
    %3459 = vmatpush1.bf16.msra.mxu0 0
    %3460 = vmatprep.subr.bf16.mxu0 0
    %3461 = vmatpush1.bf16.msra.mxu0 0
    %3462 = vmatprep.subr.bf16.mxu0 0
    %3463 = vmatpush1.bf16.msra.mxu0 0
    %3464 = vmatprep.mubr.bf16.mxu0 0
    %3465 = vmatmul.mubr.bf16.gmra.mrb[0].mxu0 %v2241
    %v3466 = vpop.f32.mrb[0].mxu0
    %v3467 = vadd.f32 0.0, %v3466
    %v3468 = vpop.f32.mrb[0].mxu0
    %v3469 = vadd.f32 0.0, %v3468
    %v3470 = vpop.f32.mrb[0].mxu0
    %v3471 = vpop.f32.mrb[0].mxu0
    %3472 = vdwg.mxu0
    %v3473 = vadd.f32 %v3346, %v3467
    %v3474 = vadd.f32 %v3348, %v3469
    %v3476 = vlaneseq
    %v3477 = vshrl.u32 %v3476, 7
    %v3478 = vsub.s32 0, %v3477
    %v3479 = vrot.slane %v2204, %v3478
    %v3480 = vlaneseq
    %v3481 = vshrl.u32 %v3480, 7
    %v3482 = vsub.s32 1, %v3481
    %v3483 = vrot.slane %v2204, %v3482
    %v3486 = vadd.f32 %v3473, %v3479
    %v3487 = vadd.f32 %v3474, %v3483
    %s3488 = scalar_lea.vmem [#allocation9], 16
    %3489 = vst [vmem:[%s3488] sm:$0xff] %v3486
    %3490 = vst [vmem:[%s3488 + $0x8] sm:$0xff] %v3487
    %s3491 = sld [smem:[#allocation4 + $0x1]]
    %p3492 = scmp.eq.s32.totalorder %s3491, 0
    // Predicated region
    $region50: #{seq2seq_forward.1} parent=1 // pred_check
      %p3493 = pneg %p3492
    $region51: #{seq2seq_forward.1} parent=1 // pred_check_branch
      %3495 = sbr.rel (%p3493) target = $region53
    $region52: #{seq2seq_forward.1} parent=1 // pred_region
      %v3496 = vlaneseq
      %v3497 = vand.u32 %v3496, 127
      %v3498 = vadd.s32 %v3497, 128
      %v3499 = vmax.f32 %v3486, %v3487
      %3500 = vmax.xlane.f32.xlu0 %v3499
      %v3501 = vpop.xlane.xlu0 %3500
      %vm3502 = vcmp.ge.f32.partialorder %v3486, %v3501
      %vm3503 = vcmp.ge.f32.partialorder %v3487, %v3501
      %v3504 = vsel %vm3502, %v3497, 256
      %v3505 = vsel %vm3503, %v3498, 256
      %vm3506 = vcmp.lt.s32.totalorder %v3504, %v3505
      %v3507 = vsel %vm3506, %v3504, %v3505
      %v3508 = vand.u32 %v3507, 65535
      %v3509 = vshra.s32 %v3507, 16
      %v3510 = vcvt.s32.f32 %v3508
      %v3511 = vcvt.s32.f32 %v3509
      %3512 = vmin.xlane.f32.xlu0 %v3511
      %v3513 = vpop.xlane.xlu0 %3512
      %vm3514 = vcmp.eq.f32.partialorder %v3511, %v3513
      %v3515 = vsel %vm3514, %v3510, inf
      %3516 = vmin.xlane.f32.xlu0 %v3515
      %v3517 = vpop.xlane.xlu0 %3516
      %v3518 = vcvt.f32.s32 %v3517
      %v3519 = vcvt.f32.s32 %v3513
      %v3520 = vshll.u32 %v3519, 16
      %v3521 = vadd.s32 %v3520, %v3518
      %vm3522 = vcmp.eq.s32.totalorder %v3497, %v3521
      %vm3523 = vcmp.eq.s32.totalorder %v3498, %v3521
      %v3524 = vsel %vm3522, 1, 0
      %v3525 = vsel %vm3523, 1, 0
      %v3526 = vcvt.s32.f32 %v3524
      %v3527 = vcvt.s32.f32 %v3525
      %v3528 = vpack.c.bf16 %v3526, %v3526
      %v3529 = vpack.c.bf16 %v3527, %v3527
      %v3562 = vunpack.c.l.b16 %v2205
      %v3563 = vunpack.c.l.b16 %v2206
      %v3564 = vunpack.c.l.b16 %v2207
      %v3565 = vunpack.c.l.b16 %v2208
      %v3566 = vunpack.c.l.b16 %v2209
      %v3567 = vunpack.c.l.b16 %v2210
      %v3568 = vunpack.c.l.b16 %v2211
      %v3569 = vunpack.c.l.b16 %v2212
      %v3570 = vunpack.c.l.b16 %v2213
      %v3571 = vunpack.c.l.b16 %v2214
      %v3572 = vunpack.c.l.b16 %v2215
      %v3573 = vunpack.c.l.b16 %v2216
      %v3574 = vunpack.c.l.b16 %v2217
      %v3575 = vunpack.c.l.b16 %v2218
      %v3576 = vunpack.c.l.b16 %v2219
      %v3577 = vunpack.c.l.b16 %v2220
      %v3578 = vunpack.c.l.b16 %v2221
      %v3579 = vunpack.c.l.b16 %v2222
      %v3580 = vunpack.c.l.b16 %v2223
      %v3581 = vunpack.c.l.b16 %v2224
      %v3582 = vunpack.c.l.b16 %v2225
      %v3583 = vunpack.c.l.b16 %v2226
      %v3584 = vunpack.c.l.b16 %v2227
      %v3585 = vunpack.c.l.b16 %v2228
      %v3586 = vunpack.c.l.b16 %v2229
      %v3587 = vunpack.c.l.b16 %v2230
      %v3588 = vunpack.c.l.b16 %v2231
      %v3589 = vunpack.c.l.b16 %v2232
      %v3590 = vunpack.c.l.b16 %v2233
      %v3591 = vunpack.c.l.b16 %v2234
      %v3592 = vunpack.c.l.b16 %v2235
      %v3593 = vunpack.c.l.b16 %v2236
      %v3594 = vpack.c.b16 %v3563, %v3562
      %v3595 = vpack.c.b16 %v3565, %v3564
      %v3596 = vpack.c.b16 %v3567, %v3566
      %v3597 = vpack.c.b16 %v3569, %v3568
      %v3598 = vpack.c.b16 %v3571, %v3570
      %v3599 = vpack.c.b16 %v3573, %v3572
      %v3600 = vpack.c.b16 %v3575, %v3574
      %v3601 = vpack.c.b16 %v3577, %v3576
      %v3602 = vpack.c.b16 %v3579, %v3578
      %v3603 = vpack.c.b16 %v3581, %v3580
      %v3604 = vpack.c.b16 %v3583, %v3582
      %v3605 = vpack.c.b16 %v3585, %v3584
      %v3606 = vpack.c.b16 %v3587, %v3586
      %v3607 = vpack.c.b16 %v3589, %v3588
      %v3608 = vpack.c.b16 %v3591, %v3590
      %v3609 = vpack.c.b16 %v3593, %v3592
      %3626 = vmatprep.subr.bf16.mxu0 0
      %3627 = vmatpush1.bf16.msra.mxu0 %v3594
      %3628 = vmatprep.subr.bf16.mxu0 0
      %3629 = vmatpush1.bf16.msra.mxu0 %v3595
      %3630 = vmatprep.subr.bf16.mxu0 0
      %3631 = vmatpush1.bf16.msra.mxu0 %v3596
      %3632 = vmatprep.subr.bf16.mxu0 0
      %3633 = vmatpush1.bf16.msra.mxu0 %v3597
      %3634 = vmatprep.subr.bf16.mxu0 0
      %3635 = vmatpush1.bf16.msra.mxu0 %v3598
      %3636 = vmatprep.subr.bf16.mxu0 0
      %3637 = vmatpush1.bf16.msra.mxu0 %v3599
      %3638 = vmatprep.subr.bf16.mxu0 0
      %3639 = vmatpush1.bf16.msra.mxu0 %v3600
      %3640 = vmatprep.subr.bf16.mxu0 0
      %3641 = vmatpush1.bf16.msra.mxu0 %v3601
      %3642 = vmatprep.subr.bf16.mxu0 0
      %3643 = vmatpush1.bf16.msra.mxu0 %v3602
      %3644 = vmatprep.subr.bf16.mxu0 0
      %3645 = vmatpush1.bf16.msra.mxu0 %v3603
      %3646 = vmatprep.subr.bf16.mxu0 0
      %3647 = vmatpush1.bf16.msra.mxu0 %v3604
      %3648 = vmatprep.subr.bf16.mxu0 0
      %3649 = vmatpush1.bf16.msra.mxu0 %v3605
      %3650 = vmatprep.subr.bf16.mxu0 0
      %3651 = vmatpush1.bf16.msra.mxu0 %v3606
      %3652 = vmatprep.subr.bf16.mxu0 0
      %3653 = vmatpush1.bf16.msra.mxu0 %v3607
      %3654 = vmatprep.subr.bf16.mxu0 0
      %3655 = vmatpush1.bf16.msra.mxu0 %v3608
      %3656 = vmatprep.subr.bf16.mxu0 0
      %3657 = vmatpush1.bf16.msra.mxu0 %v3609
      %3658 = vmatprep.mubr.bf16.mxu0 %v3529
      %3659 = vmatmul.mubr.bf16.gmra.mrb[0].mxu0 %v3528
      %v3660 = vpop.f32.mrb[0].mxu0
      %v3661 = vadd.f32 0.0, %v3660
      %v3662 = vpop.f32.mrb[0].mxu0
      %v3663 = vpop.f32.mrb[0].mxu0
      %v3664 = vpop.f32.mrb[0].mxu0
      %3665 = vdwg.mxu0
      %3666 = vst [vmem:[#allocation3] sm:$0xff] %v3661
    $region53: #{seq2seq_forward.1} parent=1 // pred_fallthru
      _
    %s3667 = sld [smem:[#allocation4 + $0x1]]
    %p3668 = scmp.ne.s32.totalorder %s3667, 0
    %s3669 = scalar_select %p3668, 1, 0
    %s3670 = scvt.s32.f32 %s3669
    %s3671 = scalar_lea.vmem %s2, 8
    %v3672 = vld [vmem:[%s3671] sm:$0xff]
    %v3673 = vstv %s3670
    %v3674 = vmul.f32 %v3673, %v3672
    %s3675 = ssub.f32 1.0, %s3670
    %v3676 = vld [vmem:[#allocation3] sm:$0xff]
    %v3677 = vstv %s3675
    %v3678 = vmul.f32 %v3677, %v3676
    %v3679 = vadd.f32 %v3674, %v3678
    %v3680 = vpack.c.bf16 %v3679, %v3679
    %v3681 = vmul.f32 %v2051, %v3108
    %v3682 = vmul.f32 %v2052, %v3108
    %v3683 = vmul.f32 %v2053, %v3108
    %v3684 = vmul.f32 %v2054, %v3108
    %v3685 = vmul.f32 %v2055, %v3108
    %v3686 = vmul.f32 %v2056, %v3108
    %v3687 = vmul.f32 %v2057, %v3108
    %v3688 = vmul.f32 %v2058, %v3108
    %3689 = vadd.xlane.f32.xlu0 %v3681
    %v3690 = vpop.xlane.xlu0 %3689
    %3691 = vadd.xlane.f32.xlu0 %v3682
    %v3692 = vpop.xlane.xlu0 %3691
    %3693 = vadd.xlane.f32.xlu0 %v3683
    %v3694 = vpop.xlane.xlu0 %3693
    %3695 = vadd.xlane.f32.xlu0 %v3684
    %v3696 = vpop.xlane.xlu0 %3695
    %3697 = vadd.xlane.f32.xlu0 %v3685
    %v3698 = vpop.xlane.xlu0 %3697
    %3699 = vadd.xlane.f32.xlu0 %v3686
    %v3700 = vpop.xlane.xlu0 %3699
    %3701 = vadd.xlane.f32.xlu0 %v3687
    %v3702 = vpop.xlane.xlu0 %3701
    %3703 = vadd.xlane.f32.xlu0 %v3688
    %v3704 = vpop.xlane.xlu0 %3703
    %v3705 = vmax.f32 %v3690, %v3698
    %v3706 = vmax.f32 %v3692, %v3700
    %v3707 = vmax.f32 %v3694, %v3702
    %v3708 = vmax.f32 %v3696, %v3704
    %v3709 = vmax.f32 %v3705, %v3706
    %v3710 = vmax.f32 %v3707, %v3708
    %v3711 = vmax.f32 %v3709, %v3710
    %v3712 = vsub.f32 %v3690, %v3711
    %v3713 = vsub.f32 %v3692, %v3711
    %v3714 = vsub.f32 %v3694, %v3711
    %v3715 = vsub.f32 %v3696, %v3711
    %v3716 = vsub.f32 %v3698, %v3711
    %v3717 = vsub.f32 %v3700, %v3711
    %v3718 = vsub.f32 %v3702, %v3711
    %v3719 = vsub.f32 %v3704, %v3711
    %v3720 = vmul.f32 %v3712, 1.442695
    %v3721 = vpow.pop %v3720
    %v3722 = vmul.f32 %v3713, 1.442695
    %v3723 = vpow.pop %v3722
    %v3724 = vmul.f32 %v3714, 1.442695
    %v3725 = vpow.pop %v3724
    %v3726 = vmul.f32 %v3715, 1.442695
    %v3727 = vpow.pop %v3726
    %v3728 = vmul.f32 %v3716, 1.442695
    %v3729 = vpow.pop %v3728
    %v3730 = vmul.f32 %v3717, 1.442695
    %v3731 = vpow.pop %v3730
    %v3732 = vmul.f32 %v3718, 1.442695
    %v3733 = vpow.pop %v3732
    %v3734 = vmul.f32 %v3719, 1.442695
    %v3735 = vpow.pop %v3734
    %v3736 = vadd.f32 %v3721, %v3723
    %v3737 = vadd.f32 %v3736, %v3725
    %v3738 = vadd.f32 %v3737, %v3727
    %v3739 = vadd.f32 %v3738, %v3729
    %v3740 = vadd.f32 %v3739, %v3731
    %v3741 = vadd.f32 %v3740, %v3733
    %v3742 = vadd.f32 %v3741, %v3735
    %v3743 = vrcp.pop %v3742
    %v3744 = vmul.f32 %v3721, %v3743
    %v3745 = vmul.f32 %v3723, %v3743
    %v3746 = vmul.f32 %v3725, %v3743
    %v3747 = vmul.f32 %v3727, %v3743
    %v3748 = vmul.f32 %v3729, %v3743
    %v3749 = vmul.f32 %v3731, %v3743
    %v3750 = vmul.f32 %v3733, %v3743
    %v3751 = vmul.f32 %v3735, %v3743
    %v3752 = vmul.f32 %v3744, %v2051
    %v3753 = vmul.f32 %v3745, %v2052
    %v3754 = vmul.f32 %v3746, %v2053
    %v3755 = vmul.f32 %v3747, %v2054
    %v3756 = vmul.f32 %v3748, %v2055
    %v3757 = vmul.f32 %v3749, %v2056
    %v3758 = vmul.f32 %v3750, %v2057
    %v3759 = vmul.f32 %v3751, %v2058
    %v3760 = vadd.f32 %v3752, %v3753
    %v3761 = vadd.f32 %v3760, %v3754
    %v3762 = vadd.f32 %v3761, %v3755
    %v3763 = vadd.f32 %v3762, %v3756
    %v3764 = vadd.f32 %v3763, %v3757
    %v3765 = vadd.f32 %v3764, %v3758
    %v3766 = vadd.f32 %v3765, %v3759
    %v3767 = vpack.c.bf16 %v3766, %v3766
    %3768 = vmatprep.subr.bf16.mxu0 %v2426
    %3769 = vmatpush1.bf16.msra.mxu0 %v2425
    %3770 = vmatprep.subr.bf16.mxu0 %v2430
    %3771 = vmatpush1.bf16.msra.mxu0 %v2429
    %3772 = vmatprep.subr.bf16.mxu0 %v2434
    %3773 = vmatpush1.bf16.msra.mxu0 %v2433
    %3774 = vmatprep.subr.bf16.mxu0 %v2438
    %3775 = vmatpush1.bf16.msra.mxu0 %v2437
    %3776 = vmatprep.subr.bf16.mxu0 %v2442
    %3777 = vmatpush1.bf16.msra.mxu0 %v2441
    %3778 = vmatprep.subr.bf16.mxu0 %v2446
    %3779 = vmatpush1.bf16.msra.mxu0 %v2445
    %3780 = vmatprep.subr.bf16.mxu0 %v2450
    %3781 = vmatpush1.bf16.msra.mxu0 %v2449
    %3782 = vmatprep.subr.bf16.mxu0 %v2454
    %3783 = vmatpush1.bf16.msra.mxu0 %v2453
    %3784 = vmatprep.subr.bf16.mxu0 0
    %3785 = vmatpush1.bf16.msra.mxu0 0
    %3786 = vmatprep.subr.bf16.mxu0 0
    %3787 = vmatpush1.bf16.msra.mxu0 0
    %3788 = vmatprep.subr.bf16.mxu0 0
    %3789 = vmatpush1.bf16.msra.mxu0 0
    %3790 = vmatprep.subr.bf16.mxu0 0
    %3791 = vmatpush1.bf16.msra.mxu0 0
    %3792 = vmatprep.subr.bf16.mxu0 0
    %3793 = vmatpush1.bf16.msra.mxu0 0
    %3794 = vmatprep.subr.bf16.mxu0 0
    %3795 = vmatpush1.bf16.msra.mxu0 0
    %3796 = vmatprep.subr.bf16.mxu0 0
    %3797 = vmatpush1.bf16.msra.mxu0 0
    %3798 = vmatprep.subr.bf16.mxu0 0
    %3799 = vmatpush1.bf16.msra.mxu0 0
    %3800 = vmatprep.mubr.bf16.mxu0 0
    %3801 = vmatmul.mubr.bf16.gmra.mrb[0].mxu0 %v3767
    %v3802 = vpop.f32.mrb[0].mxu0
    %v3803 = vadd.f32 0.0, %v3802
    %v3804 = vpop.f32.mrb[0].mxu0
    %v3805 = vadd.f32 0.0, %v3804
    %v3806 = vpop.f32.mrb[0].mxu0
    %v3807 = vpop.f32.mrb[0].mxu0
    %3808 = vdwg.mxu0
    %3809 = vmatprep.subr.bf16.mxu0 %v2428
    %3810 = vmatpush1.bf16.msra.mxu0 %v2427
    %3811 = vmatprep.subr.bf16.mxu0 %v2432
    %3812 = vmatpush1.bf16.msra.mxu0 %v2431
    %3813 = vmatprep.subr.bf16.mxu0 %v2436
    %3814 = vmatpush1.bf16.msra.mxu0 %v2435
    %3815 = vmatprep.subr.bf16.mxu0 %v2440
    %3816 = vmatpush1.bf16.msra.mxu0 %v2439
    %3817 = vmatprep.subr.bf16.mxu0 %v2444
    %3818 = vmatpush1.bf16.msra.mxu0 %v2443
    %3819 = vmatprep.subr.bf16.mxu0 %v2448
    %3820 = vmatpush1.bf16.msra.mxu0 %v2447
    %3821 = vmatprep.subr.bf16.mxu0 %v2452
    %3822 = vmatpush1.bf16.msra.mxu0 %v2451
    %3823 = vmatprep.subr.bf16.mxu0 %v2456
    %3824 = vmatpush1.bf16.msra.mxu0 %v2455
    %3825 = vmatprep.subr.bf16.mxu0 0
    %3826 = vmatpush1.bf16.msra.mxu0 0
    %3827 = vmatprep.subr.bf16.mxu0 0
    %3828 = vmatpush1.bf16.msra.mxu0 0
    %3829 = vmatprep.subr.bf16.mxu0 0
    %3830 = vmatpush1.bf16.msra.mxu0 0
    %3831 = vmatprep.subr.bf16.mxu0 0
    %3832 = vmatpush1.bf16.msra.mxu0 0
    %3833 = vmatprep.subr.bf16.mxu0 0
    %3834 = vmatpush1.bf16.msra.mxu0 0
    %3835 = vmatprep.subr.bf16.mxu0 0
    %3836 = vmatpush1.bf16.msra.mxu0 0
    %3837 = vmatprep.subr.bf16.mxu0 0
    %3838 = vmatpush1.bf16.msra.mxu0 0
    %3839 = vmatprep.subr.bf16.mxu0 0
    %3840 = vmatpush1.bf16.msra.mxu0 0
    %3841 = vmatprep.mubr.bf16.mxu0 0
    %3842 = vmatmul.mubr.bf16.gmra.mrb[0].mxu0 %v3767
    %v3843 = vpop.f32.mrb[0].mxu0
    %v3844 = vadd.f32 0.0, %v3843
    %v3845 = vpop.f32.mrb[0].mxu0
    %v3846 = vadd.f32 0.0, %v3845
    %v3847 = vpop.f32.mrb[0].mxu0
    %v3848 = vpop.f32.mrb[0].mxu0
    %3849 = vdwg.mxu0
    %3850 = vmatprep.subr.bf16.mxu0 %v2668
    %3851 = vmatpush1.bf16.msra.mxu0 %v2667
    %3852 = vmatprep.subr.bf16.mxu0 %v2672
    %3853 = vmatpush1.bf16.msra.mxu0 %v2671
    %3854 = vmatprep.subr.bf16.mxu0 %v2676
    %3855 = vmatpush1.bf16.msra.mxu0 %v2675
    %3856 = vmatprep.subr.bf16.mxu0 %v2680
    %3857 = vmatpush1.bf16.msra.mxu0 %v2679
    %3858 = vmatprep.subr.bf16.mxu0 %v2684
    %3859 = vmatpush1.bf16.msra.mxu0 %v2683
    %3860 = vmatprep.subr.bf16.mxu0 %v2688
    %3861 = vmatpush1.bf16.msra.mxu0 %v2687
    %3862 = vmatprep.subr.bf16.mxu0 %v2692
    %3863 = vmatpush1.bf16.msra.mxu0 %v2691
    %3864 = vmatprep.subr.bf16.mxu0 %v2696
    %3865 = vmatpush1.bf16.msra.mxu0 %v2695
    %3866 = vmatprep.subr.bf16.mxu0 0
    %3867 = vmatpush1.bf16.msra.mxu0 0
    %3868 = vmatprep.subr.bf16.mxu0 0
    %3869 = vmatpush1.bf16.msra.mxu0 0
    %3870 = vmatprep.subr.bf16.mxu0 0
    %3871 = vmatpush1.bf16.msra.mxu0 0
    %3872 = vmatprep.subr.bf16.mxu0 0
    %3873 = vmatpush1.bf16.msra.mxu0 0
    %3874 = vmatprep.subr.bf16.mxu0 0
    %3875 = vmatpush1.bf16.msra.mxu0 0
    %3876 = vmatprep.subr.bf16.mxu0 0
    %3877 = vmatpush1.bf16.msra.mxu0 0
    %3878 = vmatprep.subr.bf16.mxu0 0
    %3879 = vmatpush1.bf16.msra.mxu0 0
    %3880 = vmatprep.subr.bf16.mxu0 0
    %3881 = vmatpush1.bf16.msra.mxu0 0
    %3882 = vmatprep.mubr.bf16.mxu0 0
    %3883 = vmatmul.mubr.bf16.gmra.mrb[0].mxu0 %v3680
    %v3884 = vpop.f32.mrb[0].mxu0
    %v3885 = vadd.f32 %v3803, %v3884
    %v3886 = vpop.f32.mrb[0].mxu0
    %v3887 = vadd.f32 %v3805, %v3886
    %v3888 = vpop.f32.mrb[0].mxu0
    %v3889 = vpop.f32.mrb[0].mxu0
    %3890 = vdwg.mxu0
    %3891 = vmatprep.subr.bf16.mxu0 %v2670
    %3892 = vmatpush1.bf16.msra.mxu0 %v2669
    %3893 = vmatprep.subr.bf16.mxu0 %v2674
    %3894 = vmatpush1.bf16.msra.mxu0 %v2673
    %3895 = vmatprep.subr.bf16.mxu0 %v2678
    %3896 = vmatpush1.bf16.msra.mxu0 %v2677
    %3897 = vmatprep.subr.bf16.mxu0 %v2682
    %3898 = vmatpush1.bf16.msra.mxu0 %v2681
    %3899 = vmatprep.subr.bf16.mxu0 %v2686
    %3900 = vmatpush1.bf16.msra.mxu0 %v2685
    %3901 = vmatprep.subr.bf16.mxu0 %v2690
    %3902 = vmatpush1.bf16.msra.mxu0 %v2689
    %3903 = vmatprep.subr.bf16.mxu0 %v2694
    %3904 = vmatpush1.bf16.msra.mxu0 %v2693
    %3905 = vmatprep.subr.bf16.mxu0 %v2698
    %3906 = vmatpush1.bf16.msra.mxu0 %v2697
    %3907 = vmatprep.subr.bf16.mxu0 0
    %3908 = vmatpush1.bf16.msra.mxu0 0
    %3909 = vmatprep.subr.bf16.mxu0 0
    %3910 = vmatpush1.bf16.msra.mxu0 0
    %3911 = vmatprep.subr.bf16.mxu0 0
    %3912 = vmatpush1.bf16.msra.mxu0 0
    %3913 = vmatprep.subr.bf16.mxu0 0
    %3914 = vmatpush1.bf16.msra.mxu0 0
    %3915 = vmatprep.subr.bf16.mxu0 0
    %3916 = vmatpush1.bf16.msra.mxu0 0
    %3917 = vmatprep.subr.bf16.mxu0 0
    %3918 = vmatpush1.bf16.msra.mxu0 0
    %3919 = vmatprep.subr.bf16.mxu0 0
    %3920 = vmatpush1.bf16.msra.mxu0 0
    %3921 = vmatprep.subr.bf16.mxu0 0
    %3922 = vmatpush1.bf16.msra.mxu0 0
    %3923 = vmatprep.mubr.bf16.mxu0 0
    %3924 = vmatmul.mubr.bf16.gmra.mrb[0].mxu0 %v3680
    %v3925 = vpop.f32.mrb[0].mxu0
    %v3926 = vadd.f32 %v3844, %v3925
    %v3927 = vpop.f32.mrb[0].mxu0
    %v3928 = vadd.f32 %v3846, %v3927
    %v3929 = vpop.f32.mrb[0].mxu0
    %v3930 = vpop.f32.mrb[0].mxu0
    %3931 = vdwg.mxu0
    %3932 = vmatprep.subr.bf16.mxu0 %v2911
    %3933 = vmatpush1.bf16.msra.mxu0 %v2910
    %3934 = vmatprep.subr.bf16.mxu0 %v2915
    %3935 = vmatpush1.bf16.msra.mxu0 %v2914
    %3936 = vmatprep.subr.bf16.mxu0 %v2919
    %3937 = vmatpush1.bf16.msra.mxu0 %v2918
    %3938 = vmatprep.subr.bf16.mxu0 %v2923
    %3939 = vmatpush1.bf16.msra.mxu0 %v2922
    %3940 = vmatprep.subr.bf16.mxu0 %v2927
    %3941 = vmatpush1.bf16.msra.mxu0 %v2926
    %3942 = vmatprep.subr.bf16.mxu0 %v2931
    %3943 = vmatpush1.bf16.msra.mxu0 %v2930
    %3944 = vmatprep.subr.bf16.mxu0 %v2935
    %3945 = vmatpush1.bf16.msra.mxu0 %v2934
    %3946 = vmatprep.subr.bf16.mxu0 %v2939
    %3947 = vmatpush1.bf16.msra.mxu0 %v2938
    %3948 = vmatprep.subr.bf16.mxu0 0
    %3949 = vmatpush1.bf16.msra.mxu0 0
    %3950 = vmatprep.subr.bf16.mxu0 0
    %3951 = vmatpush1.bf16.msra.mxu0 0
    %3952 = vmatprep.subr.bf16.mxu0 0
    %3953 = vmatpush1.bf16.msra.mxu0 0
    %3954 = vmatprep.subr.bf16.mxu0 0
    %3955 = vmatpush1.bf16.msra.mxu0 0
    %3956 = vmatprep.subr.bf16.mxu0 0
    %3957 = vmatpush1.bf16.msra.mxu0 0
    %3958 = vmatprep.subr.bf16.mxu0 0
    %3959 = vmatpush1.bf16.msra.mxu0 0
    %3960 = vmatprep.subr.bf16.mxu0 0
    %3961 = vmatpush1.bf16.msra.mxu0 0
    %3962 = vmatprep.subr.bf16.mxu0 0
    %3963 = vmatpush1.bf16.msra.mxu0 0
    %3964 = vmatprep.mubr.bf16.mxu0 0
    %3965 = vmatmul.mubr.bf16.gmra.mrb[0].mxu0 %v3109
    %v3966 = vpop.f32.mrb[0].mxu0
    %v3967 = vadd.f32 0.0, %v3966
    %v3968 = vpop.f32.mrb[0].mxu0
    %v3969 = vadd.f32 0.0, %v3968
    %v3970 = vpop.f32.mrb[0].mxu0
    %v3971 = vpop.f32.mrb[0].mxu0
    %3972 = vdwg.mxu0
    %3973 = vmatprep.subr.bf16.mxu0 %v2913
    %3974 = vmatpush1.bf16.msra.mxu0 %v2912
    %3975 = vmatprep.subr.bf16.mxu0 %v2917
    %3976 = vmatpush1.bf16.msra.mxu0 %v2916
    %3977 = vmatprep.subr.bf16.mxu0 %v2921
    %3978 = vmatpush1.bf16.msra.mxu0 %v2920
    %3979 = vmatprep.subr.bf16.mxu0 %v2925
    %3980 = vmatpush1.bf16.msra.mxu0 %v2924
    %3981 = vmatprep.subr.bf16.mxu0 %v2929
    %3982 = vmatpush1.bf16.msra.mxu0 %v2928
    %3983 = vmatprep.subr.bf16.mxu0 %v2933
    %3984 = vmatpush1.bf16.msra.mxu0 %v2932
    %3985 = vmatprep.subr.bf16.mxu0 %v2937
    %3986 = vmatpush1.bf16.msra.mxu0 %v2936
    %3987 = vmatprep.subr.bf16.mxu0 %v2941
    %3988 = vmatpush1.bf16.msra.mxu0 %v2940
    %3989 = vmatprep.subr.bf16.mxu0 0
    %3990 = vmatpush1.bf16.msra.mxu0 0
    %3991 = vmatprep.subr.bf16.mxu0 0
    %3992 = vmatpush1.bf16.msra.mxu0 0
    %3993 = vmatprep.subr.bf16.mxu0 0
    %3994 = vmatpush1.bf16.msra.mxu0 0
    %3995 = vmatprep.subr.bf16.mxu0 0
    %3996 = vmatpush1.bf16.msra.mxu0 0
    %3997 = vmatprep.subr.bf16.mxu0 0
    %3998 = vmatpush1.bf16.msra.mxu0 0
    %3999 = vmatprep.subr.bf16.mxu0 0
    %4000 = vmatpush1.bf16.msra.mxu0 0
    %4001 = vmatprep.subr.bf16.mxu0 0
    %4002 = vmatpush1.bf16.msra.mxu0 0
    %4003 = vmatprep.subr.bf16.mxu0 0
    %4004 = vmatpush1.bf16.msra.mxu0 0
    %4005 = vmatprep.mubr.bf16.mxu0 0
    %4006 = vmatmul.mubr.bf16.gmra.mrb[0].mxu0 %v3109
    %v4007 = vpop.f32.mrb[0].mxu0
    %v4008 = vadd.f32 0.0, %v4007
    %v4009 = vpop.f32.mrb[0].mxu0
    %v4010 = vadd.f32 0.0, %v4009
    %v4011 = vpop.f32.mrb[0].mxu0
    %v4012 = vpop.f32.mrb[0].mxu0
    %4013 = vdwg.mxu0
    %v4014 = vadd.f32 %v3885, %v3967
    %v4015 = vadd.f32 %v3887, %v3969
    %v4016 = vadd.f32 %v3926, %v4008
    %v4017 = vadd.f32 %v3928, %v4010
    %v4018 = vadd.f32 %v4014, %v3064
    %v4019 = vadd.f32 %v4015, %v3068
    %v4020 = vadd.f32 %v4016, %v3072
    %v4021 = vadd.f32 %v4017, %v3076
    %v4022 = vxor.u32 %v4018, 2147483648
    %v4023 = vmul.f32 %v4022, 1.442695
    %v4024 = vpow.pop %v4023
    %v4025 = vadd.f32 %v4024, 1.0
    %v4026 = vrcp.pop %v4025
    %v4027 = vmul.f32 1.0, %v4026
    %v4028 = vxor.u32 %v4019, 2147483648
    %v4029 = vmul.f32 %v4028, 1.442695
    %v4030 = vpow.pop %v4029
    %v4031 = vadd.f32 %v4030, 1.0
    %v4032 = vrcp.pop %v4031
    %v4033 = vmul.f32 1.0, %v4032
    %v4034 = vtanh.pop %v4020
    %v4035 = vxor.u32 %v4021, 2147483648
    %v4036 = vmul.f32 %v4035, 1.442695
    %v4037 = vpow.pop %v4036
    %v4038 = vadd.f32 %v4037, 1.0
    %v4039 = vrcp.pop %v4038
    %v4040 = vmul.f32 1.0, %v4039
    %v4041 = vmul.f32 %v4033, %v3106
    %v4042 = vmul.f32 %v4027, %v4034
    %v4043 = vadd.f32 %v4041, %v4042
    %v4044 = vtanh.pop %v4043
    %v4045 = vmul.f32 %v4040, %v4044
    %v4046 = vpack.c.bf16 %v4045, %v4045
    %4047 = vmatprep.subr.bf16.mxu0 %v3159
    %4048 = vmatpush1.bf16.msra.mxu0 %v3158
    %4049 = vmatprep.subr.bf16.mxu0 %v3161
    %4050 = vmatpush1.bf16.msra.mxu0 %v3160
    %4051 = vmatprep.subr.bf16.mxu0 %v3163
    %4052 = vmatpush1.bf16.msra.mxu0 %v3162
    %4053 = vmatprep.subr.bf16.mxu0 %v3165
    %4054 = vmatpush1.bf16.msra.mxu0 %v3164
    %4055 = vmatprep.subr.bf16.mxu0 %v3167
    %4056 = vmatpush1.bf16.msra.mxu0 %v3166
    %4057 = vmatprep.subr.bf16.mxu0 %v3169
    %4058 = vmatpush1.bf16.msra.mxu0 %v3168
    %4059 = vmatprep.subr.bf16.mxu0 %v3171
    %4060 = vmatpush1.bf16.msra.mxu0 %v3170
    %4061 = vmatprep.subr.bf16.mxu0 %v3173
    %4062 = vmatpush1.bf16.msra.mxu0 %v3172
    %4063 = vmatprep.subr.bf16.mxu0 0
    %4064 = vmatpush1.bf16.msra.mxu0 0
    %4065 = vmatprep.subr.bf16.mxu0 0
    %4066 = vmatpush1.bf16.msra.mxu0 0
    %4067 = vmatprep.subr.bf16.mxu0 0
    %4068 = vmatpush1.bf16.msra.mxu0 0
    %4069 = vmatprep.subr.bf16.mxu0 0
    %4070 = vmatpush1.bf16.msra.mxu0 0
    %4071 = vmatprep.subr.bf16.mxu0 0
    %4072 = vmatpush1.bf16.msra.mxu0 0
    %4073 = vmatprep.subr.bf16.mxu0 0
    %4074 = vmatpush1.bf16.msra.mxu0 0
    %4075 = vmatprep.subr.bf16.mxu0 0
    %4076 = vmatpush1.bf16.msra.mxu0 0
    %4077 = vmatprep.subr.bf16.mxu0 0
    %4078 = vmatpush1.bf16.msra.mxu0 0
    %4079 = vmatprep.mubr.bf16.mxu0 0
    %4080 = vmatmul.mubr.bf16.gmra.mrb[0].mxu0 %v3767
    %v4081 = vpop.f32.mrb[0].mxu0
    %v4082 = vadd.f32 0.0, %v4081
    %v4083 = vpop.f32.mrb[0].mxu0
    %v4084 = vadd.f32 0.0, %v4083
    %v4085 = vpop.f32.mrb[0].mxu0
    %v4086 = vpop.f32.mrb[0].mxu0
    %4087 = vdwg.mxu0
    %4088 = vmatprep.subr.bf16.mxu0 %v3280
    %4089 = vmatpush1.bf16.msra.mxu0 %v3279
    %4090 = vmatprep.subr.bf16.mxu0 %v3282
    %4091 = vmatpush1.bf16.msra.mxu0 %v3281
    %4092 = vmatprep.subr.bf16.mxu0 %v3284
    %4093 = vmatpush1.bf16.msra.mxu0 %v3283
    %4094 = vmatprep.subr.bf16.mxu0 %v3286
    %4095 = vmatpush1.bf16.msra.mxu0 %v3285
    %4096 = vmatprep.subr.bf16.mxu0 %v3288
    %4097 = vmatpush1.bf16.msra.mxu0 %v3287
    %4098 = vmatprep.subr.bf16.mxu0 %v3290
    %4099 = vmatpush1.bf16.msra.mxu0 %v3289
    %4100 = vmatprep.subr.bf16.mxu0 %v3292
    %4101 = vmatpush1.bf16.msra.mxu0 %v3291
    %4102 = vmatprep.subr.bf16.mxu0 %v3294
    %4103 = vmatpush1.bf16.msra.mxu0 %v3293
    %4104 = vmatprep.subr.bf16.mxu0 0
    %4105 = vmatpush1.bf16.msra.mxu0 0
    %4106 = vmatprep.subr.bf16.mxu0 0
    %4107 = vmatpush1.bf16.msra.mxu0 0
    %4108 = vmatprep.subr.bf16.mxu0 0
    %4109 = vmatpush1.bf16.msra.mxu0 0
    %4110 = vmatprep.subr.bf16.mxu0 0
    %4111 = vmatpush1.bf16.msra.mxu0 0
    %4112 = vmatprep.subr.bf16.mxu0 0
    %4113 = vmatpush1.bf16.msra.mxu0 0
    %4114 = vmatprep.subr.bf16.mxu0 0
    %4115 = vmatpush1.bf16.msra.mxu0 0
    %4116 = vmatprep.subr.bf16.mxu0 0
    %4117 = vmatpush1.bf16.msra.mxu0 0
    %4118 = vmatprep.subr.bf16.mxu0 0
    %4119 = vmatpush1.bf16.msra.mxu0 0
    %4120 = vmatprep.mubr.bf16.mxu0 0
    %4121 = vmatmul.mubr.bf16.gmra.mrb[0].mxu0 %v4046
    %v4122 = vpop.f32.mrb[0].mxu0
    %v4123 = vadd.f32 %v4082, %v4122
    %v4124 = vpop.f32.mrb[0].mxu0
    %v4125 = vadd.f32 %v4084, %v4124
    %v4126 = vpop.f32.mrb[0].mxu0
    %v4127 = vpop.f32.mrb[0].mxu0
    %4128 = vdwg.mxu0
    %4129 = vmatprep.subr.bf16.mxu0 %v3401
    %4130 = vmatpush1.bf16.msra.mxu0 %v3400
    %4131 = vmatprep.subr.bf16.mxu0 %v3403
    %4132 = vmatpush1.bf16.msra.mxu0 %v3402
    %4133 = vmatprep.subr.bf16.mxu0 %v3405
    %4134 = vmatpush1.bf16.msra.mxu0 %v3404
    %4135 = vmatprep.subr.bf16.mxu0 %v3407
    %4136 = vmatpush1.bf16.msra.mxu0 %v3406
    %4137 = vmatprep.subr.bf16.mxu0 %v3409
    %4138 = vmatpush1.bf16.msra.mxu0 %v3408
    %4139 = vmatprep.subr.bf16.mxu0 %v3411
    %4140 = vmatpush1.bf16.msra.mxu0 %v3410
    %4141 = vmatprep.subr.bf16.mxu0 %v3413
    %4142 = vmatpush1.bf16.msra.mxu0 %v3412
    %4143 = vmatprep.subr.bf16.mxu0 %v3415
    %4144 = vmatpush1.bf16.msra.mxu0 %v3414
    %4145 = vmatprep.subr.bf16.mxu0 0
    %4146 = vmatpush1.bf16.msra.mxu0 0
    %4147 = vmatprep.subr.bf16.mxu0 0
    %4148 = vmatpush1.bf16.msra.mxu0 0
    %4149 = vmatprep.subr.bf16.mxu0 0
    %4150 = vmatpush1.bf16.msra.mxu0 0
    %4151 = vmatprep.subr.bf16.mxu0 0
    %4152 = vmatpush1.bf16.msra.mxu0 0
    %4153 = vmatprep.subr.bf16.mxu0 0
    %4154 = vmatpush1.bf16.msra.mxu0 0
    %4155 = vmatprep.subr.bf16.mxu0 0
    %4156 = vmatpush1.bf16.msra.mxu0 0
    %4157 = vmatprep.subr.bf16.mxu0 0
    %4158 = vmatpush1.bf16.msra.mxu0 0
    %4159 = vmatprep.subr.bf16.mxu0 0
    %4160 = vmatpush1.bf16.msra.mxu0 0
    %4161 = vmatprep.mubr.bf16.mxu0 0
    %4162 = vmatmul.mubr.bf16.gmra.mrb[0].mxu0 %v3680
    %v4163 = vpop.f32.mrb[0].mxu0
    %v4164 = vadd.f32 0.0, %v4163
    %v4165 = vpop.f32.mrb[0].mxu0
    %v4166 = vadd.f32 0.0, %v4165
    %v4167 = vpop.f32.mrb[0].mxu0
    %v4168 = vpop.f32.mrb[0].mxu0
    %4169 = vdwg.mxu0
    %v4170 = vadd.f32 %v4123, %v4164
    %v4171 = vadd.f32 %v4125, %v4166
    %v4172 = vadd.f32 %v4170, %v3479
    %v4173 = vadd.f32 %v4171, %v3483
    %s4174 = scalar_lea.vmem [#allocation9], 32
    %4175 = vst [vmem:[%s4174] sm:$0xff] %v4172
    %4176 = vst [vmem:[%s4174 + $0x8] sm:$0xff] %v4173
    %s4177 = sld [smem:[#allocation4 + $0x2]]
    %p4178 = scmp.eq.s32.totalorder %s4177, 0
    // Predicated region
    $region54: #{seq2seq_forward.1} parent=1 // pred_check
      %p4179 = pneg %p4178
    $region55: #{seq2seq_forward.1} parent=1 // pred_check_branch
      %4181 = sbr.rel (%p4179) target = $region57
    $region56: #{seq2seq_forward.1} parent=1 // pred_region
      %v4182 = vlaneseq
      %v4183 = vand.u32 %v4182, 127
      %v4184 = vadd.s32 %v4183, 128
      %v4185 = vmax.f32 %v4172, %v4173
      %4186 = vmax.xlane.f32.xlu0 %v4185
      %v4187 = vpop.xlane.xlu0 %4186
      %vm4188 = vcmp.ge.f32.partialorder %v4172, %v4187
      %vm4189 = vcmp.ge.f32.partialorder %v4173, %v4187
      %v4190 = vsel %vm4188, %v4183, 256
      %v4191 = vsel %vm4189, %v4184, 256
      %vm4192 = vcmp.lt.s32.totalorder %v4190, %v4191
      %v4193 = vsel %vm4192, %v4190, %v4191
      %v4194 = vand.u32 %v4193, 65535
      %v4195 = vshra.s32 %v4193, 16
      %v4196 = vcvt.s32.f32 %v4194
      %v4197 = vcvt.s32.f32 %v4195
      %4198 = vmin.xlane.f32.xlu0 %v4197
      %v4199 = vpop.xlane.xlu0 %4198
      %vm4200 = vcmp.eq.f32.partialorder %v4197, %v4199
      %v4201 = vsel %vm4200, %v4196, inf
      %4202 = vmin.xlane.f32.xlu0 %v4201
      %v4203 = vpop.xlane.xlu0 %4202
      %v4204 = vcvt.f32.s32 %v4203
      %v4205 = vcvt.f32.s32 %v4199
      %v4206 = vshll.u32 %v4205, 16
      %v4207 = vadd.s32 %v4206, %v4204
      %vm4208 = vcmp.eq.s32.totalorder %v4183, %v4207
      %vm4209 = vcmp.eq.s32.totalorder %v4184, %v4207
      %v4210 = vsel %vm4208, 1, 0
      %v4211 = vsel %vm4209, 1, 0
      %v4212 = vcvt.s32.f32 %v4210
      %v4213 = vcvt.s32.f32 %v4211
      %v4214 = vpack.c.bf16 %v4212, %v4212
      %v4215 = vpack.c.bf16 %v4213, %v4213
      %v4248 = vunpack.c.l.b16 %v2205
      %v4249 = vunpack.c.l.b16 %v2206
      %v4250 = vunpack.c.l.b16 %v2207
      %v4251 = vunpack.c.l.b16 %v2208
      %v4252 = vunpack.c.l.b16 %v2209
      %v4253 = vunpack.c.l.b16 %v2210
      %v4254 = vunpack.c.l.b16 %v2211
      %v4255 = vunpack.c.l.b16 %v2212
      %v4256 = vunpack.c.l.b16 %v2213
      %v4257 = vunpack.c.l.b16 %v2214
      %v4258 = vunpack.c.l.b16 %v2215
      %v4259 = vunpack.c.l.b16 %v2216
      %v4260 = vunpack.c.l.b16 %v2217
      %v4261 = vunpack.c.l.b16 %v2218
      %v4262 = vunpack.c.l.b16 %v2219
      %v4263 = vunpack.c.l.b16 %v2220
      %v4264 = vunpack.c.l.b16 %v2221
      %v4265 = vunpack.c.l.b16 %v2222
      %v4266 = vunpack.c.l.b16 %v2223
      %v4267 = vunpack.c.l.b16 %v2224
      %v4268 = vunpack.c.l.b16 %v2225
      %v4269 = vunpack.c.l.b16 %v2226
      %v4270 = vunpack.c.l.b16 %v2227
      %v4271 = vunpack.c.l.b16 %v2228
      %v4272 = vunpack.c.l.b16 %v2229
      %v4273 = vunpack.c.l.b16 %v2230
      %v4274 = vunpack.c.l.b16 %v2231
      %v4275 = vunpack.c.l.b16 %v2232
      %v4276 = vunpack.c.l.b16 %v2233
      %v4277 = vunpack.c.l.b16 %v2234
      %v4278 = vunpack.c.l.b16 %v2235
      %v4279 = vunpack.c.l.b16 %v2236
      %v4280 = vpack.c.b16 %v4249, %v4248
      %v4281 = vpack.c.b16 %v4251, %v4250
      %v4282 = vpack.c.b16 %v4253, %v4252
      %v4283 = vpack.c.b16 %v4255, %v4254
      %v4284 = vpack.c.b16 %v4257, %v4256
      %v4285 = vpack.c.b16 %v4259, %v4258
      %v4286 = vpack.c.b16 %v4261, %v4260
      %v4287 = vpack.c.b16 %v4263, %v4262
      %v4288 = vpack.c.b16 %v4265, %v4264
      %v4289 = vpack.c.b16 %v4267, %v4266
      %v4290 = vpack.c.b16 %v4269, %v4268
      %v4291 = vpack.c.b16 %v4271, %v4270
      %v4292 = vpack.c.b16 %v4273, %v4272
      %v4293 = vpack.c.b16 %v4275, %v4274
      %v4294 = vpack.c.b16 %v4277, %v4276
      %v4295 = vpack.c.b16 %v4279, %v4278
      %4312 = vmatprep.subr.bf16.mxu0 0
      %4313 = vmatpush1.bf16.msra.mxu0 %v4280
      %4314 = vmatprep.subr.bf16.mxu0 0
      %4315 = vmatpush1.bf16.msra.mxu0 %v4281
      %4316 = vmatprep.subr.bf16.mxu0 0
      %4317 = vmatpush1.bf16.msra.mxu0 %v4282
      %4318 = vmatprep.subr.bf16.mxu0 0
      %4319 = vmatpush1.bf16.msra.mxu0 %v4283
      %4320 = vmatprep.subr.bf16.mxu0 0
      %4321 = vmatpush1.bf16.msra.mxu0 %v4284
      %4322 = vmatprep.subr.bf16.mxu0 0
      %4323 = vmatpush1.bf16.msra.mxu0 %v4285
      %4324 = vmatprep.subr.bf16.mxu0 0
      %4325 = vmatpush1.bf16.msra.mxu0 %v4286
      %4326 = vmatprep.subr.bf16.mxu0 0
      %4327 = vmatpush1.bf16.msra.mxu0 %v4287
      %4328 = vmatprep.subr.bf16.mxu0 0
      %4329 = vmatpush1.bf16.msra.mxu0 %v4288
      %4330 = vmatprep.subr.bf16.mxu0 0
      %4331 = vmatpush1.bf16.msra.mxu0 %v4289
      %4332 = vmatprep.subr.bf16.mxu0 0
      %4333 = vmatpush1.bf16.msra.mxu0 %v4290
      %4334 = vmatprep.subr.bf16.mxu0 0
      %4335 = vmatpush1.bf16.msra.mxu0 %v4291
      %4336 = vmatprep.subr.bf16.mxu0 0
      %4337 = vmatpush1.bf16.msra.mxu0 %v4292
      %4338 = vmatprep.subr.bf16.mxu0 0
      %4339 = vmatpush1.bf16.msra.mxu0 %v4293
      %4340 = vmatprep.subr.bf16.mxu0 0
      %4341 = vmatpush1.bf16.msra.mxu0 %v4294
      %4342 = vmatprep.subr.bf16.mxu0 0
      %4343 = vmatpush1.bf16.msra.mxu0 %v4295
      %4344 = vmatprep.mubr.bf16.mxu0 %v4215
      %4345 = vmatmul.mubr.bf16.gmra.mrb[0].mxu0 %v4214
      %v4346 = vpop.f32.mrb[0].mxu0
      %v4347 = vadd.f32 0.0, %v4346
      %v4348 = vpop.f32.mrb[0].mxu0
      %v4349 = vpop.f32.mrb[0].mxu0
      %v4350 = vpop.f32.mrb[0].mxu0
      %4351 = vdwg.mxu0
      %4352 = vst [vmem:[#allocation3] sm:$0xff] %v4347
    $region57: #{seq2seq_forward.1} parent=1 // pred_fallthru
      _
    %s4353 = sld [smem:[#allocation4 + $0x2]]
    %p4354 = scmp.ne.s32.totalorder %s4353, 0
    %s4355 = scalar_select %p4354, 1, 0
    %s4356 = scvt.s32.f32 %s4355
    %s4357 = scalar_lea.vmem %s2, 16
    %v4358 = vld [vmem:[%s4357] sm:$0xff]
    %v4359 = vstv %s4356
    %v4360 = vmul.f32 %v4359, %v4358
    %s4361 = ssub.f32 1.0, %s4356
    %v4362 = vld [vmem:[#allocation3] sm:$0xff]
    %v4363 = vstv %s4361
    %v4364 = vmul.f32 %v4363, %v4362
    %v4365 = vadd.f32 %v4360, %v4364
    %v4366 = vpack.c.bf16 %v4365, %v4365
    %v4367 = vmul.f32 %v2051, %v4045
    %v4368 = vmul.f32 %v2052, %v4045
    %v4369 = vmul.f32 %v2053, %v4045
    %v4370 = vmul.f32 %v2054, %v4045
    %v4371 = vmul.f32 %v2055, %v4045
    %v4372 = vmul.f32 %v2056, %v4045
    %v4373 = vmul.f32 %v2057, %v4045
    %v4374 = vmul.f32 %v2058, %v4045
    %4375 = vadd.xlane.f32.xlu0 %v4367
    %v4376 = vpop.xlane.xlu0 %4375
    %4377 = vadd.xlane.f32.xlu0 %v4368
    %v4378 = vpop.xlane.xlu0 %4377
    %4379 = vadd.xlane.f32.xlu0 %v4369
    %v4380 = vpop.xlane.xlu0 %4379
    %4381 = vadd.xlane.f32.xlu0 %v4370
    %v4382 = vpop.xlane.xlu0 %4381
    %4383 = vadd.xlane.f32.xlu0 %v4371
    %v4384 = vpop.xlane.xlu0 %4383
    %4385 = vadd.xlane.f32.xlu0 %v4372
    %v4386 = vpop.xlane.xlu0 %4385
    %4387 = vadd.xlane.f32.xlu0 %v4373
    %v4388 = vpop.xlane.xlu0 %4387
    %4389 = vadd.xlane.f32.xlu0 %v4374
    %v4390 = vpop.xlane.xlu0 %4389
    %v4391 = vmax.f32 %v4376, %v4384
    %v4392 = vmax.f32 %v4378, %v4386
    %v4393 = vmax.f32 %v4380, %v4388
    %v4394 = vmax.f32 %v4382, %v4390
    %v4395 = vmax.f32 %v4391, %v4392
    %v4396 = vmax.f32 %v4393, %v4394
    %v4397 = vmax.f32 %v4395, %v4396
    %v4398 = vsub.f32 %v4376, %v4397
    %v4399 = vsub.f32 %v4378, %v4397
    %v4400 = vsub.f32 %v4380, %v4397
    %v4401 = vsub.f32 %v4382, %v4397
    %v4402 = vsub.f32 %v4384, %v4397
    %v4403 = vsub.f32 %v4386, %v4397
    %v4404 = vsub.f32 %v4388, %v4397
    %v4405 = vsub.f32 %v4390, %v4397
    %v4406 = vmul.f32 %v4398, 1.442695
    %v4407 = vpow.pop %v4406
    %v4408 = vmul.f32 %v4399, 1.442695
    %v4409 = vpow.pop %v4408
    %v4410 = vmul.f32 %v4400, 1.442695
    %v4411 = vpow.pop %v4410
    %v4412 = vmul.f32 %v4401, 1.442695
    %v4413 = vpow.pop %v4412
    %v4414 = vmul.f32 %v4402, 1.442695
    %v4415 = vpow.pop %v4414
    %v4416 = vmul.f32 %v4403, 1.442695
    %v4417 = vpow.pop %v4416
    %v4418 = vmul.f32 %v4404, 1.442695
    %v4419 = vpow.pop %v4418
    %v4420 = vmul.f32 %v4405, 1.442695
    %v4421 = vpow.pop %v4420
    %v4422 = vadd.f32 %v4407, %v4409
    %v4423 = vadd.f32 %v4422, %v4411
    %v4424 = vadd.f32 %v4423, %v4413
    %v4425 = vadd.f32 %v4424, %v4415
    %v4426 = vadd.f32 %v4425, %v4417
    %v4427 = vadd.f32 %v4426, %v4419
    %v4428 = vadd.f32 %v4427, %v4421
    %v4429 = vrcp.pop %v4428
    %v4430 = vmul.f32 %v4407, %v4429
    %v4431 = vmul.f32 %v4409, %v4429
    %v4432 = vmul.f32 %v4411, %v4429
    %v4433 = vmul.f32 %v4413, %v4429
    %v4434 = vmul.f32 %v4415, %v4429
    %v4435 = vmul.f32 %v4417, %v4429
    %v4436 = vmul.f32 %v4419, %v4429
    %v4437 = vmul.f32 %v4421, %v4429
    %v4438 = vmul.f32 %v4430, %v2051
    %v4439 = vmul.f32 %v4431, %v2052
    %v4440 = vmul.f32 %v4432, %v2053
    %v4441 = vmul.f32 %v4433, %v2054
    %v4442 = vmul.f32 %v4434, %v2055
    %v4443 = vmul.f32 %v4435, %v2056
    %v4444 = vmul.f32 %v4436, %v2057
    %v4445 = vmul.f32 %v4437, %v2058
    %v4446 = vadd.f32 %v4438, %v4439
    %v4447 = vadd.f32 %v4446, %v4440
    %v4448 = vadd.f32 %v4447, %v4441
    %v4449 = vadd.f32 %v4448, %v4442
    %v4450 = vadd.f32 %v4449, %v4443
    %v4451 = vadd.f32 %v4450, %v4444
    %v4452 = vadd.f32 %v4451, %v4445
    %v4453 = vpack.c.bf16 %v4452, %v4452
    %4454 = vmatprep.subr.bf16.mxu0 %v2426
    %4455 = vmatpush1.bf16.msra.mxu0 %v2425
    %4456 = vmatprep.subr.bf16.mxu0 %v2430
    %4457 = vmatpush1.bf16.msra.mxu0 %v2429
    %4458 = vmatprep.subr.bf16.mxu0 %v2434
    %4459 = vmatpush1.bf16.msra.mxu0 %v2433
    %4460 = vmatprep.subr.bf16.mxu0 %v2438
    %4461 = vmatpush1.bf16.msra.mxu0 %v2437
    %4462 = vmatprep.subr.bf16.mxu0 %v2442
    %4463 = vmatpush1.bf16.msra.mxu0 %v2441
    %4464 = vmatprep.subr.bf16.mxu0 %v2446
    %4465 = vmatpush1.bf16.msra.mxu0 %v2445
    %4466 = vmatprep.subr.bf16.mxu0 %v2450
    %4467 = vmatpush1.bf16.msra.mxu0 %v2449
    %4468 = vmatprep.subr.bf16.mxu0 %v2454
    %4469 = vmatpush1.bf16.msra.mxu0 %v2453
    %4470 = vmatprep.subr.bf16.mxu0 0
    %4471 = vmatpush1.bf16.msra.mxu0 0
    %4472 = vmatprep.subr.bf16.mxu0 0
    %4473 = vmatpush1.bf16.msra.mxu0 0
    %4474 = vmatprep.subr.bf16.mxu0 0
    %4475 = vmatpush1.bf16.msra.mxu0 0
    %4476 = vmatprep.subr.bf16.mxu0 0
    %4477 = vmatpush1.bf16.msra.mxu0 0
    %4478 = vmatprep.subr.bf16.mxu0 0
    %4479 = vmatpush1.bf16.msra.mxu0 0
    %4480 = vmatprep.subr.bf16.mxu0 0
    %4481 = vmatpush1.bf16.msra.mxu0 0
    %4482 = vmatprep.subr.bf16.mxu0 0
    %4483 = vmatpush1.bf16.msra.mxu0 0
    %4484 = vmatprep.subr.bf16.mxu0 0
    %4485 = vmatpush1.bf16.msra.mxu0 0
    %4486 = vmatprep.mubr.bf16.mxu0 0
    %4487 = vmatmul.mubr.bf16.gmra.mrb[0].mxu0 %v4453
    %v4488 = vpop.f32.mrb[0].mxu0
    %v4489 = vadd.f32 0.0, %v4488
    %v4490 = vpop.f32.mrb[0].mxu0
    %v4491 = vadd.f32 0.0, %v4490
    %v4492 = vpop.f32.mrb[0].mxu0
    %v4493 = vpop.f32.mrb[0].mxu0
    %4494 = vdwg.mxu0
    %4495 = vmatprep.subr.bf16.mxu0 %v2428
    %4496 = vmatpush1.bf16.msra.mxu0 %v2427
    %4497 = vmatprep.subr.bf16.mxu0 %v2432
    %4498 = vmatpush1.bf16.msra.mxu0 %v2431
    %4499 = vmatprep.subr.bf16.mxu0 %v2436
    %4500 = vmatpush1.bf16.msra.mxu0 %v2435
    %4501 = vmatprep.subr.bf16.mxu0 %v2440
    %4502 = vmatpush1.bf16.msra.mxu0 %v2439
    %4503 = vmatprep.subr.bf16.mxu0 %v2444
    %4504 = vmatpush1.bf16.msra.mxu0 %v2443
    %4505 = vmatprep.subr.bf16.mxu0 %v2448
    %4506 = vmatpush1.bf16.msra.mxu0 %v2447
    %4507 = vmatprep.subr.bf16.mxu0 %v2452
    %4508 = vmatpush1.bf16.msra.mxu0 %v2451
    %4509 = vmatprep.subr.bf16.mxu0 %v2456
    %4510 = vmatpush1.bf16.msra.mxu0 %v2455
    %4511 = vmatprep.subr.bf16.mxu0 0
    %4512 = vmatpush1.bf16.msra.mxu0 0
    %4513 = vmatprep.subr.bf16.mxu0 0
    %4514 = vmatpush1.bf16.msra.mxu0 0
    %4515 = vmatprep.subr.bf16.mxu0 0
    %4516 = vmatpush1.bf16.msra.mxu0 0
    %4517 = vmatprep.subr.bf16.mxu0 0
    %4518 = vmatpush1.bf16.msra.mxu0 0
    %4519 = vmatprep.subr.bf16.mxu0 0
    %4520 = vmatpush1.bf16.msra.mxu0 0
    %4521 = vmatprep.subr.bf16.mxu0 0
    %4522 = vmatpush1.bf16.msra.mxu0 0
    %4523 = vmatprep.subr.bf16.mxu0 0
    %4524 = vmatpush1.bf16.msra.mxu0 0
    %4525 = vmatprep.subr.bf16.mxu0 0
    %4526 = vmatpush1.bf16.msra.mxu0 0
    %4527 = vmatprep.mubr.bf16.mxu0 0
    %4528 = vmatmul.mubr.bf16.gmra.mrb[0].mxu0 %v4453
    %v4529 = vpop.f32.mrb[0].mxu0
    %v4530 = vadd.f32 0.0, %v4529
    %v4531 = vpop.f32.mrb[0].mxu0
    %v4532 = vadd.f32 0.0, %v4531
    %v4533 = vpop.f32.mrb[0].mxu0
    %v4534 = vpop.f32.mrb[0].mxu0
    %4535 = vdwg.mxu0
    %4536 = vmatprep.subr.bf16.mxu0 %v2668
    %4537 = vmatpush1.bf16.msra.mxu0 %v2667
    %4538 = vmatprep.subr.bf16.mxu0 %v2672
    %4539 = vmatpush1.bf16.msra.mxu0 %v2671
    %4540 = vmatprep.subr.bf16.mxu0 %v2676
    %4541 = vmatpush1.bf16.msra.mxu0 %v2675
    %4542 = vmatprep.subr.bf16.mxu0 %v2680
    %4543 = vmatpush1.bf16.msra.mxu0 %v2679
    %4544 = vmatprep.subr.bf16.mxu0 %v2684
    %4545 = vmatpush1.bf16.msra.mxu0 %v2683
    %4546 = vmatprep.subr.bf16.mxu0 %v2688
    %4547 = vmatpush1.bf16.msra.mxu0 %v2687
    %4548 = vmatprep.subr.bf16.mxu0 %v2692
    %4549 = vmatpush1.bf16.msra.mxu0 %v2691
    %4550 = vmatprep.subr.bf16.mxu0 %v2696
    %4551 = vmatpush1.bf16.msra.mxu0 %v2695
    %4552 = vmatprep.subr.bf16.mxu0 0
    %4553 = vmatpush1.bf16.msra.mxu0 0
    %4554 = vmatprep.subr.bf16.mxu0 0
    %4555 = vmatpush1.bf16.msra.mxu0 0
    %4556 = vmatprep.subr.bf16.mxu0 0
    %4557 = vmatpush1.bf16.msra.mxu0 0
    %4558 = vmatprep.subr.bf16.mxu0 0
    %4559 = vmatpush1.bf16.msra.mxu0 0
    %4560 = vmatprep.subr.bf16.mxu0 0
    %4561 = vmatpush1.bf16.msra.mxu0 0
    %4562 = vmatprep.subr.bf16.mxu0 0
    %4563 = vmatpush1.bf16.msra.mxu0 0
    %4564 = vmatprep.subr.bf16.mxu0 0
    %4565 = vmatpush1.bf16.msra.mxu0 0
    %4566 = vmatprep.subr.bf16.mxu0 0
    %4567 = vmatpush1.bf16.msra.mxu0 0
    %4568 = vmatprep.mubr.bf16.mxu0 0
    %4569 = vmatmul.mubr.bf16.gmra.mrb[0].mxu0 %v4366
    %v4570 = vpop.f32.mrb[0].mxu0
    %v4571 = vadd.f32 %v4489, %v4570
    %v4572 = vpop.f32.mrb[0].mxu0
    %v4573 = vadd.f32 %v4491, %v4572
    %v4574 = vpop.f32.mrb[0].mxu0
    %v4575 = vpop.f32.mrb[0].mxu0
    %4576 = vdwg.mxu0
    %4577 = vmatprep.subr.bf16.mxu0 %v2670
    %4578 = vmatpush1.bf16.msra.mxu0 %v2669
    %4579 = vmatprep.subr.bf16.mxu0 %v2674
    %4580 = vmatpush1.bf16.msra.mxu0 %v2673
    %4581 = vmatprep.subr.bf16.mxu0 %v2678
    %4582 = vmatpush1.bf16.msra.mxu0 %v2677
    %4583 = vmatprep.subr.bf16.mxu0 %v2682
    %4584 = vmatpush1.bf16.msra.mxu0 %v2681
    %4585 = vmatprep.subr.bf16.mxu0 %v2686
    %4586 = vmatpush1.bf16.msra.mxu0 %v2685
    %4587 = vmatprep.subr.bf16.mxu0 %v2690
    %4588 = vmatpush1.bf16.msra.mxu0 %v2689
    %4589 = vmatprep.subr.bf16.mxu0 %v2694
    %4590 = vmatpush1.bf16.msra.mxu0 %v2693
    %4591 = vmatprep.subr.bf16.mxu0 %v2698
    %4592 = vmatpush1.bf16.msra.mxu0 %v2697
    %4593 = vmatprep.subr.bf16.mxu0 0
    %4594 = vmatpush1.bf16.msra.mxu0 0
    %4595 = vmatprep.subr.bf16.mxu0 0
    %4596 = vmatpush1.bf16.msra.mxu0 0
    %4597 = vmatprep.subr.bf16.mxu0 0
    %4598 = vmatpush1.bf16.msra.mxu0 0
    %4599 = vmatprep.subr.bf16.mxu0 0
    %4600 = vmatpush1.bf16.msra.mxu0 0
    %4601 = vmatprep.subr.bf16.mxu0 0
    %4602 = vmatpush1.bf16.msra.mxu0 0
    %4603 = vmatprep.subr.bf16.mxu0 0
    %4604 = vmatpush1.bf16.msra.mxu0 0
    %4605 = vmatprep.subr.bf16.mxu0 0
    %4606 = vmatpush1.bf16.msra.mxu0 0
    %4607 = vmatprep.subr.bf16.mxu0 0
    %4608 = vmatpush1.bf16.msra.mxu0 0
    %4609 = vmatprep.mubr.bf16.mxu0 0
    %4610 = vmatmul.mubr.bf16.gmra.mrb[0].mxu0 %v4366
    %v4611 = vpop.f32.mrb[0].mxu0
    %v4612 = vadd.f32 %v4530, %v4611
    %v4613 = vpop.f32.mrb[0].mxu0
    %v4614 = vadd.f32 %v4532, %v4613
    %v4615 = vpop.f32.mrb[0].mxu0
    %v4616 = vpop.f32.mrb[0].mxu0
    %4617 = vdwg.mxu0
    %4618 = vmatprep.subr.bf16.mxu0 %v2911
    %4619 = vmatpush1.bf16.msra.mxu0 %v2910
    %4620 = vmatprep.subr.bf16.mxu0 %v2915
    %4621 = vmatpush1.bf16.msra.mxu0 %v2914
    %4622 = vmatprep.subr.bf16.mxu0 %v2919
    %4623 = vmatpush1.bf16.msra.mxu0 %v2918
    %4624 = vmatprep.subr.bf16.mxu0 %v2923
    %4625 = vmatpush1.bf16.msra.mxu0 %v2922
    %4626 = vmatprep.subr.bf16.mxu0 %v2927
    %4627 = vmatpush1.bf16.msra.mxu0 %v2926
    %4628 = vmatprep.subr.bf16.mxu0 %v2931
    %4629 = vmatpush1.bf16.msra.mxu0 %v2930
    %4630 = vmatprep.subr.bf16.mxu0 %v2935
    %4631 = vmatpush1.bf16.msra.mxu0 %v2934
    %4632 = vmatprep.subr.bf16.mxu0 %v2939
    %4633 = vmatpush1.bf16.msra.mxu0 %v2938
    %4634 = vmatprep.subr.bf16.mxu0 0
    %4635 = vmatpush1.bf16.msra.mxu0 0
    %4636 = vmatprep.subr.bf16.mxu0 0
    %4637 = vmatpush1.bf16.msra.mxu0 0
    %4638 = vmatprep.subr.bf16.mxu0 0
    %4639 = vmatpush1.bf16.msra.mxu0 0
    %4640 = vmatprep.subr.bf16.mxu0 0
    %4641 = vmatpush1.bf16.msra.mxu0 0
    %4642 = vmatprep.subr.bf16.mxu0 0
    %4643 = vmatpush1.bf16.msra.mxu0 0
    %4644 = vmatprep.subr.bf16.mxu0 0
    %4645 = vmatpush1.bf16.msra.mxu0 0
    %4646 = vmatprep.subr.bf16.mxu0 0
    %4647 = vmatpush1.bf16.msra.mxu0 0
    %4648 = vmatprep.subr.bf16.mxu0 0
    %4649 = vmatpush1.bf16.msra.mxu0 0
    %4650 = vmatprep.mubr.bf16.mxu0 0
    %4651 = vmatmul.mubr.bf16.gmra.mrb[0].mxu0 %v4046
    %v4652 = vpop.f32.mrb[0].mxu0
    %v4653 = vadd.f32 0.0, %v4652
    %v4654 = vpop.f32.mrb[0].mxu0
    %v4655 = vadd.f32 0.0, %v4654
    %v4656 = vpop.f32.mrb[0].mxu0
    %v4657 = vpop.f32.mrb[0].mxu0
    %4658 = vdwg.mxu0
    %4659 = vmatprep.subr.bf16.mxu0 %v2913
    %4660 = vmatpush1.bf16.msra.mxu0 %v2912
    %4661 = vmatprep.subr.bf16.mxu0 %v2917
    %4662 = vmatpush1.bf16.msra.mxu0 %v2916
    %4663 = vmatprep.subr.bf16.mxu0 %v2921
    %4664 = vmatpush1.bf16.msra.mxu0 %v2920
    %4665 = vmatprep.subr.bf16.mxu0 %v2925
    %4666 = vmatpush1.bf16.msra.mxu0 %v2924
    %4667 = vmatprep.subr.bf16.mxu0 %v2929
    %4668 = vmatpush1.bf16.msra.mxu0 %v2928
    %4669 = vmatprep.subr.bf16.mxu0 %v2933
    %4670 = vmatpush1.bf16.msra.mxu0 %v2932
    %4671 = vmatprep.subr.bf16.mxu0 %v2937
    %4672 = vmatpush1.bf16.msra.mxu0 %v2936
    %4673 = vmatprep.subr.bf16.mxu0 %v2941
    %4674 = vmatpush1.bf16.msra.mxu0 %v2940
    %4675 = vmatprep.subr.bf16.mxu0 0
    %4676 = vmatpush1.bf16.msra.mxu0 0
    %4677 = vmatprep.subr.bf16.mxu0 0
    %4678 = vmatpush1.bf16.msra.mxu0 0
    %4679 = vmatprep.subr.bf16.mxu0 0
    %4680 = vmatpush1.bf16.msra.mxu0 0
    %4681 = vmatprep.subr.bf16.mxu0 0
    %4682 = vmatpush1.bf16.msra.mxu0 0
    %4683 = vmatprep.subr.bf16.mxu0 0
    %4684 = vmatpush1.bf16.msra.mxu0 0
    %4685 = vmatprep.subr.bf16.mxu0 0
    %4686 = vmatpush1.bf16.msra.mxu0 0
    %4687 = vmatprep.subr.bf16.mxu0 0
    %4688 = vmatpush1.bf16.msra.mxu0 0
    %4689 = vmatprep.subr.bf16.mxu0 0
    %4690 = vmatpush1.bf16.msra.mxu0 0
    %4691 = vmatprep.mubr.bf16.mxu0 0
    %4692 = vmatmul.mubr.bf16.gmra.mrb[0].mxu0 %v4046
    %v4693 = vpop.f32.mrb[0].mxu0
    %v4694 = vadd.f32 0.0, %v4693
    %v4695 = vpop.f32.mrb[0].mxu0
    %v4696 = vadd.f32 0.0, %v4695
    %v4697 = vpop.f32.mrb[0].mxu0
    %v4698 = vpop.f32.mrb[0].mxu0
    %4699 = vdwg.mxu0
    %v4700 = vadd.f32 %v4571, %v4653
    %v4701 = vadd.f32 %v4573, %v4655
    %v4702 = vadd.f32 %v4612, %v4694
    %v4703 = vadd.f32 %v4614, %v4696
    %v4704 = vadd.f32 %v4700, %v3064
    %v4705 = vadd.f32 %v4701, %v3068
    %v4706 = vadd.f32 %v4702, %v3072
    %v4707 = vadd.f32 %v4703, %v3076
    %v4708 = vxor.u32 %v4704, 2147483648
    %v4709 = vmul.f32 %v4708, 1.442695
    %v4710 = vpow.pop %v4709
    %v4711 = vadd.f32 %v4710, 1.0
    %v4712 = vrcp.pop %v4711
    %v4713 = vmul.f32 1.0, %v4712
    %v4714 = vxor.u32 %v4705, 2147483648
    %v4715 = vmul.f32 %v4714, 1.442695
    %v4716 = vpow.pop %v4715
    %v4717 = vadd.f32 %v4716, 1.0
    %v4718 = vrcp.pop %v4717
    %v4719 = vmul.f32 1.0, %v4718
    %v4720 = vtanh.pop %v4706
    %v4721 = vxor.u32 %v4707, 2147483648
    %v4722 = vmul.f32 %v4721, 1.442695
    %v4723 = vpow.pop %v4722
    %v4724 = vadd.f32 %v4723, 1.0
    %v4725 = vrcp.pop %v4724
    %v4726 = vmul.f32 1.0, %v4725
    %v4727 = vmul.f32 %v4719, %v4043
    %v4728 = vmul.f32 %v4713, %v4720
    %v4729 = vadd.f32 %v4727, %v4728
    %v4730 = vtanh.pop %v4729
    %v4731 = vmul.f32 %v4726, %v4730
    %v4732 = vpack.c.bf16 %v4731, %v4731
    %4733 = vmatprep.subr.bf16.mxu0 %v3159
    %4734 = vmatpush1.bf16.msra.mxu0 %v3158
    %4735 = vmatprep.subr.bf16.mxu0 %v3161
    %4736 = vmatpush1.bf16.msra.mxu0 %v3160
    %4737 = vmatprep.subr.bf16.mxu0 %v3163
    %4738 = vmatpush1.bf16.msra.mxu0 %v3162
    %4739 = vmatprep.subr.bf16.mxu0 %v3165
    %4740 = vmatpush1.bf16.msra.mxu0 %v3164
    %4741 = vmatprep.subr.bf16.mxu0 %v3167
    %4742 = vmatpush1.bf16.msra.mxu0 %v3166
    %4743 = vmatprep.subr.bf16.mxu0 %v3169
    %4744 = vmatpush1.bf16.msra.mxu0 %v3168
    %4745 = vmatprep.subr.bf16.mxu0 %v3171
    %4746 = vmatpush1.bf16.msra.mxu0 %v3170
    %4747 = vmatprep.subr.bf16.mxu0 %v3173
    %4748 = vmatpush1.bf16.msra.mxu0 %v3172
    %4749 = vmatprep.subr.bf16.mxu0 0
    %4750 = vmatpush1.bf16.msra.mxu0 0
    %4751 = vmatprep.subr.bf16.mxu0 0
    %4752 = vmatpush1.bf16.msra.mxu0 0
    %4753 = vmatprep.subr.bf16.mxu0 0
    %4754 = vmatpush1.bf16.msra.mxu0 0
    %4755 = vmatprep.subr.bf16.mxu0 0
    %4756 = vmatpush1.bf16.msra.mxu0 0
    %4757 = vmatprep.subr.bf16.mxu0 0
    %4758 = vmatpush1.bf16.msra.mxu0 0
    %4759 = vmatprep.subr.bf16.mxu0 0
    %4760 = vmatpush1.bf16.msra.mxu0 0
    %4761 = vmatprep.subr.bf16.mxu0 0
    %4762 = vmatpush1.bf16.msra.mxu0 0
    %4763 = vmatprep.subr.bf16.mxu0 0
    %4764 = vmatpush1.bf16.msra.mxu0 0
    %4765 = vmatprep.mubr.bf16.mxu0 0
    %4766 = vmatmul.mubr.bf16.gmra.mrb[0].mxu0 %v4453
    %v4767 = vpop.f32.mrb[0].mxu0
    %v4768 = vadd.f32 0.0, %v4767
    %v4769 = vpop.f32.mrb[0].mxu0
    %v4770 = vadd.f32 0.0, %v4769
    %v4771 = vpop.f32.mrb[0].mxu0
    %v4772 = vpop.f32.mrb[0].mxu0
    %4773 = vdwg.mxu0
    %4774 = vmatprep.subr.bf16.mxu0 %v3280
    %4775 = vmatpush1.bf16.msra.mxu0 %v3279
    %4776 = vmatprep.subr.bf16.mxu0 %v3282
    %4777 = vmatpush1.bf16.msra.mxu0 %v3281
    %4778 = vmatprep.subr.bf16.mxu0 %v3284
    %4779 = vmatpush1.bf16.msra.mxu0 %v3283
    %4780 = vmatprep.subr.bf16.mxu0 %v3286
    %4781 = vmatpush1.bf16.msra.mxu0 %v3285
    %4782 = vmatprep.subr.bf16.mxu0 %v3288
    %4783 = vmatpush1.bf16.msra.mxu0 %v3287
    %4784 = vmatprep.subr.bf16.mxu0 %v3290
    %4785 = vmatpush1.bf16.msra.mxu0 %v3289
    %4786 = vmatprep.subr.bf16.mxu0 %v3292
    %4787 = vmatpush1.bf16.msra.mxu0 %v3291
    %4788 = vmatprep.subr.bf16.mxu0 %v3294
    %4789 = vmatpush1.bf16.msra.mxu0 %v3293
    %4790 = vmatprep.subr.bf16.mxu0 0
    %4791 = vmatpush1.bf16.msra.mxu0 0
    %4792 = vmatprep.subr.bf16.mxu0 0
    %4793 = vmatpush1.bf16.msra.mxu0 0
    %4794 = vmatprep.subr.bf16.mxu0 0
    %4795 = vmatpush1.bf16.msra.mxu0 0
    %4796 = vmatprep.subr.bf16.mxu0 0
    %4797 = vmatpush1.bf16.msra.mxu0 0
    %4798 = vmatprep.subr.bf16.mxu0 0
    %4799 = vmatpush1.bf16.msra.mxu0 0
    %4800 = vmatprep.subr.bf16.mxu0 0
    %4801 = vmatpush1.bf16.msra.mxu0 0
    %4802 = vmatprep.subr.bf16.mxu0 0
    %4803 = vmatpush1.bf16.msra.mxu0 0
    %4804 = vmatprep.subr.bf16.mxu0 0
    %4805 = vmatpush1.bf16.msra.mxu0 0
    %4806 = vmatprep.mubr.bf16.mxu0 0
    %4807 = vmatmul.mubr.bf16.gmra.mrb[0].mxu0 %v4732
    %v4808 = vpop.f32.mrb[0].mxu0
    %v4809 = vadd.f32 %v4768, %v4808
    %v4810 = vpop.f32.mrb[0].mxu0
    %v4811 = vadd.f32 %v4770, %v4810
    %v4812 = vpop.f32.mrb[0].mxu0
    %v4813 = vpop.f32.mrb[0].mxu0
    %4814 = vdwg.mxu0
    %4815 = vmatprep.subr.bf16.mxu0 %v3401
    %4816 = vmatpush1.bf16.msra.mxu0 %v3400
    %4817 = vmatprep.subr.bf16.mxu0 %v3403
    %4818 = vmatpush1.bf16.msra.mxu0 %v3402
    %4819 = vmatprep.subr.bf16.mxu0 %v3405
    %4820 = vmatpush1.bf16.msra.mxu0 %v3404
    %4821 = vmatprep.subr.bf16.mxu0 %v3407
    %4822 = vmatpush1.bf16.msra.mxu0 %v3406
    %4823 = vmatprep.subr.bf16.mxu0 %v3409
    %4824 = vmatpush1.bf16.msra.mxu0 %v3408
    %4825 = vmatprep.subr.bf16.mxu0 %v3411
    %4826 = vmatpush1.bf16.msra.mxu0 %v3410
    %4827 = vmatprep.subr.bf16.mxu0 %v3413
    %4828 = vmatpush1.bf16.msra.mxu0 %v3412
    %4829 = vmatprep.subr.bf16.mxu0 %v3415
    %4830 = vmatpush1.bf16.msra.mxu0 %v3414
    %4831 = vmatprep.subr.bf16.mxu0 0
    %4832 = vmatpush1.bf16.msra.mxu0 0
    %4833 = vmatprep.subr.bf16.mxu0 0
    %4834 = vmatpush1.bf16.msra.mxu0 0
    %4835 = vmatprep.subr.bf16.mxu0 0
    %4836 = vmatpush1.bf16.msra.mxu0 0
    %4837 = vmatprep.subr.bf16.mxu0 0
    %4838 = vmatpush1.bf16.msra.mxu0 0
    %4839 = vmatprep.subr.bf16.mxu0 0
    %4840 = vmatpush1.bf16.msra.mxu0 0
    %4841 = vmatprep.subr.bf16.mxu0 0
    %4842 = vmatpush1.bf16.msra.mxu0 0
    %4843 = vmatprep.subr.bf16.mxu0 0
    %4844 = vmatpush1.bf16.msra.mxu0 0
    %4845 = vmatprep.subr.bf16.mxu0 0
    %4846 = vmatpush1.bf16.msra.mxu0 0
    %4847 = vmatprep.mubr.bf16.mxu0 0
    %4848 = vmatmul.mubr.bf16.gmra.mrb[0].mxu0 %v4366
    %v4849 = vpop.f32.mrb[0].mxu0
    %v4850 = vadd.f32 0.0, %v4849
    %v4851 = vpop.f32.mrb[0].mxu0
    %v4852 = vadd.f32 0.0, %v4851
    %v4853 = vpop.f32.mrb[0].mxu0
    %v4854 = vpop.f32.mrb[0].mxu0
    %4855 = vdwg.mxu0
    %v4856 = vadd.f32 %v4809, %v4850
    %v4857 = vadd.f32 %v4811, %v4852
    %v4858 = vadd.f32 %v4856, %v3479
    %v4859 = vadd.f32 %v4857, %v3483
    %s4860 = scalar_lea.vmem [#allocation9], 48
    %4861 = vst [vmem:[%s4860] sm:$0xff] %v4858
    %4862 = vst [vmem:[%s4860 + $0x8] sm:$0xff] %v4859
    %s4863 = sld [smem:[#allocation4 + $0x3]]
    %p4864 = scmp.eq.s32.totalorder %s4863, 0
    // Predicated region
    $region58: #{seq2seq_forward.1} parent=1 // pred_check
      %p4865 = pneg %p4864
    $region59: #{seq2seq_forward.1} parent=1 // pred_check_branch
      %4867 = sbr.rel (%p4865) target = $region61
    $region60: #{seq2seq_forward.1} parent=1 // pred_region
      %v4868 = vlaneseq
      %v4869 = vand.u32 %v4868, 127
      %v4870 = vadd.s32 %v4869, 128
      %v4871 = vmax.f32 %v4858, %v4859
      %4872 = vmax.xlane.f32.xlu0 %v4871
      %v4873 = vpop.xlane.xlu0 %4872
      %vm4874 = vcmp.ge.f32.partialorder %v4858, %v4873
      %vm4875 = vcmp.ge.f32.partialorder %v4859, %v4873
      %v4876 = vsel %vm4874, %v4869, 256
      %v4877 = vsel %vm4875, %v4870, 256
      %vm4878 = vcmp.lt.s32.totalorder %v4876, %v4877
      %v4879 = vsel %vm4878, %v4876, %v4877
      %v4880 = vand.u32 %v4879, 65535
      %v4881 = vshra.s32 %v4879, 16
      %v4882 = vcvt.s32.f32 %v4880
      %v4883 = vcvt.s32.f32 %v4881
      %4884 = vmin.xlane.f32.xlu0 %v4883
      %v4885 = vpop.xlane.xlu0 %4884
      %vm4886 = vcmp.eq.f32.partialorder %v4883, %v4885
      %v4887 = vsel %vm4886, %v4882, inf
      %4888 = vmin.xlane.f32.xlu0 %v4887
      %v4889 = vpop.xlane.xlu0 %4888
      %v4890 = vcvt.f32.s32 %v4889
      %v4891 = vcvt.f32.s32 %v4885
      %v4892 = vshll.u32 %v4891, 16
      %v4893 = vadd.s32 %v4892, %v4890
      %vm4894 = vcmp.eq.s32.totalorder %v4869, %v4893
      %vm4895 = vcmp.eq.s32.totalorder %v4870, %v4893
      %v4896 = vsel %vm4894, 1, 0
      %v4897 = vsel %vm4895, 1, 0
      %v4898 = vcvt.s32.f32 %v4896
      %v4899 = vcvt.s32.f32 %v4897
      %v4900 = vpack.c.bf16 %v4898, %v4898
      %v4901 = vpack.c.bf16 %v4899, %v4899
      %v4934 = vunpack.c.l.b16 %v2205
      %v4935 = vunpack.c.l.b16 %v2206
      %v4936 = vunpack.c.l.b16 %v2207
      %v4937 = vunpack.c.l.b16 %v2208
      %v4938 = vunpack.c.l.b16 %v2209
      %v4939 = vunpack.c.l.b16 %v2210
      %v4940 = vunpack.c.l.b16 %v2211
      %v4941 = vunpack.c.l.b16 %v2212
      %v4942 = vunpack.c.l.b16 %v2213
      %v4943 = vunpack.c.l.b16 %v2214
      %v4944 = vunpack.c.l.b16 %v2215
      %v4945 = vunpack.c.l.b16 %v2216
      %v4946 = vunpack.c.l.b16 %v2217
      %v4947 = vunpack.c.l.b16 %v2218
      %v4948 = vunpack.c.l.b16 %v2219
      %v4949 = vunpack.c.l.b16 %v2220
      %v4950 = vunpack.c.l.b16 %v2221
      %v4951 = vunpack.c.l.b16 %v2222
      %v4952 = vunpack.c.l.b16 %v2223
      %v4953 = vunpack.c.l.b16 %v2224
      %v4954 = vunpack.c.l.b16 %v2225
      %v4955 = vunpack.c.l.b16 %v2226
      %v4956 = vunpack.c.l.b16 %v2227
      %v4957 = vunpack.c.l.b16 %v2228
      %v4958 = vunpack.c.l.b16 %v2229
      %v4959 = vunpack.c.l.b16 %v2230
      %v4960 = vunpack.c.l.b16 %v2231
      %v4961 = vunpack.c.l.b16 %v2232
      %v4962 = vunpack.c.l.b16 %v2233
      %v4963 = vunpack.c.l.b16 %v2234
      %v4964 = vunpack.c.l.b16 %v2235
      %v4965 = vunpack.c.l.b16 %v2236
      %v4966 = vpack.c.b16 %v4935, %v4934
      %v4967 = vpack.c.b16 %v4937, %v4936
      %v4968 = vpack.c.b16 %v4939, %v4938
      %v4969 = vpack.c.b16 %v4941, %v4940
      %v4970 = vpack.c.b16 %v4943, %v4942
      %v4971 = vpack.c.b16 %v4945, %v4944
      %v4972 = vpack.c.b16 %v4947, %v4946
      %v4973 = vpack.c.b16 %v4949, %v4948
      %v4974 = vpack.c.b16 %v4951, %v4950
      %v4975 = vpack.c.b16 %v4953, %v4952
      %v4976 = vpack.c.b16 %v4955, %v4954
      %v4977 = vpack.c.b16 %v4957, %v4956
      %v4978 = vpack.c.b16 %v4959, %v4958
      %v4979 = vpack.c.b16 %v4961, %v4960
      %v4980 = vpack.c.b16 %v4963, %v4962
      %v4981 = vpack.c.b16 %v4965, %v4964
      %4998 = vmatprep.subr.bf16.mxu0 0
      %4999 = vmatpush1.bf16.msra.mxu0 %v4966
      %5000 = vmatprep.subr.bf16.mxu0 0
      %5001 = vmatpush1.bf16.msra.mxu0 %v4967
      %5002 = vmatprep.subr.bf16.mxu0 0
      %5003 = vmatpush1.bf16.msra.mxu0 %v4968
      %5004 = vmatprep.subr.bf16.mxu0 0
      %5005 = vmatpush1.bf16.msra.mxu0 %v4969
      %5006 = vmatprep.subr.bf16.mxu0 0
      %5007 = vmatpush1.bf16.msra.mxu0 %v4970
      %5008 = vmatprep.subr.bf16.mxu0 0
      %5009 = vmatpush1.bf16.msra.mxu0 %v4971
      %5010 = vmatprep.subr.bf16.mxu0 0
      %5011 = vmatpush1.bf16.msra.mxu0 %v4972
      %5012 = vmatprep.subr.bf16.mxu0 0
      %5013 = vmatpush1.bf16.msra.mxu0 %v4973
      %5014 = vmatprep.subr.bf16.mxu0 0
      %5015 = vmatpush1.bf16.msra.mxu0 %v4974
      %5016 = vmatprep.subr.bf16.mxu0 0
      %5017 = vmatpush1.bf16.msra.mxu0 %v4975
      %5018 = vmatprep.subr.bf16.mxu0 0
      %5019 = vmatpush1.bf16.msra.mxu0 %v4976
      %5020 = vmatprep.subr.bf16.mxu0 0
      %5021 = vmatpush1.bf16.msra.mxu0 %v4977
      %5022 = vmatprep.subr.bf16.mxu0 0
      %5023 = vmatpush1.bf16.msra.mxu0 %v4978
      %5024 = vmatprep.subr.bf16.mxu0 0
      %5025 = vmatpush1.bf16.msra.mxu0 %v4979
      %5026 = vmatprep.subr.bf16.mxu0 0
      %5027 = vmatpush1.bf16.msra.mxu0 %v4980
      %5028 = vmatprep.subr.bf16.mxu0 0
      %5029 = vmatpush1.bf16.msra.mxu0 %v4981
      %5030 = vmatprep.mubr.bf16.mxu0 %v4901
      %5031 = vmatmul.mubr.bf16.gmra.mrb[0].mxu0 %v4900
      %v5032 = vpop.f32.mrb[0].mxu0
      %v5033 = vadd.f32 0.0, %v5032
      %v5034 = vpop.f32.mrb[0].mxu0
      %v5035 = vpop.f32.mrb[0].mxu0
      %v5036 = vpop.f32.mrb[0].mxu0
      %5037 = vdwg.mxu0
      %5038 = vst [vmem:[#allocation3] sm:$0xff] %v5033
    $region61: #{seq2seq_forward.1} parent=1 // pred_fallthru
      _
    %s5039 = sld [smem:[#allocation4 + $0x3]]
    %p5040 = scmp.ne.s32.totalorder %s5039, 0
    %s5041 = scalar_select %p5040, 1, 0
    %s5042 = scvt.s32.f32 %s5041
    %s5043 = scalar_lea.vmem %s2, 24
    %v5044 = vld [vmem:[%s5043] sm:$0xff]
    %v5045 = vstv %s5042
    %v5046 = vmul.f32 %v5045, %v5044
    %s5047 = ssub.f32 1.0, %s5042
    %v5048 = vld [vmem:[#allocation3] sm:$0xff]
    %v5049 = vstv %s5047
    %v5050 = vmul.f32 %v5049, %v5048
    %v5051 = vadd.f32 %v5046, %v5050
    %v5052 = vpack.c.bf16 %v5051, %v5051
    %v5053 = vmul.f32 %v2051, %v4731
    %v5054 = vmul.f32 %v2052, %v4731
    %v5055 = vmul.f32 %v2053, %v4731
    %v5056 = vmul.f32 %v2054, %v4731
    %v5057 = vmul.f32 %v2055, %v4731
    %v5058 = vmul.f32 %v2056, %v4731
    %v5059 = vmul.f32 %v2057, %v4731
    %v5060 = vmul.f32 %v2058, %v4731
    %5061 = vadd.xlane.f32.xlu0 %v5053
    %v5062 = vpop.xlane.xlu0 %5061
    %5063 = vadd.xlane.f32.xlu0 %v5054
    %v5064 = vpop.xlane.xlu0 %5063
    %5065 = vadd.xlane.f32.xlu0 %v5055
    %v5066 = vpop.xlane.xlu0 %5065
    %5067 = vadd.xlane.f32.xlu0 %v5056
    %v5068 = vpop.xlane.xlu0 %5067
    %5069 = vadd.xlane.f32.xlu0 %v5057
    %v5070 = vpop.xlane.xlu0 %5069
    %5071 = vadd.xlane.f32.xlu0 %v5058
    %v5072 = vpop.xlane.xlu0 %5071
    %5073 = vadd.xlane.f32.xlu0 %v5059
    %v5074 = vpop.xlane.xlu0 %5073
    %5075 = vadd.xlane.f32.xlu0 %v5060
    %v5076 = vpop.xlane.xlu0 %5075
    %v5077 = vmax.f32 %v5062, %v5070
    %v5078 = vmax.f32 %v5064, %v5072
    %v5079 = vmax.f32 %v5066, %v5074
    %v5080 = vmax.f32 %v5068, %v5076
    %v5081 = vmax.f32 %v5077, %v5078
    %v5082 = vmax.f32 %v5079, %v5080
    %v5083 = vmax.f32 %v5081, %v5082
    %v5084 = vsub.f32 %v5062, %v5083
    %v5085 = vsub.f32 %v5064, %v5083
    %v5086 = vsub.f32 %v5066, %v5083
    %v5087 = vsub.f32 %v5068, %v5083
    %v5088 = vsub.f32 %v5070, %v5083
    %v5089 = vsub.f32 %v5072, %v5083
    %v5090 = vsub.f32 %v5074, %v5083
    %v5091 = vsub.f32 %v5076, %v5083
    %v5092 = vmul.f32 %v5084, 1.442695
    %v5093 = vpow.pop %v5092
    %v5094 = vmul.f32 %v5085, 1.442695
    %v5095 = vpow.pop %v5094
    %v5096 = vmul.f32 %v5086, 1.442695
    %v5097 = vpow.pop %v5096
    %v5098 = vmul.f32 %v5087, 1.442695
    %v5099 = vpow.pop %v5098
    %v5100 = vmul.f32 %v5088, 1.442695
    %v5101 = vpow.pop %v5100
    %v5102 = vmul.f32 %v5089, 1.442695
    %v5103 = vpow.pop %v5102
    %v5104 = vmul.f32 %v5090, 1.442695
    %v5105 = vpow.pop %v5104
    %v5106 = vmul.f32 %v5091, 1.442695
    %v5107 = vpow.pop %v5106
    %v5108 = vadd.f32 %v5093, %v5095
    %v5109 = vadd.f32 %v5108, %v5097
    %v5110 = vadd.f32 %v5109, %v5099
    %v5111 = vadd.f32 %v5110, %v5101
    %v5112 = vadd.f32 %v5111, %v5103
    %v5113 = vadd.f32 %v5112, %v5105
    %v5114 = vadd.f32 %v5113, %v5107
    %v5115 = vrcp.pop %v5114
    %v5116 = vmul.f32 %v5093, %v5115
    %v5117 = vmul.f32 %v5095, %v5115
    %v5118 = vmul.f32 %v5097, %v5115
    %v5119 = vmul.f32 %v5099, %v5115
    %v5120 = vmul.f32 %v5101, %v5115
    %v5121 = vmul.f32 %v5103, %v5115
    %v5122 = vmul.f32 %v5105, %v5115
    %v5123 = vmul.f32 %v5107, %v5115
    %v5124 = vmul.f32 %v5116, %v2051
    %v5125 = vmul.f32 %v5117, %v2052
    %v5126 = vmul.f32 %v5118, %v2053
    %v5127 = vmul.f32 %v5119, %v2054
    %v5128 = vmul.f32 %v5120, %v2055
    %v5129 = vmul.f32 %v5121, %v2056
    %v5130 = vmul.f32 %v5122, %v2057
    %v5131 = vmul.f32 %v5123, %v2058
    %v5132 = vadd.f32 %v5124, %v5125
    %v5133 = vadd.f32 %v5132, %v5126
    %v5134 = vadd.f32 %v5133, %v5127
    %v5135 = vadd.f32 %v5134, %v5128
    %v5136 = vadd.f32 %v5135, %v5129
    %v5137 = vadd.f32 %v5136, %v5130
    %v5138 = vadd.f32 %v5137, %v5131
    %v5139 = vpack.c.bf16 %v5138, %v5138
    %5140 = vmatprep.subr.bf16.mxu0 %v2426
    %5141 = vmatpush1.bf16.msra.mxu0 %v2425
    %5142 = vmatprep.subr.bf16.mxu0 %v2430
    %5143 = vmatpush1.bf16.msra.mxu0 %v2429
    %5144 = vmatprep.subr.bf16.mxu0 %v2434
    %5145 = vmatpush1.bf16.msra.mxu0 %v2433
    %5146 = vmatprep.subr.bf16.mxu0 %v2438
    %5147 = vmatpush1.bf16.msra.mxu0 %v2437
    %5148 = vmatprep.subr.bf16.mxu0 %v2442
    %5149 = vmatpush1.bf16.msra.mxu0 %v2441
    %5150 = vmatprep.subr.bf16.mxu0 %v2446
    %5151 = vmatpush1.bf16.msra.mxu0 %v2445
    %5152 = vmatprep.subr.bf16.mxu0 %v2450
    %5153 = vmatpush1.bf16.msra.mxu0 %v2449
    %5154 = vmatprep.subr.bf16.mxu0 %v2454
    %5155 = vmatpush1.bf16.msra.mxu0 %v2453
    %5156 = vmatprep.subr.bf16.mxu0 0
    %5157 = vmatpush1.bf16.msra.mxu0 0
    %5158 = vmatprep.subr.bf16.mxu0 0
    %5159 = vmatpush1.bf16.msra.mxu0 0
    %5160 = vmatprep.subr.bf16.mxu0 0
    %5161 = vmatpush1.bf16.msra.mxu0 0
    %5162 = vmatprep.subr.bf16.mxu0 0
    %5163 = vmatpush1.bf16.msra.mxu0 0
    %5164 = vmatprep.subr.bf16.mxu0 0
    %5165 = vmatpush1.bf16.msra.mxu0 0
    %5166 = vmatprep.subr.bf16.mxu0 0
    %5167 = vmatpush1.bf16.msra.mxu0 0
    %5168 = vmatprep.subr.bf16.mxu0 0
    %5169 = vmatpush1.bf16.msra.mxu0 0
    %5170 = vmatprep.subr.bf16.mxu0 0
    %5171 = vmatpush1.bf16.msra.mxu0 0
    %5172 = vmatprep.mubr.bf16.mxu0 0
    %5173 = vmatmul.mubr.bf16.gmra.mrb[0].mxu0 %v5139
    %v5174 = vpop.f32.mrb[0].mxu0
    %v5175 = vadd.f32 0.0, %v5174
    %v5176 = vpop.f32.mrb[0].mxu0
    %v5177 = vadd.f32 0.0, %v5176
    %v5178 = vpop.f32.mrb[0].mxu0
    %v5179 = vpop.f32.mrb[0].mxu0
    %5180 = vdwg.mxu0
    %5181 = vmatprep.subr.bf16.mxu0 %v2428
    %5182 = vmatpush1.bf16.msra.mxu0 %v2427
    %5183 = vmatprep.subr.bf16.mxu0 %v2432
    %5184 = vmatpush1.bf16.msra.mxu0 %v2431
    %5185 = vmatprep.subr.bf16.mxu0 %v2436
    %5186 = vmatpush1.bf16.msra.mxu0 %v2435
    %5187 = vmatprep.subr.bf16.mxu0 %v2440
    %5188 = vmatpush1.bf16.msra.mxu0 %v2439
    %5189 = vmatprep.subr.bf16.mxu0 %v2444
    %5190 = vmatpush1.bf16.msra.mxu0 %v2443
    %5191 = vmatprep.subr.bf16.mxu0 %v2448
    %5192 = vmatpush1.bf16.msra.mxu0 %v2447
    %5193 = vmatprep.subr.bf16.mxu0 %v2452
    %5194 = vmatpush1.bf16.msra.mxu0 %v2451
    %5195 = vmatprep.subr.bf16.mxu0 %v2456
    %5196 = vmatpush1.bf16.msra.mxu0 %v2455
    %5197 = vmatprep.subr.bf16.mxu0 0
    %5198 = vmatpush1.bf16.msra.mxu0 0
    %5199 = vmatprep.subr.bf16.mxu0 0
    %5200 = vmatpush1.bf16.msra.mxu0 0
    %5201 = vmatprep.subr.bf16.mxu0 0
    %5202 = vmatpush1.bf16.msra.mxu0 0
    %5203 = vmatprep.subr.bf16.mxu0 0
    %5204 = vmatpush1.bf16.msra.mxu0 0
    %5205 = vmatprep.subr.bf16.mxu0 0
    %5206 = vmatpush1.bf16.msra.mxu0 0
    %5207 = vmatprep.subr.bf16.mxu0 0
    %5208 = vmatpush1.bf16.msra.mxu0 0
    %5209 = vmatprep.subr.bf16.mxu0 0
    %5210 = vmatpush1.bf16.msra.mxu0 0
    %5211 = vmatprep.subr.bf16.mxu0 0
    %5212 = vmatpush1.bf16.msra.mxu0 0
    %5213 = vmatprep.mubr.bf16.mxu0 0
    %5214 = vmatmul.mubr.bf16.gmra.mrb[0].mxu0 %v5139
    %v5215 = vpop.f32.mrb[0].mxu0
    %v5216 = vadd.f32 0.0, %v5215
    %v5217 = vpop.f32.mrb[0].mxu0
    %v5218 = vadd.f32 0.0, %v5217
    %v5219 = vpop.f32.mrb[0].mxu0
    %v5220 = vpop.f32.mrb[0].mxu0
    %5221 = vdwg.mxu0
    %5222 = vmatprep.subr.bf16.mxu0 %v2668
    %5223 = vmatpush1.bf16.msra.mxu0 %v2667
    %5224 = vmatprep.subr.bf16.mxu0 %v2672
    %5225 = vmatpush1.bf16.msra.mxu0 %v2671
    %5226 = vmatprep.subr.bf16.mxu0 %v2676
    %5227 = vmatpush1.bf16.msra.mxu0 %v2675
    %5228 = vmatprep.subr.bf16.mxu0 %v2680
    %5229 = vmatpush1.bf16.msra.mxu0 %v2679
    %5230 = vmatprep.subr.bf16.mxu0 %v2684
    %5231 = vmatpush1.bf16.msra.mxu0 %v2683
    %5232 = vmatprep.subr.bf16.mxu0 %v2688
    %5233 = vmatpush1.bf16.msra.mxu0 %v2687
    %5234 = vmatprep.subr.bf16.mxu0 %v2692
    %5235 = vmatpush1.bf16.msra.mxu0 %v2691
    %5236 = vmatprep.subr.bf16.mxu0 %v2696
    %5237 = vmatpush1.bf16.msra.mxu0 %v2695
    %5238 = vmatprep.subr.bf16.mxu0 0
    %5239 = vmatpush1.bf16.msra.mxu0 0
    %5240 = vmatprep.subr.bf16.mxu0 0
    %5241 = vmatpush1.bf16.msra.mxu0 0
    %5242 = vmatprep.subr.bf16.mxu0 0
    %5243 = vmatpush1.bf16.msra.mxu0 0
    %5244 = vmatprep.subr.bf16.mxu0 0
    %5245 = vmatpush1.bf16.msra.mxu0 0
    %5246 = vmatprep.subr.bf16.mxu0 0
    %5247 = vmatpush1.bf16.msra.mxu0 0
    %5248 = vmatprep.subr.bf16.mxu0 0
    %5249 = vmatpush1.bf16.msra.mxu0 0
    %5250 = vmatprep.subr.bf16.mxu0 0
    %5251 = vmatpush1.bf16.msra.mxu0 0
    %5252 = vmatprep.subr.bf16.mxu0 0
    %5253 = vmatpush1.bf16.msra.mxu0 0
    %5254 = vmatprep.mubr.bf16.mxu0 0
    %5255 = vmatmul.mubr.bf16.gmra.mrb[0].mxu0 %v5052
    %v5256 = vpop.f32.mrb[0].mxu0
    %v5257 = vadd.f32 %v5175, %v5256
    %v5258 = vpop.f32.mrb[0].mxu0
    %v5259 = vadd.f32 %v5177, %v5258
    %v5260 = vpop.f32.mrb[0].mxu0
    %v5261 = vpop.f32.mrb[0].mxu0
    %5262 = vdwg.mxu0
    %5263 = vmatprep.subr.bf16.mxu0 %v2670
    %5264 = vmatpush1.bf16.msra.mxu0 %v2669
    %5265 = vmatprep.subr.bf16.mxu0 %v2674
    %5266 = vmatpush1.bf16.msra.mxu0 %v2673
    %5267 = vmatprep.subr.bf16.mxu0 %v2678
    %5268 = vmatpush1.bf16.msra.mxu0 %v2677
    %5269 = vmatprep.subr.bf16.mxu0 %v2682
    %5270 = vmatpush1.bf16.msra.mxu0 %v2681
    %5271 = vmatprep.subr.bf16.mxu0 %v2686
    %5272 = vmatpush1.bf16.msra.mxu0 %v2685
    %5273 = vmatprep.subr.bf16.mxu0 %v2690
    %5274 = vmatpush1.bf16.msra.mxu0 %v2689
    %5275 = vmatprep.subr.bf16.mxu0 %v2694
    %5276 = vmatpush1.bf16.msra.mxu0 %v2693
    %5277 = vmatprep.subr.bf16.mxu0 %v2698
    %5278 = vmatpush1.bf16.msra.mxu0 %v2697
    %5279 = vmatprep.subr.bf16.mxu0 0
    %5280 = vmatpush1.bf16.msra.mxu0 0
    %5281 = vmatprep.subr.bf16.mxu0 0
    %5282 = vmatpush1.bf16.msra.mxu0 0
    %5283 = vmatprep.subr.bf16.mxu0 0
    %5284 = vmatpush1.bf16.msra.mxu0 0
    %5285 = vmatprep.subr.bf16.mxu0 0
    %5286 = vmatpush1.bf16.msra.mxu0 0
    %5287 = vmatprep.subr.bf16.mxu0 0
    %5288 = vmatpush1.bf16.msra.mxu0 0
    %5289 = vmatprep.subr.bf16.mxu0 0
    %5290 = vmatpush1.bf16.msra.mxu0 0
    %5291 = vmatprep.subr.bf16.mxu0 0
    %5292 = vmatpush1.bf16.msra.mxu0 0
    %5293 = vmatprep.subr.bf16.mxu0 0
    %5294 = vmatpush1.bf16.msra.mxu0 0
    %5295 = vmatprep.mubr.bf16.mxu0 0
    %5296 = vmatmul.mubr.bf16.gmra.mrb[0].mxu0 %v5052
    %v5297 = vpop.f32.mrb[0].mxu0
    %v5298 = vadd.f32 %v5216, %v5297
    %v5299 = vpop.f32.mrb[0].mxu0
    %v5300 = vadd.f32 %v5218, %v5299
    %v5301 = vpop.f32.mrb[0].mxu0
    %v5302 = vpop.f32.mrb[0].mxu0
    %5303 = vdwg.mxu0
    %5304 = vmatprep.subr.bf16.mxu0 %v2911
    %5305 = vmatpush1.bf16.msra.mxu0 %v2910
    %5306 = vmatprep.subr.bf16.mxu0 %v2915
    %5307 = vmatpush1.bf16.msra.mxu0 %v2914
    %5308 = vmatprep.subr.bf16.mxu0 %v2919
    %5309 = vmatpush1.bf16.msra.mxu0 %v2918
    %5310 = vmatprep.subr.bf16.mxu0 %v2923
    %5311 = vmatpush1.bf16.msra.mxu0 %v2922
    %5312 = vmatprep.subr.bf16.mxu0 %v2927
    %5313 = vmatpush1.bf16.msra.mxu0 %v2926
    %5314 = vmatprep.subr.bf16.mxu0 %v2931
    %5315 = vmatpush1.bf16.msra.mxu0 %v2930
    %5316 = vmatprep.subr.bf16.mxu0 %v2935
    %5317 = vmatpush1.bf16.msra.mxu0 %v2934
    %5318 = vmatprep.subr.bf16.mxu0 %v2939
    %5319 = vmatpush1.bf16.msra.mxu0 %v2938
    %5320 = vmatprep.subr.bf16.mxu0 0
    %5321 = vmatpush1.bf16.msra.mxu0 0
    %5322 = vmatprep.subr.bf16.mxu0 0
    %5323 = vmatpush1.bf16.msra.mxu0 0
    %5324 = vmatprep.subr.bf16.mxu0 0
    %5325 = vmatpush1.bf16.msra.mxu0 0
    %5326 = vmatprep.subr.bf16.mxu0 0
    %5327 = vmatpush1.bf16.msra.mxu0 0
    %5328 = vmatprep.subr.bf16.mxu0 0
    %5329 = vmatpush1.bf16.msra.mxu0 0
    %5330 = vmatprep.subr.bf16.mxu0 0
    %5331 = vmatpush1.bf16.msra.mxu0 0
    %5332 = vmatprep.subr.bf16.mxu0 0
    %5333 = vmatpush1.bf16.msra.mxu0 0
    %5334 = vmatprep.subr.bf16.mxu0 0
    %5335 = vmatpush1.bf16.msra.mxu0 0
    %5336 = vmatprep.mubr.bf16.mxu0 0
    %5337 = vmatmul.mubr.bf16.gmra.mrb[0].mxu0 %v4732
    %v5338 = vpop.f32.mrb[0].mxu0
    %v5339 = vadd.f32 0.0, %v5338
    %v5340 = vpop.f32.mrb[0].mxu0
    %v5341 = vadd.f32 0.0, %v5340
    %v5342 = vpop.f32.mrb[0].mxu0
    %v5343 = vpop.f32.mrb[0].mxu0
    %5344 = vdwg.mxu0
    %5345 = vmatprep.subr.bf16.mxu0 %v2913
    %5346 = vmatpush1.bf16.msra.mxu0 %v2912
    %5347 = vmatprep.subr.bf16.mxu0 %v2917
    %5348 = vmatpush1.bf16.msra.mxu0 %v2916
    %5349 = vmatprep.subr.bf16.mxu0 %v2921
    %5350 = vmatpush1.bf16.msra.mxu0 %v2920
    %5351 = vmatprep.subr.bf16.mxu0 %v2925
    %5352 = vmatpush1.bf16.msra.mxu0 %v2924
    %5353 = vmatprep.subr.bf16.mxu0 %v2929
    %5354 = vmatpush1.bf16.msra.mxu0 %v2928
    %5355 = vmatprep.subr.bf16.mxu0 %v2933
    %5356 = vmatpush1.bf16.msra.mxu0 %v2932
    %5357 = vmatprep.subr.bf16.mxu0 %v2937
    %5358 = vmatpush1.bf16.msra.mxu0 %v2936
    %5359 = vmatprep.subr.bf16.mxu0 %v2941
    %5360 = vmatpush1.bf16.msra.mxu0 %v2940
    %5361 = vmatprep.subr.bf16.mxu0 0
    %5362 = vmatpush1.bf16.msra.mxu0 0
    %5363 = vmatprep.subr.bf16.mxu0 0
    %5364 = vmatpush1.bf16.msra.mxu0 0
    %5365 = vmatprep.subr.bf16.mxu0 0
    %5366 = vmatpush1.bf16.msra.mxu0 0
    %5367 = vmatprep.subr.bf16.mxu0 0
    %5368 = vmatpush1.bf16.msra.mxu0 0
    %5369 = vmatprep.subr.bf16.mxu0 0
    %5370 = vmatpush1.bf16.msra.mxu0 0
    %5371 = vmatprep.subr.bf16.mxu0 0
    %5372 = vmatpush1.bf16.msra.mxu0 0
    %5373 = vmatprep.subr.bf16.mxu0 0
    %5374 = vmatpush1.bf16.msra.mxu0 0
    %5375 = vmatprep.subr.bf16.mxu0 0
    %5376 = vmatpush1.bf16.msra.mxu0 0
    %5377 = vmatprep.mubr.bf16.mxu0 0
    %5378 = vmatmul.mubr.bf16.gmra.mrb[0].mxu0 %v4732
    %v5379 = vpop.f32.mrb[0].mxu0
    %v5380 = vadd.f32 0.0, %v5379
    %v5381 = vpop.f32.mrb[0].mxu0
    %v5382 = vadd.f32 0.0, %v5381
    %v5383 = vpop.f32.mrb[0].mxu0
    %v5384 = vpop.f32.mrb[0].mxu0
    %5385 = vdwg.mxu0
    %v5386 = vadd.f32 %v5257, %v5339
    %v5387 = vadd.f32 %v5259, %v5341
    %v5388 = vadd.f32 %v5298, %v5380
    %v5389 = vadd.f32 %v5300, %v5382
    %v5390 = vadd.f32 %v5386, %v3064
    %v5391 = vadd.f32 %v5387, %v3068
    %v5392 = vadd.f32 %v5388, %v3072
    %v5393 = vadd.f32 %v5389, %v3076
    %v5394 = vxor.u32 %v5390, 2147483648
    %v5395 = vmul.f32 %v5394, 1.442695
    %v5396 = vpow.pop %v5395
    %v5397 = vadd.f32 %v5396, 1.0
    %v5398 = vrcp.pop %v5397
    %v5399 = vmul.f32 1.0, %v5398
    %v5400 = vxor.u32 %v5391, 2147483648
    %v5401 = vmul.f32 %v5400, 1.442695
    %v5402 = vpow.pop %v5401
    %v5403 = vadd.f32 %v5402, 1.0
    %v5404 = vrcp.pop %v5403
    %v5405 = vmul.f32 1.0, %v5404
    %v5406 = vtanh.pop %v5392
    %v5407 = vxor.u32 %v5393, 2147483648
    %v5408 = vmul.f32 %v5407, 1.442695
    %v5409 = vpow.pop %v5408
    %v5410 = vadd.f32 %v5409, 1.0
    %v5411 = vrcp.pop %v5410
    %v5412 = vmul.f32 1.0, %v5411
    %v5413 = vmul.f32 %v5405, %v4729
    %v5414 = vmul.f32 %v5399, %v5406
    %v5415 = vadd.f32 %v5413, %v5414
    %v5416 = vtanh.pop %v5415
    %v5417 = vmul.f32 %v5412, %v5416
    %v5418 = vpack.c.bf16 %v5417, %v5417
    %5419 = vmatprep.subr.bf16.mxu0 %v3159
    %5420 = vmatpush1.bf16.msra.mxu0 %v3158
    %5421 = vmatprep.subr.bf16.mxu0 %v3161
    %5422 = vmatpush1.bf16.msra.mxu0 %v3160
    %5423 = vmatprep.subr.bf16.mxu0 %v3163
    %5424 = vmatpush1.bf16.msra.mxu0 %v3162
    %5425 = vmatprep.subr.bf16.mxu0 %v3165
    %5426 = vmatpush1.bf16.msra.mxu0 %v3164
    %5427 = vmatprep.subr.bf16.mxu0 %v3167
    %5428 = vmatpush1.bf16.msra.mxu0 %v3166
    %5429 = vmatprep.subr.bf16.mxu0 %v3169
    %5430 = vmatpush1.bf16.msra.mxu0 %v3168
    %5431 = vmatprep.subr.bf16.mxu0 %v3171
    %5432 = vmatpush1.bf16.msra.mxu0 %v3170
    %5433 = vmatprep.subr.bf16.mxu0 %v3173
    %5434 = vmatpush1.bf16.msra.mxu0 %v3172
    %5435 = vmatprep.subr.bf16.mxu0 0
    %5436 = vmatpush1.bf16.msra.mxu0 0
    %5437 = vmatprep.subr.bf16.mxu0 0
    %5438 = vmatpush1.bf16.msra.mxu0 0
    %5439 = vmatprep.subr.bf16.mxu0 0
    %5440 = vmatpush1.bf16.msra.mxu0 0
    %5441 = vmatprep.subr.bf16.mxu0 0
    %5442 = vmatpush1.bf16.msra.mxu0 0
    %5443 = vmatprep.subr.bf16.mxu0 0
    %5444 = vmatpush1.bf16.msra.mxu0 0
    %5445 = vmatprep.subr.bf16.mxu0 0
    %5446 = vmatpush1.bf16.msra.mxu0 0
    %5447 = vmatprep.subr.bf16.mxu0 0
    %5448 = vmatpush1.bf16.msra.mxu0 0
    %5449 = vmatprep.subr.bf16.mxu0 0
    %5450 = vmatpush1.bf16.msra.mxu0 0
    %5451 = vmatprep.mubr.bf16.mxu0 0
    %5452 = vmatmul.mubr.bf16.gmra.mrb[0].mxu0 %v5139
    %v5453 = vpop.f32.mrb[0].mxu0
    %v5454 = vadd.f32 0.0, %v5453
    %v5455 = vpop.f32.mrb[0].mxu0
    %v5456 = vadd.f32 0.0, %v5455
    %v5457 = vpop.f32.mrb[0].mxu0
    %v5458 = vpop.f32.mrb[0].mxu0
    %5459 = vdwg.mxu0
    %5460 = vmatprep.subr.bf16.mxu0 %v3280
    %5461 = vmatpush1.bf16.msra.mxu0 %v3279
    %5462 = vmatprep.subr.bf16.mxu0 %v3282
    %5463 = vmatpush1.bf16.msra.mxu0 %v3281
    %5464 = vmatprep.subr.bf16.mxu0 %v3284
    %5465 = vmatpush1.bf16.msra.mxu0 %v3283
    %5466 = vmatprep.subr.bf16.mxu0 %v3286
    %5467 = vmatpush1.bf16.msra.mxu0 %v3285
    %5468 = vmatprep.subr.bf16.mxu0 %v3288
    %5469 = vmatpush1.bf16.msra.mxu0 %v3287
    %5470 = vmatprep.subr.bf16.mxu0 %v3290
    %5471 = vmatpush1.bf16.msra.mxu0 %v3289
    %5472 = vmatprep.subr.bf16.mxu0 %v3292
    %5473 = vmatpush1.bf16.msra.mxu0 %v3291
    %5474 = vmatprep.subr.bf16.mxu0 %v3294
    %5475 = vmatpush1.bf16.msra.mxu0 %v3293
    %5476 = vmatprep.subr.bf16.mxu0 0
    %5477 = vmatpush1.bf16.msra.mxu0 0
    %5478 = vmatprep.subr.bf16.mxu0 0
    %5479 = vmatpush1.bf16.msra.mxu0 0
    %5480 = vmatprep.subr.bf16.mxu0 0
    %5481 = vmatpush1.bf16.msra.mxu0 0
    %5482 = vmatprep.subr.bf16.mxu0 0
    %5483 = vmatpush1.bf16.msra.mxu0 0
    %5484 = vmatprep.subr.bf16.mxu0 0
    %5485 = vmatpush1.bf16.msra.mxu0 0
    %5486 = vmatprep.subr.bf16.mxu0 0
    %5487 = vmatpush1.bf16.msra.mxu0 0
    %5488 = vmatprep.subr.bf16.mxu0 0
    %5489 = vmatpush1.bf16.msra.mxu0 0
    %5490 = vmatprep.subr.bf16.mxu0 0
    %5491 = vmatpush1.bf16.msra.mxu0 0
    %5492 = vmatprep.mubr.bf16.mxu0 0
    %5493 = vmatmul.mubr.bf16.gmra.mrb[0].mxu0 %v5418
    %v5494 = vpop.f32.mrb[0].mxu0
    %v5495 = vadd.f32 %v5454, %v5494
    %v5496 = vpop.f32.mrb[0].mxu0
    %v5497 = vadd.f32 %v5456, %v5496
    %v5498 = vpop.f32.mrb[0].mxu0
    %v5499 = vpop.f32.mrb[0].mxu0
    %5500 = vdwg.mxu0
    %5501 = vmatprep.subr.bf16.mxu0 %v3401
    %5502 = vmatpush1.bf16.msra.mxu0 %v3400
    %5503 = vmatprep.subr.bf16.mxu0 %v3403
    %5504 = vmatpush1.bf16.msra.mxu0 %v3402
    %5505 = vmatprep.subr.bf16.mxu0 %v3405
    %5506 = vmatpush1.bf16.msra.mxu0 %v3404
    %5507 = vmatprep.subr.bf16.mxu0 %v3407
    %5508 = vmatpush1.bf16.msra.mxu0 %v3406
    %5509 = vmatprep.subr.bf16.mxu0 %v3409
    %5510 = vmatpush1.bf16.msra.mxu0 %v3408
    %5511 = vmatprep.subr.bf16.mxu0 %v3411
    %5512 = vmatpush1.bf16.msra.mxu0 %v3410
    %5513 = vmatprep.subr.bf16.mxu0 %v3413
    %5514 = vmatpush1.bf16.msra.mxu0 %v3412
    %5515 = vmatprep.subr.bf16.mxu0 %v3415
    %5516 = vmatpush1.bf16.msra.mxu0 %v3414
    %5517 = vmatprep.subr.bf16.mxu0 0
    %5518 = vmatpush1.bf16.msra.mxu0 0
    %5519 = vmatprep.subr.bf16.mxu0 0
    %5520 = vmatpush1.bf16.msra.mxu0 0
    %5521 = vmatprep.subr.bf16.mxu0 0
    %5522 = vmatpush1.bf16.msra.mxu0 0
    %5523 = vmatprep.subr.bf16.mxu0 0
    %5524 = vmatpush1.bf16.msra.mxu0 0
    %5525 = vmatprep.subr.bf16.mxu0 0
    %5526 = vmatpush1.bf16.msra.mxu0 0
    %5527 = vmatprep.subr.bf16.mxu0 0
    %5528 = vmatpush1.bf16.msra.mxu0 0
    %5529 = vmatprep.subr.bf16.mxu0 0
    %5530 = vmatpush1.bf16.msra.mxu0 0
    %5531 = vmatprep.subr.bf16.mxu0 0
    %5532 = vmatpush1.bf16.msra.mxu0 0
    %5533 = vmatprep.mubr.bf16.mxu0 0
    %5534 = vmatmul.mubr.bf16.gmra.mrb[0].mxu0 %v5052
    %v5535 = vpop.f32.mrb[0].mxu0
    %v5536 = vadd.f32 0.0, %v5535
    %v5537 = vpop.f32.mrb[0].mxu0
    %v5538 = vadd.f32 0.0, %v5537
    %v5539 = vpop.f32.mrb[0].mxu0
    %v5540 = vpop.f32.mrb[0].mxu0
    %5541 = vdwg.mxu0
    %v5542 = vadd.f32 %v5495, %v5536
    %v5543 = vadd.f32 %v5497, %v5538
    %v5544 = vadd.f32 %v5542, %v3479
    %v5545 = vadd.f32 %v5543, %v3483
    %s5546 = scalar_lea.vmem [#allocation9], 64
    %5547 = vst [vmem:[%s5546] sm:$0xff] %v5544
    %5548 = vst [vmem:[%s5546 + $0x8] sm:$0xff] %v5545
    %s5549 = sld [smem:[#allocation4 + $0x4]]
    %p5550 = scmp.eq.s32.totalorder %s5549, 0
    // Predicated region
    $region62: #{seq2seq_forward.1} parent=1 // pred_check
      %p5551 = pneg %p5550
    $region63: #{seq2seq_forward.1} parent=1 // pred_check_branch
      %5553 = sbr.rel (%p5551) target = $region65
    $region64: #{seq2seq_forward.1} parent=1 // pred_region
      %v5554 = vlaneseq
      %v5555 = vand.u32 %v5554, 127
      %v5556 = vadd.s32 %v5555, 128
      %v5557 = vmax.f32 %v5544, %v5545
      %5558 = vmax.xlane.f32.xlu0 %v5557
      %v5559 = vpop.xlane.xlu0 %5558
      %vm5560 = vcmp.ge.f32.partialorder %v5544, %v5559
      %vm5561 = vcmp.ge.f32.partialorder %v5545, %v5559
      %v5562 = vsel %vm5560, %v5555, 256
      %v5563 = vsel %vm5561, %v5556, 256
      %vm5564 = vcmp.lt.s32.totalorder %v5562, %v5563
      %v5565 = vsel %vm5564, %v5562, %v5563
      %v5566 = vand.u32 %v5565, 65535
      %v5567 = vshra.s32 %v5565, 16
      %v5568 = vcvt.s32.f32 %v5566
      %v5569 = vcvt.s32.f32 %v5567
      %5570 = vmin.xlane.f32.xlu0 %v5569
      %v5571 = vpop.xlane.xlu0 %5570
      %vm5572 = vcmp.eq.f32.partialorder %v5569, %v5571
      %v5573 = vsel %vm5572, %v5568, inf
      %5574 = vmin.xlane.f32.xlu0 %v5573
      %v5575 = vpop.xlane.xlu0 %5574
      %v5576 = vcvt.f32.s32 %v5575
      %v5577 = vcvt.f32.s32 %v5571
      %v5578 = vshll.u32 %v5577, 16
      %v5579 = vadd.s32 %v5578, %v5576
      %vm5580 = vcmp.eq.s32.totalorder %v5555, %v5579
      %vm5581 = vcmp.eq.s32.totalorder %v5556, %v5579
      %v5582 = vsel %vm5580, 1, 0
      %v5583 = vsel %vm5581, 1, 0
      %v5584 = vcvt.s32.f32 %v5582
      %v5585 = vcvt.s32.f32 %v5583
      %v5586 = vpack.c.bf16 %v5584, %v5584
      %v5587 = vpack.c.bf16 %v5585, %v5585
      %v5620 = vunpack.c.l.b16 %v2205
      %v5621 = vunpack.c.l.b16 %v2206
      %v5622 = vunpack.c.l.b16 %v2207
      %v5623 = vunpack.c.l.b16 %v2208
      %v5624 = vunpack.c.l.b16 %v2209
      %v5625 = vunpack.c.l.b16 %v2210
      %v5626 = vunpack.c.l.b16 %v2211
      %v5627 = vunpack.c.l.b16 %v2212
      %v5628 = vunpack.c.l.b16 %v2213
      %v5629 = vunpack.c.l.b16 %v2214
      %v5630 = vunpack.c.l.b16 %v2215
      %v5631 = vunpack.c.l.b16 %v2216
      %v5632 = vunpack.c.l.b16 %v2217
      %v5633 = vunpack.c.l.b16 %v2218
      %v5634 = vunpack.c.l.b16 %v2219
      %v5635 = vunpack.c.l.b16 %v2220
      %v5636 = vunpack.c.l.b16 %v2221
      %v5637 = vunpack.c.l.b16 %v2222
      %v5638 = vunpack.c.l.b16 %v2223
      %v5639 = vunpack.c.l.b16 %v2224
      %v5640 = vunpack.c.l.b16 %v2225
      %v5641 = vunpack.c.l.b16 %v2226
      %v5642 = vunpack.c.l.b16 %v2227
      %v5643 = vunpack.c.l.b16 %v2228
      %v5644 = vunpack.c.l.b16 %v2229
      %v5645 = vunpack.c.l.b16 %v2230
      %v5646 = vunpack.c.l.b16 %v2231
      %v5647 = vunpack.c.l.b16 %v2232
      %v5648 = vunpack.c.l.b16 %v2233
      %v5649 = vunpack.c.l.b16 %v2234
      %v5650 = vunpack.c.l.b16 %v2235
      %v5651 = vunpack.c.l.b16 %v2236
      %v5652 = vpack.c.b16 %v5621, %v5620
      %v5653 = vpack.c.b16 %v5623, %v5622
      %v5654 = vpack.c.b16 %v5625, %v5624
      %v5655 = vpack.c.b16 %v5627, %v5626
      %v5656 = vpack.c.b16 %v5629, %v5628
      %v5657 = vpack.c.b16 %v5631, %v5630
      %v5658 = vpack.c.b16 %v5633, %v5632
      %v5659 = vpack.c.b16 %v5635, %v5634
      %v5660 = vpack.c.b16 %v5637, %v5636
      %v5661 = vpack.c.b16 %v5639, %v5638
      %v5662 = vpack.c.b16 %v5641, %v5640
      %v5663 = vpack.c.b16 %v5643, %v5642
      %v5664 = vpack.c.b16 %v5645, %v5644
      %v5665 = vpack.c.b16 %v5647, %v5646
      %v5666 = vpack.c.b16 %v5649, %v5648
      %v5667 = vpack.c.b16 %v5651, %v5650
      %5684 = vmatprep.subr.bf16.mxu0 0
      %5685 = vmatpush1.bf16.msra.mxu0 %v5652
      %5686 = vmatprep.subr.bf16.mxu0 0
      %5687 = vmatpush1.bf16.msra.mxu0 %v5653
      %5688 = vmatprep.subr.bf16.mxu0 0
      %5689 = vmatpush1.bf16.msra.mxu0 %v5654
      %5690 = vmatprep.subr.bf16.mxu0 0
      %5691 = vmatpush1.bf16.msra.mxu0 %v5655
      %5692 = vmatprep.subr.bf16.mxu0 0
      %5693 = vmatpush1.bf16.msra.mxu0 %v5656
      %5694 = vmatprep.subr.bf16.mxu0 0
      %5695 = vmatpush1.bf16.msra.mxu0 %v5657
      %5696 = vmatprep.subr.bf16.mxu0 0
      %5697 = vmatpush1.bf16.msra.mxu0 %v5658
      %5698 = vmatprep.subr.bf16.mxu0 0
      %5699 = vmatpush1.bf16.msra.mxu0 %v5659
      %5700 = vmatprep.subr.bf16.mxu0 0
      %5701 = vmatpush1.bf16.msra.mxu0 %v5660
      %5702 = vmatprep.subr.bf16.mxu0 0
      %5703 = vmatpush1.bf16.msra.mxu0 %v5661
      %5704 = vmatprep.subr.bf16.mxu0 0
      %5705 = vmatpush1.bf16.msra.mxu0 %v5662
      %5706 = vmatprep.subr.bf16.mxu0 0
      %5707 = vmatpush1.bf16.msra.mxu0 %v5663
      %5708 = vmatprep.subr.bf16.mxu0 0
      %5709 = vmatpush1.bf16.msra.mxu0 %v5664
      %5710 = vmatprep.subr.bf16.mxu0 0
      %5711 = vmatpush1.bf16.msra.mxu0 %v5665
      %5712 = vmatprep.subr.bf16.mxu0 0
      %5713 = vmatpush1.bf16.msra.mxu0 %v5666
      %5714 = vmatprep.subr.bf16.mxu0 0
      %5715 = vmatpush1.bf16.msra.mxu0 %v5667
      %5716 = vmatprep.mubr.bf16.mxu0 %v5587
      %5717 = vmatmul.mubr.bf16.gmra.mrb[0].mxu0 %v5586
      %v5718 = vpop.f32.mrb[0].mxu0
      %v5719 = vadd.f32 0.0, %v5718
      %v5720 = vpop.f32.mrb[0].mxu0
      %v5721 = vpop.f32.mrb[0].mxu0
      %v5722 = vpop.f32.mrb[0].mxu0
      %5723 = vdwg.mxu0
      %5724 = vst [vmem:[#allocation3] sm:$0xff] %v5719
    $region65: #{seq2seq_forward.1} parent=1 // pred_fallthru
      _
    %s5725 = sld [smem:[#allocation4 + $0x4]]
    %p5726 = scmp.ne.s32.totalorder %s5725, 0
    %s5727 = scalar_select %p5726, 1, 0
    %s5728 = scvt.s32.f32 %s5727
    %s5729 = scalar_lea.vmem %s2, 32
    %v5730 = vld [vmem:[%s5729] sm:$0xff]
    %v5731 = vstv %s5728
    %v5732 = vmul.f32 %v5731, %v5730
    %s5733 = ssub.f32 1.0, %s5728
    %v5734 = vld [vmem:[#allocation3] sm:$0xff]
    %v5735 = vstv %s5733
    %v5736 = vmul.f32 %v5735, %v5734
    %v5737 = vadd.f32 %v5732, %v5736
    %v5738 = vpack.c.bf16 %v5737, %v5737
    %v5739 = vmul.f32 %v2051, %v5417
    %v5740 = vmul.f32 %v2052, %v5417
    %v5741 = vmul.f32 %v2053, %v5417
    %v5742 = vmul.f32 %v2054, %v5417
    %v5743 = vmul.f32 %v2055, %v5417
    %v5744 = vmul.f32 %v2056, %v5417
    %v5745 = vmul.f32 %v2057, %v5417
    %v5746 = vmul.f32 %v2058, %v5417
    %5747 = vadd.xlane.f32.xlu0 %v5739
    %v5748 = vpop.xlane.xlu0 %5747
    %5749 = vadd.xlane.f32.xlu0 %v5740
    %v5750 = vpop.xlane.xlu0 %5749
    %5751 = vadd.xlane.f32.xlu0 %v5741
    %v5752 = vpop.xlane.xlu0 %5751
    %5753 = vadd.xlane.f32.xlu0 %v5742
    %v5754 = vpop.xlane.xlu0 %5753
    %5755 = vadd.xlane.f32.xlu0 %v5743
    %v5756 = vpop.xlane.xlu0 %5755
    %5757 = vadd.xlane.f32.xlu0 %v5744
    %v5758 = vpop.xlane.xlu0 %5757
    %5759 = vadd.xlane.f32.xlu0 %v5745
    %v5760 = vpop.xlane.xlu0 %5759
    %5761 = vadd.xlane.f32.xlu0 %v5746
    %v5762 = vpop.xlane.xlu0 %5761
    %v5763 = vmax.f32 %v5748, %v5756
    %v5764 = vmax.f32 %v5750, %v5758
    %v5765 = vmax.f32 %v5752, %v5760
    %v5766 = vmax.f32 %v5754, %v5762
    %v5767 = vmax.f32 %v5763, %v5764
    %v5768 = vmax.f32 %v5765, %v5766
    %v5769 = vmax.f32 %v5767, %v5768
    %v5770 = vsub.f32 %v5748, %v5769
    %v5771 = vsub.f32 %v5750, %v5769
    %v5772 = vsub.f32 %v5752, %v5769
    %v5773 = vsub.f32 %v5754, %v5769
    %v5774 = vsub.f32 %v5756, %v5769
    %v5775 = vsub.f32 %v5758, %v5769
    %v5776 = vsub.f32 %v5760, %v5769
    %v5777 = vsub.f32 %v5762, %v5769
    %v5778 = vmul.f32 %v5770, 1.442695
    %v5779 = vpow.pop %v5778
    %v5780 = vmul.f32 %v5771, 1.442695
    %v5781 = vpow.pop %v5780
    %v5782 = vmul.f32 %v5772, 1.442695
    %v5783 = vpow.pop %v5782
    %v5784 = vmul.f32 %v5773, 1.442695
    %v5785 = vpow.pop %v5784
    %v5786 = vmul.f32 %v5774, 1.442695
    %v5787 = vpow.pop %v5786
    %v5788 = vmul.f32 %v5775, 1.442695
    %v5789 = vpow.pop %v5788
    %v5790 = vmul.f32 %v5776, 1.442695
    %v5791 = vpow.pop %v5790
    %v5792 = vmul.f32 %v5777, 1.442695
    %v5793 = vpow.pop %v5792
    %v5794 = vadd.f32 %v5779, %v5781
    %v5795 = vadd.f32 %v5794, %v5783
    %v5796 = vadd.f32 %v5795, %v5785
    %v5797 = vadd.f32 %v5796, %v5787
    %v5798 = vadd.f32 %v5797, %v5789
    %v5799 = vadd.f32 %v5798, %v5791
    %v5800 = vadd.f32 %v5799, %v5793
    %v5801 = vrcp.pop %v5800
    %v5802 = vmul.f32 %v5779, %v5801
    %v5803 = vmul.f32 %v5781, %v5801
    %v5804 = vmul.f32 %v5783, %v5801
    %v5805 = vmul.f32 %v5785, %v5801
    %v5806 = vmul.f32 %v5787, %v5801
    %v5807 = vmul.f32 %v5789, %v5801
    %v5808 = vmul.f32 %v5791, %v5801
    %v5809 = vmul.f32 %v5793, %v5801
    %v5810 = vmul.f32 %v5802, %v2051
    %v5811 = vmul.f32 %v5803, %v2052
    %v5812 = vmul.f32 %v5804, %v2053
    %v5813 = vmul.f32 %v5805, %v2054
    %v5814 = vmul.f32 %v5806, %v2055
    %v5815 = vmul.f32 %v5807, %v2056
    %v5816 = vmul.f32 %v5808, %v2057
    %v5817 = vmul.f32 %v5809, %v2058
    %v5818 = vadd.f32 %v5810, %v5811
    %v5819 = vadd.f32 %v5818, %v5812
    %v5820 = vadd.f32 %v5819, %v5813
    %v5821 = vadd.f32 %v5820, %v5814
    %v5822 = vadd.f32 %v5821, %v5815
    %v5823 = vadd.f32 %v5822, %v5816
    %v5824 = vadd.f32 %v5823, %v5817
    %v5825 = vpack.c.bf16 %v5824, %v5824
    %5826 = vmatprep.subr.bf16.mxu0 %v2426
    %5827 = vmatpush1.bf16.msra.mxu0 %v2425
    %5828 = vmatprep.subr.bf16.mxu0 %v2430
    %5829 = vmatpush1.bf16.msra.mxu0 %v2429
    %5830 = vmatprep.subr.bf16.mxu0 %v2434
    %5831 = vmatpush1.bf16.msra.mxu0 %v2433
    %5832 = vmatprep.subr.bf16.mxu0 %v2438
    %5833 = vmatpush1.bf16.msra.mxu0 %v2437
    %5834 = vmatprep.subr.bf16.mxu0 %v2442
    %5835 = vmatpush1.bf16.msra.mxu0 %v2441
    %5836 = vmatprep.subr.bf16.mxu0 %v2446
    %5837 = vmatpush1.bf16.msra.mxu0 %v2445
    %5838 = vmatprep.subr.bf16.mxu0 %v2450
    %5839 = vmatpush1.bf16.msra.mxu0 %v2449
    %5840 = vmatprep.subr.bf16.mxu0 %v2454
    %5841 = vmatpush1.bf16.msra.mxu0 %v2453
    %5842 = vmatprep.subr.bf16.mxu0 0
    %5843 = vmatpush1.bf16.msra.mxu0 0
    %5844 = vmatprep.subr.bf16.mxu0 0
    %5845 = vmatpush1.bf16.msra.mxu0 0
    %5846 = vmatprep.subr.bf16.mxu0 0
    %5847 = vmatpush1.bf16.msra.mxu0 0
    %5848 = vmatprep.subr.bf16.mxu0 0
    %5849 = vmatpush1.bf16.msra.mxu0 0
    %5850 = vmatprep.subr.bf16.mxu0 0
    %5851 = vmatpush1.bf16.msra.mxu0 0
    %5852 = vmatprep.subr.bf16.mxu0 0
    %5853 = vmatpush1.bf16.msra.mxu0 0
    %5854 = vmatprep.subr.bf16.mxu0 0
    %5855 = vmatpush1.bf16.msra.mxu0 0
    %5856 = vmatprep.subr.bf16.mxu0 0
    %5857 = vmatpush1.bf16.msra.mxu0 0
    %5858 = vmatprep.mubr.bf16.mxu0 0
    %5859 = vmatmul.mubr.bf16.gmra.mrb[0].mxu0 %v5825
    %v5860 = vpop.f32.mrb[0].mxu0
    %v5861 = vadd.f32 0.0, %v5860
    %v5862 = vpop.f32.mrb[0].mxu0
    %v5863 = vadd.f32 0.0, %v5862
    %v5864 = vpop.f32.mrb[0].mxu0
    %v5865 = vpop.f32.mrb[0].mxu0
    %5866 = vdwg.mxu0
    %5867 = vmatprep.subr.bf16.mxu0 %v2428
    %5868 = vmatpush1.bf16.msra.mxu0 %v2427
    %5869 = vmatprep.subr.bf16.mxu0 %v2432
    %5870 = vmatpush1.bf16.msra.mxu0 %v2431
    %5871 = vmatprep.subr.bf16.mxu0 %v2436
    %5872 = vmatpush1.bf16.msra.mxu0 %v2435
    %5873 = vmatprep.subr.bf16.mxu0 %v2440
    %5874 = vmatpush1.bf16.msra.mxu0 %v2439
    %5875 = vmatprep.subr.bf16.mxu0 %v2444
    %5876 = vmatpush1.bf16.msra.mxu0 %v2443
    %5877 = vmatprep.subr.bf16.mxu0 %v2448
    %5878 = vmatpush1.bf16.msra.mxu0 %v2447
    %5879 = vmatprep.subr.bf16.mxu0 %v2452
    %5880 = vmatpush1.bf16.msra.mxu0 %v2451
    %5881 = vmatprep.subr.bf16.mxu0 %v2456
    %5882 = vmatpush1.bf16.msra.mxu0 %v2455
    %5883 = vmatprep.subr.bf16.mxu0 0
    %5884 = vmatpush1.bf16.msra.mxu0 0
    %5885 = vmatprep.subr.bf16.mxu0 0
    %5886 = vmatpush1.bf16.msra.mxu0 0
    %5887 = vmatprep.subr.bf16.mxu0 0
    %5888 = vmatpush1.bf16.msra.mxu0 0
    %5889 = vmatprep.subr.bf16.mxu0 0
    %5890 = vmatpush1.bf16.msra.mxu0 0
    %5891 = vmatprep.subr.bf16.mxu0 0
    %5892 = vmatpush1.bf16.msra.mxu0 0
    %5893 = vmatprep.subr.bf16.mxu0 0
    %5894 = vmatpush1.bf16.msra.mxu0 0
    %5895 = vmatprep.subr.bf16.mxu0 0
    %5896 = vmatpush1.bf16.msra.mxu0 0
    %5897 = vmatprep.subr.bf16.mxu0 0
    %5898 = vmatpush1.bf16.msra.mxu0 0
    %5899 = vmatprep.mubr.bf16.mxu0 0
    %5900 = vmatmul.mubr.bf16.gmra.mrb[0].mxu0 %v5825
    %v5901 = vpop.f32.mrb[0].mxu0
    %v5902 = vadd.f32 0.0, %v5901
    %v5903 = vpop.f32.mrb[0].mxu0
    %v5904 = vadd.f32 0.0, %v5903
    %v5905 = vpop.f32.mrb[0].mxu0
    %v5906 = vpop.f32.mrb[0].mxu0
    %5907 = vdwg.mxu0
    %5908 = vmatprep.subr.bf16.mxu0 %v2668
    %5909 = vmatpush1.bf16.msra.mxu0 %v2667
    %5910 = vmatprep.subr.bf16.mxu0 %v2672
    %5911 = vmatpush1.bf16.msra.mxu0 %v2671
    %5912 = vmatprep.subr.bf16.mxu0 %v2676
    %5913 = vmatpush1.bf16.msra.mxu0 %v2675
    %5914 = vmatprep.subr.bf16.mxu0 %v2680
    %5915 = vmatpush1.bf16.msra.mxu0 %v2679
    %5916 = vmatprep.subr.bf16.mxu0 %v2684
    %5917 = vmatpush1.bf16.msra.mxu0 %v2683
    %5918 = vmatprep.subr.bf16.mxu0 %v2688
    %5919 = vmatpush1.bf16.msra.mxu0 %v2687
    %5920 = vmatprep.subr.bf16.mxu0 %v2692
    %5921 = vmatpush1.bf16.msra.mxu0 %v2691
    %5922 = vmatprep.subr.bf16.mxu0 %v2696
    %5923 = vmatpush1.bf16.msra.mxu0 %v2695
    %5924 = vmatprep.subr.bf16.mxu0 0
    %5925 = vmatpush1.bf16.msra.mxu0 0
    %5926 = vmatprep.subr.bf16.mxu0 0
    %5927 = vmatpush1.bf16.msra.mxu0 0
    %5928 = vmatprep.subr.bf16.mxu0 0
    %5929 = vmatpush1.bf16.msra.mxu0 0
    %5930 = vmatprep.subr.bf16.mxu0 0
    %5931 = vmatpush1.bf16.msra.mxu0 0
    %5932 = vmatprep.subr.bf16.mxu0 0
    %5933 = vmatpush1.bf16.msra.mxu0 0
    %5934 = vmatprep.subr.bf16.mxu0 0
    %5935 = vmatpush1.bf16.msra.mxu0 0
    %5936 = vmatprep.subr.bf16.mxu0 0
    %5937 = vmatpush1.bf16.msra.mxu0 0
    %5938 = vmatprep.subr.bf16.mxu0 0
    %5939 = vmatpush1.bf16.msra.mxu0 0
    %5940 = vmatprep.mubr.bf16.mxu0 0
    %5941 = vmatmul.mubr.bf16.gmra.mrb[0].mxu0 %v5738
    %v5942 = vpop.f32.mrb[0].mxu0
    %v5943 = vadd.f32 %v5861, %v5942
    %v5944 = vpop.f32.mrb[0].mxu0
    %v5945 = vadd.f32 %v5863, %v5944
    %v5946 = vpop.f32.mrb[0].mxu0
    %v5947 = vpop.f32.mrb[0].mxu0
    %5948 = vdwg.mxu0
    %5949 = vmatprep.subr.bf16.mxu0 %v2670
    %5950 = vmatpush1.bf16.msra.mxu0 %v2669
    %5951 = vmatprep.subr.bf16.mxu0 %v2674
    %5952 = vmatpush1.bf16.msra.mxu0 %v2673
    %5953 = vmatprep.subr.bf16.mxu0 %v2678
    %5954 = vmatpush1.bf16.msra.mxu0 %v2677
    %5955 = vmatprep.subr.bf16.mxu0 %v2682
    %5956 = vmatpush1.bf16.msra.mxu0 %v2681
    %5957 = vmatprep.subr.bf16.mxu0 %v2686
    %5958 = vmatpush1.bf16.msra.mxu0 %v2685
    %5959 = vmatprep.subr.bf16.mxu0 %v2690
    %5960 = vmatpush1.bf16.msra.mxu0 %v2689
    %5961 = vmatprep.subr.bf16.mxu0 %v2694
    %5962 = vmatpush1.bf16.msra.mxu0 %v2693
    %5963 = vmatprep.subr.bf16.mxu0 %v2698
    %5964 = vmatpush1.bf16.msra.mxu0 %v2697
    %5965 = vmatprep.subr.bf16.mxu0 0
    %5966 = vmatpush1.bf16.msra.mxu0 0
    %5967 = vmatprep.subr.bf16.mxu0 0
    %5968 = vmatpush1.bf16.msra.mxu0 0
    %5969 = vmatprep.subr.bf16.mxu0 0
    %5970 = vmatpush1.bf16.msra.mxu0 0
    %5971 = vmatprep.subr.bf16.mxu0 0
    %5972 = vmatpush1.bf16.msra.mxu0 0
    %5973 = vmatprep.subr.bf16.mxu0 0
    %5974 = vmatpush1.bf16.msra.mxu0 0
    %5975 = vmatprep.subr.bf16.mxu0 0
    %5976 = vmatpush1.bf16.msra.mxu0 0
    %5977 = vmatprep.subr.bf16.mxu0 0
    %5978 = vmatpush1.bf16.msra.mxu0 0
    %5979 = vmatprep.subr.bf16.mxu0 0
    %5980 = vmatpush1.bf16.msra.mxu0 0
    %5981 = vmatprep.mubr.bf16.mxu0 0
    %5982 = vmatmul.mubr.bf16.gmra.mrb[0].mxu0 %v5738
    %v5983 = vpop.f32.mrb[0].mxu0
    %v5984 = vadd.f32 %v5902, %v5983
    %v5985 = vpop.f32.mrb[0].mxu0
    %v5986 = vadd.f32 %v5904, %v5985
    %v5987 = vpop.f32.mrb[0].mxu0
    %v5988 = vpop.f32.mrb[0].mxu0
    %5989 = vdwg.mxu0
    %5990 = vmatprep.subr.bf16.mxu0 %v2911
    %5991 = vmatpush1.bf16.msra.mxu0 %v2910
    %5992 = vmatprep.subr.bf16.mxu0 %v2915
    %5993 = vmatpush1.bf16.msra.mxu0 %v2914
    %5994 = vmatprep.subr.bf16.mxu0 %v2919
    %5995 = vmatpush1.bf16.msra.mxu0 %v2918
    %5996 = vmatprep.subr.bf16.mxu0 %v2923
    %5997 = vmatpush1.bf16.msra.mxu0 %v2922
    %5998 = vmatprep.subr.bf16.mxu0 %v2927
    %5999 = vmatpush1.bf16.msra.mxu0 %v2926
    %6000 = vmatprep.subr.bf16.mxu0 %v2931
    %6001 = vmatpush1.bf16.msra.mxu0 %v2930
    %6002 = vmatprep.subr.bf16.mxu0 %v2935
    %6003 = vmatpush1.bf16.msra.mxu0 %v2934
    %6004 = vmatprep.subr.bf16.mxu0 %v2939
    %6005 = vmatpush1.bf16.msra.mxu0 %v2938
    %6006 = vmatprep.subr.bf16.mxu0 0
    %6007 = vmatpush1.bf16.msra.mxu0 0
    %6008 = vmatprep.subr.bf16.mxu0 0
    %6009 = vmatpush1.bf16.msra.mxu0 0
    %6010 = vmatprep.subr.bf16.mxu0 0
    %6011 = vmatpush1.bf16.msra.mxu0 0
    %6012 = vmatprep.subr.bf16.mxu0 0
    %6013 = vmatpush1.bf16.msra.mxu0 0
    %6014 = vmatprep.subr.bf16.mxu0 0
    %6015 = vmatpush1.bf16.msra.mxu0 0
    %6016 = vmatprep.subr.bf16.mxu0 0
    %6017 = vmatpush1.bf16.msra.mxu0 0
    %6018 = vmatprep.subr.bf16.mxu0 0
    %6019 = vmatpush1.bf16.msra.mxu0 0
    %6020 = vmatprep.subr.bf16.mxu0 0
    %6021 = vmatpush1.bf16.msra.mxu0 0
    %6022 = vmatprep.mubr.bf16.mxu0 0
    %6023 = vmatmul.mubr.bf16.gmra.mrb[0].mxu0 %v5418
    %v6024 = vpop.f32.mrb[0].mxu0
    %v6025 = vadd.f32 0.0, %v6024
    %v6026 = vpop.f32.mrb[0].mxu0
    %v6027 = vadd.f32 0.0, %v6026
    %v6028 = vpop.f32.mrb[0].mxu0
    %v6029 = vpop.f32.mrb[0].mxu0
    %6030 = vdwg.mxu0
    %6031 = vmatprep.subr.bf16.mxu0 %v2913
    %6032 = vmatpush1.bf16.msra.mxu0 %v2912
    %6033 = vmatprep.subr.bf16.mxu0 %v2917
    %6034 = vmatpush1.bf16.msra.mxu0 %v2916
    %6035 = vmatprep.subr.bf16.mxu0 %v2921
    %6036 = vmatpush1.bf16.msra.mxu0 %v2920
    %6037 = vmatprep.subr.bf16.mxu0 %v2925
    %6038 = vmatpush1.bf16.msra.mxu0 %v2924
    %6039 = vmatprep.subr.bf16.mxu0 %v2929
    %6040 = vmatpush1.bf16.msra.mxu0 %v2928
    %6041 = vmatprep.subr.bf16.mxu0 %v2933
    %6042 = vmatpush1.bf16.msra.mxu0 %v2932
    %6043 = vmatprep.subr.bf16.mxu0 %v2937
    %6044 = vmatpush1.bf16.msra.mxu0 %v2936
    %6045 = vmatprep.subr.bf16.mxu0 %v2941
    %6046 = vmatpush1.bf16.msra.mxu0 %v2940
    %6047 = vmatprep.subr.bf16.mxu0 0
    %6048 = vmatpush1.bf16.msra.mxu0 0
    %6049 = vmatprep.subr.bf16.mxu0 0
    %6050 = vmatpush1.bf16.msra.mxu0 0
    %6051 = vmatprep.subr.bf16.mxu0 0
    %6052 = vmatpush1.bf16.msra.mxu0 0
    %6053 = vmatprep.subr.bf16.mxu0 0
    %6054 = vmatpush1.bf16.msra.mxu0 0
    %6055 = vmatprep.subr.bf16.mxu0 0
    %6056 = vmatpush1.bf16.msra.mxu0 0
    %6057 = vmatprep.subr.bf16.mxu0 0
    %6058 = vmatpush1.bf16.msra.mxu0 0
    %6059 = vmatprep.subr.bf16.mxu0 0
    %6060 = vmatpush1.bf16.msra.mxu0 0
    %6061 = vmatprep.subr.bf16.mxu0 0
    %6062 = vmatpush1.bf16.msra.mxu0 0
    %6063 = vmatprep.mubr.bf16.mxu0 0
    %6064 = vmatmul.mubr.bf16.gmra.mrb[0].mxu0 %v5418
    %v6065 = vpop.f32.mrb[0].mxu0
    %v6066 = vadd.f32 0.0, %v6065
    %v6067 = vpop.f32.mrb[0].mxu0
    %v6068 = vadd.f32 0.0, %v6067
    %v6069 = vpop.f32.mrb[0].mxu0
    %v6070 = vpop.f32.mrb[0].mxu0
    %6071 = vdwg.mxu0
    %v6072 = vadd.f32 %v5943, %v6025
    %v6073 = vadd.f32 %v5945, %v6027
    %v6074 = vadd.f32 %v5984, %v6066
    %v6075 = vadd.f32 %v5986, %v6068
    %v6076 = vadd.f32 %v6072, %v3064
    %v6077 = vadd.f32 %v6073, %v3068
    %v6078 = vadd.f32 %v6074, %v3072
    %v6079 = vadd.f32 %v6075, %v3076
    %v6080 = vxor.u32 %v6076, 2147483648
    %v6081 = vmul.f32 %v6080, 1.442695
    %v6082 = vpow.pop %v6081
    %v6083 = vadd.f32 %v6082, 1.0
    %v6084 = vrcp.pop %v6083
    %v6085 = vmul.f32 1.0, %v6084
    %v6086 = vxor.u32 %v6077, 2147483648
    %v6087 = vmul.f32 %v6086, 1.442695
    %v6088 = vpow.pop %v6087
    %v6089 = vadd.f32 %v6088, 1.0
    %v6090 = vrcp.pop %v6089
    %v6091 = vmul.f32 1.0, %v6090
    %v6092 = vtanh.pop %v6078
    %v6093 = vxor.u32 %v6079, 2147483648
    %v6094 = vmul.f32 %v6093, 1.442695
    %v6095 = vpow.pop %v6094
    %v6096 = vadd.f32 %v6095, 1.0
    %v6097 = vrcp.pop %v6096
    %v6098 = vmul.f32 1.0, %v6097
    %v6099 = vmul.f32 %v6091, %v5415
    %v6100 = vmul.f32 %v6085, %v6092
    %v6101 = vadd.f32 %v6099, %v6100
    %v6102 = vtanh.pop %v6101
    %v6103 = vmul.f32 %v6098, %v6102
    %v6104 = vpack.c.bf16 %v6103, %v6103
    %6105 = vmatprep.subr.bf16.mxu0 %v3159
    %6106 = vmatpush1.bf16.msra.mxu0 %v3158
    %6107 = vmatprep.subr.bf16.mxu0 %v3161
    %6108 = vmatpush1.bf16.msra.mxu0 %v3160
    %6109 = vmatprep.subr.bf16.mxu0 %v3163
    %6110 = vmatpush1.bf16.msra.mxu0 %v3162
    %6111 = vmatprep.subr.bf16.mxu0 %v3165
    %6112 = vmatpush1.bf16.msra.mxu0 %v3164
    %6113 = vmatprep.subr.bf16.mxu0 %v3167
    %6114 = vmatpush1.bf16.msra.mxu0 %v3166
    %6115 = vmatprep.subr.bf16.mxu0 %v3169
    %6116 = vmatpush1.bf16.msra.mxu0 %v3168
    %6117 = vmatprep.subr.bf16.mxu0 %v3171
    %6118 = vmatpush1.bf16.msra.mxu0 %v3170
    %6119 = vmatprep.subr.bf16.mxu0 %v3173
    %6120 = vmatpush1.bf16.msra.mxu0 %v3172
    %6121 = vmatprep.subr.bf16.mxu0 0
    %6122 = vmatpush1.bf16.msra.mxu0 0
    %6123 = vmatprep.subr.bf16.mxu0 0
    %6124 = vmatpush1.bf16.msra.mxu0 0
    %6125 = vmatprep.subr.bf16.mxu0 0
    %6126 = vmatpush1.bf16.msra.mxu0 0
    %6127 = vmatprep.subr.bf16.mxu0 0
    %6128 = vmatpush1.bf16.msra.mxu0 0
    %6129 = vmatprep.subr.bf16.mxu0 0
    %6130 = vmatpush1.bf16.msra.mxu0 0
    %6131 = vmatprep.subr.bf16.mxu0 0
    %6132 = vmatpush1.bf16.msra.mxu0 0
    %6133 = vmatprep.subr.bf16.mxu0 0
    %6134 = vmatpush1.bf16.msra.mxu0 0
    %6135 = vmatprep.subr.bf16.mxu0 0
    %6136 = vmatpush1.bf16.msra.mxu0 0
    %6137 = vmatprep.mubr.bf16.mxu0 0
    %6138 = vmatmul.mubr.bf16.gmra.mrb[0].mxu0 %v5825
    %v6139 = vpop.f32.mrb[0].mxu0
    %v6140 = vadd.f32 0.0, %v6139
    %v6141 = vpop.f32.mrb[0].mxu0
    %v6142 = vadd.f32 0.0, %v6141
    %v6143 = vpop.f32.mrb[0].mxu0
    %v6144 = vpop.f32.mrb[0].mxu0
    %6145 = vdwg.mxu0
    %6146 = vmatprep.subr.bf16.mxu0 %v3280
    %6147 = vmatpush1.bf16.msra.mxu0 %v3279
    %6148 = vmatprep.subr.bf16.mxu0 %v3282
    %6149 = vmatpush1.bf16.msra.mxu0 %v3281
    %6150 = vmatprep.subr.bf16.mxu0 %v3284
    %6151 = vmatpush1.bf16.msra.mxu0 %v3283
    %6152 = vmatprep.subr.bf16.mxu0 %v3286
    %6153 = vmatpush1.bf16.msra.mxu0 %v3285
    %6154 = vmatprep.subr.bf16.mxu0 %v3288
    %6155 = vmatpush1.bf16.msra.mxu0 %v3287
    %6156 = vmatprep.subr.bf16.mxu0 %v3290
    %6157 = vmatpush1.bf16.msra.mxu0 %v3289
    %6158 = vmatprep.subr.bf16.mxu0 %v3292
    %6159 = vmatpush1.bf16.msra.mxu0 %v3291
    %6160 = vmatprep.subr.bf16.mxu0 %v3294
    %6161 = vmatpush1.bf16.msra.mxu0 %v3293
    %6162 = vmatprep.subr.bf16.mxu0 0
    %6163 = vmatpush1.bf16.msra.mxu0 0
    %6164 = vmatprep.subr.bf16.mxu0 0
    %6165 = vmatpush1.bf16.msra.mxu0 0
    %6166 = vmatprep.subr.bf16.mxu0 0
    %6167 = vmatpush1.bf16.msra.mxu0 0
    %6168 = vmatprep.subr.bf16.mxu0 0
    %6169 = vmatpush1.bf16.msra.mxu0 0
    %6170 = vmatprep.subr.bf16.mxu0 0
    %6171 = vmatpush1.bf16.msra.mxu0 0
    %6172 = vmatprep.subr.bf16.mxu0 0
    %6173 = vmatpush1.bf16.msra.mxu0 0
    %6174 = vmatprep.subr.bf16.mxu0 0
    %6175 = vmatpush1.bf16.msra.mxu0 0
    %6176 = vmatprep.subr.bf16.mxu0 0
    %6177 = vmatpush1.bf16.msra.mxu0 0
    %6178 = vmatprep.mubr.bf16.mxu0 0
    %6179 = vmatmul.mubr.bf16.gmra.mrb[0].mxu0 %v6104
    %v6180 = vpop.f32.mrb[0].mxu0
    %v6181 = vadd.f32 %v6140, %v6180
    %v6182 = vpop.f32.mrb[0].mxu0
    %v6183 = vadd.f32 %v6142, %v6182
    %v6184 = vpop.f32.mrb[0].mxu0
    %v6185 = vpop.f32.mrb[0].mxu0
    %6186 = vdwg.mxu0
    %6187 = vmatprep.subr.bf16.mxu0 %v3401
    %6188 = vmatpush1.bf16.msra.mxu0 %v3400
    %6189 = vmatprep.subr.bf16.mxu0 %v3403
    %6190 = vmatpush1.bf16.msra.mxu0 %v3402
    %6191 = vmatprep.subr.bf16.mxu0 %v3405
    %6192 = vmatpush1.bf16.msra.mxu0 %v3404
    %6193 = vmatprep.subr.bf16.mxu0 %v3407
    %6194 = vmatpush1.bf16.msra.mxu0 %v3406
    %6195 = vmatprep.subr.bf16.mxu0 %v3409
    %6196 = vmatpush1.bf16.msra.mxu0 %v3408
    %6197 = vmatprep.subr.bf16.mxu0 %v3411
    %6198 = vmatpush1.bf16.msra.mxu0 %v3410
    %6199 = vmatprep.subr.bf16.mxu0 %v3413
    %6200 = vmatpush1.bf16.msra.mxu0 %v3412
    %6201 = vmatprep.subr.bf16.mxu0 %v3415
    %6202 = vmatpush1.bf16.msra.mxu0 %v3414
    %6203 = vmatprep.subr.bf16.mxu0 0
    %6204 = vmatpush1.bf16.msra.mxu0 0
    %6205 = vmatprep.subr.bf16.mxu0 0
    %6206 = vmatpush1.bf16.msra.mxu0 0
    %6207 = vmatprep.subr.bf16.mxu0 0
    %6208 = vmatpush1.bf16.msra.mxu0 0
    %6209 = vmatprep.subr.bf16.mxu0 0
    %6210 = vmatpush1.bf16.msra.mxu0 0
    %6211 = vmatprep.subr.bf16.mxu0 0
    %6212 = vmatpush1.bf16.msra.mxu0 0
    %6213 = vmatprep.subr.bf16.mxu0 0
    %6214 = vmatpush1.bf16.msra.mxu0 0
    %6215 = vmatprep.subr.bf16.mxu0 0
    %6216 = vmatpush1.bf16.msra.mxu0 0
    %6217 = vmatprep.subr.bf16.mxu0 0
    %6218 = vmatpush1.bf16.msra.mxu0 0
    %6219 = vmatprep.mubr.bf16.mxu0 0
    %6220 = vmatmul.mubr.bf16.gmra.mrb[0].mxu0 %v5738
    %v6221 = vpop.f32.mrb[0].mxu0
    %v6222 = vadd.f32 0.0, %v6221
    %v6223 = vpop.f32.mrb[0].mxu0
    %v6224 = vadd.f32 0.0, %v6223
    %v6225 = vpop.f32.mrb[0].mxu0
    %v6226 = vpop.f32.mrb[0].mxu0
    %6227 = vdwg.mxu0
    %v6228 = vadd.f32 %v6181, %v6222
    %v6229 = vadd.f32 %v6183, %v6224
    %v6230 = vadd.f32 %v6228, %v3479
    %v6231 = vadd.f32 %v6229, %v3483
    %s6232 = scalar_lea.vmem [#allocation9], 80
    %6233 = vst [vmem:[%s6232] sm:$0xff] %v6230
    %6234 = vst [vmem:[%s6232 + $0x8] sm:$0xff] %v6231
    %s6235 = sld [smem:[#allocation4 + $0x5]]
    %p6236 = scmp.eq.s32.totalorder %s6235, 0
    // Predicated region
    $region66: #{seq2seq_forward.1} parent=1 // pred_check
      %p6237 = pneg %p6236
    $region67: #{seq2seq_forward.1} parent=1 // pred_check_branch
      %6239 = sbr.rel (%p6237) target = $region69
    $region68: #{seq2seq_forward.1} parent=1 // pred_region
      %v6240 = vlaneseq
      %v6241 = vand.u32 %v6240, 127
      %v6242 = vadd.s32 %v6241, 128
      %v6243 = vmax.f32 %v6230, %v6231
      %6244 = vmax.xlane.f32.xlu0 %v6243
      %v6245 = vpop.xlane.xlu0 %6244
      %vm6246 = vcmp.ge.f32.partialorder %v6230, %v6245
      %vm6247 = vcmp.ge.f32.partialorder %v6231, %v6245
      %v6248 = vsel %vm6246, %v6241, 256
      %v6249 = vsel %vm6247, %v6242, 256
      %vm6250 = vcmp.lt.s32.totalorder %v6248, %v6249
      %v6251 = vsel %vm6250, %v6248, %v6249
      %v6252 = vand.u32 %v6251, 65535
      %v6253 = vshra.s32 %v6251, 16
      %v6254 = vcvt.s32.f32 %v6252
      %v6255 = vcvt.s32.f32 %v6253
      %6256 = vmin.xlane.f32.xlu0 %v6255
      %v6257 = vpop.xlane.xlu0 %6256
      %vm6258 = vcmp.eq.f32.partialorder %v6255, %v6257
      %v6259 = vsel %vm6258, %v6254, inf
      %6260 = vmin.xlane.f32.xlu0 %v6259
      %v6261 = vpop.xlane.xlu0 %6260
      %v6262 = vcvt.f32.s32 %v6261
      %v6263 = vcvt.f32.s32 %v6257
      %v6264 = vshll.u32 %v6263, 16
      %v6265 = vadd.s32 %v6264, %v6262
      %vm6266 = vcmp.eq.s32.totalorder %v6241, %v6265
      %vm6267 = vcmp.eq.s32.totalorder %v6242, %v6265
      %v6268 = vsel %vm6266, 1, 0
      %v6269 = vsel %vm6267, 1, 0
      %v6270 = vcvt.s32.f32 %v6268
      %v6271 = vcvt.s32.f32 %v6269
      %v6272 = vpack.c.bf16 %v6270, %v6270
      %v6273 = vpack.c.bf16 %v6271, %v6271
      %v6306 = vunpack.c.l.b16 %v2205
      %v6307 = vunpack.c.l.b16 %v2206
      %v6308 = vunpack.c.l.b16 %v2207
      %v6309 = vunpack.c.l.b16 %v2208
      %v6310 = vunpack.c.l.b16 %v2209
      %v6311 = vunpack.c.l.b16 %v2210
      %v6312 = vunpack.c.l.b16 %v2211
      %v6313 = vunpack.c.l.b16 %v2212
      %v6314 = vunpack.c.l.b16 %v2213
      %v6315 = vunpack.c.l.b16 %v2214
      %v6316 = vunpack.c.l.b16 %v2215
      %v6317 = vunpack.c.l.b16 %v2216
      %v6318 = vunpack.c.l.b16 %v2217
      %v6319 = vunpack.c.l.b16 %v2218
      %v6320 = vunpack.c.l.b16 %v2219
      %v6321 = vunpack.c.l.b16 %v2220
      %v6322 = vunpack.c.l.b16 %v2221
      %v6323 = vunpack.c.l.b16 %v2222
      %v6324 = vunpack.c.l.b16 %v2223
      %v6325 = vunpack.c.l.b16 %v2224
      %v6326 = vunpack.c.l.b16 %v2225
      %v6327 = vunpack.c.l.b16 %v2226
      %v6328 = vunpack.c.l.b16 %v2227
      %v6329 = vunpack.c.l.b16 %v2228
      %v6330 = vunpack.c.l.b16 %v2229
      %v6331 = vunpack.c.l.b16 %v2230
      %v6332 = vunpack.c.l.b16 %v2231
      %v6333 = vunpack.c.l.b16 %v2232
      %v6334 = vunpack.c.l.b16 %v2233
      %v6335 = vunpack.c.l.b16 %v2234
      %v6336 = vunpack.c.l.b16 %v2235
      %v6337 = vunpack.c.l.b16 %v2236
      %v6338 = vpack.c.b16 %v6307, %v6306
      %v6339 = vpack.c.b16 %v6309, %v6308
      %v6340 = vpack.c.b16 %v6311, %v6310
      %v6341 = vpack.c.b16 %v6313, %v6312
      %v6342 = vpack.c.b16 %v6315, %v6314
      %v6343 = vpack.c.b16 %v6317, %v6316
      %v6344 = vpack.c.b16 %v6319, %v6318
      %v6345 = vpack.c.b16 %v6321, %v6320
      %v6346 = vpack.c.b16 %v6323, %v6322
      %v6347 = vpack.c.b16 %v6325, %v6324
      %v6348 = vpack.c.b16 %v6327, %v6326
      %v6349 = vpack.c.b16 %v6329, %v6328
      %v6350 = vpack.c.b16 %v6331, %v6330
      %v6351 = vpack.c.b16 %v6333, %v6332
      %v6352 = vpack.c.b16 %v6335, %v6334
      %v6353 = vpack.c.b16 %v6337, %v6336
      %6370 = vmatprep.subr.bf16.mxu0 0
      %6371 = vmatpush1.bf16.msra.mxu0 %v6338
      %6372 = vmatprep.subr.bf16.mxu0 0
      %6373 = vmatpush1.bf16.msra.mxu0 %v6339
      %6374 = vmatprep.subr.bf16.mxu0 0
      %6375 = vmatpush1.bf16.msra.mxu0 %v6340
      %6376 = vmatprep.subr.bf16.mxu0 0
      %6377 = vmatpush1.bf16.msra.mxu0 %v6341
      %6378 = vmatprep.subr.bf16.mxu0 0
      %6379 = vmatpush1.bf16.msra.mxu0 %v6342
      %6380 = vmatprep.subr.bf16.mxu0 0
      %6381 = vmatpush1.bf16.msra.mxu0 %v6343
      %6382 = vmatprep.subr.bf16.mxu0 0
      %6383 = vmatpush1.bf16.msra.mxu0 %v6344
      %6384 = vmatprep.subr.bf16.mxu0 0
      %6385 = vmatpush1.bf16.msra.mxu0 %v6345
      %6386 = vmatprep.subr.bf16.mxu0 0
      %6387 = vmatpush1.bf16.msra.mxu0 %v6346
      %6388 = vmatprep.subr.bf16.mxu0 0
      %6389 = vmatpush1.bf16.msra.mxu0 %v6347
      %6390 = vmatprep.subr.bf16.mxu0 0
      %6391 = vmatpush1.bf16.msra.mxu0 %v6348
      %6392 = vmatprep.subr.bf16.mxu0 0
      %6393 = vmatpush1.bf16.msra.mxu0 %v6349
      %6394 = vmatprep.subr.bf16.mxu0 0
      %6395 = vmatpush1.bf16.msra.mxu0 %v6350
      %6396 = vmatprep.subr.bf16.mxu0 0
      %6397 = vmatpush1.bf16.msra.mxu0 %v6351
      %6398 = vmatprep.subr.bf16.mxu0 0
      %6399 = vmatpush1.bf16.msra.mxu0 %v6352
      %6400 = vmatprep.subr.bf16.mxu0 0
      %6401 = vmatpush1.bf16.msra.mxu0 %v6353
      %6402 = vmatprep.mubr.bf16.mxu0 %v6273
      %6403 = vmatmul.mubr.bf16.gmra.mrb[0].mxu0 %v6272
      %v6404 = vpop.f32.mrb[0].mxu0
      %v6405 = vadd.f32 0.0, %v6404
      %v6406 = vpop.f32.mrb[0].mxu0
      %v6407 = vpop.f32.mrb[0].mxu0
      %v6408 = vpop.f32.mrb[0].mxu0
      %6409 = vdwg.mxu0
      %6410 = vst [vmem:[#allocation3] sm:$0xff] %v6405
    $region69: #{seq2seq_forward.1} parent=1 // pred_fallthru
      _
    %s6411 = sld [smem:[#allocation4 + $0x5]]
    %p6412 = scmp.ne.s32.totalorder %s6411, 0
    %s6413 = scalar_select %p6412, 1, 0
    %s6414 = scvt.s32.f32 %s6413
    %s6415 = scalar_lea.vmem %s2, 40
    %v6416 = vld [vmem:[%s6415] sm:$0xff]
    %v6417 = vstv %s6414
    %v6418 = vmul.f32 %v6417, %v6416
    %s6419 = ssub.f32 1.0, %s6414
    %v6420 = vld [vmem:[#allocation3] sm:$0xff]
    %v6421 = vstv %s6419
    %v6422 = vmul.f32 %v6421, %v6420
    %v6423 = vadd.f32 %v6418, %v6422
    %v6424 = vpack.c.bf16 %v6423, %v6423
    %v6425 = vmul.f32 %v2051, %v6103
    %v6426 = vmul.f32 %v2052, %v6103
    %v6427 = vmul.f32 %v2053, %v6103
    %v6428 = vmul.f32 %v2054, %v6103
    %v6429 = vmul.f32 %v2055, %v6103
    %v6430 = vmul.f32 %v2056, %v6103
    %v6431 = vmul.f32 %v2057, %v6103
    %v6432 = vmul.f32 %v2058, %v6103
    %6433 = vadd.xlane.f32.xlu0 %v6425
    %v6434 = vpop.xlane.xlu0 %6433
    %6435 = vadd.xlane.f32.xlu0 %v6426
    %v6436 = vpop.xlane.xlu0 %6435
    %6437 = vadd.xlane.f32.xlu0 %v6427
    %v6438 = vpop.xlane.xlu0 %6437
    %6439 = vadd.xlane.f32.xlu0 %v6428
    %v6440 = vpop.xlane.xlu0 %6439
    %6441 = vadd.xlane.f32.xlu0 %v6429
    %v6442 = vpop.xlane.xlu0 %6441
    %6443 = vadd.xlane.f32.xlu0 %v6430
    %v6444 = vpop.xlane.xlu0 %6443
    %6445 = vadd.xlane.f32.xlu0 %v6431
    %v6446 = vpop.xlane.xlu0 %6445
    %6447 = vadd.xlane.f32.xlu0 %v6432
    %v6448 = vpop.xlane.xlu0 %6447
    %v6449 = vmax.f32 %v6434, %v6442
    %v6450 = vmax.f32 %v6436, %v6444
    %v6451 = vmax.f32 %v6438, %v6446
    %v6452 = vmax.f32 %v6440, %v6448
    %v6453 = vmax.f32 %v6449, %v6450
    %v6454 = vmax.f32 %v6451, %v6452
    %v6455 = vmax.f32 %v6453, %v6454
    %v6456 = vsub.f32 %v6434, %v6455
    %v6457 = vsub.f32 %v6436, %v6455
    %v6458 = vsub.f32 %v6438, %v6455
    %v6459 = vsub.f32 %v6440, %v6455
    %v6460 = vsub.f32 %v6442, %v6455
    %v6461 = vsub.f32 %v6444, %v6455
    %v6462 = vsub.f32 %v6446, %v6455
    %v6463 = vsub.f32 %v6448, %v6455
    %v6464 = vmul.f32 %v6456, 1.442695
    %v6465 = vpow.pop %v6464
    %v6466 = vmul.f32 %v6457, 1.442695
    %v6467 = vpow.pop %v6466
    %v6468 = vmul.f32 %v6458, 1.442695
    %v6469 = vpow.pop %v6468
    %v6470 = vmul.f32 %v6459, 1.442695
    %v6471 = vpow.pop %v6470
    %v6472 = vmul.f32 %v6460, 1.442695
    %v6473 = vpow.pop %v6472
    %v6474 = vmul.f32 %v6461, 1.442695
    %v6475 = vpow.pop %v6474
    %v6476 = vmul.f32 %v6462, 1.442695
    %v6477 = vpow.pop %v6476
    %v6478 = vmul.f32 %v6463, 1.442695
    %v6479 = vpow.pop %v6478
    %v6480 = vadd.f32 %v6465, %v6467
    %v6481 = vadd.f32 %v6480, %v6469
    %v6482 = vadd.f32 %v6481, %v6471
    %v6483 = vadd.f32 %v6482, %v6473
    %v6484 = vadd.f32 %v6483, %v6475
    %v6485 = vadd.f32 %v6484, %v6477
    %v6486 = vadd.f32 %v6485, %v6479
    %v6487 = vrcp.pop %v6486
    %v6488 = vmul.f32 %v6465, %v6487
    %v6489 = vmul.f32 %v6467, %v6487
    %v6490 = vmul.f32 %v6469, %v6487
    %v6491 = vmul.f32 %v6471, %v6487
    %v6492 = vmul.f32 %v6473, %v6487
    %v6493 = vmul.f32 %v6475, %v6487
    %v6494 = vmul.f32 %v6477, %v6487
    %v6495 = vmul.f32 %v6479, %v6487
    %v6496 = vmul.f32 %v6488, %v2051
    %v6497 = vmul.f32 %v6489, %v2052
    %v6498 = vmul.f32 %v6490, %v2053
    %v6499 = vmul.f32 %v6491, %v2054
    %v6500 = vmul.f32 %v6492, %v2055
    %v6501 = vmul.f32 %v6493, %v2056
    %v6502 = vmul.f32 %v6494, %v2057
    %v6503 = vmul.f32 %v6495, %v2058
    %v6504 = vadd.f32 %v6496, %v6497
    %v6505 = vadd.f32 %v6504, %v6498
    %v6506 = vadd.f32 %v6505, %v6499
    %v6507 = vadd.f32 %v6506, %v6500
    %v6508 = vadd.f32 %v6507, %v6501
    %v6509 = vadd.f32 %v6508, %v6502
    %v6510 = vadd.f32 %v6509, %v6503
    %v6511 = vpack.c.bf16 %v6510, %v6510
    %6512 = vmatprep.subr.bf16.mxu0 %v2426
    %6513 = vmatpush1.bf16.msra.mxu0 %v2425
    %6514 = vmatprep.subr.bf16.mxu0 %v2430
    %6515 = vmatpush1.bf16.msra.mxu0 %v2429
    %6516 = vmatprep.subr.bf16.mxu0 %v2434
    %6517 = vmatpush1.bf16.msra.mxu0 %v2433
    %6518 = vmatprep.subr.bf16.mxu0 %v2438
    %6519 = vmatpush1.bf16.msra.mxu0 %v2437
    %6520 = vmatprep.subr.bf16.mxu0 %v2442
    %6521 = vmatpush1.bf16.msra.mxu0 %v2441
    %6522 = vmatprep.subr.bf16.mxu0 %v2446
    %6523 = vmatpush1.bf16.msra.mxu0 %v2445
    %6524 = vmatprep.subr.bf16.mxu0 %v2450
    %6525 = vmatpush1.bf16.msra.mxu0 %v2449
    %6526 = vmatprep.subr.bf16.mxu0 %v2454
    %6527 = vmatpush1.bf16.msra.mxu0 %v2453
    %6528 = vmatprep.subr.bf16.mxu0 0
    %6529 = vmatpush1.bf16.msra.mxu0 0
    %6530 = vmatprep.subr.bf16.mxu0 0
    %6531 = vmatpush1.bf16.msra.mxu0 0
    %6532 = vmatprep.subr.bf16.mxu0 0
    %6533 = vmatpush1.bf16.msra.mxu0 0
    %6534 = vmatprep.subr.bf16.mxu0 0
    %6535 = vmatpush1.bf16.msra.mxu0 0
    %6536 = vmatprep.subr.bf16.mxu0 0
    %6537 = vmatpush1.bf16.msra.mxu0 0
    %6538 = vmatprep.subr.bf16.mxu0 0
    %6539 = vmatpush1.bf16.msra.mxu0 0
    %6540 = vmatprep.subr.bf16.mxu0 0
    %6541 = vmatpush1.bf16.msra.mxu0 0
    %6542 = vmatprep.subr.bf16.mxu0 0
    %6543 = vmatpush1.bf16.msra.mxu0 0
    %6544 = vmatprep.mubr.bf16.mxu0 0
    %6545 = vmatmul.mubr.bf16.gmra.mrb[0].mxu0 %v6511
    %v6546 = vpop.f32.mrb[0].mxu0
    %v6547 = vadd.f32 0.0, %v6546
    %v6548 = vpop.f32.mrb[0].mxu0
    %v6549 = vadd.f32 0.0, %v6548
    %v6550 = vpop.f32.mrb[0].mxu0
    %v6551 = vpop.f32.mrb[0].mxu0
    %6552 = vdwg.mxu0
    %6553 = vmatprep.subr.bf16.mxu0 %v2428
    %6554 = vmatpush1.bf16.msra.mxu0 %v2427
    %6555 = vmatprep.subr.bf16.mxu0 %v2432
    %6556 = vmatpush1.bf16.msra.mxu0 %v2431
    %6557 = vmatprep.subr.bf16.mxu0 %v2436
    %6558 = vmatpush1.bf16.msra.mxu0 %v2435
    %6559 = vmatprep.subr.bf16.mxu0 %v2440
    %6560 = vmatpush1.bf16.msra.mxu0 %v2439
    %6561 = vmatprep.subr.bf16.mxu0 %v2444
    %6562 = vmatpush1.bf16.msra.mxu0 %v2443
    %6563 = vmatprep.subr.bf16.mxu0 %v2448
    %6564 = vmatpush1.bf16.msra.mxu0 %v2447
    %6565 = vmatprep.subr.bf16.mxu0 %v2452
    %6566 = vmatpush1.bf16.msra.mxu0 %v2451
    %6567 = vmatprep.subr.bf16.mxu0 %v2456
    %6568 = vmatpush1.bf16.msra.mxu0 %v2455
    %6569 = vmatprep.subr.bf16.mxu0 0
    %6570 = vmatpush1.bf16.msra.mxu0 0
    %6571 = vmatprep.subr.bf16.mxu0 0
    %6572 = vmatpush1.bf16.msra.mxu0 0
    %6573 = vmatprep.subr.bf16.mxu0 0
    %6574 = vmatpush1.bf16.msra.mxu0 0
    %6575 = vmatprep.subr.bf16.mxu0 0
    %6576 = vmatpush1.bf16.msra.mxu0 0
    %6577 = vmatprep.subr.bf16.mxu0 0
    %6578 = vmatpush1.bf16.msra.mxu0 0
    %6579 = vmatprep.subr.bf16.mxu0 0
    %6580 = vmatpush1.bf16.msra.mxu0 0
    %6581 = vmatprep.subr.bf16.mxu0 0
    %6582 = vmatpush1.bf16.msra.mxu0 0
    %6583 = vmatprep.subr.bf16.mxu0 0
    %6584 = vmatpush1.bf16.msra.mxu0 0
    %6585 = vmatprep.mubr.bf16.mxu0 0
    %6586 = vmatmul.mubr.bf16.gmra.mrb[0].mxu0 %v6511
    %v6587 = vpop.f32.mrb[0].mxu0
    %v6588 = vadd.f32 0.0, %v6587
    %v6589 = vpop.f32.mrb[0].mxu0
    %v6590 = vadd.f32 0.0, %v6589
    %v6591 = vpop.f32.mrb[0].mxu0
    %v6592 = vpop.f32.mrb[0].mxu0
    %6593 = vdwg.mxu0
    %6594 = vmatprep.subr.bf16.mxu0 %v2668
    %6595 = vmatpush1.bf16.msra.mxu0 %v2667
    %6596 = vmatprep.subr.bf16.mxu0 %v2672
    %6597 = vmatpush1.bf16.msra.mxu0 %v2671
    %6598 = vmatprep.subr.bf16.mxu0 %v2676
    %6599 = vmatpush1.bf16.msra.mxu0 %v2675
    %6600 = vmatprep.subr.bf16.mxu0 %v2680
    %6601 = vmatpush1.bf16.msra.mxu0 %v2679
    %6602 = vmatprep.subr.bf16.mxu0 %v2684
    %6603 = vmatpush1.bf16.msra.mxu0 %v2683
    %6604 = vmatprep.subr.bf16.mxu0 %v2688
    %6605 = vmatpush1.bf16.msra.mxu0 %v2687
    %6606 = vmatprep.subr.bf16.mxu0 %v2692
    %6607 = vmatpush1.bf16.msra.mxu0 %v2691
    %6608 = vmatprep.subr.bf16.mxu0 %v2696
    %6609 = vmatpush1.bf16.msra.mxu0 %v2695
    %6610 = vmatprep.subr.bf16.mxu0 0
    %6611 = vmatpush1.bf16.msra.mxu0 0
    %6612 = vmatprep.subr.bf16.mxu0 0
    %6613 = vmatpush1.bf16.msra.mxu0 0
    %6614 = vmatprep.subr.bf16.mxu0 0
    %6615 = vmatpush1.bf16.msra.mxu0 0
    %6616 = vmatprep.subr.bf16.mxu0 0
    %6617 = vmatpush1.bf16.msra.mxu0 0
    %6618 = vmatprep.subr.bf16.mxu0 0
    %6619 = vmatpush1.bf16.msra.mxu0 0
    %6620 = vmatprep.subr.bf16.mxu0 0
    %6621 = vmatpush1.bf16.msra.mxu0 0
    %6622 = vmatprep.subr.bf16.mxu0 0
    %6623 = vmatpush1.bf16.msra.mxu0 0
    %6624 = vmatprep.subr.bf16.mxu0 0
    %6625 = vmatpush1.bf16.msra.mxu0 0
    %6626 = vmatprep.mubr.bf16.mxu0 0
    %6627 = vmatmul.mubr.bf16.gmra.mrb[0].mxu0 %v6424
    %v6628 = vpop.f32.mrb[0].mxu0
    %v6629 = vadd.f32 %v6547, %v6628
    %v6630 = vpop.f32.mrb[0].mxu0
    %v6631 = vadd.f32 %v6549, %v6630
    %v6632 = vpop.f32.mrb[0].mxu0
    %v6633 = vpop.f32.mrb[0].mxu0
    %6634 = vdwg.mxu0
    %6635 = vmatprep.subr.bf16.mxu0 %v2670
    %6636 = vmatpush1.bf16.msra.mxu0 %v2669
    %6637 = vmatprep.subr.bf16.mxu0 %v2674
    %6638 = vmatpush1.bf16.msra.mxu0 %v2673
    %6639 = vmatprep.subr.bf16.mxu0 %v2678
    %6640 = vmatpush1.bf16.msra.mxu0 %v2677
    %6641 = vmatprep.subr.bf16.mxu0 %v2682
    %6642 = vmatpush1.bf16.msra.mxu0 %v2681
    %6643 = vmatprep.subr.bf16.mxu0 %v2686
    %6644 = vmatpush1.bf16.msra.mxu0 %v2685
    %6645 = vmatprep.subr.bf16.mxu0 %v2690
    %6646 = vmatpush1.bf16.msra.mxu0 %v2689
    %6647 = vmatprep.subr.bf16.mxu0 %v2694
    %6648 = vmatpush1.bf16.msra.mxu0 %v2693
    %6649 = vmatprep.subr.bf16.mxu0 %v2698
    %6650 = vmatpush1.bf16.msra.mxu0 %v2697
    %6651 = vmatprep.subr.bf16.mxu0 0
    %6652 = vmatpush1.bf16.msra.mxu0 0
    %6653 = vmatprep.subr.bf16.mxu0 0
    %6654 = vmatpush1.bf16.msra.mxu0 0
    %6655 = vmatprep.subr.bf16.mxu0 0
    %6656 = vmatpush1.bf16.msra.mxu0 0
    %6657 = vmatprep.subr.bf16.mxu0 0
    %6658 = vmatpush1.bf16.msra.mxu0 0
    %6659 = vmatprep.subr.bf16.mxu0 0
    %6660 = vmatpush1.bf16.msra.mxu0 0
    %6661 = vmatprep.subr.bf16.mxu0 0
    %6662 = vmatpush1.bf16.msra.mxu0 0
    %6663 = vmatprep.subr.bf16.mxu0 0
    %6664 = vmatpush1.bf16.msra.mxu0 0
    %6665 = vmatprep.subr.bf16.mxu0 0
    %6666 = vmatpush1.bf16.msra.mxu0 0
    %6667 = vmatprep.mubr.bf16.mxu0 0
    %6668 = vmatmul.mubr.bf16.gmra.mrb[0].mxu0 %v6424
    %v6669 = vpop.f32.mrb[0].mxu0
    %v6670 = vadd.f32 %v6588, %v6669
    %v6671 = vpop.f32.mrb[0].mxu0
    %v6672 = vadd.f32 %v6590, %v6671
    %v6673 = vpop.f32.mrb[0].mxu0
    %v6674 = vpop.f32.mrb[0].mxu0
    %6675 = vdwg.mxu0
    %6676 = vmatprep.subr.bf16.mxu0 %v2911
    %6677 = vmatpush1.bf16.msra.mxu0 %v2910
    %6678 = vmatprep.subr.bf16.mxu0 %v2915
    %6679 = vmatpush1.bf16.msra.mxu0 %v2914
    %6680 = vmatprep.subr.bf16.mxu0 %v2919
    %6681 = vmatpush1.bf16.msra.mxu0 %v2918
    %6682 = vmatprep.subr.bf16.mxu0 %v2923
    %6683 = vmatpush1.bf16.msra.mxu0 %v2922
    %6684 = vmatprep.subr.bf16.mxu0 %v2927
    %6685 = vmatpush1.bf16.msra.mxu0 %v2926
    %6686 = vmatprep.subr.bf16.mxu0 %v2931
    %6687 = vmatpush1.bf16.msra.mxu0 %v2930
    %6688 = vmatprep.subr.bf16.mxu0 %v2935
    %6689 = vmatpush1.bf16.msra.mxu0 %v2934
    %6690 = vmatprep.subr.bf16.mxu0 %v2939
    %6691 = vmatpush1.bf16.msra.mxu0 %v2938
    %6692 = vmatprep.subr.bf16.mxu0 0
    %6693 = vmatpush1.bf16.msra.mxu0 0
    %6694 = vmatprep.subr.bf16.mxu0 0
    %6695 = vmatpush1.bf16.msra.mxu0 0
    %6696 = vmatprep.subr.bf16.mxu0 0
    %6697 = vmatpush1.bf16.msra.mxu0 0
    %6698 = vmatprep.subr.bf16.mxu0 0
    %6699 = vmatpush1.bf16.msra.mxu0 0
    %6700 = vmatprep.subr.bf16.mxu0 0
    %6701 = vmatpush1.bf16.msra.mxu0 0
    %6702 = vmatprep.subr.bf16.mxu0 0
    %6703 = vmatpush1.bf16.msra.mxu0 0
    %6704 = vmatprep.subr.bf16.mxu0 0
    %6705 = vmatpush1.bf16.msra.mxu0 0
    %6706 = vmatprep.subr.bf16.mxu0 0
    %6707 = vmatpush1.bf16.msra.mxu0 0
    %6708 = vmatprep.mubr.bf16.mxu0 0
    %6709 = vmatmul.mubr.bf16.gmra.mrb[0].mxu0 %v6104
    %v6710 = vpop.f32.mrb[0].mxu0
    %v6711 = vadd.f32 0.0, %v6710
    %v6712 = vpop.f32.mrb[0].mxu0
    %v6713 = vadd.f32 0.0, %v6712
    %v6714 = vpop.f32.mrb[0].mxu0
    %v6715 = vpop.f32.mrb[0].mxu0
    %6716 = vdwg.mxu0
    %6717 = vmatprep.subr.bf16.mxu0 %v2913
    %6718 = vmatpush1.bf16.msra.mxu0 %v2912
    %6719 = vmatprep.subr.bf16.mxu0 %v2917
    %6720 = vmatpush1.bf16.msra.mxu0 %v2916
    %6721 = vmatprep.subr.bf16.mxu0 %v2921
    %6722 = vmatpush1.bf16.msra.mxu0 %v2920
    %6723 = vmatprep.subr.bf16.mxu0 %v2925
    %6724 = vmatpush1.bf16.msra.mxu0 %v2924
    %6725 = vmatprep.subr.bf16.mxu0 %v2929
    %6726 = vmatpush1.bf16.msra.mxu0 %v2928
    %6727 = vmatprep.subr.bf16.mxu0 %v2933
    %6728 = vmatpush1.bf16.msra.mxu0 %v2932
    %6729 = vmatprep.subr.bf16.mxu0 %v2937
    %6730 = vmatpush1.bf16.msra.mxu0 %v2936
    %6731 = vmatprep.subr.bf16.mxu0 %v2941
    %6732 = vmatpush1.bf16.msra.mxu0 %v2940
    %6733 = vmatprep.subr.bf16.mxu0 0
    %6734 = vmatpush1.bf16.msra.mxu0 0
    %6735 = vmatprep.subr.bf16.mxu0 0
    %6736 = vmatpush1.bf16.msra.mxu0 0
    %6737 = vmatprep.subr.bf16.mxu0 0
    %6738 = vmatpush1.bf16.msra.mxu0 0
    %6739 = vmatprep.subr.bf16.mxu0 0
    %6740 = vmatpush1.bf16.msra.mxu0 0
    %6741 = vmatprep.subr.bf16.mxu0 0
    %6742 = vmatpush1.bf16.msra.mxu0 0
    %6743 = vmatprep.subr.bf16.mxu0 0
    %6744 = vmatpush1.bf16.msra.mxu0 0
    %6745 = vmatprep.subr.bf16.mxu0 0
    %6746 = vmatpush1.bf16.msra.mxu0 0
    %6747 = vmatprep.subr.bf16.mxu0 0
    %6748 = vmatpush1.bf16.msra.mxu0 0
    %6749 = vmatprep.mubr.bf16.mxu0 0
    %6750 = vmatmul.mubr.bf16.gmra.mrb[0].mxu0 %v6104
    %v6751 = vpop.f32.mrb[0].mxu0
    %v6752 = vadd.f32 0.0, %v6751
    %v6753 = vpop.f32.mrb[0].mxu0
    %v6754 = vadd.f32 0.0, %v6753
    %v6755 = vpop.f32.mrb[0].mxu0
    %v6756 = vpop.f32.mrb[0].mxu0
    %6757 = vdwg.mxu0
    %v6758 = vadd.f32 %v6629, %v6711
    %v6759 = vadd.f32 %v6631, %v6713
    %v6760 = vadd.f32 %v6670, %v6752
    %v6761 = vadd.f32 %v6672, %v6754
    %v6762 = vadd.f32 %v6758, %v3064
    %v6763 = vadd.f32 %v6759, %v3068
    %v6764 = vadd.f32 %v6760, %v3072
    %v6765 = vadd.f32 %v6761, %v3076
    %v6766 = vxor.u32 %v6762, 2147483648
    %v6767 = vmul.f32 %v6766, 1.442695
    %v6768 = vpow.pop %v6767
    %v6769 = vadd.f32 %v6768, 1.0
    %v6770 = vrcp.pop %v6769
    %v6771 = vmul.f32 1.0, %v6770
    %v6772 = vxor.u32 %v6763, 2147483648
    %v6773 = vmul.f32 %v6772, 1.442695
    %v6774 = vpow.pop %v6773
    %v6775 = vadd.f32 %v6774, 1.0
    %v6776 = vrcp.pop %v6775
    %v6777 = vmul.f32 1.0, %v6776
    %v6778 = vtanh.pop %v6764
    %v6779 = vxor.u32 %v6765, 2147483648
    %v6780 = vmul.f32 %v6779, 1.442695
    %v6781 = vpow.pop %v6780
    %v6782 = vadd.f32 %v6781, 1.0
    %v6783 = vrcp.pop %v6782
    %v6784 = vmul.f32 1.0, %v6783
    %v6785 = vmul.f32 %v6777, %v6101
    %v6786 = vmul.f32 %v6771, %v6778
    %v6787 = vadd.f32 %v6785, %v6786
    %v6788 = vtanh.pop %v6787
    %v6789 = vmul.f32 %v6784, %v6788
    %v6790 = vpack.c.bf16 %v6789, %v6789
    %6791 = vmatprep.subr.bf16.mxu0 %v3159
    %6792 = vmatpush1.bf16.msra.mxu0 %v3158
    %6793 = vmatprep.subr.bf16.mxu0 %v3161
    %6794 = vmatpush1.bf16.msra.mxu0 %v3160
    %6795 = vmatprep.subr.bf16.mxu0 %v3163
    %6796 = vmatpush1.bf16.msra.mxu0 %v3162
    %6797 = vmatprep.subr.bf16.mxu0 %v3165
    %6798 = vmatpush1.bf16.msra.mxu0 %v3164
    %6799 = vmatprep.subr.bf16.mxu0 %v3167
    %6800 = vmatpush1.bf16.msra.mxu0 %v3166
    %6801 = vmatprep.subr.bf16.mxu0 %v3169
    %6802 = vmatpush1.bf16.msra.mxu0 %v3168
    %6803 = vmatprep.subr.bf16.mxu0 %v3171
    %6804 = vmatpush1.bf16.msra.mxu0 %v3170
    %6805 = vmatprep.subr.bf16.mxu0 %v3173
    %6806 = vmatpush1.bf16.msra.mxu0 %v3172
    %6807 = vmatprep.subr.bf16.mxu0 0
    %6808 = vmatpush1.bf16.msra.mxu0 0
    %6809 = vmatprep.subr.bf16.mxu0 0
    %6810 = vmatpush1.bf16.msra.mxu0 0
    %6811 = vmatprep.subr.bf16.mxu0 0
    %6812 = vmatpush1.bf16.msra.mxu0 0
    %6813 = vmatprep.subr.bf16.mxu0 0
    %6814 = vmatpush1.bf16.msra.mxu0 0
    %6815 = vmatprep.subr.bf16.mxu0 0
    %6816 = vmatpush1.bf16.msra.mxu0 0
    %6817 = vmatprep.subr.bf16.mxu0 0
    %6818 = vmatpush1.bf16.msra.mxu0 0
    %6819 = vmatprep.subr.bf16.mxu0 0
    %6820 = vmatpush1.bf16.msra.mxu0 0
    %6821 = vmatprep.subr.bf16.mxu0 0
    %6822 = vmatpush1.bf16.msra.mxu0 0
    %6823 = vmatprep.mubr.bf16.mxu0 0
    %6824 = vmatmul.mubr.bf16.gmra.mrb[0].mxu0 %v6511
    %v6825 = vpop.f32.mrb[0].mxu0
    %v6826 = vadd.f32 0.0, %v6825
    %v6827 = vpop.f32.mrb[0].mxu0
    %v6828 = vadd.f32 0.0, %v6827
    %v6829 = vpop.f32.mrb[0].mxu0
    %v6830 = vpop.f32.mrb[0].mxu0
    %6831 = vdwg.mxu0
    %6832 = vmatprep.subr.bf16.mxu0 %v3280
    %6833 = vmatpush1.bf16.msra.mxu0 %v3279
    %6834 = vmatprep.subr.bf16.mxu0 %v3282
    %6835 = vmatpush1.bf16.msra.mxu0 %v3281
    %6836 = vmatprep.subr.bf16.mxu0 %v3284
    %6837 = vmatpush1.bf16.msra.mxu0 %v3283
    %6838 = vmatprep.subr.bf16.mxu0 %v3286
    %6839 = vmatpush1.bf16.msra.mxu0 %v3285
    %6840 = vmatprep.subr.bf16.mxu0 %v3288
    %6841 = vmatpush1.bf16.msra.mxu0 %v3287
    %6842 = vmatprep.subr.bf16.mxu0 %v3290
    %6843 = vmatpush1.bf16.msra.mxu0 %v3289
    %6844 = vmatprep.subr.bf16.mxu0 %v3292
    %6845 = vmatpush1.bf16.msra.mxu0 %v3291
    %6846 = vmatprep.subr.bf16.mxu0 %v3294
    %6847 = vmatpush1.bf16.msra.mxu0 %v3293
    %6848 = vmatprep.subr.bf16.mxu0 0
    %6849 = vmatpush1.bf16.msra.mxu0 0
    %6850 = vmatprep.subr.bf16.mxu0 0
    %6851 = vmatpush1.bf16.msra.mxu0 0
    %6852 = vmatprep.subr.bf16.mxu0 0
    %6853 = vmatpush1.bf16.msra.mxu0 0
    %6854 = vmatprep.subr.bf16.mxu0 0
    %6855 = vmatpush1.bf16.msra.mxu0 0
    %6856 = vmatprep.subr.bf16.mxu0 0
    %6857 = vmatpush1.bf16.msra.mxu0 0
    %6858 = vmatprep.subr.bf16.mxu0 0
    %6859 = vmatpush1.bf16.msra.mxu0 0
    %6860 = vmatprep.subr.bf16.mxu0 0
    %6861 = vmatpush1.bf16.msra.mxu0 0
    %6862 = vmatprep.subr.bf16.mxu0 0
    %6863 = vmatpush1.bf16.msra.mxu0 0
    %6864 = vmatprep.mubr.bf16.mxu0 0
    %6865 = vmatmul.mubr.bf16.gmra.mrb[0].mxu0 %v6790
    %v6866 = vpop.f32.mrb[0].mxu0
    %v6867 = vadd.f32 %v6826, %v6866
    %v6868 = vpop.f32.mrb[0].mxu0
    %v6869 = vadd.f32 %v6828, %v6868
    %v6870 = vpop.f32.mrb[0].mxu0
    %v6871 = vpop.f32.mrb[0].mxu0
    %6872 = vdwg.mxu0
    %6873 = vmatprep.subr.bf16.mxu0 %v3401
    %6874 = vmatpush1.bf16.msra.mxu0 %v3400
    %6875 = vmatprep.subr.bf16.mxu0 %v3403
    %6876 = vmatpush1.bf16.msra.mxu0 %v3402
    %6877 = vmatprep.subr.bf16.mxu0 %v3405
    %6878 = vmatpush1.bf16.msra.mxu0 %v3404
    %6879 = vmatprep.subr.bf16.mxu0 %v3407
    %6880 = vmatpush1.bf16.msra.mxu0 %v3406
    %6881 = vmatprep.subr.bf16.mxu0 %v3409
    %6882 = vmatpush1.bf16.msra.mxu0 %v3408
    %6883 = vmatprep.subr.bf16.mxu0 %v3411
    %6884 = vmatpush1.bf16.msra.mxu0 %v3410
    %6885 = vmatprep.subr.bf16.mxu0 %v3413
    %6886 = vmatpush1.bf16.msra.mxu0 %v3412
    %6887 = vmatprep.subr.bf16.mxu0 %v3415
    %6888 = vmatpush1.bf16.msra.mxu0 %v3414
    %6889 = vmatprep.subr.bf16.mxu0 0
    %6890 = vmatpush1.bf16.msra.mxu0 0
    %6891 = vmatprep.subr.bf16.mxu0 0
    %6892 = vmatpush1.bf16.msra.mxu0 0
    %6893 = vmatprep.subr.bf16.mxu0 0
    %6894 = vmatpush1.bf16.msra.mxu0 0
    %6895 = vmatprep.subr.bf16.mxu0 0
    %6896 = vmatpush1.bf16.msra.mxu0 0
    %6897 = vmatprep.subr.bf16.mxu0 0
    %6898 = vmatpush1.bf16.msra.mxu0 0
    %6899 = vmatprep.subr.bf16.mxu0 0
    %6900 = vmatpush1.bf16.msra.mxu0 0
    %6901 = vmatprep.subr.bf16.mxu0 0
    %6902 = vmatpush1.bf16.msra.mxu0 0
    %6903 = vmatprep.subr.bf16.mxu0 0
    %6904 = vmatpush1.bf16.msra.mxu0 0
    %6905 = vmatprep.mubr.bf16.mxu0 0
    %6906 = vmatmul.mubr.bf16.gmra.mrb[0].mxu0 %v6424
    %v6907 = vpop.f32.mrb[0].mxu0
    %v6908 = vadd.f32 0.0, %v6907
    %v6909 = vpop.f32.mrb[0].mxu0
    %v6910 = vadd.f32 0.0, %v6909
    %v6911 = vpop.f32.mrb[0].mxu0
    %v6912 = vpop.f32.mrb[0].mxu0
    %6913 = vdwg.mxu0
    %v6914 = vadd.f32 %v6867, %v6908
    %v6915 = vadd.f32 %v6869, %v6910
    %v6916 = vadd.f32 %v6914, %v3479
    %v6917 = vadd.f32 %v6915, %v3483
    %s6918 = scalar_lea.vmem [#allocation9], 96
    %6919 = vst [vmem:[%s6918] sm:$0xff] %v6916
    %6920 = vst [vmem:[%s6918 + $0x8] sm:$0xff] %v6917
    %s6921 = sld [smem:[#allocation4 + $0x6]]
    %p6922 = scmp.eq.s32.totalorder %s6921, 0
    // Predicated region
    $region70: #{seq2seq_forward.1} parent=1 // pred_check
      %p6923 = pneg %p6922
    $region71: #{seq2seq_forward.1} parent=1 // pred_check_branch
      %6925 = sbr.rel (%p6923) target = $region73
    $region72: #{seq2seq_forward.1} parent=1 // pred_region
      %v6926 = vlaneseq
      %v6927 = vand.u32 %v6926, 127
      %v6928 = vadd.s32 %v6927, 128
      %v6929 = vmax.f32 %v6916, %v6917
      %6930 = vmax.xlane.f32.xlu0 %v6929
      %v6931 = vpop.xlane.xlu0 %6930
      %vm6932 = vcmp.ge.f32.partialorder %v6916, %v6931
      %vm6933 = vcmp.ge.f32.partialorder %v6917, %v6931
      %v6934 = vsel %vm6932, %v6927, 256
      %v6935 = vsel %vm6933, %v6928, 256
      %vm6936 = vcmp.lt.s32.totalorder %v6934, %v6935
      %v6937 = vsel %vm6936, %v6934, %v6935
      %v6938 = vand.u32 %v6937, 65535
      %v6939 = vshra.s32 %v6937, 16
      %v6940 = vcvt.s32.f32 %v6938
      %v6941 = vcvt.s32.f32 %v6939
      %6942 = vmin.xlane.f32.xlu0 %v6941
      %v6943 = vpop.xlane.xlu0 %6942
      %vm6944 = vcmp.eq.f32.partialorder %v6941, %v6943
      %v6945 = vsel %vm6944, %v6940, inf
      %6946 = vmin.xlane.f32.xlu0 %v6945
      %v6947 = vpop.xlane.xlu0 %6946
      %v6948 = vcvt.f32.s32 %v6947
      %v6949 = vcvt.f32.s32 %v6943
      %v6950 = vshll.u32 %v6949, 16
      %v6951 = vadd.s32 %v6950, %v6948
      %vm6952 = vcmp.eq.s32.totalorder %v6927, %v6951
      %vm6953 = vcmp.eq.s32.totalorder %v6928, %v6951
      %v6954 = vsel %vm6952, 1, 0
      %v6955 = vsel %vm6953, 1, 0
      %v6956 = vcvt.s32.f32 %v6954
      %v6957 = vcvt.s32.f32 %v6955
      %v6958 = vpack.c.bf16 %v6956, %v6956
      %v6959 = vpack.c.bf16 %v6957, %v6957
      %v6992 = vunpack.c.l.b16 %v2205
      %v6993 = vunpack.c.l.b16 %v2206
      %v6994 = vunpack.c.l.b16 %v2207
      %v6995 = vunpack.c.l.b16 %v2208
      %v6996 = vunpack.c.l.b16 %v2209
      %v6997 = vunpack.c.l.b16 %v2210
      %v6998 = vunpack.c.l.b16 %v2211
      %v6999 = vunpack.c.l.b16 %v2212
      %v7000 = vunpack.c.l.b16 %v2213
      %v7001 = vunpack.c.l.b16 %v2214
      %v7002 = vunpack.c.l.b16 %v2215
      %v7003 = vunpack.c.l.b16 %v2216
      %v7004 = vunpack.c.l.b16 %v2217
      %v7005 = vunpack.c.l.b16 %v2218
      %v7006 = vunpack.c.l.b16 %v2219
      %v7007 = vunpack.c.l.b16 %v2220
      %v7008 = vunpack.c.l.b16 %v2221
      %v7009 = vunpack.c.l.b16 %v2222
      %v7010 = vunpack.c.l.b16 %v2223
      %v7011 = vunpack.c.l.b16 %v2224
      %v7012 = vunpack.c.l.b16 %v2225
      %v7013 = vunpack.c.l.b16 %v2226
      %v7014 = vunpack.c.l.b16 %v2227
      %v7015 = vunpack.c.l.b16 %v2228
      %v7016 = vunpack.c.l.b16 %v2229
      %v7017 = vunpack.c.l.b16 %v2230
      %v7018 = vunpack.c.l.b16 %v2231
      %v7019 = vunpack.c.l.b16 %v2232
      %v7020 = vunpack.c.l.b16 %v2233
      %v7021 = vunpack.c.l.b16 %v2234
      %v7022 = vunpack.c.l.b16 %v2235
      %v7023 = vunpack.c.l.b16 %v2236
      %v7024 = vpack.c.b16 %v6993, %v6992
      %v7025 = vpack.c.b16 %v6995, %v6994
      %v7026 = vpack.c.b16 %v6997, %v6996
      %v7027 = vpack.c.b16 %v6999, %v6998
      %v7028 = vpack.c.b16 %v7001, %v7000
      %v7029 = vpack.c.b16 %v7003, %v7002
      %v7030 = vpack.c.b16 %v7005, %v7004
      %v7031 = vpack.c.b16 %v7007, %v7006
      %v7032 = vpack.c.b16 %v7009, %v7008
      %v7033 = vpack.c.b16 %v7011, %v7010
      %v7034 = vpack.c.b16 %v7013, %v7012
      %v7035 = vpack.c.b16 %v7015, %v7014
      %v7036 = vpack.c.b16 %v7017, %v7016
      %v7037 = vpack.c.b16 %v7019, %v7018
      %v7038 = vpack.c.b16 %v7021, %v7020
      %v7039 = vpack.c.b16 %v7023, %v7022
      %7056 = vmatprep.subr.bf16.mxu0 0
      %7057 = vmatpush1.bf16.msra.mxu0 %v7024
      %7058 = vmatprep.subr.bf16.mxu0 0
      %7059 = vmatpush1.bf16.msra.mxu0 %v7025
      %7060 = vmatprep.subr.bf16.mxu0 0
      %7061 = vmatpush1.bf16.msra.mxu0 %v7026
      %7062 = vmatprep.subr.bf16.mxu0 0
      %7063 = vmatpush1.bf16.msra.mxu0 %v7027
      %7064 = vmatprep.subr.bf16.mxu0 0
      %7065 = vmatpush1.bf16.msra.mxu0 %v7028
      %7066 = vmatprep.subr.bf16.mxu0 0
      %7067 = vmatpush1.bf16.msra.mxu0 %v7029
      %7068 = vmatprep.subr.bf16.mxu0 0
      %7069 = vmatpush1.bf16.msra.mxu0 %v7030
      %7070 = vmatprep.subr.bf16.mxu0 0
      %7071 = vmatpush1.bf16.msra.mxu0 %v7031
      %7072 = vmatprep.subr.bf16.mxu0 0
      %7073 = vmatpush1.bf16.msra.mxu0 %v7032
      %7074 = vmatprep.subr.bf16.mxu0 0
      %7075 = vmatpush1.bf16.msra.mxu0 %v7033
      %7076 = vmatprep.subr.bf16.mxu0 0
      %7077 = vmatpush1.bf16.msra.mxu0 %v7034
      %7078 = vmatprep.subr.bf16.mxu0 0
      %7079 = vmatpush1.bf16.msra.mxu0 %v7035
      %7080 = vmatprep.subr.bf16.mxu0 0
      %7081 = vmatpush1.bf16.msra.mxu0 %v7036
      %7082 = vmatprep.subr.bf16.mxu0 0
      %7083 = vmatpush1.bf16.msra.mxu0 %v7037
      %7084 = vmatprep.subr.bf16.mxu0 0
      %7085 = vmatpush1.bf16.msra.mxu0 %v7038
      %7086 = vmatprep.subr.bf16.mxu0 0
      %7087 = vmatpush1.bf16.msra.mxu0 %v7039
      %7088 = vmatprep.mubr.bf16.mxu0 %v6959
      %7089 = vmatmul.mubr.bf16.gmra.mrb[0].mxu0 %v6958
      %v7090 = vpop.f32.mrb[0].mxu0
      %v7091 = vadd.f32 0.0, %v7090
      %v7092 = vpop.f32.mrb[0].mxu0
      %v7093 = vpop.f32.mrb[0].mxu0
      %v7094 = vpop.f32.mrb[0].mxu0
      %7095 = vdwg.mxu0
      %7096 = vst [vmem:[#allocation3] sm:$0xff] %v7091
    $region73: #{seq2seq_forward.1} parent=1 // pred_fallthru
      _
    %s7097 = sld [smem:[#allocation4 + $0x6]]
    %p7098 = scmp.ne.s32.totalorder %s7097, 0
    %s7099 = scalar_select %p7098, 1, 0
    %s7100 = scvt.s32.f32 %s7099
    %s7101 = scalar_lea.vmem %s2, 48
    %v7102 = vld [vmem:[%s7101] sm:$0xff]
    %v7103 = vstv %s7100
    %v7104 = vmul.f32 %v7103, %v7102
    %s7105 = ssub.f32 1.0, %s7100
    %v7106 = vld [vmem:[#allocation3] sm:$0xff]
    %v7107 = vstv %s7105
    %v7108 = vmul.f32 %v7107, %v7106
    %v7109 = vadd.f32 %v7104, %v7108
    %v7110 = vpack.c.bf16 %v7109, %v7109
    %v7111 = vmul.f32 %v2051, %v6789
    %v7112 = vmul.f32 %v2052, %v6789
    %v7113 = vmul.f32 %v2053, %v6789
    %v7114 = vmul.f32 %v2054, %v6789
    %v7115 = vmul.f32 %v2055, %v6789
    %v7116 = vmul.f32 %v2056, %v6789
    %v7117 = vmul.f32 %v2057, %v6789
    %v7118 = vmul.f32 %v2058, %v6789
    %7119 = vadd.xlane.f32.xlu0 %v7111
    %v7120 = vpop.xlane.xlu0 %7119
    %7121 = vadd.xlane.f32.xlu0 %v7112
    %v7122 = vpop.xlane.xlu0 %7121
    %7123 = vadd.xlane.f32.xlu0 %v7113
    %v7124 = vpop.xlane.xlu0 %7123
    %7125 = vadd.xlane.f32.xlu0 %v7114
    %v7126 = vpop.xlane.xlu0 %7125
    %7127 = vadd.xlane.f32.xlu0 %v7115
    %v7128 = vpop.xlane.xlu0 %7127
    %7129 = vadd.xlane.f32.xlu0 %v7116
    %v7130 = vpop.xlane.xlu0 %7129
    %7131 = vadd.xlane.f32.xlu0 %v7117
    %v7132 = vpop.xlane.xlu0 %7131
    %7133 = vadd.xlane.f32.xlu0 %v7118
    %v7134 = vpop.xlane.xlu0 %7133
    %v7135 = vmax.f32 %v7120, %v7128
    %v7136 = vmax.f32 %v7122, %v7130
    %v7137 = vmax.f32 %v7124, %v7132
    %v7138 = vmax.f32 %v7126, %v7134
    %v7139 = vmax.f32 %v7135, %v7136
    %v7140 = vmax.f32 %v7137, %v7138
    %v7141 = vmax.f32 %v7139, %v7140
    %v7142 = vsub.f32 %v7120, %v7141
    %v7143 = vsub.f32 %v7122, %v7141
    %v7144 = vsub.f32 %v7124, %v7141
    %v7145 = vsub.f32 %v7126, %v7141
    %v7146 = vsub.f32 %v7128, %v7141
    %v7147 = vsub.f32 %v7130, %v7141
    %v7148 = vsub.f32 %v7132, %v7141
    %v7149 = vsub.f32 %v7134, %v7141
    %v7150 = vmul.f32 %v7142, 1.442695
    %v7151 = vpow.pop %v7150
    %v7152 = vmul.f32 %v7143, 1.442695
    %v7153 = vpow.pop %v7152
    %v7154 = vmul.f32 %v7144, 1.442695
    %v7155 = vpow.pop %v7154
    %v7156 = vmul.f32 %v7145, 1.442695
    %v7157 = vpow.pop %v7156
    %v7158 = vmul.f32 %v7146, 1.442695
    %v7159 = vpow.pop %v7158
    %v7160 = vmul.f32 %v7147, 1.442695
    %v7161 = vpow.pop %v7160
    %v7162 = vmul.f32 %v7148, 1.442695
    %v7163 = vpow.pop %v7162
    %v7164 = vmul.f32 %v7149, 1.442695
    %v7165 = vpow.pop %v7164
    %v7166 = vadd.f32 %v7151, %v7153
    %v7167 = vadd.f32 %v7166, %v7155
    %v7168 = vadd.f32 %v7167, %v7157
    %v7169 = vadd.f32 %v7168, %v7159
    %v7170 = vadd.f32 %v7169, %v7161
    %v7171 = vadd.f32 %v7170, %v7163
    %v7172 = vadd.f32 %v7171, %v7165
    %v7173 = vrcp.pop %v7172
    %v7174 = vmul.f32 %v7151, %v7173
    %v7175 = vmul.f32 %v7153, %v7173
    %v7176 = vmul.f32 %v7155, %v7173
    %v7177 = vmul.f32 %v7157, %v7173
    %v7178 = vmul.f32 %v7159, %v7173
    %v7179 = vmul.f32 %v7161, %v7173
    %v7180 = vmul.f32 %v7163, %v7173
    %v7181 = vmul.f32 %v7165, %v7173
    %v7182 = vmul.f32 %v7174, %v2051
    %v7183 = vmul.f32 %v7175, %v2052
    %v7184 = vmul.f32 %v7176, %v2053
    %v7185 = vmul.f32 %v7177, %v2054
    %v7186 = vmul.f32 %v7178, %v2055
    %v7187 = vmul.f32 %v7179, %v2056
    %v7188 = vmul.f32 %v7180, %v2057
    %v7189 = vmul.f32 %v7181, %v2058
    %v7190 = vadd.f32 %v7182, %v7183
    %v7191 = vadd.f32 %v7190, %v7184
    %v7192 = vadd.f32 %v7191, %v7185
    %v7193 = vadd.f32 %v7192, %v7186
    %v7194 = vadd.f32 %v7193, %v7187
    %v7195 = vadd.f32 %v7194, %v7188
    %v7196 = vadd.f32 %v7195, %v7189
    %v7197 = vpack.c.bf16 %v7196, %v7196
    %7198 = vmatprep.subr.bf16.mxu0 %v2426
    %7199 = vmatpush1.bf16.msra.mxu0 %v2425
    %7200 = vmatprep.subr.bf16.mxu0 %v2430
    %7201 = vmatpush1.bf16.msra.mxu0 %v2429
    %7202 = vmatprep.subr.bf16.mxu0 %v2434
    %7203 = vmatpush1.bf16.msra.mxu0 %v2433
    %7204 = vmatprep.subr.bf16.mxu0 %v2438
    %7205 = vmatpush1.bf16.msra.mxu0 %v2437
    %7206 = vmatprep.subr.bf16.mxu0 %v2442
    %7207 = vmatpush1.bf16.msra.mxu0 %v2441
    %7208 = vmatprep.subr.bf16.mxu0 %v2446
    %7209 = vmatpush1.bf16.msra.mxu0 %v2445
    %7210 = vmatprep.subr.bf16.mxu0 %v2450
    %7211 = vmatpush1.bf16.msra.mxu0 %v2449
    %7212 = vmatprep.subr.bf16.mxu0 %v2454
    %7213 = vmatpush1.bf16.msra.mxu0 %v2453
    %7214 = vmatprep.subr.bf16.mxu0 0
    %7215 = vmatpush1.bf16.msra.mxu0 0
    %7216 = vmatprep.subr.bf16.mxu0 0
    %7217 = vmatpush1.bf16.msra.mxu0 0
    %7218 = vmatprep.subr.bf16.mxu0 0
    %7219 = vmatpush1.bf16.msra.mxu0 0
    %7220 = vmatprep.subr.bf16.mxu0 0
    %7221 = vmatpush1.bf16.msra.mxu0 0
    %7222 = vmatprep.subr.bf16.mxu0 0
    %7223 = vmatpush1.bf16.msra.mxu0 0
    %7224 = vmatprep.subr.bf16.mxu0 0
    %7225 = vmatpush1.bf16.msra.mxu0 0
    %7226 = vmatprep.subr.bf16.mxu0 0
    %7227 = vmatpush1.bf16.msra.mxu0 0
    %7228 = vmatprep.subr.bf16.mxu0 0
    %7229 = vmatpush1.bf16.msra.mxu0 0
    %7230 = vmatprep.mubr.bf16.mxu0 0
    %7231 = vmatmul.mubr.bf16.gmra.mrb[0].mxu0 %v7197
    %v7232 = vpop.f32.mrb[0].mxu0
    %v7233 = vadd.f32 0.0, %v7232
    %v7234 = vpop.f32.mrb[0].mxu0
    %v7235 = vadd.f32 0.0, %v7234
    %v7236 = vpop.f32.mrb[0].mxu0
    %v7237 = vpop.f32.mrb[0].mxu0
    %7238 = vdwg.mxu0
    %7239 = vmatprep.subr.bf16.mxu0 %v2428
    %7240 = vmatpush1.bf16.msra.mxu0 %v2427
    %7241 = vmatprep.subr.bf16.mxu0 %v2432
    %7242 = vmatpush1.bf16.msra.mxu0 %v2431
    %7243 = vmatprep.subr.bf16.mxu0 %v2436
    %7244 = vmatpush1.bf16.msra.mxu0 %v2435
    %7245 = vmatprep.subr.bf16.mxu0 %v2440
    %7246 = vmatpush1.bf16.msra.mxu0 %v2439
    %7247 = vmatprep.subr.bf16.mxu0 %v2444
    %7248 = vmatpush1.bf16.msra.mxu0 %v2443
    %7249 = vmatprep.subr.bf16.mxu0 %v2448
    %7250 = vmatpush1.bf16.msra.mxu0 %v2447
    %7251 = vmatprep.subr.bf16.mxu0 %v2452
    %7252 = vmatpush1.bf16.msra.mxu0 %v2451
    %7253 = vmatprep.subr.bf16.mxu0 %v2456
    %7254 = vmatpush1.bf16.msra.mxu0 %v2455
    %7255 = vmatprep.subr.bf16.mxu0 0
    %7256 = vmatpush1.bf16.msra.mxu0 0
    %7257 = vmatprep.subr.bf16.mxu0 0
    %7258 = vmatpush1.bf16.msra.mxu0 0
    %7259 = vmatprep.subr.bf16.mxu0 0
    %7260 = vmatpush1.bf16.msra.mxu0 0
    %7261 = vmatprep.subr.bf16.mxu0 0
    %7262 = vmatpush1.bf16.msra.mxu0 0
    %7263 = vmatprep.subr.bf16.mxu0 0
    %7264 = vmatpush1.bf16.msra.mxu0 0
    %7265 = vmatprep.subr.bf16.mxu0 0
    %7266 = vmatpush1.bf16.msra.mxu0 0
    %7267 = vmatprep.subr.bf16.mxu0 0
    %7268 = vmatpush1.bf16.msra.mxu0 0
    %7269 = vmatprep.subr.bf16.mxu0 0
    %7270 = vmatpush1.bf16.msra.mxu0 0
    %7271 = vmatprep.mubr.bf16.mxu0 0
    %7272 = vmatmul.mubr.bf16.gmra.mrb[0].mxu0 %v7197
    %v7273 = vpop.f32.mrb[0].mxu0
    %v7274 = vadd.f32 0.0, %v7273
    %v7275 = vpop.f32.mrb[0].mxu0
    %v7276 = vadd.f32 0.0, %v7275
    %v7277 = vpop.f32.mrb[0].mxu0
    %v7278 = vpop.f32.mrb[0].mxu0
    %7279 = vdwg.mxu0
    %7280 = vmatprep.subr.bf16.mxu0 %v2668
    %7281 = vmatpush1.bf16.msra.mxu0 %v2667
    %7282 = vmatprep.subr.bf16.mxu0 %v2672
    %7283 = vmatpush1.bf16.msra.mxu0 %v2671
    %7284 = vmatprep.subr.bf16.mxu0 %v2676
    %7285 = vmatpush1.bf16.msra.mxu0 %v2675
    %7286 = vmatprep.subr.bf16.mxu0 %v2680
    %7287 = vmatpush1.bf16.msra.mxu0 %v2679
    %7288 = vmatprep.subr.bf16.mxu0 %v2684
    %7289 = vmatpush1.bf16.msra.mxu0 %v2683
    %7290 = vmatprep.subr.bf16.mxu0 %v2688
    %7291 = vmatpush1.bf16.msra.mxu0 %v2687
    %7292 = vmatprep.subr.bf16.mxu0 %v2692
    %7293 = vmatpush1.bf16.msra.mxu0 %v2691
    %7294 = vmatprep.subr.bf16.mxu0 %v2696
    %7295 = vmatpush1.bf16.msra.mxu0 %v2695
    %7296 = vmatprep.subr.bf16.mxu0 0
    %7297 = vmatpush1.bf16.msra.mxu0 0
    %7298 = vmatprep.subr.bf16.mxu0 0
    %7299 = vmatpush1.bf16.msra.mxu0 0
    %7300 = vmatprep.subr.bf16.mxu0 0
    %7301 = vmatpush1.bf16.msra.mxu0 0
    %7302 = vmatprep.subr.bf16.mxu0 0
    %7303 = vmatpush1.bf16.msra.mxu0 0
    %7304 = vmatprep.subr.bf16.mxu0 0
    %7305 = vmatpush1.bf16.msra.mxu0 0
    %7306 = vmatprep.subr.bf16.mxu0 0
    %7307 = vmatpush1.bf16.msra.mxu0 0
    %7308 = vmatprep.subr.bf16.mxu0 0
    %7309 = vmatpush1.bf16.msra.mxu0 0
    %7310 = vmatprep.subr.bf16.mxu0 0
    %7311 = vmatpush1.bf16.msra.mxu0 0
    %7312 = vmatprep.mubr.bf16.mxu0 0
    %7313 = vmatmul.mubr.bf16.gmra.mrb[0].mxu0 %v7110
    %v7314 = vpop.f32.mrb[0].mxu0
    %v7315 = vadd.f32 %v7233, %v7314
    %v7316 = vpop.f32.mrb[0].mxu0
    %v7317 = vadd.f32 %v7235, %v7316
    %v7318 = vpop.f32.mrb[0].mxu0
    %v7319 = vpop.f32.mrb[0].mxu0
    %7320 = vdwg.mxu0
    %7321 = vmatprep.subr.bf16.mxu0 %v2670
    %7322 = vmatpush1.bf16.msra.mxu0 %v2669
    %7323 = vmatprep.subr.bf16.mxu0 %v2674
    %7324 = vmatpush1.bf16.msra.mxu0 %v2673
    %7325 = vmatprep.subr.bf16.mxu0 %v2678
    %7326 = vmatpush1.bf16.msra.mxu0 %v2677
    %7327 = vmatprep.subr.bf16.mxu0 %v2682
    %7328 = vmatpush1.bf16.msra.mxu0 %v2681
    %7329 = vmatprep.subr.bf16.mxu0 %v2686
    %7330 = vmatpush1.bf16.msra.mxu0 %v2685
    %7331 = vmatprep.subr.bf16.mxu0 %v2690
    %7332 = vmatpush1.bf16.msra.mxu0 %v2689
    %7333 = vmatprep.subr.bf16.mxu0 %v2694
    %7334 = vmatpush1.bf16.msra.mxu0 %v2693
    %7335 = vmatprep.subr.bf16.mxu0 %v2698
    %7336 = vmatpush1.bf16.msra.mxu0 %v2697
    %7337 = vmatprep.subr.bf16.mxu0 0
    %7338 = vmatpush1.bf16.msra.mxu0 0
    %7339 = vmatprep.subr.bf16.mxu0 0
    %7340 = vmatpush1.bf16.msra.mxu0 0
    %7341 = vmatprep.subr.bf16.mxu0 0
    %7342 = vmatpush1.bf16.msra.mxu0 0
    %7343 = vmatprep.subr.bf16.mxu0 0
    %7344 = vmatpush1.bf16.msra.mxu0 0
    %7345 = vmatprep.subr.bf16.mxu0 0
    %7346 = vmatpush1.bf16.msra.mxu0 0
    %7347 = vmatprep.subr.bf16.mxu0 0
    %7348 = vmatpush1.bf16.msra.mxu0 0
    %7349 = vmatprep.subr.bf16.mxu0 0
    %7350 = vmatpush1.bf16.msra.mxu0 0
    %7351 = vmatprep.subr.bf16.mxu0 0
    %7352 = vmatpush1.bf16.msra.mxu0 0
    %7353 = vmatprep.mubr.bf16.mxu0 0
    %7354 = vmatmul.mubr.bf16.gmra.mrb[0].mxu0 %v7110
    %v7355 = vpop.f32.mrb[0].mxu0
    %v7356 = vadd.f32 %v7274, %v7355
    %v7357 = vpop.f32.mrb[0].mxu0
    %v7358 = vadd.f32 %v7276, %v7357
    %v7359 = vpop.f32.mrb[0].mxu0
    %v7360 = vpop.f32.mrb[0].mxu0
    %7361 = vdwg.mxu0
    %7362 = vmatprep.subr.bf16.mxu0 %v2911
    %7363 = vmatpush1.bf16.msra.mxu0 %v2910
    %7364 = vmatprep.subr.bf16.mxu0 %v2915
    %7365 = vmatpush1.bf16.msra.mxu0 %v2914
    %7366 = vmatprep.subr.bf16.mxu0 %v2919
    %7367 = vmatpush1.bf16.msra.mxu0 %v2918
    %7368 = vmatprep.subr.bf16.mxu0 %v2923
    %7369 = vmatpush1.bf16.msra.mxu0 %v2922
    %7370 = vmatprep.subr.bf16.mxu0 %v2927
    %7371 = vmatpush1.bf16.msra.mxu0 %v2926
    %7372 = vmatprep.subr.bf16.mxu0 %v2931
    %7373 = vmatpush1.bf16.msra.mxu0 %v2930
    %7374 = vmatprep.subr.bf16.mxu0 %v2935
    %7375 = vmatpush1.bf16.msra.mxu0 %v2934
    %7376 = vmatprep.subr.bf16.mxu0 %v2939
    %7377 = vmatpush1.bf16.msra.mxu0 %v2938
    %7378 = vmatprep.subr.bf16.mxu0 0
    %7379 = vmatpush1.bf16.msra.mxu0 0
    %7380 = vmatprep.subr.bf16.mxu0 0
    %7381 = vmatpush1.bf16.msra.mxu0 0
    %7382 = vmatprep.subr.bf16.mxu0 0
    %7383 = vmatpush1.bf16.msra.mxu0 0
    %7384 = vmatprep.subr.bf16.mxu0 0
    %7385 = vmatpush1.bf16.msra.mxu0 0
    %7386 = vmatprep.subr.bf16.mxu0 0
    %7387 = vmatpush1.bf16.msra.mxu0 0
    %7388 = vmatprep.subr.bf16.mxu0 0
    %7389 = vmatpush1.bf16.msra.mxu0 0
    %7390 = vmatprep.subr.bf16.mxu0 0
    %7391 = vmatpush1.bf16.msra.mxu0 0
    %7392 = vmatprep.subr.bf16.mxu0 0
    %7393 = vmatpush1.bf16.msra.mxu0 0
    %7394 = vmatprep.mubr.bf16.mxu0 0
    %7395 = vmatmul.mubr.bf16.gmra.mrb[0].mxu0 %v6790
    %v7396 = vpop.f32.mrb[0].mxu0
    %v7397 = vadd.f32 0.0, %v7396
    %v7398 = vpop.f32.mrb[0].mxu0
    %v7399 = vadd.f32 0.0, %v7398
    %v7400 = vpop.f32.mrb[0].mxu0
    %v7401 = vpop.f32.mrb[0].mxu0
    %7402 = vdwg.mxu0
    %7403 = vmatprep.subr.bf16.mxu0 %v2913
    %7404 = vmatpush1.bf16.msra.mxu0 %v2912
    %7405 = vmatprep.subr.bf16.mxu0 %v2917
    %7406 = vmatpush1.bf16.msra.mxu0 %v2916
    %7407 = vmatprep.subr.bf16.mxu0 %v2921
    %7408 = vmatpush1.bf16.msra.mxu0 %v2920
    %7409 = vmatprep.subr.bf16.mxu0 %v2925
    %7410 = vmatpush1.bf16.msra.mxu0 %v2924
    %7411 = vmatprep.subr.bf16.mxu0 %v2929
    %7412 = vmatpush1.bf16.msra.mxu0 %v2928
    %7413 = vmatprep.subr.bf16.mxu0 %v2933
    %7414 = vmatpush1.bf16.msra.mxu0 %v2932
    %7415 = vmatprep.subr.bf16.mxu0 %v2937
    %7416 = vmatpush1.bf16.msra.mxu0 %v2936
    %7417 = vmatprep.subr.bf16.mxu0 %v2941
    %7418 = vmatpush1.bf16.msra.mxu0 %v2940
    %7419 = vmatprep.subr.bf16.mxu0 0
    %7420 = vmatpush1.bf16.msra.mxu0 0
    %7421 = vmatprep.subr.bf16.mxu0 0
    %7422 = vmatpush1.bf16.msra.mxu0 0
    %7423 = vmatprep.subr.bf16.mxu0 0
    %7424 = vmatpush1.bf16.msra.mxu0 0
    %7425 = vmatprep.subr.bf16.mxu0 0
    %7426 = vmatpush1.bf16.msra.mxu0 0
    %7427 = vmatprep.subr.bf16.mxu0 0
    %7428 = vmatpush1.bf16.msra.mxu0 0
    %7429 = vmatprep.subr.bf16.mxu0 0
    %7430 = vmatpush1.bf16.msra.mxu0 0
    %7431 = vmatprep.subr.bf16.mxu0 0
    %7432 = vmatpush1.bf16.msra.mxu0 0
    %7433 = vmatprep.subr.bf16.mxu0 0
    %7434 = vmatpush1.bf16.msra.mxu0 0
    %7435 = vmatprep.mubr.bf16.mxu0 0
    %7436 = vmatmul.mubr.bf16.gmra.mrb[0].mxu0 %v6790
    %v7437 = vpop.f32.mrb[0].mxu0
    %v7438 = vadd.f32 0.0, %v7437
    %v7439 = vpop.f32.mrb[0].mxu0
    %v7440 = vadd.f32 0.0, %v7439
    %v7441 = vpop.f32.mrb[0].mxu0
    %v7442 = vpop.f32.mrb[0].mxu0
    %7443 = vdwg.mxu0
    %v7444 = vadd.f32 %v7315, %v7397
    %v7445 = vadd.f32 %v7317, %v7399
    %v7446 = vadd.f32 %v7356, %v7438
    %v7447 = vadd.f32 %v7358, %v7440
    %v7448 = vadd.f32 %v7444, %v3064
    %v7449 = vadd.f32 %v7445, %v3068
    %v7450 = vadd.f32 %v7446, %v3072
    %v7451 = vadd.f32 %v7447, %v3076
    %v7452 = vxor.u32 %v7448, 2147483648
    %v7453 = vmul.f32 %v7452, 1.442695
    %v7454 = vpow.pop %v7453
    %v7455 = vadd.f32 %v7454, 1.0
    %v7456 = vrcp.pop %v7455
    %v7457 = vmul.f32 1.0, %v7456
    %v7458 = vxor.u32 %v7449, 2147483648
    %v7459 = vmul.f32 %v7458, 1.442695
    %v7460 = vpow.pop %v7459
    %v7461 = vadd.f32 %v7460, 1.0
    %v7462 = vrcp.pop %v7461
    %v7463 = vmul.f32 1.0, %v7462
    %v7464 = vtanh.pop %v7450
    %v7465 = vxor.u32 %v7451, 2147483648
    %v7466 = vmul.f32 %v7465, 1.442695
    %v7467 = vpow.pop %v7466
    %v7468 = vadd.f32 %v7467, 1.0
    %v7469 = vrcp.pop %v7468
    %v7470 = vmul.f32 1.0, %v7469
    %v7471 = vmul.f32 %v7463, %v6787
    %v7472 = vmul.f32 %v7457, %v7464
    %v7473 = vadd.f32 %v7471, %v7472
    %v7474 = vtanh.pop %v7473
    %v7475 = vmul.f32 %v7470, %v7474
    %v7476 = vpack.c.bf16 %v7475, %v7475
    %7477 = vmatprep.subr.bf16.mxu0 %v3159
    %7478 = vmatpush1.bf16.msra.mxu0 %v3158
    %7479 = vmatprep.subr.bf16.mxu0 %v3161
    %7480 = vmatpush1.bf16.msra.mxu0 %v3160
    %7481 = vmatprep.subr.bf16.mxu0 %v3163
    %7482 = vmatpush1.bf16.msra.mxu0 %v3162
    %7483 = vmatprep.subr.bf16.mxu0 %v3165
    %7484 = vmatpush1.bf16.msra.mxu0 %v3164
    %7485 = vmatprep.subr.bf16.mxu0 %v3167
    %7486 = vmatpush1.bf16.msra.mxu0 %v3166
    %7487 = vmatprep.subr.bf16.mxu0 %v3169
    %7488 = vmatpush1.bf16.msra.mxu0 %v3168
    %7489 = vmatprep.subr.bf16.mxu0 %v3171
    %7490 = vmatpush1.bf16.msra.mxu0 %v3170
    %7491 = vmatprep.subr.bf16.mxu0 %v3173
    %7492 = vmatpush1.bf16.msra.mxu0 %v3172
    %7493 = vmatprep.subr.bf16.mxu0 0
    %7494 = vmatpush1.bf16.msra.mxu0 0
    %7495 = vmatprep.subr.bf16.mxu0 0
    %7496 = vmatpush1.bf16.msra.mxu0 0
    %7497 = vmatprep.subr.bf16.mxu0 0
    %7498 = vmatpush1.bf16.msra.mxu0 0
    %7499 = vmatprep.subr.bf16.mxu0 0
    %7500 = vmatpush1.bf16.msra.mxu0 0
    %7501 = vmatprep.subr.bf16.mxu0 0
    %7502 = vmatpush1.bf16.msra.mxu0 0
    %7503 = vmatprep.subr.bf16.mxu0 0
    %7504 = vmatpush1.bf16.msra.mxu0 0
    %7505 = vmatprep.subr.bf16.mxu0 0
    %7506 = vmatpush1.bf16.msra.mxu0 0
    %7507 = vmatprep.subr.bf16.mxu0 0
    %7508 = vmatpush1.bf16.msra.mxu0 0
    %7509 = vmatprep.mubr.bf16.mxu0 0
    %7510 = vmatmul.mubr.bf16.gmra.mrb[0].mxu0 %v7197
    %v7511 = vpop.f32.mrb[0].mxu0
    %v7512 = vadd.f32 0.0, %v7511
    %v7513 = vpop.f32.mrb[0].mxu0
    %v7514 = vadd.f32 0.0, %v7513
    %v7515 = vpop.f32.mrb[0].mxu0
    %v7516 = vpop.f32.mrb[0].mxu0
    %7517 = vdwg.mxu0
    %7518 = vmatprep.subr.bf16.mxu0 %v3280
    %7519 = vmatpush1.bf16.msra.mxu0 %v3279
    %7520 = vmatprep.subr.bf16.mxu0 %v3282
    %7521 = vmatpush1.bf16.msra.mxu0 %v3281
    %7522 = vmatprep.subr.bf16.mxu0 %v3284
    %7523 = vmatpush1.bf16.msra.mxu0 %v3283
    %7524 = vmatprep.subr.bf16.mxu0 %v3286
    %7525 = vmatpush1.bf16.msra.mxu0 %v3285
    %7526 = vmatprep.subr.bf16.mxu0 %v3288
    %7527 = vmatpush1.bf16.msra.mxu0 %v3287
    %7528 = vmatprep.subr.bf16.mxu0 %v3290
    %7529 = vmatpush1.bf16.msra.mxu0 %v3289
    %7530 = vmatprep.subr.bf16.mxu0 %v3292
    %7531 = vmatpush1.bf16.msra.mxu0 %v3291
    %7532 = vmatprep.subr.bf16.mxu0 %v3294
    %7533 = vmatpush1.bf16.msra.mxu0 %v3293
    %7534 = vmatprep.subr.bf16.mxu0 0
    %7535 = vmatpush1.bf16.msra.mxu0 0
    %7536 = vmatprep.subr.bf16.mxu0 0
    %7537 = vmatpush1.bf16.msra.mxu0 0
    %7538 = vmatprep.subr.bf16.mxu0 0
    %7539 = vmatpush1.bf16.msra.mxu0 0
    %7540 = vmatprep.subr.bf16.mxu0 0
    %7541 = vmatpush1.bf16.msra.mxu0 0
    %7542 = vmatprep.subr.bf16.mxu0 0
    %7543 = vmatpush1.bf16.msra.mxu0 0
    %7544 = vmatprep.subr.bf16.mxu0 0
    %7545 = vmatpush1.bf16.msra.mxu0 0
    %7546 = vmatprep.subr.bf16.mxu0 0
    %7547 = vmatpush1.bf16.msra.mxu0 0
    %7548 = vmatprep.subr.bf16.mxu0 0
    %7549 = vmatpush1.bf16.msra.mxu0 0
    %7550 = vmatprep.mubr.bf16.mxu0 0
    %7551 = vmatmul.mubr.bf16.gmra.mrb[0].mxu0 %v7476
    %v7552 = vpop.f32.mrb[0].mxu0
    %v7553 = vadd.f32 %v7512, %v7552
    %v7554 = vpop.f32.mrb[0].mxu0
    %v7555 = vadd.f32 %v7514, %v7554
    %v7556 = vpop.f32.mrb[0].mxu0
    %v7557 = vpop.f32.mrb[0].mxu0
    %7558 = vdwg.mxu0
    %7559 = vmatprep.subr.bf16.mxu0 %v3401
    %7560 = vmatpush1.bf16.msra.mxu0 %v3400
    %7561 = vmatprep.subr.bf16.mxu0 %v3403
    %7562 = vmatpush1.bf16.msra.mxu0 %v3402
    %7563 = vmatprep.subr.bf16.mxu0 %v3405
    %7564 = vmatpush1.bf16.msra.mxu0 %v3404
    %7565 = vmatprep.subr.bf16.mxu0 %v3407
    %7566 = vmatpush1.bf16.msra.mxu0 %v3406
    %7567 = vmatprep.subr.bf16.mxu0 %v3409
    %7568 = vmatpush1.bf16.msra.mxu0 %v3408
    %7569 = vmatprep.subr.bf16.mxu0 %v3411
    %7570 = vmatpush1.bf16.msra.mxu0 %v3410
    %7571 = vmatprep.subr.bf16.mxu0 %v3413
    %7572 = vmatpush1.bf16.msra.mxu0 %v3412
    %7573 = vmatprep.subr.bf16.mxu0 %v3415
    %7574 = vmatpush1.bf16.msra.mxu0 %v3414
    %7575 = vmatprep.subr.bf16.mxu0 0
    %7576 = vmatpush1.bf16.msra.mxu0 0
    %7577 = vmatprep.subr.bf16.mxu0 0
    %7578 = vmatpush1.bf16.msra.mxu0 0
    %7579 = vmatprep.subr.bf16.mxu0 0
    %7580 = vmatpush1.bf16.msra.mxu0 0
    %7581 = vmatprep.subr.bf16.mxu0 0
    %7582 = vmatpush1.bf16.msra.mxu0 0
    %7583 = vmatprep.subr.bf16.mxu0 0
    %7584 = vmatpush1.bf16.msra.mxu0 0
    %7585 = vmatprep.subr.bf16.mxu0 0
    %7586 = vmatpush1.bf16.msra.mxu0 0
    %7587 = vmatprep.subr.bf16.mxu0 0
    %7588 = vmatpush1.bf16.msra.mxu0 0
    %7589 = vmatprep.subr.bf16.mxu0 0
    %7590 = vmatpush1.bf16.msra.mxu0 0
    %7591 = vmatprep.mubr.bf16.mxu0 0
    %7592 = vmatmul.mubr.bf16.gmra.mrb[0].mxu0 %v7110
    %v7593 = vpop.f32.mrb[0].mxu0
    %v7594 = vadd.f32 0.0, %v7593
    %v7595 = vpop.f32.mrb[0].mxu0
    %v7596 = vadd.f32 0.0, %v7595
    %v7597 = vpop.f32.mrb[0].mxu0
    %v7598 = vpop.f32.mrb[0].mxu0
    %7599 = vdwg.mxu0
    %v7600 = vadd.f32 %v7553, %v7594
    %v7601 = vadd.f32 %v7555, %v7596
    %v7602 = vadd.f32 %v7600, %v3479
    %v7603 = vadd.f32 %v7601, %v3483
    %s7604 = scalar_lea.vmem [#allocation9], 112
    %7605 = vst [vmem:[%s7604] sm:$0xff] %v7602
    %7606 = vst [vmem:[%s7604 + $0x8] sm:$0xff] %v7603
    // Predicated region
    $region74: #{seq2seq_forward.1} parent=1 // pred_check
      _
    $region75: #{seq2seq_forward.1} parent=1 // pred_check_branch
      %7608 = sbr.rel (0) target = $region77
    $region76: #{seq2seq_forward.1} parent=1 // pred_region
      %s7610 = ssub.s32 2048, 2048
      %7611 = vsyncadd [#allocation6], %s7610
      %s7612 = sshll.u32 [#allocation9], 4
      %s7613 = int_to_ptr.vmem [resolvable:$true] %s7612
      %7618 = dma.vmem_to_hbm [thread:$0]  %s7613, 2048, %s10, [#allocation6], 256, 256, 16
    $region77: #{seq2seq_forward.1} parent=1 // pred_fallthru
      _
    // Predicated region
    $region78: #{seq2seq_forward.1} parent=1 // pred_check
      _
    $region79: #{seq2seq_forward.1} parent=1 // pred_check_branch
      %7620 = sbr.rel (0) target = $region81
    $region80: #{seq2seq_forward.1} parent=1 // pred_region
      %7621 = dma.done [#allocation6], 2048
    $region81: #{seq2seq_forward.1} parent=1 // pred_fallthru
      _
    %7622 = vsyncpa [#allocation5], 1
    %7623 = vsyncpa [#allocation6], 1
    %7624 = vsyncpa [#allocation7], 1

</llo_original>
